<compile_context>
chip_gen: v7x
topology: tpu7x:2x2x1
jax: 0.10.0
libtpu: 0.0.40
codegen_flags: <defaults>
</compile_context>

<pallas_src>
import numpy as np
import jax
import jax.numpy as jnp
from jax.experimental import pallas as pl
from jax.experimental.pallas import tpu as pltpu

POOL_SIZES = (1, 2, 3, 6)
OUT_CH = 512
KMAX = max(POOL_SIZES) ** 2  # 36 pooled pixels max (zero-padded for smaller scales)


# ----------------------------------------------------------------------------
# Host glue: exact linear operators for adaptive avg-pool and bilinear
# interpolation (align_corners=True), matching PyTorch semantics.
# ----------------------------------------------------------------------------
def pool_matrix(in_size: int, out_size: int) -> np.ndarray:
    """AdaptiveAvgPool1d(out_size) as a (out_size, in_size) matrix (PyTorch bins)."""
    P = np.zeros((out_size, in_size), np.float32)
    for i in range(out_size):
        start = (i * in_size) // out_size
        end = -((-(i + 1) * in_size) // out_size)  # ceil((i+1)*in/out)
        P[i, start:end] = 1.0 / (end - start)
    return P


def interp_matrix(out_size: int, in_size: int) -> np.ndarray:
    """Bilinear (1-D linear) interpolation, align_corners=True, as (out, in) matrix."""
    U = np.zeros((out_size, in_size), np.float32)
    if in_size == 1:
        U[:, 0] = 1.0
        return U
    for y in range(out_size):
        src = y * (in_size - 1) / (out_size - 1) if out_size > 1 else 0.0
        y0 = min(int(np.floor(src)), in_size - 1)
        y1 = min(y0 + 1, in_size - 1)
        f = src - y0
        U[y, y0] += 1.0 - f
        U[y, y1] += f
    return U


def build_scale_operators(H: int, W: int):
    """Per scale s:
       PT_s (H*W, KMAX) = P_s^T  pooling operator, transposed (cols >= k^2 are zero)
       UT_s (KMAX, H*W) = U_s^T  upsample operator, transposed (rows >= k^2 are zero)
    Both padded to KMAX so a single kernel handles every scale."""
    HW = H * W
    S = len(POOL_SIZES)
    PT_all = np.zeros((S, HW, KMAX), np.float32)
    UT_all = np.zeros((S, KMAX, HW), np.float32)
    PU = []
    for s, k in enumerate(POOL_SIZES):
        Ph, Pw = pool_matrix(H, k), pool_matrix(W, k)        # (k, H), (k, W)
        Uh, Uw = interp_matrix(H, k), interp_matrix(W, k)    # (H, k), (W, k)
        PT_all[s, :, : k * k] = np.kron(Ph, Pw).T            # (H*W, k*k)
        UT_all[s, : k * k, :] = np.kron(Uh, Uw).T            # (k*k, H*W)
        PU.append((Ph, Pw, Uh, Uw))
    return jnp.asarray(PT_all), jnp.asarray(UT_all), PU


# ----------------------------------------------------------------------------
# Pallas kernel: one batch element per grid point; all scales unrolled inside.
# ----------------------------------------------------------------------------
def ppm_kernel(x_ref, pt_ref, ut_ref, w_ref, b_ref, o_ref):
    C = x_ref.shape[1]            # input channels
    S, _, _ = pt_ref.shape        # number of pyramid scales
    out_ch = w_ref.shape[1]       # 512

    x2 = x_ref[0]                 # (C, HW) input feature map, spatial flattened

    # Pass-through: the original features occupy the first C output channels
    # (this replaces the wrapper-level concatenate).
    o_ref[0, :C, :] = x2

    # Static unroll over the four pyramid scales.
    for s in range(S):
        PT = pt_ref[s]            # (HW, KMAX)  pooling operator^T  (zero-padded cols)
        UT = ut_ref[s]            # (KMAX, HW)  upsample operator^T (zero-padded rows)
        Ws = w_ref[s]             # (512, C)    1x1 conv weight (natural layout)
        bs = b_ref[s]             # (512, 1)    1x1 conv bias

        # adaptive avg pool:  pooled[c, j] = sum_p x2[c, p] * PT[p, j]
        pooled = jnp.dot(x2, PT, preferred_element_type=jnp.float32)       # (C, KMAX)
        # 1x1 conv over channels; bias added in pooled space (interp rows sum
        # to 1; padded pooled cols get only the bias, killed by UT's zero rows).
        conv = jnp.dot(Ws, pooled, preferred_element_type=jnp.float32) + bs  # (512, KMAX)
        # bilinear upsample (align_corners=True):  out[o, p] = sum_j conv[o, j] * UT[j, p]
        out_s = jnp.dot(conv, UT, preferred_element_type=jnp.float32)      # (512, HW)

        lo = C + s * out_ch
        o_ref[0, lo:lo + out_ch, :] = out_s.astype(o_ref.dtype)


def ppm_forward(x, PT_all, UT_all, W_all, b_all):
    """x: (N, C, H, W) f32 -> (N, C + 4*512, H, W) f32 == torch.cat([x, x1..x4], 1)."""
    N, C, H, W = x.shape
    HW = H * W
    S = PT_all.shape[0]
    C_total = C + S * OUT_CH
    x_flat = x.reshape(N, C, HW)

    flops = 2 * N * S * (C * HW * KMAX + OUT_CH * C * KMAX + OUT_CH * KMAX * HW)
    bytes_accessed = 4 * (x_flat.size + PT_all.size + UT_all.size
                          + W_all.size + b_all.size + N * C_total * HW)

    out = pl.pallas_call(
        ppm_kernel,
        out_shape=jax.ShapeDtypeStruct((N, C_total, HW), jnp.float32),
        grid_spec=pltpu.PrefetchScalarGridSpec(
            num_scalar_prefetch=0,
            grid=(N,),
            in_specs=[
                pl.BlockSpec((1, C, HW), lambda n: (n, 0, 0)),          # x (per batch)
                pl.BlockSpec((S, HW, KMAX), lambda n: (0, 0, 0)),       # pool ops^T (resident)
                pl.BlockSpec((S, KMAX, HW), lambda n: (0, 0, 0)),       # upsample ops^T (resident)
                pl.BlockSpec((S, OUT_CH, C), lambda n: (0, 0, 0)),      # conv weights (resident)
                pl.BlockSpec((S, OUT_CH, 1), lambda n: (0, 0, 0)),      # conv biases (resident)
            ],
            # Full channel extent per batch: x and all four pyramid slabs land in
            # their final channel positions; no wrapper concatenate needed.
            out_specs=pl.BlockSpec((1, C_total, HW), lambda n: (n, 0, 0)),
        ),
        compiler_params=pltpu.CompilerParams(
            dimension_semantics=("parallel",)),     # N=2 steps -> one per v7x TensorCore
        cost_estimate=pl.CostEstimate(
            flops=int(flops), transcendentals=0, bytes_accessed=int(bytes_accessed)),
    )(x_flat, PT_all, UT_all, W_all, b_all)

    return out.reshape(N, C_total, H, W)


# ----------------------------------------------------------------------------
# Pure-JAX reference mirroring the PyTorch op order (pool -> conv -> interp -> cat).
# ----------------------------------------------------------------------------
def ppm_reference(x, PU, W_all, b_all):
    outs = [x]
    for s in range(len(POOL_SIZES)):
        Ph, Pw, Uh, Uw = (jnp.asarray(m) for m in PU[s])
        pooled = jnp.einsum('ih,nchw,jw->ncij', Ph, x, Pw)
        conv = (jnp.einsum('oc,ncij->noij', W_all[s], pooled)
                + b_all[s].reshape(1, OUT_CH, 1, 1))
        up = jnp.einsum('hi,noij,wj->nohw', Uh, conv, Uw)
        outs.append(up)
    return jnp.concatenate(outs, axis=1)


if __name__ == "__main__":
    N, C, H, W = 2, 4, 16, 16

    key = jax.random.PRNGKey(0)
    kx, kw, kb = jax.random.split(key, 3)
    x = jax.random.normal(kx, (N, C, H, W), dtype=jnp.float32)

    # Deterministic parameter init: 4 independent 1x1 convs (C -> 512), stored in
    # the natural (out, in) layout (S, 512, C) plus bias (S, 512, 1).
    bound = 1.0 / np.sqrt(C)
    W_all = jax.random.uniform(kw, (len(POOL_SIZES), OUT_CH, C),
                               minval=-bound, maxval=bound, dtype=jnp.float32)
    b_all = jax.random.uniform(kb, (len(POOL_SIZES), OUT_CH, 1),
                               minval=-bound, maxval=bound, dtype=jnp.float32)

    PT_all, UT_all, PU = build_scale_operators(H, W)

    out = jax.block_until_ready(ppm_forward(x, PT_all, UT_all, W_all, b_all))
    assert out.shape == (N, C + len(POOL_SIZES) * OUT_CH, H, W), out.shape

    ref = jax.block_until_ready(ppm_reference(x, PU, W_all, b_all))
    np.testing.assert_allclose(np.asarray(out), np.asarray(ref), rtol=1e-4, atol=1e-4)

    print("KERNEL_OK")
</pallas_src>

<mosaic_0001>
module attributes {stable_mosaic.version = 11 : i64} {
  func.func @ppm_kernel(%arg0: i32, %arg1: memref<1x4x256xf32, #tpu.memory_space<vmem>>, %arg2: memref<4x256x36xf32, #tpu.memory_space<vmem>>, %arg3: memref<4x36x256xf32, #tpu.memory_space<vmem>>, %arg4: memref<4x512x4xf32, #tpu.memory_space<vmem>>, %arg5: memref<4x512x1xf32, #tpu.memory_space<vmem>>, %arg6: memref<1x2052x256xf32, #tpu.memory_space<vmem>>) attributes {dimension_semantics = [#tpu.dimension_semantics<parallel>], iteration_bounds = array<i64: 2>, scalar_prefetch = 0 : i64, scratch_operands = 0 : i64, tpu.core_type = #tpu.core_type<tc>, window_params = [{transform_indices = @transform_0, window_bounds = array<i64: 1, 4, 256>}, {pipeline_mode = #tpu.pipeline_mode<synchronous>, transform_indices = @transform_1, window_bounds = array<i64: 4, 256, 36>}, {pipeline_mode = #tpu.pipeline_mode<synchronous>, transform_indices = @transform_2, window_bounds = array<i64: 4, 36, 256>}, {pipeline_mode = #tpu.pipeline_mode<synchronous>, transform_indices = @transform_3, window_bounds = array<i64: 4, 512, 4>}, {pipeline_mode = #tpu.pipeline_mode<synchronous>, transform_indices = @transform_4, window_bounds = array<i64: 4, 512, 1>}, {transform_indices = @transform_5, window_bounds = array<i64: 1, 2052, 256>}]} {
    %c0 = arith.constant 0 : index
    %c0_0 = arith.constant 0 : index
    %c0_1 = arith.constant 0 : index
    %0 = vector.load %arg1[%c0, %c0_0, %c0_1] : memref<1x4x256xf32, #tpu.memory_space<vmem>>, vector<1x4x256xf32>
    %1 = vector.shape_cast %0 : vector<1x4x256xf32> to vector<4x256xf32>
    %c0_2 = arith.constant 0 : index
    %c0_3 = arith.constant 0 : index
    %c0_4 = arith.constant 0 : index
    %2 = vector.load %arg6[%c0_2, %c0_3, %c0_4] : memref<1x2052x256xf32, #tpu.memory_space<vmem>>, vector<1x4x256xf32>
    %3 = vector.shape_cast %2 : vector<1x4x256xf32> to vector<4x256xf32>
    %4 = vector.shape_cast %1 : vector<4x256xf32> to vector<1x4x256xf32>
    tpu.vector_store %arg6[%c0_2, %c0_3, %c0_4], %4 {strides = array<i32>} : memref<1x2052x256xf32, #tpu.memory_space<vmem>>, vector<1x4x256xf32>,
    %c0_5 = arith.constant 0 : index
    %c0_6 = arith.constant 0 : index
    %c0_7 = arith.constant 0 : index
    %5 = vector.load %arg2[%c0_5, %c0_6, %c0_7] : memref<4x256x36xf32, #tpu.memory_space<vmem>>, vector<1x256x36xf32>
    %6 = vector.shape_cast %5 : vector<1x256x36xf32> to vector<256x36xf32>
    %c0_8 = arith.constant 0 : index
    %c0_9 = arith.constant 0 : index
    %c0_10 = arith.constant 0 : index
    %7 = vector.load %arg3[%c0_8, %c0_9, %c0_10] : memref<4x36x256xf32, #tpu.memory_space<vmem>>, vector<1x36x256xf32>
    %8 = vector.shape_cast %7 : vector<1x36x256xf32> to vector<36x256xf32>
    %c0_11 = arith.constant 0 : index
    %c0_12 = arith.constant 0 : index
    %c0_13 = arith.constant 0 : index
    %9 = vector.load %arg4[%c0_11, %c0_12, %c0_13] : memref<4x512x4xf32, #tpu.memory_space<vmem>>, vector<1x512x4xf32>
    %10 = vector.shape_cast %9 : vector<1x512x4xf32> to vector<512x4xf32>
    %c0_14 = arith.constant 0 : index
    %c0_15 = arith.constant 0 : index
    %c0_16 = arith.constant 0 : index
    %11 = vector.load %arg5[%c0_14, %c0_15, %c0_16] : memref<4x512x1xf32, #tpu.memory_space<vmem>>, vector<1x512x1xf32>
    %12 = vector.shape_cast %11 : vector<1x512x1xf32> to vector<512x1xf32>
    %cst = arith.constant dense<0.000000e+00> : vector<4x36xf32>
    %13 = tpu.matmul %1, %6, %cst {dimension_numbers = #tpu.dot_dimension_numbers<[1], [0], [0], [1], [0, 0, 1, 1], [], []>} : vector<4x256xf32>, vector<256x36xf32>, vector<4x36xf32> -> vector<4x36xf32>
    %cst_17 = arith.constant dense<0.000000e+00> : vector<512x36xf32>
    %14 = tpu.matmul %10, %13, %cst_17 {dimension_numbers = #tpu.dot_dimension_numbers<[1], [0], [0], [1], [0, 0, 1, 1], [], []>} : vector<512x4xf32>, vector<4x36xf32>, vector<512x36xf32> -> vector<512x36xf32>
    %15 = vector.broadcast %12 : vector<512x1xf32> to vector<512x36xf32>
    %16 = arith.addf %14, %15 : vector<512x36xf32>
    %cst_18 = arith.constant dense<0.000000e+00> : vector<512x256xf32>
    %17 = tpu.matmul %16, %8, %cst_18 {dimension_numbers = #tpu.dot_dimension_numbers<[1], [0], [0], [1], [0, 0, 1, 1], [], []>} : vector<512x36xf32>, vector<36x256xf32>, vector<512x256xf32> -> vector<512x256xf32>
    %c0_19 = arith.constant 0 : index
    %c4 = arith.constant 4 : index
    %c0_20 = arith.constant 0 : index
    %18 = vector.load %arg6[%c0_19, %c4, %c0_20] : memref<1x2052x256xf32, #tpu.memory_space<vmem>>, vector<1x512x256xf32>
    %19 = vector.shape_cast %18 : vector<1x512x256xf32> to vector<512x256xf32>
    %20 = vector.shape_cast %17 : vector<512x256xf32> to vector<1x512x256xf32>
    tpu.vector_store %arg6[%c0_19, %c4, %c0_20], %20 {strides = array<i32>} : memref<1x2052x256xf32, #tpu.memory_space<vmem>>, vector<1x512x256xf32>,
    %c1 = arith.constant 1 : index
    %c0_21 = arith.constant 0 : index
    %c0_22 = arith.constant 0 : index
    %21 = vector.load %arg2[%c1, %c0_21, %c0_22] : memref<4x256x36xf32, #tpu.memory_space<vmem>>, vector<1x256x36xf32>
    %22 = vector.shape_cast %21 : vector<1x256x36xf32> to vector<256x36xf32>
    %c1_23 = arith.constant 1 : index
    %c0_24 = arith.constant 0 : index
    %c0_25 = arith.constant 0 : index
    %23 = vector.load %arg3[%c1_23, %c0_24, %c0_25] : memref<4x36x256xf32, #tpu.memory_space<vmem>>, vector<1x36x256xf32>
    %24 = vector.shape_cast %23 : vector<1x36x256xf32> to vector<36x256xf32>
    %c1_26 = arith.constant 1 : index
    %c0_27 = arith.constant 0 : index
    %c0_28 = arith.constant 0 : index
    %25 = vector.load %arg4[%c1_26, %c0_27, %c0_28] : memref<4x512x4xf32, #tpu.memory_space<vmem>>, vector<1x512x4xf32>
    %26 = vector.shape_cast %25 : vector<1x512x4xf32> to vector<512x4xf32>
    %c1_29 = arith.constant 1 : index
    %c0_30 = arith.constant 0 : index
    %c0_31 = arith.constant 0 : index
    %27 = vector.load %arg5[%c1_29, %c0_30, %c0_31] : memref<4x512x1xf32, #tpu.memory_space<vmem>>, vector<1x512x1xf32>
    %28 = vector.shape_cast %27 : vector<1x512x1xf32> to vector<512x1xf32>
    %cst_32 = arith.constant dense<0.000000e+00> : vector<4x36xf32>
    %29 = tpu.matmul %1, %22, %cst_32 {dimension_numbers = #tpu.dot_dimension_numbers<[1], [0], [0], [1], [0, 0, 1, 1], [], []>} : vector<4x256xf32>, vector<256x36xf32>, vector<4x36xf32> -> vector<4x36xf32>
    %cst_33 = arith.constant dense<0.000000e+00> : vector<512x36xf32>
    %30 = tpu.matmul %26, %29, %cst_33 {dimension_numbers = #tpu.dot_dimension_numbers<[1], [0], [0], [1], [0, 0, 1, 1], [], []>} : vector<512x4xf32>, vector<4x36xf32>, vector<512x36xf32> -> vector<512x36xf32>
    %31 = vector.broadcast %28 : vector<512x1xf32> to vector<512x36xf32>
    %32 = arith.addf %30, %31 : vector<512x36xf32>
    %cst_34 = arith.constant dense<0.000000e+00> : vector<512x256xf32>
    %33 = tpu.matmul %32, %24, %cst_34 {dimension_numbers = #tpu.dot_dimension_numbers<[1], [0], [0], [1], [0, 0, 1, 1], [], []>} : vector<512x36xf32>, vector<36x256xf32>, vector<512x256xf32> -> vector<512x256xf32>
    %c0_35 = arith.constant 0 : index
    %c516 = arith.constant 516 : index
    %c0_36 = arith.constant 0 : index
    %34 = vector.load %arg6[%c0_35, %c516, %c0_36] : memref<1x2052x256xf32, #tpu.memory_space<vmem>>, vector<1x512x256xf32>
    %35 = vector.shape_cast %34 : vector<1x512x256xf32> to vector<512x256xf32>
    %36 = vector.shape_cast %33 : vector<512x256xf32> to vector<1x512x256xf32>
    tpu.vector_store %arg6[%c0_35, %c516, %c0_36], %36 {strides = array<i32>} : memref<1x2052x256xf32, #tpu.memory_space<vmem>>, vector<1x512x256xf32>,
    %c2 = arith.constant 2 : index
    %c0_37 = arith.constant 0 : index
    %c0_38 = arith.constant 0 : index
    %37 = vector.load %arg2[%c2, %c0_37, %c0_38] : memref<4x256x36xf32, #tpu.memory_space<vmem>>, vector<1x256x36xf32>
    %38 = vector.shape_cast %37 : vector<1x256x36xf32> to vector<256x36xf32>
    %c2_39 = arith.constant 2 : index
    %c0_40 = arith.constant 0 : index
    %c0_41 = arith.constant 0 : index
    %39 = vector.load %arg3[%c2_39, %c0_40, %c0_41] : memref<4x36x256xf32, #tpu.memory_space<vmem>>, vector<1x36x256xf32>
    %40 = vector.shape_cast %39 : vector<1x36x256xf32> to vector<36x256xf32>
    %c2_42 = arith.constant 2 : index
    %c0_43 = arith.constant 0 : index
    %c0_44 = arith.constant 0 : index
    %41 = vector.load %arg4[%c2_42, %c0_43, %c0_44] : memref<4x512x4xf32, #tpu.memory_space<vmem>>, vector<1x512x4xf32>
    %42 = vector.shape_cast %41 : vector<1x512x4xf32> to vector<512x4xf32>
    %c2_45 = arith.constant 2 : index
    %c0_46 = arith.constant 0 : index
    %c0_47 = arith.constant 0 : index
    %43 = vector.load %arg5[%c2_45, %c0_46, %c0_47] : memref<4x512x1xf32, #tpu.memory_space<vmem>>, vector<1x512x1xf32>
    %44 = vector.shape_cast %43 : vector<1x512x1xf32> to vector<512x1xf32>
    %cst_48 = arith.constant dense<0.000000e+00> : vector<4x36xf32>
    %45 = tpu.matmul %1, %38, %cst_48 {dimension_numbers = #tpu.dot_dimension_numbers<[1], [0], [0], [1], [0, 0, 1, 1], [], []>} : vector<4x256xf32>, vector<256x36xf32>, vector<4x36xf32> -> vector<4x36xf32>
    %cst_49 = arith.constant dense<0.000000e+00> : vector<512x36xf32>
    %46 = tpu.matmul %42, %45, %cst_49 {dimension_numbers = #tpu.dot_dimension_numbers<[1], [0], [0], [1], [0, 0, 1, 1], [], []>} : vector<512x4xf32>, vector<4x36xf32>, vector<512x36xf32> -> vector<512x36xf32>
    %47 = vector.broadcast %44 : vector<512x1xf32> to vector<512x36xf32>
    %48 = arith.addf %46, %47 : vector<512x36xf32>
    %cst_50 = arith.constant dense<0.000000e+00> : vector<512x256xf32>
    %49 = tpu.matmul %48, %40, %cst_50 {dimension_numbers = #tpu.dot_dimension_numbers<[1], [0], [0], [1], [0, 0, 1, 1], [], []>} : vector<512x36xf32>, vector<36x256xf32>, vector<512x256xf32> -> vector<512x256xf32>
    %c0_51 = arith.constant 0 : index
    %c1028 = arith.constant 1028 : index
    %c0_52 = arith.constant 0 : index
    %50 = vector.load %arg6[%c0_51, %c1028, %c0_52] : memref<1x2052x256xf32, #tpu.memory_space<vmem>>, vector<1x512x256xf32>
    %51 = vector.shape_cast %50 : vector<1x512x256xf32> to vector<512x256xf32>
    %52 = vector.shape_cast %49 : vector<512x256xf32> to vector<1x512x256xf32>
    tpu.vector_store %arg6[%c0_51, %c1028, %c0_52], %52 {strides = array<i32>} : memref<1x2052x256xf32, #tpu.memory_space<vmem>>, vector<1x512x256xf32>,
    %c3 = arith.constant 3 : index
    %c0_53 = arith.constant 0 : index
    %c0_54 = arith.constant 0 : index
    %53 = vector.load %arg2[%c3, %c0_53, %c0_54] : memref<4x256x36xf32, #tpu.memory_space<vmem>>, vector<1x256x36xf32>
    %54 = vector.shape_cast %53 : vector<1x256x36xf32> to vector<256x36xf32>
    %c3_55 = arith.constant 3 : index
    %c0_56 = arith.constant 0 : index
    %c0_57 = arith.constant 0 : index
    %55 = vector.load %arg3[%c3_55, %c0_56, %c0_57] : memref<4x36x256xf32, #tpu.memory_space<vmem>>, vector<1x36x256xf32>
    %56 = vector.shape_cast %55 : vector<1x36x256xf32> to vector<36x256xf32>
    %c3_58 = arith.constant 3 : index
    %c0_59 = arith.constant 0 : index
    %c0_60 = arith.constant 0 : index
    %57 = vector.load %arg4[%c3_58, %c0_59, %c0_60] : memref<4x512x4xf32, #tpu.memory_space<vmem>>, vector<1x512x4xf32>
    %58 = vector.shape_cast %57 : vector<1x512x4xf32> to vector<512x4xf32>
    %c3_61 = arith.constant 3 : index
    %c0_62 = arith.constant 0 : index
    %c0_63 = arith.constant 0 : index
    %59 = vector.load %arg5[%c3_61, %c0_62, %c0_63] : memref<4x512x1xf32, #tpu.memory_space<vmem>>, vector<1x512x1xf32>
    %60 = vector.shape_cast %59 : vector<1x512x1xf32> to vector<512x1xf32>
    %cst_64 = arith.constant dense<0.000000e+00> : vector<4x36xf32>
    %61 = tpu.matmul %1, %54, %cst_64 {dimension_numbers = #tpu.dot_dimension_numbers<[1], [0], [0], [1], [0, 0, 1, 1], [], []>} : vector<4x256xf32>, vector<256x36xf32>, vector<4x36xf32> -> vector<4x36xf32>
    %cst_65 = arith.constant dense<0.000000e+00> : vector<512x36xf32>
    %62 = tpu.matmul %58, %61, %cst_65 {dimension_numbers = #tpu.dot_dimension_numbers<[1], [0], [0], [1], [0, 0, 1, 1], [], []>} : vector<512x4xf32>, vector<4x36xf32>, vector<512x36xf32> -> vector<512x36xf32>
    %63 = vector.broadcast %60 : vector<512x1xf32> to vector<512x36xf32>
    %64 = arith.addf %62, %63 : vector<512x36xf32>
    %cst_66 = arith.constant dense<0.000000e+00> : vector<512x256xf32>
    %65 = tpu.matmul %64, %56, %cst_66 {dimension_numbers = #tpu.dot_dimension_numbers<[1], [0], [0], [1], [0, 0, 1, 1], [], []>} : vector<512x36xf32>, vector<36x256xf32>, vector<512x256xf32> -> vector<512x256xf32>
    %c0_67 = arith.constant 0 : index
    %c1540 = arith.constant 1540 : index
    %c0_68 = arith.constant 0 : index
    %66 = vector.load %arg6[%c0_67, %c1540, %c0_68] : memref<1x2052x256xf32, #tpu.memory_space<vmem>>, vector<1x512x256xf32>
    %67 = vector.shape_cast %66 : vector<1x512x256xf32> to vector<512x256xf32>
    %68 = vector.shape_cast %65 : vector<512x256xf32> to vector<1x512x256xf32>
    tpu.vector_store %arg6[%c0_67, %c1540, %c0_68], %68 {strides = array<i32>} : memref<1x2052x256xf32, #tpu.memory_space<vmem>>, vector<1x512x256xf32>,
    return
  }
  func.func @transform_0(%arg0: i32) -> (i32, i32, i32) {
    %c0_i32 = arith.constant 0 : i32
    %c0_i32_0 = arith.constant 0 : i32
    %c0_i32_1 = arith.constant 0 : i32
    return %arg0, %c0_i32, %c0_i32_0 : i32, i32, i32
  }
  func.func @transform_1(%arg0: i32) -> (i32, i32, i32) {
    %c0_i32 = arith.constant 0 : i32
    %c0_i32_0 = arith.constant 0 : i32
    %c0_i32_1 = arith.constant 0 : i32
    %c0_i32_2 = arith.constant 0 : i32
    return %c0_i32, %c0_i32_0, %c0_i32_1 : i32, i32, i32
  }
  func.func @transform_2(%arg0: i32) -> (i32, i32, i32) {
    %c0_i32 = arith.constant 0 : i32
    %c0_i32_0 = arith.constant 0 : i32
    %c0_i32_1 = arith.constant 0 : i32
    %c0_i32_2 = arith.constant 0 : i32
    return %c0_i32, %c0_i32_0, %c0_i32_1 : i32, i32, i32
  }
  func.func @transform_3(%arg0: i32) -> (i32, i32, i32) {
    %c0_i32 = arith.constant 0 : i32
    %c0_i32_0 = arith.constant 0 : i32
    %c0_i32_1 = arith.constant 0 : i32
    %c0_i32_2 = arith.constant 0 : i32
    return %c0_i32, %c0_i32_0, %c0_i32_1 : i32, i32, i32
  }
  func.func @transform_4(%arg0: i32) -> (i32, i32, i32) {
    %c0_i32 = arith.constant 0 : i32
    %c0_i32_0 = arith.constant 0 : i32
    %c0_i32_1 = arith.constant 0 : i32
    %c0_i32_2 = arith.constant 0 : i32
    return %c0_i32, %c0_i32_0, %c0_i32_1 : i32, i32, i32
  }
  func.func @transform_5(%arg0: i32) -> (i32, i32, i32) {
    %c0_i32 = arith.constant 0 : i32
    %c0_i32_0 = arith.constant 0 : i32
    %c0_i32_1 = arith.constant 0 : i32
    return %arg0, %c0_i32, %c0_i32_0 : i32, i32, i32
  }
}

</mosaic_0001>

<llo_original>
// kernel: tpu_custom_call.1
$region0: #{tpu_custom_call.1}
  #allocation0 [shape = 'u32[]', space=smem, size = 0x4, offset = 0x4, fixed_abs, tag = 'smem constant byte address 0x4 - core index']
  #allocation1 [shape = 'u32[144,128]{1,0:T(1,128)}', space=vmem, size = 0x12000, scoped, tag = 'internal scratch']
  %s0 = inlined_call_operand.hbm [shape: f32[2,4,256], index: 0, kind: input, shape index: {}]
  %s1 = inlined_call_operand.vmem [shape: f32[4,256,36], index: 1, kind: input, shape index: {}]
  %s2 = inlined_call_operand.vmem [shape: f32[4,36,256], index: 2, kind: input, shape index: {}]
  %s3 = inlined_call_operand.vmem [shape: f32[4,512,4], index: 3, kind: input, shape index: {}]
  %s4 = inlined_call_operand.vmem [shape: f32[4,512,1], index: 4, kind: input, shape index: {}]
  %s5 = inlined_call_operand.vmem [shape: f32[2,2052,256], index: 5, kind: output, shape index: {}]
  %s6 = sld [smem:[#allocation0]]
  $region57: #{tpu_custom_call.1} parent=0
    _
  %s8 = ssub.s32 1, %s6
  %s9 = scalar_select 0, %s8, %s6
  $region1: #{tpu_custom_call.1} parent=0
    #allocation2 [shape = 'u8[8192]{0}', space=vmem, size = 0x2000, scoped, tag = 'input window, operand 0']
    #allocation3 [shape = 's32[2]{0}', space=sflag, size = 0x8, scoped, tag = 'scoped memory for tpu_custom_call.1']
    %10 = vsyncpa [#allocation3], 0
    %s11 = scalar_lea.sflag [#allocation3], 1
    %12 = vsyncpa %s11, 0
    loop: start=0, step=1, limit=4
    $region2: #{tpu_custom_call.1} parent=1 // loop_pre_header
      _
    $region3: #{tpu_custom_call.1} parent=1 // loop_header
      %s14 = sphi 0, %s18
      %p15 = scmp.ge.s32.totalorder %s14, 4
      %s24 = sphi 0, %s26
      %s27 = sphi 0, %s24
      %s28 = sphi 0, %s27
      %s44 = sphi 0, %s28
      %s48 = sphi 0, %s48
      %s50 = sphi 0, %s48
      %s51 = sphi 0, %s50
      %s65 = sphi 0, %s51
      %s69 = sphi 0, %s69
      %s71 = sphi 0, %s69
      %s72 = sphi 0, %s71
      %s86 = sphi 0, %s72
      %s90 = sphi 0, %s90
      %s92 = sphi 0, %s90
      %s93 = sphi 0, %s92
      %s107 = sphi 0, %s93
      %s111 = sphi 0, %s111
      %s113 = sphi 0, %s111
      %s114 = sphi 0, %s113
      %s128 = sphi 0, %s114
      %s134 = sphi 0, %s136
      %s137 = sphi 0, %s134
      %s138 = sphi 0, %s137
      %s154 = sphi 0, %s138
    $region4: #{tpu_custom_call.1} parent=1 // loop_header_branch
      %17 = sbr.rel (%p15) target = $region8
    $region5: #{tpu_custom_call.1} parent=1 // loop_body
      %s19 = ssub.s32 %s14, 1
      %s20 = ssub.s32 %s14, 2
      %s21 = sadd.s32 %s14, 1
      %s22 = ssub.s32 %s14, %s21
      %p23 = scmp.eq.s32.totalorder %s22, 0
      %s25 = sadd.s32 %s24, 1
      %s26 = scalar_select %p23, %s24, %s25
      %p29 = pneg %p23
      %p30 = scmp.eq.s32.totalorder %s14, 1
      %p31 = por %p29, %p30
      %p32 = scmp.ne.s32.totalorder %s24, %s27
      %p33 = scmp.eq.s32.totalorder %s14, 0
      %p34 = por %p32, %p33
      %p35 = scmp.ne.s32.totalorder %s24, %s27
      %p36 = scmp.eq.s32.totalorder %s19, 1
      %p37 = por %p35, %p36
      %p38 = scmp.ne.s32.totalorder %s27, %s28
      %p39 = scmp.eq.s32.totalorder %s19, 0
      %p40 = por %p38, %p39
      %p41 = scmp.ne.s32.totalorder %s27, %s28
      %p42 = scmp.eq.s32.totalorder %s20, 1
      %p43 = por %p41, %p42
      %p45 = scmp.ne.s32.totalorder %s28, %s44
      %p46 = scmp.eq.s32.totalorder %s20, 0
      %p47 = por %p45, %p46
      %s49 = sadd.s32 %s48, 1
      %p52 = scmp.eq.s32.totalorder %s14, 1
      %p53 = scmp.ne.s32.totalorder %s48, %s50
      %p54 = scmp.eq.s32.totalorder %s14, 0
      %p55 = por %p53, %p54
      %p56 = scmp.ne.s32.totalorder %s48, %s50
      %p57 = scmp.eq.s32.totalorder %s19, 1
      %p58 = por %p56, %p57
      %p59 = scmp.ne.s32.totalorder %s50, %s51
      %p60 = scmp.eq.s32.totalorder %s19, 0
      %p61 = por %p59, %p60
      %p62 = scmp.ne.s32.totalorder %s50, %s51
      %p63 = scmp.eq.s32.totalorder %s20, 1
      %p64 = por %p62, %p63
      %p66 = scmp.ne.s32.totalorder %s51, %s65
      %p67 = scmp.eq.s32.totalorder %s20, 0
      %p68 = por %p66, %p67
      %s70 = sadd.s32 %s69, 1
      %p73 = scmp.eq.s32.totalorder %s14, 1
      %p74 = scmp.ne.s32.totalorder %s69, %s71
      %p75 = scmp.eq.s32.totalorder %s14, 0
      %p76 = por %p74, %p75
      %p77 = scmp.ne.s32.totalorder %s69, %s71
      %p78 = scmp.eq.s32.totalorder %s19, 1
      %p79 = por %p77, %p78
      %p80 = scmp.ne.s32.totalorder %s71, %s72
      %p81 = scmp.eq.s32.totalorder %s19, 0
      %p82 = por %p80, %p81
      %p83 = scmp.ne.s32.totalorder %s71, %s72
      %p84 = scmp.eq.s32.totalorder %s20, 1
      %p85 = por %p83, %p84
      %p87 = scmp.ne.s32.totalorder %s72, %s86
      %p88 = scmp.eq.s32.totalorder %s20, 0
      %p89 = por %p87, %p88
      %s91 = sadd.s32 %s90, 1
      %p94 = scmp.eq.s32.totalorder %s14, 1
      %p95 = scmp.ne.s32.totalorder %s90, %s92
      %p96 = scmp.eq.s32.totalorder %s14, 0
      %p97 = por %p95, %p96
      %p98 = scmp.ne.s32.totalorder %s90, %s92
      %p99 = scmp.eq.s32.totalorder %s19, 1
      %p100 = por %p98, %p99
      %p101 = scmp.ne.s32.totalorder %s92, %s93
      %p102 = scmp.eq.s32.totalorder %s19, 0
      %p103 = por %p101, %p102
      %p104 = scmp.ne.s32.totalorder %s92, %s93
      %p105 = scmp.eq.s32.totalorder %s20, 1
      %p106 = por %p104, %p105
      %p108 = scmp.ne.s32.totalorder %s93, %s107
      %p109 = scmp.eq.s32.totalorder %s20, 0
      %p110 = por %p108, %p109
      %s112 = sadd.s32 %s111, 1
      %p115 = scmp.eq.s32.totalorder %s14, 1
      %p116 = scmp.ne.s32.totalorder %s111, %s113
      %p117 = scmp.eq.s32.totalorder %s14, 0
      %p118 = por %p116, %p117
      %p119 = scmp.ne.s32.totalorder %s111, %s113
      %p120 = scmp.eq.s32.totalorder %s19, 1
      %p121 = por %p119, %p120
      %p122 = scmp.ne.s32.totalorder %s113, %s114
      %p123 = scmp.eq.s32.totalorder %s19, 0
      %p124 = por %p122, %p123
      %p125 = scmp.ne.s32.totalorder %s113, %s114
      %p126 = scmp.eq.s32.totalorder %s20, 1
      %p127 = por %p125, %p126
      %p129 = scmp.ne.s32.totalorder %s114, %s128
      %p130 = scmp.eq.s32.totalorder %s20, 0
      %p131 = por %p129, %p130
      %s132 = ssub.s32 %s14, %s21
      %p133 = scmp.eq.s32.totalorder %s132, 0
      %s135 = sadd.s32 %s134, 1
      %s136 = scalar_select %p133, %s134, %s135
      %p139 = pneg %p133
      %p140 = scmp.eq.s32.totalorder %s14, 1
      %p141 = por %p139, %p140
      %p142 = scmp.ne.s32.totalorder %s134, %s137
      %p143 = scmp.eq.s32.totalorder %s14, 0
      %p144 = por %p142, %p143
      %p145 = scmp.ne.s32.totalorder %s134, %s137
      %p146 = scmp.eq.s32.totalorder %s19, 1
      %p147 = por %p145, %p146
      %p148 = scmp.ne.s32.totalorder %s137, %s138
      %p149 = scmp.eq.s32.totalorder %s19, 0
      %p150 = por %p148, %p149
      %p151 = scmp.ne.s32.totalorder %s137, %s138
      %p152 = scmp.eq.s32.totalorder %s20, 1
      %p153 = por %p151, %p152
      %p155 = scmp.ne.s32.totalorder %s138, %s154
      %p156 = scmp.eq.s32.totalorder %s20, 0
      %p157 = por %p155, %p156
      %p158 = scmp.le.s32.totalorder 1, %s14
      %p159 = scmp.lt.s32.totalorder %s14, 3
      %p160 = pnand %p158, %p159
      %p161 = pneg %p160
      // Predicated region
      $region9: #{tpu_custom_call.1} parent=5 // pred_check
        _
      $region10: #{tpu_custom_call.1} parent=5 // pred_check_branch
        %163 = sbr.rel (%p160) target = $region12
      $region11: #{tpu_custom_call.1} parent=5 // pred_region
        %s164 = ssub.s32 %s14, 1
        // Predicated region
        $region13: #{tpu_custom_call.1} parent=11 // pred_check
          %p165 = pneg %p61
        $region14: #{tpu_custom_call.1} parent=11 // pred_check_branch
          %167 = sbr.rel (%p165) target = $region16
        $region15: #{tpu_custom_call.1} parent=11 // pred_region
          _
        $region16: #{tpu_custom_call.1} parent=11 // pred_fallthru
          _
        // Predicated region
        $region17: #{tpu_custom_call.1} parent=11 // pred_check
          %p168 = pneg %p82
        $region18: #{tpu_custom_call.1} parent=11 // pred_check_branch
          %170 = sbr.rel (%p168) target = $region20
        $region19: #{tpu_custom_call.1} parent=11 // pred_region
          _
        $region20: #{tpu_custom_call.1} parent=11 // pred_fallthru
          _
        // Predicated region
        $region21: #{tpu_custom_call.1} parent=11 // pred_check
          %p171 = pneg %p103
        $region22: #{tpu_custom_call.1} parent=11 // pred_check_branch
          %173 = sbr.rel (%p171) target = $region24
        $region23: #{tpu_custom_call.1} parent=11 // pred_region
          _
        $region24: #{tpu_custom_call.1} parent=11 // pred_fallthru
          _
        // Predicated region
        $region25: #{tpu_custom_call.1} parent=11 // pred_check
          %p174 = pneg %p124
        $region26: #{tpu_custom_call.1} parent=11 // pred_check_branch
          %176 = sbr.rel (%p174) target = $region28
        $region27: #{tpu_custom_call.1} parent=11 // pred_region
          _
        $region28: #{tpu_custom_call.1} parent=11 // pred_fallthru
          _
      $region12: #{tpu_custom_call.1} parent=5 // pred_fallthru
        _
      %p177 = scmp.lt.s32.totalorder %s14, 2
      // Predicated region
      $region29: #{tpu_custom_call.1} parent=5 // pred_check
        %p178 = pneg %p177
      $region30: #{tpu_custom_call.1} parent=5 // pred_check_branch
        %180 = sbr.rel (%p178) target = $region32
      $region31: #{tpu_custom_call.1} parent=5 // pred_region
        // Predicated region
        $region33: #{tpu_custom_call.1} parent=31 // pred_check
          %p181 = pneg %p34
        $region34: #{tpu_custom_call.1} parent=31 // pred_check_branch
          %183 = sbr.rel (%p181) target = $region36
        $region35: #{tpu_custom_call.1} parent=31 // pred_region
          %s184 = sand.u32 %s24, 1
          %s185 = scalar_lea.sflag [#allocation3], %s184
          %s186 = sand.u32 %s24, 1
          %s187 = smul.addr %s186, 8
          %s188 = scalar_lea.vmem [#allocation2], %s187
          %s190 = ssub.s32 128, 128
          %191 = vsyncadd %s185, %s190
          %s192 = smul.addr %s14, 2
          %s193 = smul.addr %s192, 64
          %s194 = scalar_lea.hbm %s0, %s193
          %s196 = sshll.u32 %s188, 4
          %s197 = int_to_ptr.vmem [resolvable:$true] %s196
          %199 = dma.hbm_to_vmem [thread:$0]  %s194, 128, %s197, %s185
        $region36: #{tpu_custom_call.1} parent=31 // pred_fallthru
          _
      $region32: #{tpu_custom_call.1} parent=5 // pred_fallthru
        _
      %p200 = scmp.le.s32.totalorder 1, %s14
      %p201 = scmp.lt.s32.totalorder %s14, 3
      %p202 = pnand %p200, %p201
      %p203 = pneg %p202
      // Predicated region
      $region37: #{tpu_custom_call.1} parent=5 // pred_check
        _
      $region38: #{tpu_custom_call.1} parent=5 // pred_check_branch
        %205 = sbr.rel (%p202) target = $region40
      $region39: #{tpu_custom_call.1} parent=5 // pred_region
        %s206 = ssub.s32 %s14, 1
        %s207 = sand.u32 %s27, 1
        %s208 = scalar_lea.sflag [#allocation3], %s207
        %s209 = sand.u32 %s27, 1
        %s210 = smul.addr %s209, 8
        %s211 = scalar_lea.vmem [#allocation2], %s210
        // Predicated region
        $region41: #{tpu_custom_call.1} parent=39 // pred_check
          %p212 = pneg %p40
        $region42: #{tpu_custom_call.1} parent=39 // pred_check_branch
          %214 = sbr.rel (%p212) target = $region44
        $region43: #{tpu_custom_call.1} parent=39 // pred_region
          %215 = dma.done %s208, 128
        $region44: #{tpu_custom_call.1} parent=39 // pred_fallthru
          _
        %s216 = sand.u32 %s27, 1
        %s217 = scalar_lea.sflag [#allocation3], %s216
        %s218 = sand.u32 %s27, 1
        %s219 = smul.addr %s218, 8
        %s220 = scalar_lea.vmem [#allocation2], %s219
        %p221 = pneg %p40
        %p222 = pneg %p37
        %p223 = pneg %p61
        %p224 = pneg %p58
        %p225 = pneg %p82
        %p226 = pneg %p79
        %p227 = pneg %p103
        %p228 = pneg %p100
        %p229 = pneg %p124
        %p230 = pneg %p121
        %p231 = pneg %p150
        %p232 = pneg %p147
        %p233 = scmp.lt.s32.totalorder %s19, 1
        %s234 = scalar_select %p233, %s19, 1
        %s235 = smul.addr %s234, 514
        %s236 = smul.addr %s235, 8
        %s237 = scalar_lea.vmem %s5, %s236
        %p238 = scmp.lt.s32.totalorder %s19, 1
        %s239 = scalar_select %p238, %s19, 1
        %s240 = smul.addr %s239, 514
        %s241 = smul.addr %s240, 8
        %s242 = scalar_lea.vmem %s5, %s241
        %v243 = vld [vmem:[%s211] sm:$0xff]
        %v245 = vcombine.high %v243, %v243
        %247 = vst [vmem:[%s242] sm:$0xf] %v243
        %248 = vst [vmem:[%s242 + $0x8] sm:$0xf] %v245
        %v249 = vld [vmem:[%s1] sm:$0xff]
        %v250 = vld [vmem:[%s1 + $0x8] sm:$0xff]
        %v251 = vld [vmem:[%s1 + $0x10] sm:$0xff]
        %v252 = vld [vmem:[%s1 + $0x18] sm:$0xff]
        %v253 = vld [vmem:[%s1 + $0x20] sm:$0xff]
        %v254 = vld [vmem:[%s1 + $0x28] sm:$0xff]
        %v255 = vld [vmem:[%s1 + $0x30] sm:$0xff]
        %v256 = vld [vmem:[%s1 + $0x38] sm:$0xff]
        %v257 = vld [vmem:[%s1 + $0x40] sm:$0xff]
        %v258 = vld [vmem:[%s1 + $0x48] sm:$0xff]
        %v259 = vld [vmem:[%s1 + $0x50] sm:$0xff]
        %v260 = vld [vmem:[%s1 + $0x58] sm:$0xff]
        %v261 = vld [vmem:[%s1 + $0x60] sm:$0xff]
        %v262 = vld [vmem:[%s1 + $0x68] sm:$0xff]
        %v263 = vld [vmem:[%s1 + $0x70] sm:$0xff]
        %v264 = vld [vmem:[%s1 + $0x78] sm:$0xff]
        %v265 = vld [vmem:[%s1 + $0x80] sm:$0xff]
        %v266 = vld [vmem:[%s1 + $0x88] sm:$0xff]
        %v267 = vld [vmem:[%s1 + $0x90] sm:$0xff]
        %v268 = vld [vmem:[%s1 + $0x98] sm:$0xff]
        %v269 = vld [vmem:[%s1 + $0xa0] sm:$0xff]
        %v270 = vld [vmem:[%s1 + $0xa8] sm:$0xff]
        %v271 = vld [vmem:[%s1 + $0xb0] sm:$0xff]
        %v272 = vld [vmem:[%s1 + $0xb8] sm:$0xff]
        %v273 = vld [vmem:[%s1 + $0xc0] sm:$0xff]
        %v274 = vld [vmem:[%s1 + $0xc8] sm:$0xff]
        %v275 = vld [vmem:[%s1 + $0xd0] sm:$0xff]
        %v276 = vld [vmem:[%s1 + $0xd8] sm:$0xff]
        %v277 = vld [vmem:[%s1 + $0xe0] sm:$0xff]
        %v278 = vld [vmem:[%s1 + $0xe8] sm:$0xff]
        %v279 = vld [vmem:[%s1 + $0xf0] sm:$0xff]
        %v280 = vld [vmem:[%s1 + $0xf8] sm:$0xff]
        %v281 = vld [vmem:[%s2] sm:$0xff]
        %v282 = vld [vmem:[%s2 + $0x8] sm:$0xff]
        %v283 = vld [vmem:[%s2 + $0x10] sm:$0xff]
        %v284 = vld [vmem:[%s2 + $0x18] sm:$0xff]
        %v285 = vld [vmem:[%s2 + $0x20] sm:$0xff]
        %v286 = vld [vmem:[%s2 + $0x28] sm:$0xff]
        %v287 = vld [vmem:[%s2 + $0x30] sm:$0xff]
        %v288 = vld [vmem:[%s2 + $0x38] sm:$0xff]
        %v289 = vld [vmem:[%s2 + $0x40] sm:$0xf]
        %v290 = vld [vmem:[%s2 + $0x48] sm:$0xf]
        %v291 = vld [vmem:[%s3] sm:$0xff]
        %v292 = vld [vmem:[%s3 + $0x8] sm:$0xff]
        %v293 = vld [vmem:[%s3 + $0x10] sm:$0xff]
        %v294 = vld [vmem:[%s3 + $0x18] sm:$0xff]
        %v295 = vld [vmem:[%s3 + $0x20] sm:$0xff]
        %v296 = vld [vmem:[%s3 + $0x28] sm:$0xff]
        %v297 = vld [vmem:[%s3 + $0x30] sm:$0xff]
        %v298 = vld [vmem:[%s3 + $0x38] sm:$0xff]
        %v299 = vld [vmem:[%s3 + $0x40] sm:$0xff]
        %v300 = vld [vmem:[%s3 + $0x48] sm:$0xff]
        %v301 = vld [vmem:[%s3 + $0x50] sm:$0xff]
        %v302 = vld [vmem:[%s3 + $0x58] sm:$0xff]
        %v303 = vld [vmem:[%s3 + $0x60] sm:$0xff]
        %v304 = vld [vmem:[%s3 + $0x68] sm:$0xff]
        %v305 = vld [vmem:[%s3 + $0x70] sm:$0xff]
        %v306 = vld [vmem:[%s3 + $0x78] sm:$0xff]
        %v307 = vld [vmem:[%s3 + $0x80] sm:$0xff]
        %v308 = vld [vmem:[%s3 + $0x88] sm:$0xff]
        %v309 = vld [vmem:[%s3 + $0x90] sm:$0xff]
        %v310 = vld [vmem:[%s3 + $0x98] sm:$0xff]
        %v311 = vld [vmem:[%s3 + $0xa0] sm:$0xff]
        %v312 = vld [vmem:[%s3 + $0xa8] sm:$0xff]
        %v313 = vld [vmem:[%s3 + $0xb0] sm:$0xff]
        %v314 = vld [vmem:[%s3 + $0xb8] sm:$0xff]
        %v315 = vld [vmem:[%s3 + $0xc0] sm:$0xff]
        %v316 = vld [vmem:[%s3 + $0xc8] sm:$0xff]
        %v317 = vld [vmem:[%s3 + $0xd0] sm:$0xff]
        %v318 = vld [vmem:[%s3 + $0xd8] sm:$0xff]
        %v319 = vld [vmem:[%s3 + $0xe0] sm:$0xff]
        %v320 = vld [vmem:[%s3 + $0xe8] sm:$0xff]
        %v321 = vld [vmem:[%s3 + $0xf0] sm:$0xff]
        %v322 = vld [vmem:[%s3 + $0xf8] sm:$0xff]
        %v323 = vld [vmem:[%s3 + $0x100] sm:$0xff]
        %v324 = vld [vmem:[%s3 + $0x108] sm:$0xff]
        %v325 = vld [vmem:[%s3 + $0x110] sm:$0xff]
        %v326 = vld [vmem:[%s3 + $0x118] sm:$0xff]
        %v327 = vld [vmem:[%s3 + $0x120] sm:$0xff]
        %v328 = vld [vmem:[%s3 + $0x128] sm:$0xff]
        %v329 = vld [vmem:[%s3 + $0x130] sm:$0xff]
        %v330 = vld [vmem:[%s3 + $0x138] sm:$0xff]
        %v331 = vld [vmem:[%s3 + $0x140] sm:$0xff]
        %v332 = vld [vmem:[%s3 + $0x148] sm:$0xff]
        %v333 = vld [vmem:[%s3 + $0x150] sm:$0xff]
        %v334 = vld [vmem:[%s3 + $0x158] sm:$0xff]
        %v335 = vld [vmem:[%s3 + $0x160] sm:$0xff]
        %v336 = vld [vmem:[%s3 + $0x168] sm:$0xff]
        %v337 = vld [vmem:[%s3 + $0x170] sm:$0xff]
        %v338 = vld [vmem:[%s3 + $0x178] sm:$0xff]
        %v339 = vld [vmem:[%s3 + $0x180] sm:$0xff]
        %v340 = vld [vmem:[%s3 + $0x188] sm:$0xff]
        %v341 = vld [vmem:[%s3 + $0x190] sm:$0xff]
        %v342 = vld [vmem:[%s3 + $0x198] sm:$0xff]
        %v343 = vld [vmem:[%s3 + $0x1a0] sm:$0xff]
        %v344 = vld [vmem:[%s3 + $0x1a8] sm:$0xff]
        %v345 = vld [vmem:[%s3 + $0x1b0] sm:$0xff]
        %v346 = vld [vmem:[%s3 + $0x1b8] sm:$0xff]
        %v347 = vld [vmem:[%s3 + $0x1c0] sm:$0xff]
        %v348 = vld [vmem:[%s3 + $0x1c8] sm:$0xff]
        %v349 = vld [vmem:[%s3 + $0x1d0] sm:$0xff]
        %v350 = vld [vmem:[%s3 + $0x1d8] sm:$0xff]
        %v351 = vld [vmem:[%s3 + $0x1e0] sm:$0xff]
        %v352 = vld [vmem:[%s3 + $0x1e8] sm:$0xff]
        %v353 = vld [vmem:[%s3 + $0x1f0] sm:$0xff]
        %v354 = vld [vmem:[%s3 + $0x1f8] sm:$0xff]
        %v355 = vld [vmem:[%s4] sm:$0xff]
        %v356 = vld [vmem:[%s4 + $0x8] sm:$0xff]
        %v357 = vld [vmem:[%s4 + $0x10] sm:$0xff]
        %v358 = vld [vmem:[%s4 + $0x18] sm:$0xff]
        %v359 = vld [vmem:[%s4 + $0x20] sm:$0xff]
        %v360 = vld [vmem:[%s4 + $0x28] sm:$0xff]
        %v361 = vld [vmem:[%s4 + $0x30] sm:$0xff]
        %v362 = vld [vmem:[%s4 + $0x38] sm:$0xff]
        %v363 = vld [vmem:[%s4 + $0x40] sm:$0xff]
        %v364 = vld [vmem:[%s4 + $0x48] sm:$0xff]
        %v365 = vld [vmem:[%s4 + $0x50] sm:$0xff]
        %v366 = vld [vmem:[%s4 + $0x58] sm:$0xff]
        %v367 = vld [vmem:[%s4 + $0x60] sm:$0xff]
        %v368 = vld [vmem:[%s4 + $0x68] sm:$0xff]
        %v369 = vld [vmem:[%s4 + $0x70] sm:$0xff]
        %v370 = vld [vmem:[%s4 + $0x78] sm:$0xff]
        %v371 = vld [vmem:[%s4 + $0x80] sm:$0xff]
        %v372 = vld [vmem:[%s4 + $0x88] sm:$0xff]
        %v373 = vld [vmem:[%s4 + $0x90] sm:$0xff]
        %v374 = vld [vmem:[%s4 + $0x98] sm:$0xff]
        %v375 = vld [vmem:[%s4 + $0xa0] sm:$0xff]
        %v376 = vld [vmem:[%s4 + $0xa8] sm:$0xff]
        %v377 = vld [vmem:[%s4 + $0xb0] sm:$0xff]
        %v378 = vld [vmem:[%s4 + $0xb8] sm:$0xff]
        %v379 = vld [vmem:[%s4 + $0xc0] sm:$0xff]
        %v380 = vld [vmem:[%s4 + $0xc8] sm:$0xff]
        %v381 = vld [vmem:[%s4 + $0xd0] sm:$0xff]
        %v382 = vld [vmem:[%s4 + $0xd8] sm:$0xff]
        %v383 = vld [vmem:[%s4 + $0xe0] sm:$0xff]
        %v384 = vld [vmem:[%s4 + $0xe8] sm:$0xff]
        %v385 = vld [vmem:[%s4 + $0xf0] sm:$0xff]
        %v386 = vld [vmem:[%s4 + $0xf8] sm:$0xff]
        %v387 = vld [vmem:[%s4 + $0x100] sm:$0xff]
        %v388 = vld [vmem:[%s4 + $0x108] sm:$0xff]
        %v389 = vld [vmem:[%s4 + $0x110] sm:$0xff]
        %v390 = vld [vmem:[%s4 + $0x118] sm:$0xff]
        %v391 = vld [vmem:[%s4 + $0x120] sm:$0xff]
        %v392 = vld [vmem:[%s4 + $0x128] sm:$0xff]
        %v393 = vld [vmem:[%s4 + $0x130] sm:$0xff]
        %v394 = vld [vmem:[%s4 + $0x138] sm:$0xff]
        %v395 = vld [vmem:[%s4 + $0x140] sm:$0xff]
        %v396 = vld [vmem:[%s4 + $0x148] sm:$0xff]
        %v397 = vld [vmem:[%s4 + $0x150] sm:$0xff]
        %v398 = vld [vmem:[%s4 + $0x158] sm:$0xff]
        %v399 = vld [vmem:[%s4 + $0x160] sm:$0xff]
        %v400 = vld [vmem:[%s4 + $0x168] sm:$0xff]
        %v401 = vld [vmem:[%s4 + $0x170] sm:$0xff]
        %v402 = vld [vmem:[%s4 + $0x178] sm:$0xff]
        %v403 = vld [vmem:[%s4 + $0x180] sm:$0xff]
        %v404 = vld [vmem:[%s4 + $0x188] sm:$0xff]
        %v405 = vld [vmem:[%s4 + $0x190] sm:$0xff]
        %v406 = vld [vmem:[%s4 + $0x198] sm:$0xff]
        %v407 = vld [vmem:[%s4 + $0x1a0] sm:$0xff]
        %v408 = vld [vmem:[%s4 + $0x1a8] sm:$0xff]
        %v409 = vld [vmem:[%s4 + $0x1b0] sm:$0xff]
        %v410 = vld [vmem:[%s4 + $0x1b8] sm:$0xff]
        %v411 = vld [vmem:[%s4 + $0x1c0] sm:$0xff]
        %v412 = vld [vmem:[%s4 + $0x1c8] sm:$0xff]
        %v413 = vld [vmem:[%s4 + $0x1d0] sm:$0xff]
        %v414 = vld [vmem:[%s4 + $0x1d8] sm:$0xff]
        %v415 = vld [vmem:[%s4 + $0x1e0] sm:$0xff]
        %v416 = vld [vmem:[%s4 + $0x1e8] sm:$0xff]
        %v417 = vld [vmem:[%s4 + $0x1f0] sm:$0xff]
        %v418 = vld [vmem:[%s4 + $0x1f8] sm:$0xff]
        %419 = vmatprep.subr.mxu0 0.0
        %420 = vmatpush1.msra.mxu0 %v249
        %421 = vmatprep.subr.mxu0 0.0
        %422 = vmatpush1.msra.mxu0 %v250
        %423 = vmatprep.subr.mxu0 0.0
        %424 = vmatpush1.msra.mxu0 %v251
        %425 = vmatprep.subr.mxu0 0.0
        %426 = vmatpush1.msra.mxu0 %v252
        %427 = vmatprep.subr.mxu0 0.0
        %428 = vmatpush1.msra.mxu0 %v253
        %429 = vmatprep.subr.mxu0 0.0
        %430 = vmatpush1.msra.mxu0 %v254
        %431 = vmatprep.subr.mxu0 0.0
        %432 = vmatpush1.msra.mxu0 %v255
        %433 = vmatprep.subr.mxu0 0.0
        %434 = vmatpush1.msra.mxu0 %v256
        %435 = vmatprep.subr.mxu0 0.0
        %436 = vmatpush1.msra.mxu0 %v257
        %437 = vmatprep.subr.mxu0 0.0
        %438 = vmatpush1.msra.mxu0 %v258
        %439 = vmatprep.subr.mxu0 0.0
        %440 = vmatpush1.msra.mxu0 %v259
        %441 = vmatprep.subr.mxu0 0.0
        %442 = vmatpush1.msra.mxu0 %v260
        %443 = vmatprep.subr.mxu0 0.0
        %444 = vmatpush1.msra.mxu0 %v261
        %445 = vmatprep.subr.mxu0 0.0
        %446 = vmatpush1.msra.mxu0 %v262
        %447 = vmatprep.subr.mxu0 0.0
        %448 = vmatpush1.msra.mxu0 %v263
        %449 = vmatprep.subr.mxu0 0.0
        %450 = vmatpush1.msra.mxu0 %v264
        %451 = vmatprep.subr.mxu0 0.0
        %452 = vmatpush1.msra.mxu0 %v265
        %453 = vmatprep.subr.mxu0 0.0
        %454 = vmatpush1.msra.mxu0 %v266
        %455 = vmatprep.subr.mxu0 0.0
        %456 = vmatpush1.msra.mxu0 %v267
        %457 = vmatprep.subr.mxu0 0.0
        %458 = vmatpush1.msra.mxu0 %v268
        %459 = vmatprep.subr.mxu0 0.0
        %460 = vmatpush1.msra.mxu0 %v269
        %461 = vmatprep.subr.mxu0 0.0
        %462 = vmatpush1.msra.mxu0 %v270
        %463 = vmatprep.subr.mxu0 0.0
        %464 = vmatpush1.msra.mxu0 %v271
        %465 = vmatprep.subr.mxu0 0.0
        %466 = vmatpush1.msra.mxu0 %v272
        %467 = vmatprep.subr.mxu0 0.0
        %468 = vmatpush1.msra.mxu0 %v273
        %469 = vmatprep.subr.mxu0 0.0
        %470 = vmatpush1.msra.mxu0 %v274
        %471 = vmatprep.subr.mxu0 0.0
        %472 = vmatpush1.msra.mxu0 %v275
        %473 = vmatprep.subr.mxu0 0.0
        %474 = vmatpush1.msra.mxu0 %v276
        %475 = vmatprep.subr.mxu0 0.0
        %476 = vmatpush1.msra.mxu0 %v277
        %477 = vmatprep.subr.mxu0 0.0
        %478 = vmatpush1.msra.mxu0 %v278
        %479 = vmatprep.subr.mxu0 0.0
        %480 = vmatpush1.msra.mxu0 %v279
        %481 = vmatprep.subr.mxu0 0.0
        %482 = vmatpush1.msra.mxu0 %v280
        %483 = vmatprep.mubr.f32.mxu0 %v245
        %484 = vmatmul.mubr.f32.gmra.mrb[0].mxu0 %v243
        %v485 = vpop.f32.mrb[0].mxu0
        %v486 = vadd.f32 0.0, %v485
        %v487 = vpop.f32.mrb[0].mxu0
        %488 = vdwg.mxu0
        %490 = vset.pattern.permute.xlu0 0
        %491 = vperm.xlu0 %490, %v355
        %v492 = vpop.permute.xlu0 %491
        %495 = vset.pattern.permute.xlu0 0
        %496 = vperm.xlu0 %495, %v356
        %v497 = vpop.permute.xlu0 %496
        %500 = vset.pattern.permute.xlu0 0
        %501 = vperm.xlu0 %500, %v357
        %v502 = vpop.permute.xlu0 %501
        %505 = vset.pattern.permute.xlu0 0
        %506 = vperm.xlu0 %505, %v358
        %v507 = vpop.permute.xlu0 %506
        %510 = vset.pattern.permute.xlu0 0
        %511 = vperm.xlu0 %510, %v359
        %v512 = vpop.permute.xlu0 %511
        %515 = vset.pattern.permute.xlu0 0
        %516 = vperm.xlu0 %515, %v360
        %v517 = vpop.permute.xlu0 %516
        %520 = vset.pattern.permute.xlu0 0
        %521 = vperm.xlu0 %520, %v361
        %v522 = vpop.permute.xlu0 %521
        %525 = vset.pattern.permute.xlu0 0
        %526 = vperm.xlu0 %525, %v362
        %v527 = vpop.permute.xlu0 %526
        %530 = vset.pattern.permute.xlu0 0
        %531 = vperm.xlu0 %530, %v363
        %v532 = vpop.permute.xlu0 %531
        %535 = vset.pattern.permute.xlu0 0
        %536 = vperm.xlu0 %535, %v364
        %v537 = vpop.permute.xlu0 %536
        %540 = vset.pattern.permute.xlu0 0
        %541 = vperm.xlu0 %540, %v365
        %v542 = vpop.permute.xlu0 %541
        %545 = vset.pattern.permute.xlu0 0
        %546 = vperm.xlu0 %545, %v366
        %v547 = vpop.permute.xlu0 %546
        %550 = vset.pattern.permute.xlu0 0
        %551 = vperm.xlu0 %550, %v367
        %v552 = vpop.permute.xlu0 %551
        %555 = vset.pattern.permute.xlu0 0
        %556 = vperm.xlu0 %555, %v368
        %v557 = vpop.permute.xlu0 %556
        %560 = vset.pattern.permute.xlu0 0
        %561 = vperm.xlu0 %560, %v369
        %v562 = vpop.permute.xlu0 %561
        %565 = vset.pattern.permute.xlu0 0
        %566 = vperm.xlu0 %565, %v370
        %v567 = vpop.permute.xlu0 %566
        %570 = vset.pattern.permute.xlu0 0
        %571 = vperm.xlu0 %570, %v371
        %v572 = vpop.permute.xlu0 %571
        %575 = vset.pattern.permute.xlu0 0
        %576 = vperm.xlu0 %575, %v372
        %v577 = vpop.permute.xlu0 %576
        %580 = vset.pattern.permute.xlu0 0
        %581 = vperm.xlu0 %580, %v373
        %v582 = vpop.permute.xlu0 %581
        %585 = vset.pattern.permute.xlu0 0
        %586 = vperm.xlu0 %585, %v374
        %v587 = vpop.permute.xlu0 %586
        %590 = vset.pattern.permute.xlu0 0
        %591 = vperm.xlu0 %590, %v375
        %v592 = vpop.permute.xlu0 %591
        %595 = vset.pattern.permute.xlu0 0
        %596 = vperm.xlu0 %595, %v376
        %v597 = vpop.permute.xlu0 %596
        %600 = vset.pattern.permute.xlu0 0
        %601 = vperm.xlu0 %600, %v377
        %v602 = vpop.permute.xlu0 %601
        %605 = vset.pattern.permute.xlu0 0
        %606 = vperm.xlu0 %605, %v378
        %v607 = vpop.permute.xlu0 %606
        %610 = vset.pattern.permute.xlu0 0
        %611 = vperm.xlu0 %610, %v379
        %v612 = vpop.permute.xlu0 %611
        %615 = vset.pattern.permute.xlu0 0
        %616 = vperm.xlu0 %615, %v380
        %v617 = vpop.permute.xlu0 %616
        %620 = vset.pattern.permute.xlu0 0
        %621 = vperm.xlu0 %620, %v381
        %v622 = vpop.permute.xlu0 %621
        %625 = vset.pattern.permute.xlu0 0
        %626 = vperm.xlu0 %625, %v382
        %v627 = vpop.permute.xlu0 %626
        %630 = vset.pattern.permute.xlu0 0
        %631 = vperm.xlu0 %630, %v383
        %v632 = vpop.permute.xlu0 %631
        %635 = vset.pattern.permute.xlu0 0
        %636 = vperm.xlu0 %635, %v384
        %v637 = vpop.permute.xlu0 %636
        %640 = vset.pattern.permute.xlu0 0
        %641 = vperm.xlu0 %640, %v385
        %v642 = vpop.permute.xlu0 %641
        %645 = vset.pattern.permute.xlu0 0
        %646 = vperm.xlu0 %645, %v386
        %v647 = vpop.permute.xlu0 %646
        %650 = vset.pattern.permute.xlu0 0
        %651 = vperm.xlu0 %650, %v387
        %v652 = vpop.permute.xlu0 %651
        %655 = vset.pattern.permute.xlu0 0
        %656 = vperm.xlu0 %655, %v388
        %v657 = vpop.permute.xlu0 %656
        %660 = vset.pattern.permute.xlu0 0
        %661 = vperm.xlu0 %660, %v389
        %v662 = vpop.permute.xlu0 %661
        %665 = vset.pattern.permute.xlu0 0
        %666 = vperm.xlu0 %665, %v390
        %v667 = vpop.permute.xlu0 %666
        %670 = vset.pattern.permute.xlu0 0
        %671 = vperm.xlu0 %670, %v391
        %v672 = vpop.permute.xlu0 %671
        %675 = vset.pattern.permute.xlu0 0
        %676 = vperm.xlu0 %675, %v392
        %v677 = vpop.permute.xlu0 %676
        %680 = vset.pattern.permute.xlu0 0
        %681 = vperm.xlu0 %680, %v393
        %v682 = vpop.permute.xlu0 %681
        %685 = vset.pattern.permute.xlu0 0
        %686 = vperm.xlu0 %685, %v394
        %v687 = vpop.permute.xlu0 %686
        %690 = vset.pattern.permute.xlu0 0
        %691 = vperm.xlu0 %690, %v395
        %v692 = vpop.permute.xlu0 %691
        %695 = vset.pattern.permute.xlu0 0
        %696 = vperm.xlu0 %695, %v396
        %v697 = vpop.permute.xlu0 %696
        %700 = vset.pattern.permute.xlu0 0
        %701 = vperm.xlu0 %700, %v397
        %v702 = vpop.permute.xlu0 %701
        %705 = vset.pattern.permute.xlu0 0
        %706 = vperm.xlu0 %705, %v398
        %v707 = vpop.permute.xlu0 %706
        %710 = vset.pattern.permute.xlu0 0
        %711 = vperm.xlu0 %710, %v399
        %v712 = vpop.permute.xlu0 %711
        %715 = vset.pattern.permute.xlu0 0
        %716 = vperm.xlu0 %715, %v400
        %v717 = vpop.permute.xlu0 %716
        %720 = vset.pattern.permute.xlu0 0
        %721 = vperm.xlu0 %720, %v401
        %v722 = vpop.permute.xlu0 %721
        %725 = vset.pattern.permute.xlu0 0
        %726 = vperm.xlu0 %725, %v402
        %v727 = vpop.permute.xlu0 %726
        %730 = vset.pattern.permute.xlu0 0
        %731 = vperm.xlu0 %730, %v403
        %v732 = vpop.permute.xlu0 %731
        %735 = vset.pattern.permute.xlu0 0
        %736 = vperm.xlu0 %735, %v404
        %v737 = vpop.permute.xlu0 %736
        %740 = vset.pattern.permute.xlu0 0
        %741 = vperm.xlu0 %740, %v405
        %v742 = vpop.permute.xlu0 %741
        %745 = vset.pattern.permute.xlu0 0
        %746 = vperm.xlu0 %745, %v406
        %v747 = vpop.permute.xlu0 %746
        %750 = vset.pattern.permute.xlu0 0
        %751 = vperm.xlu0 %750, %v407
        %v752 = vpop.permute.xlu0 %751
        %755 = vset.pattern.permute.xlu0 0
        %756 = vperm.xlu0 %755, %v408
        %v757 = vpop.permute.xlu0 %756
        %760 = vset.pattern.permute.xlu0 0
        %761 = vperm.xlu0 %760, %v409
        %v762 = vpop.permute.xlu0 %761
        %765 = vset.pattern.permute.xlu0 0
        %766 = vperm.xlu0 %765, %v410
        %v767 = vpop.permute.xlu0 %766
        %770 = vset.pattern.permute.xlu0 0
        %771 = vperm.xlu0 %770, %v411
        %v772 = vpop.permute.xlu0 %771
        %775 = vset.pattern.permute.xlu0 0
        %776 = vperm.xlu0 %775, %v412
        %v777 = vpop.permute.xlu0 %776
        %780 = vset.pattern.permute.xlu0 0
        %781 = vperm.xlu0 %780, %v413
        %v782 = vpop.permute.xlu0 %781
        %785 = vset.pattern.permute.xlu0 0
        %786 = vperm.xlu0 %785, %v414
        %v787 = vpop.permute.xlu0 %786
        %790 = vset.pattern.permute.xlu0 0
        %791 = vperm.xlu0 %790, %v415
        %v792 = vpop.permute.xlu0 %791
        %795 = vset.pattern.permute.xlu0 0
        %796 = vperm.xlu0 %795, %v416
        %v797 = vpop.permute.xlu0 %796
        %800 = vset.pattern.permute.xlu0 0
        %801 = vperm.xlu0 %800, %v417
        %v802 = vpop.permute.xlu0 %801
        %805 = vset.pattern.permute.xlu0 0
        %806 = vperm.xlu0 %805, %v418
        %v807 = vpop.permute.xlu0 %806
        %vm809 = vcmask 31744
        %v811 = vsel %vm809, %v291, 0
        %v814 = vsel %vm809, %v292, 0
        %v817 = vsel %vm809, %v293, 0
        %v820 = vsel %vm809, %v294, 0
        %v823 = vsel %vm809, %v295, 0
        %v826 = vsel %vm809, %v296, 0
        %v829 = vsel %vm809, %v297, 0
        %v832 = vsel %vm809, %v298, 0
        %v835 = vsel %vm809, %v299, 0
        %v838 = vsel %vm809, %v300, 0
        %v841 = vsel %vm809, %v301, 0
        %v844 = vsel %vm809, %v302, 0
        %v847 = vsel %vm809, %v303, 0
        %v850 = vsel %vm809, %v304, 0
        %v853 = vsel %vm809, %v305, 0
        %v856 = vsel %vm809, %v306, 0
        %v859 = vsel %vm809, %v307, 0
        %v862 = vsel %vm809, %v308, 0
        %v865 = vsel %vm809, %v309, 0
        %v868 = vsel %vm809, %v310, 0
        %v871 = vsel %vm809, %v311, 0
        %v874 = vsel %vm809, %v312, 0
        %v877 = vsel %vm809, %v313, 0
        %v880 = vsel %vm809, %v314, 0
        %v883 = vsel %vm809, %v315, 0
        %v886 = vsel %vm809, %v316, 0
        %v889 = vsel %vm809, %v317, 0
        %v892 = vsel %vm809, %v318, 0
        %v895 = vsel %vm809, %v319, 0
        %v898 = vsel %vm809, %v320, 0
        %v901 = vsel %vm809, %v321, 0
        %v904 = vsel %vm809, %v322, 0
        %v907 = vsel %vm809, %v323, 0
        %v910 = vsel %vm809, %v324, 0
        %v913 = vsel %vm809, %v325, 0
        %v916 = vsel %vm809, %v326, 0
        %v919 = vsel %vm809, %v327, 0
        %v922 = vsel %vm809, %v328, 0
        %v925 = vsel %vm809, %v329, 0
        %v928 = vsel %vm809, %v330, 0
        %v931 = vsel %vm809, %v331, 0
        %v934 = vsel %vm809, %v332, 0
        %v937 = vsel %vm809, %v333, 0
        %v940 = vsel %vm809, %v334, 0
        %v943 = vsel %vm809, %v335, 0
        %v946 = vsel %vm809, %v336, 0
        %v949 = vsel %vm809, %v337, 0
        %v952 = vsel %vm809, %v338, 0
        %v955 = vsel %vm809, %v339, 0
        %v958 = vsel %vm809, %v340, 0
        %v961 = vsel %vm809, %v341, 0
        %v964 = vsel %vm809, %v342, 0
        %v967 = vsel %vm809, %v343, 0
        %v970 = vsel %vm809, %v344, 0
        %v973 = vsel %vm809, %v345, 0
        %v976 = vsel %vm809, %v346, 0
        %v979 = vsel %vm809, %v347, 0
        %v982 = vsel %vm809, %v348, 0
        %v985 = vsel %vm809, %v349, 0
        %v988 = vsel %vm809, %v350, 0
        %v991 = vsel %vm809, %v351, 0
        %v994 = vsel %vm809, %v352, 0
        %v997 = vsel %vm809, %v353, 0
        %v1000 = vsel %vm809, %v354, 0
        %vm1002 = vcmask 1043456
        %v1004 = vsel %vm1002, %v486, 0
        %1006 = vmatprep.subr.mxu0 0.0
        %1007 = vmatpush1.msra.mxu0 %v1004
        %1008 = vmatprep.subr.mxu0 0.0
        %1009 = vmatpush1.msra.mxu0 0.0
        %1010 = vmatprep.subr.mxu0 0.0
        %1011 = vmatpush1.msra.mxu0 0.0
        %1012 = vmatprep.subr.mxu0 0.0
        %1013 = vmatpush1.msra.mxu0 0.0
        %1014 = vmatprep.subr.mxu0 0.0
        %1015 = vmatpush1.msra.mxu0 0.0
        %1016 = vmatprep.subr.mxu0 0.0
        %1017 = vmatpush1.msra.mxu0 0.0
        %1018 = vmatprep.subr.mxu0 0.0
        %1019 = vmatpush1.msra.mxu0 0.0
        %1020 = vmatprep.subr.mxu0 0.0
        %1021 = vmatpush1.msra.mxu0 0.0
        %1022 = vmatprep.subr.mxu0 0.0
        %1023 = vmatpush1.msra.mxu0 0.0
        %1024 = vmatprep.subr.mxu0 0.0
        %1025 = vmatpush1.msra.mxu0 0.0
        %1026 = vmatprep.subr.mxu0 0.0
        %1027 = vmatpush1.msra.mxu0 0.0
        %1028 = vmatprep.subr.mxu0 0.0
        %1029 = vmatpush1.msra.mxu0 0.0
        %1030 = vmatprep.subr.mxu0 0.0
        %1031 = vmatpush1.msra.mxu0 0.0
        %1032 = vmatprep.subr.mxu0 0.0
        %1033 = vmatpush1.msra.mxu0 0.0
        %1034 = vmatprep.subr.mxu0 0.0
        %1035 = vmatpush1.msra.mxu0 0.0
        %1036 = vmatprep.subr.mxu0 0.0
        %1037 = vmatpush1.msra.mxu0 0.0
        %1038 = vmatprep.subr.mxu0 0.0
        %1039 = vmatpush1.msra.mxu0 0.0
        %1040 = vmatprep.subr.mxu0 0.0
        %1041 = vmatpush1.msra.mxu0 0.0
        %1042 = vmatprep.subr.mxu0 0.0
        %1043 = vmatpush1.msra.mxu0 0.0
        %1044 = vmatprep.subr.mxu0 0.0
        %1045 = vmatpush1.msra.mxu0 0.0
        %1046 = vmatprep.subr.mxu0 0.0
        %1047 = vmatpush1.msra.mxu0 0.0
        %1048 = vmatprep.subr.mxu0 0.0
        %1049 = vmatpush1.msra.mxu0 0.0
        %1050 = vmatprep.subr.mxu0 0.0
        %1051 = vmatpush1.msra.mxu0 0.0
        %1052 = vmatprep.subr.mxu0 0.0
        %1053 = vmatpush1.msra.mxu0 0.0
        %1054 = vmatprep.subr.mxu0 0.0
        %1055 = vmatpush1.msra.mxu0 0.0
        %1056 = vmatprep.subr.mxu0 0.0
        %1057 = vmatpush1.msra.mxu0 0.0
        %1058 = vmatprep.subr.mxu0 0.0
        %1059 = vmatpush1.msra.mxu0 0.0
        %1060 = vmatprep.subr.mxu0 0.0
        %1061 = vmatpush1.msra.mxu0 0.0
        %1062 = vmatprep.subr.mxu0 0.0
        %1063 = vmatpush1.msra.mxu0 0.0
        %1064 = vmatprep.subr.mxu0 0.0
        %1065 = vmatpush1.msra.mxu0 0.0
        %1066 = vmatprep.subr.mxu0 0.0
        %1067 = vmatpush1.msra.mxu0 0.0
        %1068 = vmatprep.subr.mxu0 0.0
        %1069 = vmatpush1.msra.mxu0 0.0
        %1070 = vmatprep.mubr.f32.mxu0 0.0
        %1071 = vmatmul.mubr.f32.gmra.mrb[0].mxu0 %v811
        %v1072 = vpop.f32.mrb[0].mxu0
        %v1073 = vadd.f32 %v492, %v1072
        %v1074 = vpop.f32.mrb[0].mxu0
        %1075 = vmatprep.mubr.f32.mxu0 0.0
        %1076 = vmatmul.mubr.f32.gmra.mrb[0].mxu0 %v814
        %v1077 = vpop.f32.mrb[0].mxu0
        %v1078 = vadd.f32 %v497, %v1077
        %v1079 = vpop.f32.mrb[0].mxu0
        %1080 = vmatprep.mubr.f32.mxu0 0.0
        %1081 = vmatmul.mubr.f32.gmra.mrb[0].mxu0 %v817
        %v1082 = vpop.f32.mrb[0].mxu0
        %v1083 = vadd.f32 %v502, %v1082
        %v1084 = vpop.f32.mrb[0].mxu0
        %1085 = vmatprep.mubr.f32.mxu0 0.0
        %1086 = vmatmul.mubr.f32.gmra.mrb[0].mxu0 %v820
        %v1087 = vpop.f32.mrb[0].mxu0
        %v1088 = vadd.f32 %v507, %v1087
        %v1089 = vpop.f32.mrb[0].mxu0
        %1090 = vmatprep.mubr.f32.mxu0 0.0
        %1091 = vmatmul.mubr.f32.gmra.mrb[0].mxu0 %v823
        %v1092 = vpop.f32.mrb[0].mxu0
        %v1093 = vadd.f32 %v512, %v1092
        %v1094 = vpop.f32.mrb[0].mxu0
        %1095 = vmatprep.mubr.f32.mxu0 0.0
        %1096 = vmatmul.mubr.f32.gmra.mrb[0].mxu0 %v826
        %v1097 = vpop.f32.mrb[0].mxu0
        %v1098 = vadd.f32 %v517, %v1097
        %v1099 = vpop.f32.mrb[0].mxu0
        %1100 = vmatprep.mubr.f32.mxu0 0.0
        %1101 = vmatmul.mubr.f32.gmra.mrb[0].mxu0 %v829
        %v1102 = vpop.f32.mrb[0].mxu0
        %v1103 = vadd.f32 %v522, %v1102
        %v1104 = vpop.f32.mrb[0].mxu0
        %1105 = vmatprep.mubr.f32.mxu0 0.0
        %1106 = vmatmul.mubr.f32.gmra.mrb[0].mxu0 %v832
        %v1107 = vpop.f32.mrb[0].mxu0
        %v1108 = vadd.f32 %v527, %v1107
        %v1109 = vpop.f32.mrb[0].mxu0
        %1110 = vmatprep.mubr.f32.mxu0 0.0
        %1111 = vmatmul.mubr.f32.gmra.mrb[0].mxu0 %v835
        %v1112 = vpop.f32.mrb[0].mxu0
        %v1113 = vadd.f32 %v532, %v1112
        %v1114 = vpop.f32.mrb[0].mxu0
        %1115 = vmatprep.mubr.f32.mxu0 0.0
        %1116 = vmatmul.mubr.f32.gmra.mrb[0].mxu0 %v838
        %v1117 = vpop.f32.mrb[0].mxu0
        %v1118 = vadd.f32 %v537, %v1117
        %v1119 = vpop.f32.mrb[0].mxu0
        %1120 = vmatprep.mubr.f32.mxu0 0.0
        %1121 = vmatmul.mubr.f32.gmra.mrb[0].mxu0 %v841
        %v1122 = vpop.f32.mrb[0].mxu0
        %v1123 = vadd.f32 %v542, %v1122
        %v1124 = vpop.f32.mrb[0].mxu0
        %1125 = vmatprep.mubr.f32.mxu0 0.0
        %1126 = vmatmul.mubr.f32.gmra.mrb[0].mxu0 %v844
        %v1127 = vpop.f32.mrb[0].mxu0
        %v1128 = vadd.f32 %v547, %v1127
        %v1129 = vpop.f32.mrb[0].mxu0
        %1130 = vmatprep.mubr.f32.mxu0 0.0
        %1131 = vmatmul.mubr.f32.gmra.mrb[0].mxu0 %v847
        %v1132 = vpop.f32.mrb[0].mxu0
        %v1133 = vadd.f32 %v552, %v1132
        %v1134 = vpop.f32.mrb[0].mxu0
        %1135 = vmatprep.mubr.f32.mxu0 0.0
        %1136 = vmatmul.mubr.f32.gmra.mrb[0].mxu0 %v850
        %v1137 = vpop.f32.mrb[0].mxu0
        %v1138 = vadd.f32 %v557, %v1137
        %v1139 = vpop.f32.mrb[0].mxu0
        %1140 = vmatprep.mubr.f32.mxu0 0.0
        %1141 = vmatmul.mubr.f32.gmra.mrb[0].mxu0 %v853
        %v1142 = vpop.f32.mrb[0].mxu0
        %v1143 = vadd.f32 %v562, %v1142
        %v1144 = vpop.f32.mrb[0].mxu0
        %1145 = vmatprep.mubr.f32.mxu0 0.0
        %1146 = vmatmul.mubr.f32.gmra.mrb[0].mxu0 %v856
        %v1147 = vpop.f32.mrb[0].mxu0
        %v1148 = vadd.f32 %v567, %v1147
        %v1149 = vpop.f32.mrb[0].mxu0
        %1150 = vmatprep.mubr.f32.mxu0 0.0
        %1151 = vmatmul.mubr.f32.gmra.mrb[0].mxu0 %v859
        %v1152 = vpop.f32.mrb[0].mxu0
        %v1153 = vadd.f32 %v572, %v1152
        %v1154 = vpop.f32.mrb[0].mxu0
        %1155 = vmatprep.mubr.f32.mxu0 0.0
        %1156 = vmatmul.mubr.f32.gmra.mrb[0].mxu0 %v862
        %v1157 = vpop.f32.mrb[0].mxu0
        %v1158 = vadd.f32 %v577, %v1157
        %v1159 = vpop.f32.mrb[0].mxu0
        %1160 = vmatprep.mubr.f32.mxu0 0.0
        %1161 = vmatmul.mubr.f32.gmra.mrb[0].mxu0 %v865
        %v1162 = vpop.f32.mrb[0].mxu0
        %v1163 = vadd.f32 %v582, %v1162
        %v1164 = vpop.f32.mrb[0].mxu0
        %1165 = vmatprep.mubr.f32.mxu0 0.0
        %1166 = vmatmul.mubr.f32.gmra.mrb[0].mxu0 %v868
        %v1167 = vpop.f32.mrb[0].mxu0
        %v1168 = vadd.f32 %v587, %v1167
        %v1169 = vpop.f32.mrb[0].mxu0
        %1170 = vmatprep.mubr.f32.mxu0 0.0
        %1171 = vmatmul.mubr.f32.gmra.mrb[0].mxu0 %v871
        %v1172 = vpop.f32.mrb[0].mxu0
        %v1173 = vadd.f32 %v592, %v1172
        %v1174 = vpop.f32.mrb[0].mxu0
        %1175 = vmatprep.mubr.f32.mxu0 0.0
        %1176 = vmatmul.mubr.f32.gmra.mrb[0].mxu0 %v874
        %v1177 = vpop.f32.mrb[0].mxu0
        %v1178 = vadd.f32 %v597, %v1177
        %v1179 = vpop.f32.mrb[0].mxu0
        %1180 = vmatprep.mubr.f32.mxu0 0.0
        %1181 = vmatmul.mubr.f32.gmra.mrb[0].mxu0 %v877
        %v1182 = vpop.f32.mrb[0].mxu0
        %v1183 = vadd.f32 %v602, %v1182
        %v1184 = vpop.f32.mrb[0].mxu0
        %1185 = vmatprep.mubr.f32.mxu0 0.0
        %1186 = vmatmul.mubr.f32.gmra.mrb[0].mxu0 %v880
        %v1187 = vpop.f32.mrb[0].mxu0
        %v1188 = vadd.f32 %v607, %v1187
        %v1189 = vpop.f32.mrb[0].mxu0
        %1190 = vmatprep.mubr.f32.mxu0 0.0
        %1191 = vmatmul.mubr.f32.gmra.mrb[0].mxu0 %v883
        %v1192 = vpop.f32.mrb[0].mxu0
        %v1193 = vadd.f32 %v612, %v1192
        %v1194 = vpop.f32.mrb[0].mxu0
        %1195 = vmatprep.mubr.f32.mxu0 0.0
        %1196 = vmatmul.mubr.f32.gmra.mrb[0].mxu0 %v886
        %v1197 = vpop.f32.mrb[0].mxu0
        %v1198 = vadd.f32 %v617, %v1197
        %v1199 = vpop.f32.mrb[0].mxu0
        %1200 = vmatprep.mubr.f32.mxu0 0.0
        %1201 = vmatmul.mubr.f32.gmra.mrb[0].mxu0 %v889
        %v1202 = vpop.f32.mrb[0].mxu0
        %v1203 = vadd.f32 %v622, %v1202
        %v1204 = vpop.f32.mrb[0].mxu0
        %1205 = vmatprep.mubr.f32.mxu0 0.0
        %1206 = vmatmul.mubr.f32.gmra.mrb[0].mxu0 %v892
        %v1207 = vpop.f32.mrb[0].mxu0
        %v1208 = vadd.f32 %v627, %v1207
        %v1209 = vpop.f32.mrb[0].mxu0
        %1210 = vmatprep.mubr.f32.mxu0 0.0
        %1211 = vmatmul.mubr.f32.gmra.mrb[0].mxu0 %v895
        %v1212 = vpop.f32.mrb[0].mxu0
        %v1213 = vadd.f32 %v632, %v1212
        %v1214 = vpop.f32.mrb[0].mxu0
        %1215 = vmatprep.mubr.f32.mxu0 0.0
        %1216 = vmatmul.mubr.f32.gmra.mrb[0].mxu0 %v898
        %v1217 = vpop.f32.mrb[0].mxu0
        %v1218 = vadd.f32 %v637, %v1217
        %v1219 = vpop.f32.mrb[0].mxu0
        %1220 = vmatprep.mubr.f32.mxu0 0.0
        %1221 = vmatmul.mubr.f32.gmra.mrb[0].mxu0 %v901
        %v1222 = vpop.f32.mrb[0].mxu0
        %v1223 = vadd.f32 %v642, %v1222
        %v1224 = vpop.f32.mrb[0].mxu0
        %1225 = vmatprep.mubr.f32.mxu0 0.0
        %1226 = vmatmul.mubr.f32.gmra.mrb[0].mxu0 %v904
        %v1227 = vpop.f32.mrb[0].mxu0
        %v1228 = vadd.f32 %v647, %v1227
        %v1229 = vpop.f32.mrb[0].mxu0
        %1230 = vmatprep.mubr.f32.mxu0 0.0
        %1231 = vmatmul.mubr.f32.gmra.mrb[0].mxu0 %v907
        %v1232 = vpop.f32.mrb[0].mxu0
        %v1233 = vadd.f32 %v652, %v1232
        %v1234 = vpop.f32.mrb[0].mxu0
        %1235 = vmatprep.mubr.f32.mxu0 0.0
        %1236 = vmatmul.mubr.f32.gmra.mrb[0].mxu0 %v910
        %v1237 = vpop.f32.mrb[0].mxu0
        %v1238 = vadd.f32 %v657, %v1237
        %v1239 = vpop.f32.mrb[0].mxu0
        %1240 = vmatprep.mubr.f32.mxu0 0.0
        %1241 = vmatmul.mubr.f32.gmra.mrb[0].mxu0 %v913
        %v1242 = vpop.f32.mrb[0].mxu0
        %v1243 = vadd.f32 %v662, %v1242
        %v1244 = vpop.f32.mrb[0].mxu0
        %1245 = vmatprep.mubr.f32.mxu0 0.0
        %1246 = vmatmul.mubr.f32.gmra.mrb[0].mxu0 %v916
        %v1247 = vpop.f32.mrb[0].mxu0
        %v1248 = vadd.f32 %v667, %v1247
        %v1249 = vpop.f32.mrb[0].mxu0
        %1250 = vmatprep.mubr.f32.mxu0 0.0
        %1251 = vmatmul.mubr.f32.gmra.mrb[0].mxu0 %v919
        %v1252 = vpop.f32.mrb[0].mxu0
        %v1253 = vadd.f32 %v672, %v1252
        %v1254 = vpop.f32.mrb[0].mxu0
        %1255 = vmatprep.mubr.f32.mxu0 0.0
        %1256 = vmatmul.mubr.f32.gmra.mrb[0].mxu0 %v922
        %v1257 = vpop.f32.mrb[0].mxu0
        %v1258 = vadd.f32 %v677, %v1257
        %v1259 = vpop.f32.mrb[0].mxu0
        %1260 = vmatprep.mubr.f32.mxu0 0.0
        %1261 = vmatmul.mubr.f32.gmra.mrb[0].mxu0 %v925
        %v1262 = vpop.f32.mrb[0].mxu0
        %v1263 = vadd.f32 %v682, %v1262
        %v1264 = vpop.f32.mrb[0].mxu0
        %1265 = vmatprep.mubr.f32.mxu0 0.0
        %1266 = vmatmul.mubr.f32.gmra.mrb[0].mxu0 %v928
        %v1267 = vpop.f32.mrb[0].mxu0
        %v1268 = vadd.f32 %v687, %v1267
        %v1269 = vpop.f32.mrb[0].mxu0
        %1270 = vmatprep.mubr.f32.mxu0 0.0
        %1271 = vmatmul.mubr.f32.gmra.mrb[0].mxu0 %v931
        %v1272 = vpop.f32.mrb[0].mxu0
        %v1273 = vadd.f32 %v692, %v1272
        %v1274 = vpop.f32.mrb[0].mxu0
        %1275 = vmatprep.mubr.f32.mxu0 0.0
        %1276 = vmatmul.mubr.f32.gmra.mrb[0].mxu0 %v934
        %v1277 = vpop.f32.mrb[0].mxu0
        %v1278 = vadd.f32 %v697, %v1277
        %v1279 = vpop.f32.mrb[0].mxu0
        %1280 = vmatprep.mubr.f32.mxu0 0.0
        %1281 = vmatmul.mubr.f32.gmra.mrb[0].mxu0 %v937
        %v1282 = vpop.f32.mrb[0].mxu0
        %v1283 = vadd.f32 %v702, %v1282
        %v1284 = vpop.f32.mrb[0].mxu0
        %1285 = vmatprep.mubr.f32.mxu0 0.0
        %1286 = vmatmul.mubr.f32.gmra.mrb[0].mxu0 %v940
        %v1287 = vpop.f32.mrb[0].mxu0
        %v1288 = vadd.f32 %v707, %v1287
        %v1289 = vpop.f32.mrb[0].mxu0
        %1290 = vmatprep.mubr.f32.mxu0 0.0
        %1291 = vmatmul.mubr.f32.gmra.mrb[0].mxu0 %v943
        %v1292 = vpop.f32.mrb[0].mxu0
        %v1293 = vadd.f32 %v712, %v1292
        %v1294 = vpop.f32.mrb[0].mxu0
        %1295 = vmatprep.mubr.f32.mxu0 0.0
        %1296 = vmatmul.mubr.f32.gmra.mrb[0].mxu0 %v946
        %v1297 = vpop.f32.mrb[0].mxu0
        %v1298 = vadd.f32 %v717, %v1297
        %v1299 = vpop.f32.mrb[0].mxu0
        %1300 = vmatprep.mubr.f32.mxu0 0.0
        %1301 = vmatmul.mubr.f32.gmra.mrb[0].mxu0 %v949
        %v1302 = vpop.f32.mrb[0].mxu0
        %v1303 = vadd.f32 %v722, %v1302
        %v1304 = vpop.f32.mrb[0].mxu0
        %1305 = vmatprep.mubr.f32.mxu0 0.0
        %1306 = vmatmul.mubr.f32.gmra.mrb[0].mxu0 %v952
        %v1307 = vpop.f32.mrb[0].mxu0
        %v1308 = vadd.f32 %v727, %v1307
        %v1309 = vpop.f32.mrb[0].mxu0
        %1310 = vmatprep.mubr.f32.mxu0 0.0
        %1311 = vmatmul.mubr.f32.gmra.mrb[0].mxu0 %v955
        %v1312 = vpop.f32.mrb[0].mxu0
        %v1313 = vadd.f32 %v732, %v1312
        %v1314 = vpop.f32.mrb[0].mxu0
        %1315 = vmatprep.mubr.f32.mxu0 0.0
        %1316 = vmatmul.mubr.f32.gmra.mrb[0].mxu0 %v958
        %v1317 = vpop.f32.mrb[0].mxu0
        %v1318 = vadd.f32 %v737, %v1317
        %v1319 = vpop.f32.mrb[0].mxu0
        %1320 = vmatprep.mubr.f32.mxu0 0.0
        %1321 = vmatmul.mubr.f32.gmra.mrb[0].mxu0 %v961
        %v1322 = vpop.f32.mrb[0].mxu0
        %v1323 = vadd.f32 %v742, %v1322
        %v1324 = vpop.f32.mrb[0].mxu0
        %1325 = vmatprep.mubr.f32.mxu0 0.0
        %1326 = vmatmul.mubr.f32.gmra.mrb[0].mxu0 %v964
        %v1327 = vpop.f32.mrb[0].mxu0
        %v1328 = vadd.f32 %v747, %v1327
        %v1329 = vpop.f32.mrb[0].mxu0
        %1330 = vmatprep.mubr.f32.mxu0 0.0
        %1331 = vmatmul.mubr.f32.gmra.mrb[0].mxu0 %v967
        %v1332 = vpop.f32.mrb[0].mxu0
        %v1333 = vadd.f32 %v752, %v1332
        %v1334 = vpop.f32.mrb[0].mxu0
        %1335 = vmatprep.mubr.f32.mxu0 0.0
        %1336 = vmatmul.mubr.f32.gmra.mrb[0].mxu0 %v970
        %v1337 = vpop.f32.mrb[0].mxu0
        %v1338 = vadd.f32 %v757, %v1337
        %v1339 = vpop.f32.mrb[0].mxu0
        %1340 = vmatprep.mubr.f32.mxu0 0.0
        %1341 = vmatmul.mubr.f32.gmra.mrb[0].mxu0 %v973
        %v1342 = vpop.f32.mrb[0].mxu0
        %v1343 = vadd.f32 %v762, %v1342
        %v1344 = vpop.f32.mrb[0].mxu0
        %1345 = vmatprep.mubr.f32.mxu0 0.0
        %1346 = vmatmul.mubr.f32.gmra.mrb[0].mxu0 %v976
        %v1347 = vpop.f32.mrb[0].mxu0
        %v1348 = vadd.f32 %v767, %v1347
        %v1349 = vpop.f32.mrb[0].mxu0
        %1350 = vmatprep.mubr.f32.mxu0 0.0
        %1351 = vmatmul.mubr.f32.gmra.mrb[0].mxu0 %v979
        %v1352 = vpop.f32.mrb[0].mxu0
        %v1353 = vadd.f32 %v772, %v1352
        %v1354 = vpop.f32.mrb[0].mxu0
        %1355 = vmatprep.mubr.f32.mxu0 0.0
        %1356 = vmatmul.mubr.f32.gmra.mrb[0].mxu0 %v982
        %v1357 = vpop.f32.mrb[0].mxu0
        %v1358 = vadd.f32 %v777, %v1357
        %v1359 = vpop.f32.mrb[0].mxu0
        %1360 = vmatprep.mubr.f32.mxu0 0.0
        %1361 = vmatmul.mubr.f32.gmra.mrb[0].mxu0 %v985
        %v1362 = vpop.f32.mrb[0].mxu0
        %v1363 = vadd.f32 %v782, %v1362
        %v1364 = vpop.f32.mrb[0].mxu0
        %1365 = vmatprep.mubr.f32.mxu0 0.0
        %1366 = vmatmul.mubr.f32.gmra.mrb[0].mxu0 %v988
        %v1367 = vpop.f32.mrb[0].mxu0
        %v1368 = vadd.f32 %v787, %v1367
        %v1369 = vpop.f32.mrb[0].mxu0
        %1370 = vmatprep.mubr.f32.mxu0 0.0
        %1371 = vmatmul.mubr.f32.gmra.mrb[0].mxu0 %v991
        %v1372 = vpop.f32.mrb[0].mxu0
        %v1373 = vadd.f32 %v792, %v1372
        %v1374 = vpop.f32.mrb[0].mxu0
        %1375 = vmatprep.mubr.f32.mxu0 0.0
        %1376 = vmatmul.mubr.f32.gmra.mrb[0].mxu0 %v994
        %v1377 = vpop.f32.mrb[0].mxu0
        %v1378 = vadd.f32 %v797, %v1377
        %v1379 = vpop.f32.mrb[0].mxu0
        %1380 = vmatprep.mubr.f32.mxu0 0.0
        %1381 = vmatmul.mubr.f32.gmra.mrb[0].mxu0 %v997
        %v1382 = vpop.f32.mrb[0].mxu0
        %v1383 = vadd.f32 %v802, %v1382
        %v1384 = vpop.f32.mrb[0].mxu0
        %1385 = vmatprep.mubr.f32.mxu0 0.0
        %1386 = vmatmul.mubr.f32.gmra.mrb[0].mxu0 %v1000
        %v1387 = vpop.f32.mrb[0].mxu0
        %v1388 = vadd.f32 %v807, %v1387
        %v1389 = vpop.f32.mrb[0].mxu0
        %1390 = vdwg.mxu0
        %vm1391 = vcmask 293888
        %v1393 = vsel %vm1391, %v1073, 0
        %v1396 = vsel %vm1391, %v1078, 0
        %v1399 = vsel %vm1391, %v1083, 0
        %v1402 = vsel %vm1391, %v1088, 0
        %v1405 = vsel %vm1391, %v1093, 0
        %v1408 = vsel %vm1391, %v1098, 0
        %v1411 = vsel %vm1391, %v1103, 0
        %v1414 = vsel %vm1391, %v1108, 0
        %v1417 = vsel %vm1391, %v1113, 0
        %v1420 = vsel %vm1391, %v1118, 0
        %v1423 = vsel %vm1391, %v1123, 0
        %v1426 = vsel %vm1391, %v1128, 0
        %v1429 = vsel %vm1391, %v1133, 0
        %v1432 = vsel %vm1391, %v1138, 0
        %v1435 = vsel %vm1391, %v1143, 0
        %v1438 = vsel %vm1391, %v1148, 0
        %v1441 = vsel %vm1391, %v1153, 0
        %v1444 = vsel %vm1391, %v1158, 0
        %v1447 = vsel %vm1391, %v1163, 0
        %v1450 = vsel %vm1391, %v1168, 0
        %v1453 = vsel %vm1391, %v1173, 0
        %v1456 = vsel %vm1391, %v1178, 0
        %v1459 = vsel %vm1391, %v1183, 0
        %v1462 = vsel %vm1391, %v1188, 0
        %v1465 = vsel %vm1391, %v1193, 0
        %v1468 = vsel %vm1391, %v1198, 0
        %v1471 = vsel %vm1391, %v1203, 0
        %v1474 = vsel %vm1391, %v1208, 0
        %v1477 = vsel %vm1391, %v1213, 0
        %v1480 = vsel %vm1391, %v1218, 0
        %v1483 = vsel %vm1391, %v1223, 0
        %v1486 = vsel %vm1391, %v1228, 0
        %v1489 = vsel %vm1391, %v1233, 0
        %v1492 = vsel %vm1391, %v1238, 0
        %v1495 = vsel %vm1391, %v1243, 0
        %v1498 = vsel %vm1391, %v1248, 0
        %v1501 = vsel %vm1391, %v1253, 0
        %v1504 = vsel %vm1391, %v1258, 0
        %v1507 = vsel %vm1391, %v1263, 0
        %v1510 = vsel %vm1391, %v1268, 0
        %v1513 = vsel %vm1391, %v1273, 0
        %v1516 = vsel %vm1391, %v1278, 0
        %v1519 = vsel %vm1391, %v1283, 0
        %v1522 = vsel %vm1391, %v1288, 0
        %v1525 = vsel %vm1391, %v1293, 0
        %v1528 = vsel %vm1391, %v1298, 0
        %v1531 = vsel %vm1391, %v1303, 0
        %v1534 = vsel %vm1391, %v1308, 0
        %v1537 = vsel %vm1391, %v1313, 0
        %v1540 = vsel %vm1391, %v1318, 0
        %v1543 = vsel %vm1391, %v1323, 0
        %v1546 = vsel %vm1391, %v1328, 0
        %v1549 = vsel %vm1391, %v1333, 0
        %v1552 = vsel %vm1391, %v1338, 0
        %v1555 = vsel %vm1391, %v1343, 0
        %v1558 = vsel %vm1391, %v1348, 0
        %v1561 = vsel %vm1391, %v1353, 0
        %v1564 = vsel %vm1391, %v1358, 0
        %v1567 = vsel %vm1391, %v1363, 0
        %v1570 = vsel %vm1391, %v1368, 0
        %v1573 = vsel %vm1391, %v1373, 0
        %v1576 = vsel %vm1391, %v1378, 0
        %v1579 = vsel %vm1391, %v1383, 0
        %v1582 = vsel %vm1391, %v1388, 0
        %v1585 = vsel %vm1002, %v289, 0
        %v1588 = vsel %vm1002, %v290, 0
        %1590 = vmatprep.subr.mxu0 %v282
        %1591 = vmatpush1.msra.mxu0 %v281
        %1592 = vmatprep.subr.mxu0 %v284
        %1593 = vmatpush1.msra.mxu0 %v283
        %1594 = vmatprep.subr.mxu0 %v286
        %1595 = vmatpush1.msra.mxu0 %v285
        %1596 = vmatprep.subr.mxu0 %v288
        %1597 = vmatpush1.msra.mxu0 %v287
        %1598 = vmatprep.subr.mxu0 %v1588
        %1599 = vmatpush1.msra.mxu0 %v1585
        %1600 = vmatprep.subr.mxu0 0.0
        %1601 = vmatpush1.msra.mxu0 0.0
        %1602 = vmatprep.subr.mxu0 0.0
        %1603 = vmatpush1.msra.mxu0 0.0
        %1604 = vmatprep.subr.mxu0 0.0
        %1605 = vmatpush1.msra.mxu0 0.0
        %1606 = vmatprep.subr.mxu0 0.0
        %1607 = vmatpush1.msra.mxu0 0.0
        %1608 = vmatprep.subr.mxu0 0.0
        %1609 = vmatpush1.msra.mxu0 0.0
        %1610 = vmatprep.subr.mxu0 0.0
        %1611 = vmatpush1.msra.mxu0 0.0
        %1612 = vmatprep.subr.mxu0 0.0
        %1613 = vmatpush1.msra.mxu0 0.0
        %1614 = vmatprep.subr.mxu0 0.0
        %1615 = vmatpush1.msra.mxu0 0.0
        %1616 = vmatprep.subr.mxu0 0.0
        %1617 = vmatpush1.msra.mxu0 0.0
        %1618 = vmatprep.subr.mxu0 0.0
        %1619 = vmatpush1.msra.mxu0 0.0
        %1620 = vmatprep.subr.mxu0 0.0
        %1621 = vmatpush1.msra.mxu0 0.0
        %1622 = vmatprep.subr.mxu0 0.0
        %1623 = vmatpush1.msra.mxu0 0.0
        %1624 = vmatprep.subr.mxu0 0.0
        %1625 = vmatpush1.msra.mxu0 0.0
        %1626 = vmatprep.subr.mxu0 0.0
        %1627 = vmatpush1.msra.mxu0 0.0
        %1628 = vmatprep.subr.mxu0 0.0
        %1629 = vmatpush1.msra.mxu0 0.0
        %1630 = vmatprep.subr.mxu0 0.0
        %1631 = vmatpush1.msra.mxu0 0.0
        %1632 = vmatprep.subr.mxu0 0.0
        %1633 = vmatpush1.msra.mxu0 0.0
        %1634 = vmatprep.subr.mxu0 0.0
        %1635 = vmatpush1.msra.mxu0 0.0
        %1636 = vmatprep.subr.mxu0 0.0
        %1637 = vmatpush1.msra.mxu0 0.0
        %1638 = vmatprep.subr.mxu0 0.0
        %1639 = vmatpush1.msra.mxu0 0.0
        %1640 = vmatprep.subr.mxu0 0.0
        %1641 = vmatpush1.msra.mxu0 0.0
        %1642 = vmatprep.subr.mxu0 0.0
        %1643 = vmatpush1.msra.mxu0 0.0
        %1644 = vmatprep.subr.mxu0 0.0
        %1645 = vmatpush1.msra.mxu0 0.0
        %1646 = vmatprep.subr.mxu0 0.0
        %1647 = vmatpush1.msra.mxu0 0.0
        %1648 = vmatprep.subr.mxu0 0.0
        %1649 = vmatpush1.msra.mxu0 0.0
        %1650 = vmatprep.subr.mxu0 0.0
        %1651 = vmatpush1.msra.mxu0 0.0
        %1652 = vmatprep.subr.mxu0 0.0
        %1653 = vmatpush1.msra.mxu0 0.0
        %1654 = vmatprep.mubr.f32.mxu0 0.0
        %1655 = vmatmul.mubr.f32.gmra.mrb[0].mxu0 %v1393
        %v1656 = vpop.f32.mrb[0].mxu0
        %v1657 = vadd.f32 0.0, %v1656
        %v1658 = vpop.f32.mrb[0].mxu0
        %v1659 = vadd.f32 0.0, %v1658
        %1660 = vmatprep.mubr.f32.mxu0 0.0
        %1661 = vmatmul.mubr.f32.gmra.mrb[0].mxu0 %v1396
        %v1662 = vpop.f32.mrb[0].mxu0
        %v1663 = vadd.f32 0.0, %v1662
        %v1664 = vpop.f32.mrb[0].mxu0
        %v1665 = vadd.f32 0.0, %v1664
        %1666 = vmatprep.mubr.f32.mxu0 0.0
        %1667 = vmatmul.mubr.f32.gmra.mrb[0].mxu0 %v1399
        %v1668 = vpop.f32.mrb[0].mxu0
        %v1669 = vadd.f32 0.0, %v1668
        %v1670 = vpop.f32.mrb[0].mxu0
        %v1671 = vadd.f32 0.0, %v1670
        %1672 = vmatprep.mubr.f32.mxu0 0.0
        %1673 = vmatmul.mubr.f32.gmra.mrb[0].mxu0 %v1402
        %v1674 = vpop.f32.mrb[0].mxu0
        %v1675 = vadd.f32 0.0, %v1674
        %v1676 = vpop.f32.mrb[0].mxu0
        %v1677 = vadd.f32 0.0, %v1676
        %1678 = vmatprep.mubr.f32.mxu0 0.0
        %1679 = vmatmul.mubr.f32.gmra.mrb[0].mxu0 %v1405
        %v1680 = vpop.f32.mrb[0].mxu0
        %v1681 = vadd.f32 0.0, %v1680
        %v1682 = vpop.f32.mrb[0].mxu0
        %v1683 = vadd.f32 0.0, %v1682
        %1684 = vmatprep.mubr.f32.mxu0 0.0
        %1685 = vmatmul.mubr.f32.gmra.mrb[0].mxu0 %v1408
        %v1686 = vpop.f32.mrb[0].mxu0
        %v1687 = vadd.f32 0.0, %v1686
        %v1688 = vpop.f32.mrb[0].mxu0
        %v1689 = vadd.f32 0.0, %v1688
        %1690 = vmatprep.mubr.f32.mxu0 0.0
        %1691 = vmatmul.mubr.f32.gmra.mrb[0].mxu0 %v1411
        %v1692 = vpop.f32.mrb[0].mxu0
        %v1693 = vadd.f32 0.0, %v1692
        %v1694 = vpop.f32.mrb[0].mxu0
        %v1695 = vadd.f32 0.0, %v1694
        %1696 = vmatprep.mubr.f32.mxu0 0.0
        %1697 = vmatmul.mubr.f32.gmra.mrb[0].mxu0 %v1414
        %v1698 = vpop.f32.mrb[0].mxu0
        %v1699 = vadd.f32 0.0, %v1698
        %v1700 = vpop.f32.mrb[0].mxu0
        %v1701 = vadd.f32 0.0, %v1700
        %1702 = vmatprep.mubr.f32.mxu0 0.0
        %1703 = vmatmul.mubr.f32.gmra.mrb[0].mxu0 %v1417
        %v1704 = vpop.f32.mrb[0].mxu0
        %v1705 = vadd.f32 0.0, %v1704
        %v1706 = vpop.f32.mrb[0].mxu0
        %v1707 = vadd.f32 0.0, %v1706
        %1708 = vmatprep.mubr.f32.mxu0 0.0
        %1709 = vmatmul.mubr.f32.gmra.mrb[0].mxu0 %v1420
        %v1710 = vpop.f32.mrb[0].mxu0
        %v1711 = vadd.f32 0.0, %v1710
        %v1712 = vpop.f32.mrb[0].mxu0
        %v1713 = vadd.f32 0.0, %v1712
        %1714 = vmatprep.mubr.f32.mxu0 0.0
        %1715 = vmatmul.mubr.f32.gmra.mrb[0].mxu0 %v1423
        %v1716 = vpop.f32.mrb[0].mxu0
        %v1717 = vadd.f32 0.0, %v1716
        %v1718 = vpop.f32.mrb[0].mxu0
        %v1719 = vadd.f32 0.0, %v1718
        %1720 = vmatprep.mubr.f32.mxu0 0.0
        %1721 = vmatmul.mubr.f32.gmra.mrb[0].mxu0 %v1426
        %v1722 = vpop.f32.mrb[0].mxu0
        %v1723 = vadd.f32 0.0, %v1722
        %v1724 = vpop.f32.mrb[0].mxu0
        %v1725 = vadd.f32 0.0, %v1724
        %1726 = vmatprep.mubr.f32.mxu0 0.0
        %1727 = vmatmul.mubr.f32.gmra.mrb[0].mxu0 %v1429
        %v1728 = vpop.f32.mrb[0].mxu0
        %v1729 = vadd.f32 0.0, %v1728
        %v1730 = vpop.f32.mrb[0].mxu0
        %v1731 = vadd.f32 0.0, %v1730
        %1732 = vmatprep.mubr.f32.mxu0 0.0
        %1733 = vmatmul.mubr.f32.gmra.mrb[0].mxu0 %v1432
        %v1734 = vpop.f32.mrb[0].mxu0
        %v1735 = vadd.f32 0.0, %v1734
        %v1736 = vpop.f32.mrb[0].mxu0
        %v1737 = vadd.f32 0.0, %v1736
        %1738 = vmatprep.mubr.f32.mxu0 0.0
        %1739 = vmatmul.mubr.f32.gmra.mrb[0].mxu0 %v1435
        %v1740 = vpop.f32.mrb[0].mxu0
        %v1741 = vadd.f32 0.0, %v1740
        %v1742 = vpop.f32.mrb[0].mxu0
        %v1743 = vadd.f32 0.0, %v1742
        %1744 = vmatprep.mubr.f32.mxu0 0.0
        %1745 = vmatmul.mubr.f32.gmra.mrb[0].mxu0 %v1438
        %v1746 = vpop.f32.mrb[0].mxu0
        %v1747 = vadd.f32 0.0, %v1746
        %v1748 = vpop.f32.mrb[0].mxu0
        %v1749 = vadd.f32 0.0, %v1748
        %1750 = vmatprep.mubr.f32.mxu0 0.0
        %1751 = vmatmul.mubr.f32.gmra.mrb[0].mxu0 %v1441
        %v1752 = vpop.f32.mrb[0].mxu0
        %v1753 = vadd.f32 0.0, %v1752
        %v1754 = vpop.f32.mrb[0].mxu0
        %v1755 = vadd.f32 0.0, %v1754
        %1756 = vmatprep.mubr.f32.mxu0 0.0
        %1757 = vmatmul.mubr.f32.gmra.mrb[0].mxu0 %v1444
        %v1758 = vpop.f32.mrb[0].mxu0
        %v1759 = vadd.f32 0.0, %v1758
        %v1760 = vpop.f32.mrb[0].mxu0
        %v1761 = vadd.f32 0.0, %v1760
        %1762 = vmatprep.mubr.f32.mxu0 0.0
        %1763 = vmatmul.mubr.f32.gmra.mrb[0].mxu0 %v1447
        %v1764 = vpop.f32.mrb[0].mxu0
        %v1765 = vadd.f32 0.0, %v1764
        %v1766 = vpop.f32.mrb[0].mxu0
        %v1767 = vadd.f32 0.0, %v1766
        %1768 = vmatprep.mubr.f32.mxu0 0.0
        %1769 = vmatmul.mubr.f32.gmra.mrb[0].mxu0 %v1450
        %v1770 = vpop.f32.mrb[0].mxu0
        %v1771 = vadd.f32 0.0, %v1770
        %v1772 = vpop.f32.mrb[0].mxu0
        %v1773 = vadd.f32 0.0, %v1772
        %1774 = vmatprep.mubr.f32.mxu0 0.0
        %1775 = vmatmul.mubr.f32.gmra.mrb[0].mxu0 %v1453
        %v1776 = vpop.f32.mrb[0].mxu0
        %v1777 = vadd.f32 0.0, %v1776
        %v1778 = vpop.f32.mrb[0].mxu0
        %v1779 = vadd.f32 0.0, %v1778
        %1780 = vmatprep.mubr.f32.mxu0 0.0
        %1781 = vmatmul.mubr.f32.gmra.mrb[0].mxu0 %v1456
        %v1782 = vpop.f32.mrb[0].mxu0
        %v1783 = vadd.f32 0.0, %v1782
        %v1784 = vpop.f32.mrb[0].mxu0
        %v1785 = vadd.f32 0.0, %v1784
        %1786 = vmatprep.mubr.f32.mxu0 0.0
        %1787 = vmatmul.mubr.f32.gmra.mrb[0].mxu0 %v1459
        %v1788 = vpop.f32.mrb[0].mxu0
        %v1789 = vadd.f32 0.0, %v1788
        %v1790 = vpop.f32.mrb[0].mxu0
        %v1791 = vadd.f32 0.0, %v1790
        %1792 = vmatprep.mubr.f32.mxu0 0.0
        %1793 = vmatmul.mubr.f32.gmra.mrb[0].mxu0 %v1462
        %v1794 = vpop.f32.mrb[0].mxu0
        %v1795 = vadd.f32 0.0, %v1794
        %v1796 = vpop.f32.mrb[0].mxu0
        %v1797 = vadd.f32 0.0, %v1796
        %1798 = vmatprep.mubr.f32.mxu0 0.0
        %1799 = vmatmul.mubr.f32.gmra.mrb[0].mxu0 %v1465
        %v1800 = vpop.f32.mrb[0].mxu0
        %v1801 = vadd.f32 0.0, %v1800
        %v1802 = vpop.f32.mrb[0].mxu0
        %v1803 = vadd.f32 0.0, %v1802
        %1804 = vmatprep.mubr.f32.mxu0 0.0
        %1805 = vmatmul.mubr.f32.gmra.mrb[0].mxu0 %v1468
        %v1806 = vpop.f32.mrb[0].mxu0
        %v1807 = vadd.f32 0.0, %v1806
        %v1808 = vpop.f32.mrb[0].mxu0
        %v1809 = vadd.f32 0.0, %v1808
        %1810 = vmatprep.mubr.f32.mxu0 0.0
        %1811 = vmatmul.mubr.f32.gmra.mrb[0].mxu0 %v1471
        %v1812 = vpop.f32.mrb[0].mxu0
        %v1813 = vadd.f32 0.0, %v1812
        %v1814 = vpop.f32.mrb[0].mxu0
        %v1815 = vadd.f32 0.0, %v1814
        %1816 = vmatprep.mubr.f32.mxu0 0.0
        %1817 = vmatmul.mubr.f32.gmra.mrb[0].mxu0 %v1474
        %v1818 = vpop.f32.mrb[0].mxu0
        %v1819 = vadd.f32 0.0, %v1818
        %v1820 = vpop.f32.mrb[0].mxu0
        %v1821 = vadd.f32 0.0, %v1820
        %1822 = vmatprep.mubr.f32.mxu0 0.0
        %1823 = vmatmul.mubr.f32.gmra.mrb[0].mxu0 %v1477
        %v1824 = vpop.f32.mrb[0].mxu0
        %v1825 = vadd.f32 0.0, %v1824
        %v1826 = vpop.f32.mrb[0].mxu0
        %v1827 = vadd.f32 0.0, %v1826
        %1828 = vmatprep.mubr.f32.mxu0 0.0
        %1829 = vmatmul.mubr.f32.gmra.mrb[0].mxu0 %v1480
        %v1830 = vpop.f32.mrb[0].mxu0
        %v1831 = vadd.f32 0.0, %v1830
        %v1832 = vpop.f32.mrb[0].mxu0
        %v1833 = vadd.f32 0.0, %v1832
        %1834 = vmatprep.mubr.f32.mxu0 0.0
        %1835 = vmatmul.mubr.f32.gmra.mrb[0].mxu0 %v1483
        %v1836 = vpop.f32.mrb[0].mxu0
        %v1837 = vadd.f32 0.0, %v1836
        %v1838 = vpop.f32.mrb[0].mxu0
        %v1839 = vadd.f32 0.0, %v1838
        %1840 = vmatprep.mubr.f32.mxu0 0.0
        %1841 = vmatmul.mubr.f32.gmra.mrb[0].mxu0 %v1486
        %v1842 = vpop.f32.mrb[0].mxu0
        %v1843 = vadd.f32 0.0, %v1842
        %v1844 = vpop.f32.mrb[0].mxu0
        %v1845 = vadd.f32 0.0, %v1844
        %1846 = vmatprep.mubr.f32.mxu0 0.0
        %1847 = vmatmul.mubr.f32.gmra.mrb[0].mxu0 %v1489
        %v1848 = vpop.f32.mrb[0].mxu0
        %v1849 = vadd.f32 0.0, %v1848
        %v1850 = vpop.f32.mrb[0].mxu0
        %v1851 = vadd.f32 0.0, %v1850
        %1852 = vmatprep.mubr.f32.mxu0 0.0
        %1853 = vmatmul.mubr.f32.gmra.mrb[0].mxu0 %v1492
        %v1854 = vpop.f32.mrb[0].mxu0
        %v1855 = vadd.f32 0.0, %v1854
        %v1856 = vpop.f32.mrb[0].mxu0
        %v1857 = vadd.f32 0.0, %v1856
        %1858 = vmatprep.mubr.f32.mxu0 0.0
        %1859 = vmatmul.mubr.f32.gmra.mrb[0].mxu0 %v1495
        %v1860 = vpop.f32.mrb[0].mxu0
        %v1861 = vadd.f32 0.0, %v1860
        %v1862 = vpop.f32.mrb[0].mxu0
        %v1863 = vadd.f32 0.0, %v1862
        %1864 = vmatprep.mubr.f32.mxu0 0.0
        %1865 = vmatmul.mubr.f32.gmra.mrb[0].mxu0 %v1498
        %v1866 = vpop.f32.mrb[0].mxu0
        %v1867 = vadd.f32 0.0, %v1866
        %v1868 = vpop.f32.mrb[0].mxu0
        %v1869 = vadd.f32 0.0, %v1868
        %1870 = vmatprep.mubr.f32.mxu0 0.0
        %1871 = vmatmul.mubr.f32.gmra.mrb[0].mxu0 %v1501
        %v1872 = vpop.f32.mrb[0].mxu0
        %v1873 = vadd.f32 0.0, %v1872
        %v1874 = vpop.f32.mrb[0].mxu0
        %v1875 = vadd.f32 0.0, %v1874
        %1876 = vmatprep.mubr.f32.mxu0 0.0
        %1877 = vmatmul.mubr.f32.gmra.mrb[0].mxu0 %v1504
        %v1878 = vpop.f32.mrb[0].mxu0
        %v1879 = vadd.f32 0.0, %v1878
        %v1880 = vpop.f32.mrb[0].mxu0
        %v1881 = vadd.f32 0.0, %v1880
        %1882 = vmatprep.mubr.f32.mxu0 0.0
        %1883 = vmatmul.mubr.f32.gmra.mrb[0].mxu0 %v1507
        %v1884 = vpop.f32.mrb[0].mxu0
        %v1885 = vadd.f32 0.0, %v1884
        %v1886 = vpop.f32.mrb[0].mxu0
        %v1887 = vadd.f32 0.0, %v1886
        %1888 = vmatprep.mubr.f32.mxu0 0.0
        %1889 = vmatmul.mubr.f32.gmra.mrb[0].mxu0 %v1510
        %v1890 = vpop.f32.mrb[0].mxu0
        %v1891 = vadd.f32 0.0, %v1890
        %v1892 = vpop.f32.mrb[0].mxu0
        %v1893 = vadd.f32 0.0, %v1892
        %1894 = vmatprep.mubr.f32.mxu0 0.0
        %1895 = vmatmul.mubr.f32.gmra.mrb[0].mxu0 %v1513
        %v1896 = vpop.f32.mrb[0].mxu0
        %v1897 = vadd.f32 0.0, %v1896
        %v1898 = vpop.f32.mrb[0].mxu0
        %v1899 = vadd.f32 0.0, %v1898
        %1900 = vmatprep.mubr.f32.mxu0 0.0
        %1901 = vmatmul.mubr.f32.gmra.mrb[0].mxu0 %v1516
        %v1902 = vpop.f32.mrb[0].mxu0
        %v1903 = vadd.f32 0.0, %v1902
        %v1904 = vpop.f32.mrb[0].mxu0
        %v1905 = vadd.f32 0.0, %v1904
        %1906 = vmatprep.mubr.f32.mxu0 0.0
        %1907 = vmatmul.mubr.f32.gmra.mrb[0].mxu0 %v1519
        %v1908 = vpop.f32.mrb[0].mxu0
        %v1909 = vadd.f32 0.0, %v1908
        %v1910 = vpop.f32.mrb[0].mxu0
        %v1911 = vadd.f32 0.0, %v1910
        %1912 = vmatprep.mubr.f32.mxu0 0.0
        %1913 = vmatmul.mubr.f32.gmra.mrb[0].mxu0 %v1522
        %v1914 = vpop.f32.mrb[0].mxu0
        %v1915 = vadd.f32 0.0, %v1914
        %v1916 = vpop.f32.mrb[0].mxu0
        %v1917 = vadd.f32 0.0, %v1916
        %1918 = vmatprep.mubr.f32.mxu0 0.0
        %1919 = vmatmul.mubr.f32.gmra.mrb[0].mxu0 %v1525
        %v1920 = vpop.f32.mrb[0].mxu0
        %v1921 = vadd.f32 0.0, %v1920
        %v1922 = vpop.f32.mrb[0].mxu0
        %v1923 = vadd.f32 0.0, %v1922
        %1924 = vmatprep.mubr.f32.mxu0 0.0
        %1925 = vmatmul.mubr.f32.gmra.mrb[0].mxu0 %v1528
        %v1926 = vpop.f32.mrb[0].mxu0
        %v1927 = vadd.f32 0.0, %v1926
        %v1928 = vpop.f32.mrb[0].mxu0
        %v1929 = vadd.f32 0.0, %v1928
        %1930 = vmatprep.mubr.f32.mxu0 0.0
        %1931 = vmatmul.mubr.f32.gmra.mrb[0].mxu0 %v1531
        %v1932 = vpop.f32.mrb[0].mxu0
        %v1933 = vadd.f32 0.0, %v1932
        %v1934 = vpop.f32.mrb[0].mxu0
        %v1935 = vadd.f32 0.0, %v1934
        %1936 = vmatprep.mubr.f32.mxu0 0.0
        %1937 = vmatmul.mubr.f32.gmra.mrb[0].mxu0 %v1534
        %v1938 = vpop.f32.mrb[0].mxu0
        %v1939 = vadd.f32 0.0, %v1938
        %v1940 = vpop.f32.mrb[0].mxu0
        %v1941 = vadd.f32 0.0, %v1940
        %1942 = vmatprep.mubr.f32.mxu0 0.0
        %1943 = vmatmul.mubr.f32.gmra.mrb[0].mxu0 %v1537
        %v1944 = vpop.f32.mrb[0].mxu0
        %v1945 = vadd.f32 0.0, %v1944
        %v1946 = vpop.f32.mrb[0].mxu0
        %v1947 = vadd.f32 0.0, %v1946
        %1948 = vmatprep.mubr.f32.mxu0 0.0
        %1949 = vmatmul.mubr.f32.gmra.mrb[0].mxu0 %v1540
        %v1950 = vpop.f32.mrb[0].mxu0
        %v1951 = vadd.f32 0.0, %v1950
        %v1952 = vpop.f32.mrb[0].mxu0
        %v1953 = vadd.f32 0.0, %v1952
        %1954 = vmatprep.mubr.f32.mxu0 0.0
        %1955 = vmatmul.mubr.f32.gmra.mrb[0].mxu0 %v1543
        %v1956 = vpop.f32.mrb[0].mxu0
        %v1957 = vadd.f32 0.0, %v1956
        %v1958 = vpop.f32.mrb[0].mxu0
        %v1959 = vadd.f32 0.0, %v1958
        %1960 = vmatprep.mubr.f32.mxu0 0.0
        %1961 = vmatmul.mubr.f32.gmra.mrb[0].mxu0 %v1546
        %v1962 = vpop.f32.mrb[0].mxu0
        %v1963 = vadd.f32 0.0, %v1962
        %v1964 = vpop.f32.mrb[0].mxu0
        %v1965 = vadd.f32 0.0, %v1964
        %1966 = vmatprep.mubr.f32.mxu0 0.0
        %1967 = vmatmul.mubr.f32.gmra.mrb[0].mxu0 %v1549
        %v1968 = vpop.f32.mrb[0].mxu0
        %v1969 = vadd.f32 0.0, %v1968
        %v1970 = vpop.f32.mrb[0].mxu0
        %v1971 = vadd.f32 0.0, %v1970
        %1972 = vmatprep.mubr.f32.mxu0 0.0
        %1973 = vmatmul.mubr.f32.gmra.mrb[0].mxu0 %v1552
        %v1974 = vpop.f32.mrb[0].mxu0
        %v1975 = vadd.f32 0.0, %v1974
        %v1976 = vpop.f32.mrb[0].mxu0
        %v1977 = vadd.f32 0.0, %v1976
        %1978 = vmatprep.mubr.f32.mxu0 0.0
        %1979 = vmatmul.mubr.f32.gmra.mrb[0].mxu0 %v1555
        %v1980 = vpop.f32.mrb[0].mxu0
        %v1981 = vadd.f32 0.0, %v1980
        %v1982 = vpop.f32.mrb[0].mxu0
        %v1983 = vadd.f32 0.0, %v1982
        %1984 = vmatprep.mubr.f32.mxu0 0.0
        %1985 = vmatmul.mubr.f32.gmra.mrb[0].mxu0 %v1558
        %v1986 = vpop.f32.mrb[0].mxu0
        %v1987 = vadd.f32 0.0, %v1986
        %v1988 = vpop.f32.mrb[0].mxu0
        %v1989 = vadd.f32 0.0, %v1988
        %1990 = vmatprep.mubr.f32.mxu0 0.0
        %1991 = vmatmul.mubr.f32.gmra.mrb[0].mxu0 %v1561
        %v1992 = vpop.f32.mrb[0].mxu0
        %v1993 = vadd.f32 0.0, %v1992
        %v1994 = vpop.f32.mrb[0].mxu0
        %v1995 = vadd.f32 0.0, %v1994
        %1996 = vmatprep.mubr.f32.mxu0 0.0
        %1997 = vmatmul.mubr.f32.gmra.mrb[0].mxu0 %v1564
        %v1998 = vpop.f32.mrb[0].mxu0
        %v1999 = vadd.f32 0.0, %v1998
        %v2000 = vpop.f32.mrb[0].mxu0
        %v2001 = vadd.f32 0.0, %v2000
        %2002 = vmatprep.mubr.f32.mxu0 0.0
        %2003 = vmatmul.mubr.f32.gmra.mrb[0].mxu0 %v1567
        %v2004 = vpop.f32.mrb[0].mxu0
        %v2005 = vadd.f32 0.0, %v2004
        %v2006 = vpop.f32.mrb[0].mxu0
        %v2007 = vadd.f32 0.0, %v2006
        %2008 = vmatprep.mubr.f32.mxu0 0.0
        %2009 = vmatmul.mubr.f32.gmra.mrb[0].mxu0 %v1570
        %v2010 = vpop.f32.mrb[0].mxu0
        %v2011 = vadd.f32 0.0, %v2010
        %v2012 = vpop.f32.mrb[0].mxu0
        %v2013 = vadd.f32 0.0, %v2012
        %2014 = vmatprep.mubr.f32.mxu0 0.0
        %2015 = vmatmul.mubr.f32.gmra.mrb[0].mxu0 %v1573
        %v2016 = vpop.f32.mrb[0].mxu0
        %v2017 = vadd.f32 0.0, %v2016
        %v2018 = vpop.f32.mrb[0].mxu0
        %v2019 = vadd.f32 0.0, %v2018
        %2020 = vmatprep.mubr.f32.mxu0 0.0
        %2021 = vmatmul.mubr.f32.gmra.mrb[0].mxu0 %v1576
        %v2022 = vpop.f32.mrb[0].mxu0
        %v2023 = vadd.f32 0.0, %v2022
        %v2024 = vpop.f32.mrb[0].mxu0
        %v2025 = vadd.f32 0.0, %v2024
        %2026 = vmatprep.mubr.f32.mxu0 0.0
        %2027 = vmatmul.mubr.f32.gmra.mrb[0].mxu0 %v1579
        %v2028 = vpop.f32.mrb[0].mxu0
        %v2029 = vadd.f32 0.0, %v2028
        %v2030 = vpop.f32.mrb[0].mxu0
        %v2031 = vadd.f32 0.0, %v2030
        %2032 = vmatprep.mubr.f32.mxu0 0.0
        %2033 = vmatmul.mubr.f32.gmra.mrb[0].mxu0 %v1582
        %v2034 = vpop.f32.mrb[0].mxu0
        %v2035 = vadd.f32 0.0, %v2034
        %v2036 = vpop.f32.mrb[0].mxu0
        %v2037 = vadd.f32 0.0, %v2036
        %2038 = vdwg.mxu0
        %v2167 = vrot.slane %v1657, 4
        %v2168 = vrot.slane %v1659, 4
        %v2169 = vrot.slane %v1663, 4
        %v2170 = vsel %vm1002, %v2167, %v2169
        %v2171 = vrot.slane %v1665, 4
        %v2172 = vsel %vm1002, %v2168, %v2171
        %v2173 = vrot.slane %v1669, 4
        %v2174 = vsel %vm1002, %v2169, %v2173
        %v2175 = vrot.slane %v1671, 4
        %v2176 = vsel %vm1002, %v2171, %v2175
        %v2177 = vrot.slane %v1675, 4
        %v2178 = vsel %vm1002, %v2173, %v2177
        %v2179 = vrot.slane %v1677, 4
        %v2180 = vsel %vm1002, %v2175, %v2179
        %v2181 = vrot.slane %v1681, 4
        %v2182 = vsel %vm1002, %v2177, %v2181
        %v2183 = vrot.slane %v1683, 4
        %v2184 = vsel %vm1002, %v2179, %v2183
        %v2185 = vrot.slane %v1687, 4
        %v2186 = vsel %vm1002, %v2181, %v2185
        %v2187 = vrot.slane %v1689, 4
        %v2188 = vsel %vm1002, %v2183, %v2187
        %v2189 = vrot.slane %v1693, 4
        %v2190 = vsel %vm1002, %v2185, %v2189
        %v2191 = vrot.slane %v1695, 4
        %v2192 = vsel %vm1002, %v2187, %v2191
        %v2193 = vrot.slane %v1699, 4
        %v2194 = vsel %vm1002, %v2189, %v2193
        %v2195 = vrot.slane %v1701, 4
        %v2196 = vsel %vm1002, %v2191, %v2195
        %v2197 = vrot.slane %v1705, 4
        %v2198 = vsel %vm1002, %v2193, %v2197
        %v2199 = vrot.slane %v1707, 4
        %v2200 = vsel %vm1002, %v2195, %v2199
        %v2201 = vrot.slane %v1711, 4
        %v2202 = vsel %vm1002, %v2197, %v2201
        %v2203 = vrot.slane %v1713, 4
        %v2204 = vsel %vm1002, %v2199, %v2203
        %v2205 = vrot.slane %v1717, 4
        %v2206 = vsel %vm1002, %v2201, %v2205
        %v2207 = vrot.slane %v1719, 4
        %v2208 = vsel %vm1002, %v2203, %v2207
        %v2209 = vrot.slane %v1723, 4
        %v2210 = vsel %vm1002, %v2205, %v2209
        %v2211 = vrot.slane %v1725, 4
        %v2212 = vsel %vm1002, %v2207, %v2211
        %v2213 = vrot.slane %v1729, 4
        %v2214 = vsel %vm1002, %v2209, %v2213
        %v2215 = vrot.slane %v1731, 4
        %v2216 = vsel %vm1002, %v2211, %v2215
        %v2217 = vrot.slane %v1735, 4
        %v2218 = vsel %vm1002, %v2213, %v2217
        %v2219 = vrot.slane %v1737, 4
        %v2220 = vsel %vm1002, %v2215, %v2219
        %v2221 = vrot.slane %v1741, 4
        %v2222 = vsel %vm1002, %v2217, %v2221
        %v2223 = vrot.slane %v1743, 4
        %v2224 = vsel %vm1002, %v2219, %v2223
        %v2225 = vrot.slane %v1747, 4
        %v2226 = vsel %vm1002, %v2221, %v2225
        %v2227 = vrot.slane %v1749, 4
        %v2228 = vsel %vm1002, %v2223, %v2227
        %v2229 = vrot.slane %v1753, 4
        %v2230 = vsel %vm1002, %v2225, %v2229
        %v2231 = vrot.slane %v1755, 4
        %v2232 = vsel %vm1002, %v2227, %v2231
        %v2233 = vrot.slane %v1759, 4
        %v2234 = vsel %vm1002, %v2229, %v2233
        %v2235 = vrot.slane %v1761, 4
        %v2236 = vsel %vm1002, %v2231, %v2235
        %v2237 = vrot.slane %v1765, 4
        %v2238 = vsel %vm1002, %v2233, %v2237
        %v2239 = vrot.slane %v1767, 4
        %v2240 = vsel %vm1002, %v2235, %v2239
        %v2241 = vrot.slane %v1771, 4
        %v2242 = vsel %vm1002, %v2237, %v2241
        %v2243 = vrot.slane %v1773, 4
        %v2244 = vsel %vm1002, %v2239, %v2243
        %v2245 = vrot.slane %v1777, 4
        %v2246 = vsel %vm1002, %v2241, %v2245
        %v2247 = vrot.slane %v1779, 4
        %v2248 = vsel %vm1002, %v2243, %v2247
        %v2249 = vrot.slane %v1783, 4
        %v2250 = vsel %vm1002, %v2245, %v2249
        %v2251 = vrot.slane %v1785, 4
        %v2252 = vsel %vm1002, %v2247, %v2251
        %v2253 = vrot.slane %v1789, 4
        %v2254 = vsel %vm1002, %v2249, %v2253
        %v2255 = vrot.slane %v1791, 4
        %v2256 = vsel %vm1002, %v2251, %v2255
        %v2257 = vrot.slane %v1795, 4
        %v2258 = vsel %vm1002, %v2253, %v2257
        %v2259 = vrot.slane %v1797, 4
        %v2260 = vsel %vm1002, %v2255, %v2259
        %v2261 = vrot.slane %v1801, 4
        %v2262 = vsel %vm1002, %v2257, %v2261
        %v2263 = vrot.slane %v1803, 4
        %v2264 = vsel %vm1002, %v2259, %v2263
        %v2265 = vrot.slane %v1807, 4
        %v2266 = vsel %vm1002, %v2261, %v2265
        %v2267 = vrot.slane %v1809, 4
        %v2268 = vsel %vm1002, %v2263, %v2267
        %v2269 = vrot.slane %v1813, 4
        %v2270 = vsel %vm1002, %v2265, %v2269
        %v2271 = vrot.slane %v1815, 4
        %v2272 = vsel %vm1002, %v2267, %v2271
        %v2273 = vrot.slane %v1819, 4
        %v2274 = vsel %vm1002, %v2269, %v2273
        %v2275 = vrot.slane %v1821, 4
        %v2276 = vsel %vm1002, %v2271, %v2275
        %v2277 = vrot.slane %v1825, 4
        %v2278 = vsel %vm1002, %v2273, %v2277
        %v2279 = vrot.slane %v1827, 4
        %v2280 = vsel %vm1002, %v2275, %v2279
        %v2281 = vrot.slane %v1831, 4
        %v2282 = vsel %vm1002, %v2277, %v2281
        %v2283 = vrot.slane %v1833, 4
        %v2284 = vsel %vm1002, %v2279, %v2283
        %v2285 = vrot.slane %v1837, 4
        %v2286 = vsel %vm1002, %v2281, %v2285
        %v2287 = vrot.slane %v1839, 4
        %v2288 = vsel %vm1002, %v2283, %v2287
        %v2289 = vrot.slane %v1843, 4
        %v2290 = vsel %vm1002, %v2285, %v2289
        %v2291 = vrot.slane %v1845, 4
        %v2292 = vsel %vm1002, %v2287, %v2291
        %v2293 = vrot.slane %v1849, 4
        %v2294 = vsel %vm1002, %v2289, %v2293
        %v2295 = vrot.slane %v1851, 4
        %v2296 = vsel %vm1002, %v2291, %v2295
        %v2297 = vrot.slane %v1855, 4
        %v2298 = vsel %vm1002, %v2293, %v2297
        %v2299 = vrot.slane %v1857, 4
        %v2300 = vsel %vm1002, %v2295, %v2299
        %v2301 = vrot.slane %v1861, 4
        %v2302 = vsel %vm1002, %v2297, %v2301
        %v2303 = vrot.slane %v1863, 4
        %v2304 = vsel %vm1002, %v2299, %v2303
        %v2305 = vrot.slane %v1867, 4
        %v2306 = vsel %vm1002, %v2301, %v2305
        %v2307 = vrot.slane %v1869, 4
        %v2308 = vsel %vm1002, %v2303, %v2307
        %v2309 = vrot.slane %v1873, 4
        %v2310 = vsel %vm1002, %v2305, %v2309
        %v2311 = vrot.slane %v1875, 4
        %v2312 = vsel %vm1002, %v2307, %v2311
        %v2313 = vrot.slane %v1879, 4
        %v2314 = vsel %vm1002, %v2309, %v2313
        %v2315 = vrot.slane %v1881, 4
        %v2316 = vsel %vm1002, %v2311, %v2315
        %v2317 = vrot.slane %v1885, 4
        %v2318 = vsel %vm1002, %v2313, %v2317
        %v2319 = vrot.slane %v1887, 4
        %v2320 = vsel %vm1002, %v2315, %v2319
        %v2321 = vrot.slane %v1891, 4
        %v2322 = vsel %vm1002, %v2317, %v2321
        %v2323 = vrot.slane %v1893, 4
        %v2324 = vsel %vm1002, %v2319, %v2323
        %v2325 = vrot.slane %v1897, 4
        %v2326 = vsel %vm1002, %v2321, %v2325
        %v2327 = vrot.slane %v1899, 4
        %v2328 = vsel %vm1002, %v2323, %v2327
        %v2329 = vrot.slane %v1903, 4
        %v2330 = vsel %vm1002, %v2325, %v2329
        %v2331 = vrot.slane %v1905, 4
        %v2332 = vsel %vm1002, %v2327, %v2331
        %v2333 = vrot.slane %v1909, 4
        %v2334 = vsel %vm1002, %v2329, %v2333
        %v2335 = vrot.slane %v1911, 4
        %v2336 = vsel %vm1002, %v2331, %v2335
        %v2337 = vrot.slane %v1915, 4
        %v2338 = vsel %vm1002, %v2333, %v2337
        %v2339 = vrot.slane %v1917, 4
        %v2340 = vsel %vm1002, %v2335, %v2339
        %v2341 = vrot.slane %v1921, 4
        %v2342 = vsel %vm1002, %v2337, %v2341
        %v2343 = vrot.slane %v1923, 4
        %v2344 = vsel %vm1002, %v2339, %v2343
        %v2345 = vrot.slane %v1927, 4
        %v2346 = vsel %vm1002, %v2341, %v2345
        %v2347 = vrot.slane %v1929, 4
        %v2348 = vsel %vm1002, %v2343, %v2347
        %v2349 = vrot.slane %v1933, 4
        %v2350 = vsel %vm1002, %v2345, %v2349
        %v2351 = vrot.slane %v1935, 4
        %v2352 = vsel %vm1002, %v2347, %v2351
        %v2353 = vrot.slane %v1939, 4
        %v2354 = vsel %vm1002, %v2349, %v2353
        %v2355 = vrot.slane %v1941, 4
        %v2356 = vsel %vm1002, %v2351, %v2355
        %v2357 = vrot.slane %v1945, 4
        %v2358 = vsel %vm1002, %v2353, %v2357
        %v2359 = vrot.slane %v1947, 4
        %v2360 = vsel %vm1002, %v2355, %v2359
        %v2361 = vrot.slane %v1951, 4
        %v2362 = vsel %vm1002, %v2357, %v2361
        %v2363 = vrot.slane %v1953, 4
        %v2364 = vsel %vm1002, %v2359, %v2363
        %v2365 = vrot.slane %v1957, 4
        %v2366 = vsel %vm1002, %v2361, %v2365
        %v2367 = vrot.slane %v1959, 4
        %v2368 = vsel %vm1002, %v2363, %v2367
        %v2369 = vrot.slane %v1963, 4
        %v2370 = vsel %vm1002, %v2365, %v2369
        %v2371 = vrot.slane %v1965, 4
        %v2372 = vsel %vm1002, %v2367, %v2371
        %v2373 = vrot.slane %v1969, 4
        %v2374 = vsel %vm1002, %v2369, %v2373
        %v2375 = vrot.slane %v1971, 4
        %v2376 = vsel %vm1002, %v2371, %v2375
        %v2377 = vrot.slane %v1975, 4
        %v2378 = vsel %vm1002, %v2373, %v2377
        %v2379 = vrot.slane %v1977, 4
        %v2380 = vsel %vm1002, %v2375, %v2379
        %v2381 = vrot.slane %v1981, 4
        %v2382 = vsel %vm1002, %v2377, %v2381
        %v2383 = vrot.slane %v1983, 4
        %v2384 = vsel %vm1002, %v2379, %v2383
        %v2385 = vrot.slane %v1987, 4
        %v2386 = vsel %vm1002, %v2381, %v2385
        %v2387 = vrot.slane %v1989, 4
        %v2388 = vsel %vm1002, %v2383, %v2387
        %v2389 = vrot.slane %v1993, 4
        %v2390 = vsel %vm1002, %v2385, %v2389
        %v2391 = vrot.slane %v1995, 4
        %v2392 = vsel %vm1002, %v2387, %v2391
        %v2393 = vrot.slane %v1999, 4
        %v2394 = vsel %vm1002, %v2389, %v2393
        %v2395 = vrot.slane %v2001, 4
        %v2396 = vsel %vm1002, %v2391, %v2395
        %v2397 = vrot.slane %v2005, 4
        %v2398 = vsel %vm1002, %v2393, %v2397
        %v2399 = vrot.slane %v2007, 4
        %v2400 = vsel %vm1002, %v2395, %v2399
        %v2401 = vrot.slane %v2011, 4
        %v2402 = vsel %vm1002, %v2397, %v2401
        %v2403 = vrot.slane %v2013, 4
        %v2404 = vsel %vm1002, %v2399, %v2403
        %v2405 = vrot.slane %v2017, 4
        %v2406 = vsel %vm1002, %v2401, %v2405
        %v2407 = vrot.slane %v2019, 4
        %v2408 = vsel %vm1002, %v2403, %v2407
        %v2409 = vrot.slane %v2023, 4
        %v2410 = vsel %vm1002, %v2405, %v2409
        %v2411 = vrot.slane %v2025, 4
        %v2412 = vsel %vm1002, %v2407, %v2411
        %v2413 = vrot.slane %v2029, 4
        %v2414 = vsel %vm1002, %v2409, %v2413
        %v2415 = vrot.slane %v2031, 4
        %v2416 = vsel %vm1002, %v2411, %v2415
        %v2417 = vrot.slane %v2035, 4
        %v2418 = vsel %vm1002, %v2413, %v2417
        %v2419 = vrot.slane %v2037, 4
        %v2420 = vsel %vm1002, %v2415, %v2419
        %2551 = vst [vmem:[%s242] sm:$0xf0] %v2167
        %2552 = vst [vmem:[%s242 + $0x8] sm:$0xf0] %v2168
        %2553 = vst [vmem:[%s242 + $0x10] sm:$0xff] %v2170
        %2554 = vst [vmem:[%s242 + $0x18] sm:$0xff] %v2172
        %2555 = vst [vmem:[%s242 + $0x20] sm:$0xff] %v2174
        %2556 = vst [vmem:[%s242 + $0x28] sm:$0xff] %v2176
        %2557 = vst [vmem:[%s242 + $0x30] sm:$0xff] %v2178
        %2558 = vst [vmem:[%s242 + $0x38] sm:$0xff] %v2180
        %2559 = vst [vmem:[%s242 + $0x40] sm:$0xff] %v2182
        %2560 = vst [vmem:[%s242 + $0x48] sm:$0xff] %v2184
        %2561 = vst [vmem:[%s242 + $0x50] sm:$0xff] %v2186
        %2562 = vst [vmem:[%s242 + $0x58] sm:$0xff] %v2188
        %2563 = vst [vmem:[%s242 + $0x60] sm:$0xff] %v2190
        %2564 = vst [vmem:[%s242 + $0x68] sm:$0xff] %v2192
        %2565 = vst [vmem:[%s242 + $0x70] sm:$0xff] %v2194
        %2566 = vst [vmem:[%s242 + $0x78] sm:$0xff] %v2196
        %2567 = vst [vmem:[%s242 + $0x80] sm:$0xff] %v2198
        %2568 = vst [vmem:[%s242 + $0x88] sm:$0xff] %v2200
        %2569 = vst [vmem:[%s242 + $0x90] sm:$0xff] %v2202
        %2570 = vst [vmem:[%s242 + $0x98] sm:$0xff] %v2204
        %2571 = vst [vmem:[%s242 + $0xa0] sm:$0xff] %v2206
        %2572 = vst [vmem:[%s242 + $0xa8] sm:$0xff] %v2208
        %2573 = vst [vmem:[%s242 + $0xb0] sm:$0xff] %v2210
        %2574 = vst [vmem:[%s242 + $0xb8] sm:$0xff] %v2212
        %2575 = vst [vmem:[%s242 + $0xc0] sm:$0xff] %v2214
        %2576 = vst [vmem:[%s242 + $0xc8] sm:$0xff] %v2216
        %2577 = vst [vmem:[%s242 + $0xd0] sm:$0xff] %v2218
        %2578 = vst [vmem:[%s242 + $0xd8] sm:$0xff] %v2220
        %2579 = vst [vmem:[%s242 + $0xe0] sm:$0xff] %v2222
        %2580 = vst [vmem:[%s242 + $0xe8] sm:$0xff] %v2224
        %2581 = vst [vmem:[%s242 + $0xf0] sm:$0xff] %v2226
        %2582 = vst [vmem:[%s242 + $0xf8] sm:$0xff] %v2228
        %2583 = vst [vmem:[%s242 + $0x100] sm:$0xff] %v2230
        %2584 = vst [vmem:[%s242 + $0x108] sm:$0xff] %v2232
        %2585 = vst [vmem:[%s242 + $0x110] sm:$0xff] %v2234
        %2586 = vst [vmem:[%s242 + $0x118] sm:$0xff] %v2236
        %2587 = vst [vmem:[%s242 + $0x120] sm:$0xff] %v2238
        %2588 = vst [vmem:[%s242 + $0x128] sm:$0xff] %v2240
        %2589 = vst [vmem:[%s242 + $0x130] sm:$0xff] %v2242
        %2590 = vst [vmem:[%s242 + $0x138] sm:$0xff] %v2244
        %2591 = vst [vmem:[%s242 + $0x140] sm:$0xff] %v2246
        %2592 = vst [vmem:[%s242 + $0x148] sm:$0xff] %v2248
        %2593 = vst [vmem:[%s242 + $0x150] sm:$0xff] %v2250
        %2594 = vst [vmem:[%s242 + $0x158] sm:$0xff] %v2252
        %2595 = vst [vmem:[%s242 + $0x160] sm:$0xff] %v2254
        %2596 = vst [vmem:[%s242 + $0x168] sm:$0xff] %v2256
        %2597 = vst [vmem:[%s242 + $0x170] sm:$0xff] %v2258
        %2598 = vst [vmem:[%s242 + $0x178] sm:$0xff] %v2260
        %2599 = vst [vmem:[%s242 + $0x180] sm:$0xff] %v2262
        %2600 = vst [vmem:[%s242 + $0x188] sm:$0xff] %v2264
        %2601 = vst [vmem:[%s242 + $0x190] sm:$0xff] %v2266
        %2602 = vst [vmem:[%s242 + $0x198] sm:$0xff] %v2268
        %2603 = vst [vmem:[%s242 + $0x1a0] sm:$0xff] %v2270
        %2604 = vst [vmem:[%s242 + $0x1a8] sm:$0xff] %v2272
        %2605 = vst [vmem:[%s242 + $0x1b0] sm:$0xff] %v2274
        %2606 = vst [vmem:[%s242 + $0x1b8] sm:$0xff] %v2276
        %2607 = vst [vmem:[%s242 + $0x1c0] sm:$0xff] %v2278
        %2608 = vst [vmem:[%s242 + $0x1c8] sm:$0xff] %v2280
        %2609 = vst [vmem:[%s242 + $0x1d0] sm:$0xff] %v2282
        %2610 = vst [vmem:[%s242 + $0x1d8] sm:$0xff] %v2284
        %2611 = vst [vmem:[%s242 + $0x1e0] sm:$0xff] %v2286
        %2612 = vst [vmem:[%s242 + $0x1e8] sm:$0xff] %v2288
        %2613 = vst [vmem:[%s242 + $0x1f0] sm:$0xff] %v2290
        %2614 = vst [vmem:[%s242 + $0x1f8] sm:$0xff] %v2292
        %2615 = vst [vmem:[%s242 + $0x200] sm:$0xff] %v2294
        %2616 = vst [vmem:[%s242 + $0x208] sm:$0xff] %v2296
        %2617 = vst [vmem:[%s242 + $0x210] sm:$0xff] %v2298
        %2618 = vst [vmem:[%s242 + $0x218] sm:$0xff] %v2300
        %2619 = vst [vmem:[%s242 + $0x220] sm:$0xff] %v2302
        %2620 = vst [vmem:[%s242 + $0x228] sm:$0xff] %v2304
        %2621 = vst [vmem:[%s242 + $0x230] sm:$0xff] %v2306
        %2622 = vst [vmem:[%s242 + $0x238] sm:$0xff] %v2308
        %2623 = vst [vmem:[%s242 + $0x240] sm:$0xff] %v2310
        %2624 = vst [vmem:[%s242 + $0x248] sm:$0xff] %v2312
        %2625 = vst [vmem:[%s242 + $0x250] sm:$0xff] %v2314
        %2626 = vst [vmem:[%s242 + $0x258] sm:$0xff] %v2316
        %2627 = vst [vmem:[%s242 + $0x260] sm:$0xff] %v2318
        %2628 = vst [vmem:[%s242 + $0x268] sm:$0xff] %v2320
        %2629 = vst [vmem:[%s242 + $0x270] sm:$0xff] %v2322
        %2630 = vst [vmem:[%s242 + $0x278] sm:$0xff] %v2324
        %2631 = vst [vmem:[%s242 + $0x280] sm:$0xff] %v2326
        %2632 = vst [vmem:[%s242 + $0x288] sm:$0xff] %v2328
        %2633 = vst [vmem:[%s242 + $0x290] sm:$0xff] %v2330
        %2634 = vst [vmem:[%s242 + $0x298] sm:$0xff] %v2332
        %2635 = vst [vmem:[%s242 + $0x2a0] sm:$0xff] %v2334
        %2636 = vst [vmem:[%s242 + $0x2a8] sm:$0xff] %v2336
        %2637 = vst [vmem:[%s242 + $0x2b0] sm:$0xff] %v2338
        %2638 = vst [vmem:[%s242 + $0x2b8] sm:$0xff] %v2340
        %2639 = vst [vmem:[%s242 + $0x2c0] sm:$0xff] %v2342
        %2640 = vst [vmem:[%s242 + $0x2c8] sm:$0xff] %v2344
        %2641 = vst [vmem:[%s242 + $0x2d0] sm:$0xff] %v2346
        %2642 = vst [vmem:[%s242 + $0x2d8] sm:$0xff] %v2348
        %2643 = vst [vmem:[%s242 + $0x2e0] sm:$0xff] %v2350
        %2644 = vst [vmem:[%s242 + $0x2e8] sm:$0xff] %v2352
        %2645 = vst [vmem:[%s242 + $0x2f0] sm:$0xff] %v2354
        %2646 = vst [vmem:[%s242 + $0x2f8] sm:$0xff] %v2356
        %2647 = vst [vmem:[%s242 + $0x300] sm:$0xff] %v2358
        %2648 = vst [vmem:[%s242 + $0x308] sm:$0xff] %v2360
        %2649 = vst [vmem:[%s242 + $0x310] sm:$0xff] %v2362
        %2650 = vst [vmem:[%s242 + $0x318] sm:$0xff] %v2364
        %2651 = vst [vmem:[%s242 + $0x320] sm:$0xff] %v2366
        %2652 = vst [vmem:[%s242 + $0x328] sm:$0xff] %v2368
        %2653 = vst [vmem:[%s242 + $0x330] sm:$0xff] %v2370
        %2654 = vst [vmem:[%s242 + $0x338] sm:$0xff] %v2372
        %2655 = vst [vmem:[%s242 + $0x340] sm:$0xff] %v2374
        %2656 = vst [vmem:[%s242 + $0x348] sm:$0xff] %v2376
        %2657 = vst [vmem:[%s242 + $0x350] sm:$0xff] %v2378
        %2658 = vst [vmem:[%s242 + $0x358] sm:$0xff] %v2380
        %2659 = vst [vmem:[%s242 + $0x360] sm:$0xff] %v2382
        %2660 = vst [vmem:[%s242 + $0x368] sm:$0xff] %v2384
        %2661 = vst [vmem:[%s242 + $0x370] sm:$0xff] %v2386
        %2662 = vst [vmem:[%s242 + $0x378] sm:$0xff] %v2388
        %2663 = vst [vmem:[%s242 + $0x380] sm:$0xff] %v2390
        %2664 = vst [vmem:[%s242 + $0x388] sm:$0xff] %v2392
        %2665 = vst [vmem:[%s242 + $0x390] sm:$0xff] %v2394
        %2666 = vst [vmem:[%s242 + $0x398] sm:$0xff] %v2396
        %2667 = vst [vmem:[%s242 + $0x3a0] sm:$0xff] %v2398
        %2668 = vst [vmem:[%s242 + $0x3a8] sm:$0xff] %v2400
        %2669 = vst [vmem:[%s242 + $0x3b0] sm:$0xff] %v2402
        %2670 = vst [vmem:[%s242 + $0x3b8] sm:$0xff] %v2404
        %2671 = vst [vmem:[%s242 + $0x3c0] sm:$0xff] %v2406
        %2672 = vst [vmem:[%s242 + $0x3c8] sm:$0xff] %v2408
        %2673 = vst [vmem:[%s242 + $0x3d0] sm:$0xff] %v2410
        %2674 = vst [vmem:[%s242 + $0x3d8] sm:$0xff] %v2412
        %2675 = vst [vmem:[%s242 + $0x3e0] sm:$0xff] %v2414
        %2676 = vst [vmem:[%s242 + $0x3e8] sm:$0xff] %v2416
        %2677 = vst [vmem:[%s242 + $0x3f0] sm:$0xff] %v2418
        %2678 = vst [vmem:[%s242 + $0x3f8] sm:$0xff] %v2420
        %2679 = vst [vmem:[%s242 + $0x400] sm:$0xf] %v2417
        %2680 = vst [vmem:[%s242 + $0x408] sm:$0xf] %v2419
        %s2681 = scalar_lea.vmem %s1, 256
        %v2682 = vld [vmem:[%s2681] sm:$0xff]
        %v2683 = vld [vmem:[%s2681 + $0x8] sm:$0xff]
        %v2684 = vld [vmem:[%s2681 + $0x10] sm:$0xff]
        %v2685 = vld [vmem:[%s2681 + $0x18] sm:$0xff]
        %v2686 = vld [vmem:[%s2681 + $0x20] sm:$0xff]
        %v2687 = vld [vmem:[%s2681 + $0x28] sm:$0xff]
        %v2688 = vld [vmem:[%s2681 + $0x30] sm:$0xff]
        %v2689 = vld [vmem:[%s2681 + $0x38] sm:$0xff]
        %v2690 = vld [vmem:[%s2681 + $0x40] sm:$0xff]
        %v2691 = vld [vmem:[%s2681 + $0x48] sm:$0xff]
        %v2692 = vld [vmem:[%s2681 + $0x50] sm:$0xff]
        %v2693 = vld [vmem:[%s2681 + $0x58] sm:$0xff]
        %v2694 = vld [vmem:[%s2681 + $0x60] sm:$0xff]
        %v2695 = vld [vmem:[%s2681 + $0x68] sm:$0xff]
        %v2696 = vld [vmem:[%s2681 + $0x70] sm:$0xff]
        %v2697 = vld [vmem:[%s2681 + $0x78] sm:$0xff]
        %v2698 = vld [vmem:[%s2681 + $0x80] sm:$0xff]
        %v2699 = vld [vmem:[%s2681 + $0x88] sm:$0xff]
        %v2700 = vld [vmem:[%s2681 + $0x90] sm:$0xff]
        %v2701 = vld [vmem:[%s2681 + $0x98] sm:$0xff]
        %v2702 = vld [vmem:[%s2681 + $0xa0] sm:$0xff]
        %v2703 = vld [vmem:[%s2681 + $0xa8] sm:$0xff]
        %v2704 = vld [vmem:[%s2681 + $0xb0] sm:$0xff]
        %v2705 = vld [vmem:[%s2681 + $0xb8] sm:$0xff]
        %v2706 = vld [vmem:[%s2681 + $0xc0] sm:$0xff]
        %v2707 = vld [vmem:[%s2681 + $0xc8] sm:$0xff]
        %v2708 = vld [vmem:[%s2681 + $0xd0] sm:$0xff]
        %v2709 = vld [vmem:[%s2681 + $0xd8] sm:$0xff]
        %v2710 = vld [vmem:[%s2681 + $0xe0] sm:$0xff]
        %v2711 = vld [vmem:[%s2681 + $0xe8] sm:$0xff]
        %v2712 = vld [vmem:[%s2681 + $0xf0] sm:$0xff]
        %v2713 = vld [vmem:[%s2681 + $0xf8] sm:$0xff]
        %s2714 = scalar_lea.vmem %s2, 80
        %v2715 = vld [vmem:[%s2714] sm:$0xff]
        %v2716 = vld [vmem:[%s2714 + $0x8] sm:$0xff]
        %v2717 = vld [vmem:[%s2714 + $0x10] sm:$0xff]
        %v2718 = vld [vmem:[%s2714 + $0x18] sm:$0xff]
        %v2719 = vld [vmem:[%s2714 + $0x20] sm:$0xff]
        %v2720 = vld [vmem:[%s2714 + $0x28] sm:$0xff]
        %v2721 = vld [vmem:[%s2714 + $0x30] sm:$0xff]
        %v2722 = vld [vmem:[%s2714 + $0x38] sm:$0xff]
        %v2723 = vld [vmem:[%s2714 + $0x40] sm:$0xf]
        %v2724 = vld [vmem:[%s2714 + $0x48] sm:$0xf]
        %s2725 = scalar_lea.vmem %s3, 512
        %v2726 = vld [vmem:[%s2725] sm:$0xff]
        %v2727 = vld [vmem:[%s2725 + $0x8] sm:$0xff]
        %v2728 = vld [vmem:[%s2725 + $0x10] sm:$0xff]
        %v2729 = vld [vmem:[%s2725 + $0x18] sm:$0xff]
        %v2730 = vld [vmem:[%s2725 + $0x20] sm:$0xff]
        %v2731 = vld [vmem:[%s2725 + $0x28] sm:$0xff]
        %v2732 = vld [vmem:[%s2725 + $0x30] sm:$0xff]
        %v2733 = vld [vmem:[%s2725 + $0x38] sm:$0xff]
        %v2734 = vld [vmem:[%s2725 + $0x40] sm:$0xff]
        %v2735 = vld [vmem:[%s2725 + $0x48] sm:$0xff]
        %v2736 = vld [vmem:[%s2725 + $0x50] sm:$0xff]
        %v2737 = vld [vmem:[%s2725 + $0x58] sm:$0xff]
        %v2738 = vld [vmem:[%s2725 + $0x60] sm:$0xff]
        %v2739 = vld [vmem:[%s2725 + $0x68] sm:$0xff]
        %v2740 = vld [vmem:[%s2725 + $0x70] sm:$0xff]
        %v2741 = vld [vmem:[%s2725 + $0x78] sm:$0xff]
        %v2742 = vld [vmem:[%s2725 + $0x80] sm:$0xff]
        %v2743 = vld [vmem:[%s2725 + $0x88] sm:$0xff]
        %v2744 = vld [vmem:[%s2725 + $0x90] sm:$0xff]
        %v2745 = vld [vmem:[%s2725 + $0x98] sm:$0xff]
        %v2746 = vld [vmem:[%s2725 + $0xa0] sm:$0xff]
        %v2747 = vld [vmem:[%s2725 + $0xa8] sm:$0xff]
        %v2748 = vld [vmem:[%s2725 + $0xb0] sm:$0xff]
        %v2749 = vld [vmem:[%s2725 + $0xb8] sm:$0xff]
        %v2750 = vld [vmem:[%s2725 + $0xc0] sm:$0xff]
        %v2751 = vld [vmem:[%s2725 + $0xc8] sm:$0xff]
        %v2752 = vld [vmem:[%s2725 + $0xd0] sm:$0xff]
        %v2753 = vld [vmem:[%s2725 + $0xd8] sm:$0xff]
        %v2754 = vld [vmem:[%s2725 + $0xe0] sm:$0xff]
        %v2755 = vld [vmem:[%s2725 + $0xe8] sm:$0xff]
        %v2756 = vld [vmem:[%s2725 + $0xf0] sm:$0xff]
        %v2757 = vld [vmem:[%s2725 + $0xf8] sm:$0xff]
        %v2758 = vld [vmem:[%s2725 + $0x100] sm:$0xff]
        %v2759 = vld [vmem:[%s2725 + $0x108] sm:$0xff]
        %v2760 = vld [vmem:[%s2725 + $0x110] sm:$0xff]
        %v2761 = vld [vmem:[%s2725 + $0x118] sm:$0xff]
        %v2762 = vld [vmem:[%s2725 + $0x120] sm:$0xff]
        %v2763 = vld [vmem:[%s2725 + $0x128] sm:$0xff]
        %v2764 = vld [vmem:[%s2725 + $0x130] sm:$0xff]
        %v2765 = vld [vmem:[%s2725 + $0x138] sm:$0xff]
        %v2766 = vld [vmem:[%s2725 + $0x140] sm:$0xff]
        %v2767 = vld [vmem:[%s2725 + $0x148] sm:$0xff]
        %v2768 = vld [vmem:[%s2725 + $0x150] sm:$0xff]
        %v2769 = vld [vmem:[%s2725 + $0x158] sm:$0xff]
        %v2770 = vld [vmem:[%s2725 + $0x160] sm:$0xff]
        %v2771 = vld [vmem:[%s2725 + $0x168] sm:$0xff]
        %v2772 = vld [vmem:[%s2725 + $0x170] sm:$0xff]
        %v2773 = vld [vmem:[%s2725 + $0x178] sm:$0xff]
        %v2774 = vld [vmem:[%s2725 + $0x180] sm:$0xff]
        %v2775 = vld [vmem:[%s2725 + $0x188] sm:$0xff]
        %v2776 = vld [vmem:[%s2725 + $0x190] sm:$0xff]
        %v2777 = vld [vmem:[%s2725 + $0x198] sm:$0xff]
        %v2778 = vld [vmem:[%s2725 + $0x1a0] sm:$0xff]
        %v2779 = vld [vmem:[%s2725 + $0x1a8] sm:$0xff]
        %v2780 = vld [vmem:[%s2725 + $0x1b0] sm:$0xff]
        %v2781 = vld [vmem:[%s2725 + $0x1b8] sm:$0xff]
        %v2782 = vld [vmem:[%s2725 + $0x1c0] sm:$0xff]
        %v2783 = vld [vmem:[%s2725 + $0x1c8] sm:$0xff]
        %v2784 = vld [vmem:[%s2725 + $0x1d0] sm:$0xff]
        %v2785 = vld [vmem:[%s2725 + $0x1d8] sm:$0xff]
        %v2786 = vld [vmem:[%s2725 + $0x1e0] sm:$0xff]
        %v2787 = vld [vmem:[%s2725 + $0x1e8] sm:$0xff]
        %v2788 = vld [vmem:[%s2725 + $0x1f0] sm:$0xff]
        %v2789 = vld [vmem:[%s2725 + $0x1f8] sm:$0xff]
        %s2790 = scalar_lea.vmem %s4, 512
        %v2791 = vld [vmem:[%s2790] sm:$0xff]
        %v2792 = vld [vmem:[%s2790 + $0x8] sm:$0xff]
        %v2793 = vld [vmem:[%s2790 + $0x10] sm:$0xff]
        %v2794 = vld [vmem:[%s2790 + $0x18] sm:$0xff]
        %v2795 = vld [vmem:[%s2790 + $0x20] sm:$0xff]
        %v2796 = vld [vmem:[%s2790 + $0x28] sm:$0xff]
        %v2797 = vld [vmem:[%s2790 + $0x30] sm:$0xff]
        %v2798 = vld [vmem:[%s2790 + $0x38] sm:$0xff]
        %v2799 = vld [vmem:[%s2790 + $0x40] sm:$0xff]
        %v2800 = vld [vmem:[%s2790 + $0x48] sm:$0xff]
        %v2801 = vld [vmem:[%s2790 + $0x50] sm:$0xff]
        %v2802 = vld [vmem:[%s2790 + $0x58] sm:$0xff]
        %v2803 = vld [vmem:[%s2790 + $0x60] sm:$0xff]
        %v2804 = vld [vmem:[%s2790 + $0x68] sm:$0xff]
        %v2805 = vld [vmem:[%s2790 + $0x70] sm:$0xff]
        %v2806 = vld [vmem:[%s2790 + $0x78] sm:$0xff]
        %v2807 = vld [vmem:[%s2790 + $0x80] sm:$0xff]
        %v2808 = vld [vmem:[%s2790 + $0x88] sm:$0xff]
        %v2809 = vld [vmem:[%s2790 + $0x90] sm:$0xff]
        %v2810 = vld [vmem:[%s2790 + $0x98] sm:$0xff]
        %v2811 = vld [vmem:[%s2790 + $0xa0] sm:$0xff]
        %v2812 = vld [vmem:[%s2790 + $0xa8] sm:$0xff]
        %v2813 = vld [vmem:[%s2790 + $0xb0] sm:$0xff]
        %v2814 = vld [vmem:[%s2790 + $0xb8] sm:$0xff]
        %v2815 = vld [vmem:[%s2790 + $0xc0] sm:$0xff]
        %v2816 = vld [vmem:[%s2790 + $0xc8] sm:$0xff]
        %v2817 = vld [vmem:[%s2790 + $0xd0] sm:$0xff]
        %v2818 = vld [vmem:[%s2790 + $0xd8] sm:$0xff]
        %v2819 = vld [vmem:[%s2790 + $0xe0] sm:$0xff]
        %v2820 = vld [vmem:[%s2790 + $0xe8] sm:$0xff]
        %v2821 = vld [vmem:[%s2790 + $0xf0] sm:$0xff]
        %v2822 = vld [vmem:[%s2790 + $0xf8] sm:$0xff]
        %v2823 = vld [vmem:[%s2790 + $0x100] sm:$0xff]
        %v2824 = vld [vmem:[%s2790 + $0x108] sm:$0xff]
        %v2825 = vld [vmem:[%s2790 + $0x110] sm:$0xff]
        %v2826 = vld [vmem:[%s2790 + $0x118] sm:$0xff]
        %v2827 = vld [vmem:[%s2790 + $0x120] sm:$0xff]
        %v2828 = vld [vmem:[%s2790 + $0x128] sm:$0xff]
        %v2829 = vld [vmem:[%s2790 + $0x130] sm:$0xff]
        %v2830 = vld [vmem:[%s2790 + $0x138] sm:$0xff]
        %v2831 = vld [vmem:[%s2790 + $0x140] sm:$0xff]
        %v2832 = vld [vmem:[%s2790 + $0x148] sm:$0xff]
        %v2833 = vld [vmem:[%s2790 + $0x150] sm:$0xff]
        %v2834 = vld [vmem:[%s2790 + $0x158] sm:$0xff]
        %v2835 = vld [vmem:[%s2790 + $0x160] sm:$0xff]
        %v2836 = vld [vmem:[%s2790 + $0x168] sm:$0xff]
        %v2837 = vld [vmem:[%s2790 + $0x170] sm:$0xff]
        %v2838 = vld [vmem:[%s2790 + $0x178] sm:$0xff]
        %v2839 = vld [vmem:[%s2790 + $0x180] sm:$0xff]
        %v2840 = vld [vmem:[%s2790 + $0x188] sm:$0xff]
        %v2841 = vld [vmem:[%s2790 + $0x190] sm:$0xff]
        %v2842 = vld [vmem:[%s2790 + $0x198] sm:$0xff]
        %v2843 = vld [vmem:[%s2790 + $0x1a0] sm:$0xff]
        %v2844 = vld [vmem:[%s2790 + $0x1a8] sm:$0xff]
        %v2845 = vld [vmem:[%s2790 + $0x1b0] sm:$0xff]
        %v2846 = vld [vmem:[%s2790 + $0x1b8] sm:$0xff]
        %v2847 = vld [vmem:[%s2790 + $0x1c0] sm:$0xff]
        %v2848 = vld [vmem:[%s2790 + $0x1c8] sm:$0xff]
        %v2849 = vld [vmem:[%s2790 + $0x1d0] sm:$0xff]
        %v2850 = vld [vmem:[%s2790 + $0x1d8] sm:$0xff]
        %v2851 = vld [vmem:[%s2790 + $0x1e0] sm:$0xff]
        %v2852 = vld [vmem:[%s2790 + $0x1e8] sm:$0xff]
        %v2853 = vld [vmem:[%s2790 + $0x1f0] sm:$0xff]
        %v2854 = vld [vmem:[%s2790 + $0x1f8] sm:$0xff]
        %2855 = vmatprep.subr.mxu0 0.0
        %2856 = vmatpush1.msra.mxu0 %v2682
        %2857 = vmatprep.subr.mxu0 0.0
        %2858 = vmatpush1.msra.mxu0 %v2683
        %2859 = vmatprep.subr.mxu0 0.0
        %2860 = vmatpush1.msra.mxu0 %v2684
        %2861 = vmatprep.subr.mxu0 0.0
        %2862 = vmatpush1.msra.mxu0 %v2685
        %2863 = vmatprep.subr.mxu0 0.0
        %2864 = vmatpush1.msra.mxu0 %v2686
        %2865 = vmatprep.subr.mxu0 0.0
        %2866 = vmatpush1.msra.mxu0 %v2687
        %2867 = vmatprep.subr.mxu0 0.0
        %2868 = vmatpush1.msra.mxu0 %v2688
        %2869 = vmatprep.subr.mxu0 0.0
        %2870 = vmatpush1.msra.mxu0 %v2689
        %2871 = vmatprep.subr.mxu0 0.0
        %2872 = vmatpush1.msra.mxu0 %v2690
        %2873 = vmatprep.subr.mxu0 0.0
        %2874 = vmatpush1.msra.mxu0 %v2691
        %2875 = vmatprep.subr.mxu0 0.0
        %2876 = vmatpush1.msra.mxu0 %v2692
        %2877 = vmatprep.subr.mxu0 0.0
        %2878 = vmatpush1.msra.mxu0 %v2693
        %2879 = vmatprep.subr.mxu0 0.0
        %2880 = vmatpush1.msra.mxu0 %v2694
        %2881 = vmatprep.subr.mxu0 0.0
        %2882 = vmatpush1.msra.mxu0 %v2695
        %2883 = vmatprep.subr.mxu0 0.0
        %2884 = vmatpush1.msra.mxu0 %v2696
        %2885 = vmatprep.subr.mxu0 0.0
        %2886 = vmatpush1.msra.mxu0 %v2697
        %2887 = vmatprep.subr.mxu0 0.0
        %2888 = vmatpush1.msra.mxu0 %v2698
        %2889 = vmatprep.subr.mxu0 0.0
        %2890 = vmatpush1.msra.mxu0 %v2699
        %2891 = vmatprep.subr.mxu0 0.0
        %2892 = vmatpush1.msra.mxu0 %v2700
        %2893 = vmatprep.subr.mxu0 0.0
        %2894 = vmatpush1.msra.mxu0 %v2701
        %2895 = vmatprep.subr.mxu0 0.0
        %2896 = vmatpush1.msra.mxu0 %v2702
        %2897 = vmatprep.subr.mxu0 0.0
        %2898 = vmatpush1.msra.mxu0 %v2703
        %2899 = vmatprep.subr.mxu0 0.0
        %2900 = vmatpush1.msra.mxu0 %v2704
        %2901 = vmatprep.subr.mxu0 0.0
        %2902 = vmatpush1.msra.mxu0 %v2705
        %2903 = vmatprep.subr.mxu0 0.0
        %2904 = vmatpush1.msra.mxu0 %v2706
        %2905 = vmatprep.subr.mxu0 0.0
        %2906 = vmatpush1.msra.mxu0 %v2707
        %2907 = vmatprep.subr.mxu0 0.0
        %2908 = vmatpush1.msra.mxu0 %v2708
        %2909 = vmatprep.subr.mxu0 0.0
        %2910 = vmatpush1.msra.mxu0 %v2709
        %2911 = vmatprep.subr.mxu0 0.0
        %2912 = vmatpush1.msra.mxu0 %v2710
        %2913 = vmatprep.subr.mxu0 0.0
        %2914 = vmatpush1.msra.mxu0 %v2711
        %2915 = vmatprep.subr.mxu0 0.0
        %2916 = vmatpush1.msra.mxu0 %v2712
        %2917 = vmatprep.subr.mxu0 0.0
        %2918 = vmatpush1.msra.mxu0 %v2713
        %2919 = vmatprep.mubr.f32.mxu0 %v245
        %2920 = vmatmul.mubr.f32.gmra.mrb[0].mxu0 %v243
        %v2921 = vpop.f32.mrb[0].mxu0
        %v2922 = vadd.f32 0.0, %v2921
        %v2923 = vpop.f32.mrb[0].mxu0
        %2924 = vdwg.mxu0
        %2926 = vset.pattern.permute.xlu0 0
        %2927 = vperm.xlu0 %2926, %v2791
        %v2928 = vpop.permute.xlu0 %2927
        %2931 = vset.pattern.permute.xlu0 0
        %2932 = vperm.xlu0 %2931, %v2792
        %v2933 = vpop.permute.xlu0 %2932
        %2936 = vset.pattern.permute.xlu0 0
        %2937 = vperm.xlu0 %2936, %v2793
        %v2938 = vpop.permute.xlu0 %2937
        %2941 = vset.pattern.permute.xlu0 0
        %2942 = vperm.xlu0 %2941, %v2794
        %v2943 = vpop.permute.xlu0 %2942
        %2946 = vset.pattern.permute.xlu0 0
        %2947 = vperm.xlu0 %2946, %v2795
        %v2948 = vpop.permute.xlu0 %2947
        %2951 = vset.pattern.permute.xlu0 0
        %2952 = vperm.xlu0 %2951, %v2796
        %v2953 = vpop.permute.xlu0 %2952
        %2956 = vset.pattern.permute.xlu0 0
        %2957 = vperm.xlu0 %2956, %v2797
        %v2958 = vpop.permute.xlu0 %2957
        %2961 = vset.pattern.permute.xlu0 0
        %2962 = vperm.xlu0 %2961, %v2798
        %v2963 = vpop.permute.xlu0 %2962
        %2966 = vset.pattern.permute.xlu0 0
        %2967 = vperm.xlu0 %2966, %v2799
        %v2968 = vpop.permute.xlu0 %2967
        %2971 = vset.pattern.permute.xlu0 0
        %2972 = vperm.xlu0 %2971, %v2800
        %v2973 = vpop.permute.xlu0 %2972
        %2976 = vset.pattern.permute.xlu0 0
        %2977 = vperm.xlu0 %2976, %v2801
        %v2978 = vpop.permute.xlu0 %2977
        %2981 = vset.pattern.permute.xlu0 0
        %2982 = vperm.xlu0 %2981, %v2802
        %v2983 = vpop.permute.xlu0 %2982
        %2986 = vset.pattern.permute.xlu0 0
        %2987 = vperm.xlu0 %2986, %v2803
        %v2988 = vpop.permute.xlu0 %2987
        %2991 = vset.pattern.permute.xlu0 0
        %2992 = vperm.xlu0 %2991, %v2804
        %v2993 = vpop.permute.xlu0 %2992
        %2996 = vset.pattern.permute.xlu0 0
        %2997 = vperm.xlu0 %2996, %v2805
        %v2998 = vpop.permute.xlu0 %2997
        %3001 = vset.pattern.permute.xlu0 0
        %3002 = vperm.xlu0 %3001, %v2806
        %v3003 = vpop.permute.xlu0 %3002
        %3006 = vset.pattern.permute.xlu0 0
        %3007 = vperm.xlu0 %3006, %v2807
        %v3008 = vpop.permute.xlu0 %3007
        %3011 = vset.pattern.permute.xlu0 0
        %3012 = vperm.xlu0 %3011, %v2808
        %v3013 = vpop.permute.xlu0 %3012
        %3016 = vset.pattern.permute.xlu0 0
        %3017 = vperm.xlu0 %3016, %v2809
        %v3018 = vpop.permute.xlu0 %3017
        %3021 = vset.pattern.permute.xlu0 0
        %3022 = vperm.xlu0 %3021, %v2810
        %v3023 = vpop.permute.xlu0 %3022
        %3026 = vset.pattern.permute.xlu0 0
        %3027 = vperm.xlu0 %3026, %v2811
        %v3028 = vpop.permute.xlu0 %3027
        %3031 = vset.pattern.permute.xlu0 0
        %3032 = vperm.xlu0 %3031, %v2812
        %v3033 = vpop.permute.xlu0 %3032
        %3036 = vset.pattern.permute.xlu0 0
        %3037 = vperm.xlu0 %3036, %v2813
        %v3038 = vpop.permute.xlu0 %3037
        %3041 = vset.pattern.permute.xlu0 0
        %3042 = vperm.xlu0 %3041, %v2814
        %v3043 = vpop.permute.xlu0 %3042
        %3046 = vset.pattern.permute.xlu0 0
        %3047 = vperm.xlu0 %3046, %v2815
        %v3048 = vpop.permute.xlu0 %3047
        %3051 = vset.pattern.permute.xlu0 0
        %3052 = vperm.xlu0 %3051, %v2816
        %v3053 = vpop.permute.xlu0 %3052
        %3056 = vset.pattern.permute.xlu0 0
        %3057 = vperm.xlu0 %3056, %v2817
        %v3058 = vpop.permute.xlu0 %3057
        %3061 = vset.pattern.permute.xlu0 0
        %3062 = vperm.xlu0 %3061, %v2818
        %v3063 = vpop.permute.xlu0 %3062
        %3066 = vset.pattern.permute.xlu0 0
        %3067 = vperm.xlu0 %3066, %v2819
        %v3068 = vpop.permute.xlu0 %3067
        %3071 = vset.pattern.permute.xlu0 0
        %3072 = vperm.xlu0 %3071, %v2820
        %v3073 = vpop.permute.xlu0 %3072
        %3076 = vset.pattern.permute.xlu0 0
        %3077 = vperm.xlu0 %3076, %v2821
        %v3078 = vpop.permute.xlu0 %3077
        %3081 = vset.pattern.permute.xlu0 0
        %3082 = vperm.xlu0 %3081, %v2822
        %v3083 = vpop.permute.xlu0 %3082
        %3086 = vset.pattern.permute.xlu0 0
        %3087 = vperm.xlu0 %3086, %v2823
        %v3088 = vpop.permute.xlu0 %3087
        %3091 = vset.pattern.permute.xlu0 0
        %3092 = vperm.xlu0 %3091, %v2824
        %v3093 = vpop.permute.xlu0 %3092
        %3096 = vset.pattern.permute.xlu0 0
        %3097 = vperm.xlu0 %3096, %v2825
        %v3098 = vpop.permute.xlu0 %3097
        %3101 = vset.pattern.permute.xlu0 0
        %3102 = vperm.xlu0 %3101, %v2826
        %v3103 = vpop.permute.xlu0 %3102
        %3106 = vset.pattern.permute.xlu0 0
        %3107 = vperm.xlu0 %3106, %v2827
        %v3108 = vpop.permute.xlu0 %3107
        %3111 = vset.pattern.permute.xlu0 0
        %3112 = vperm.xlu0 %3111, %v2828
        %v3113 = vpop.permute.xlu0 %3112
        %3116 = vset.pattern.permute.xlu0 0
        %3117 = vperm.xlu0 %3116, %v2829
        %v3118 = vpop.permute.xlu0 %3117
        %3121 = vset.pattern.permute.xlu0 0
        %3122 = vperm.xlu0 %3121, %v2830
        %v3123 = vpop.permute.xlu0 %3122
        %3126 = vset.pattern.permute.xlu0 0
        %3127 = vperm.xlu0 %3126, %v2831
        %v3128 = vpop.permute.xlu0 %3127
        %3131 = vset.pattern.permute.xlu0 0
        %3132 = vperm.xlu0 %3131, %v2832
        %v3133 = vpop.permute.xlu0 %3132
        %3136 = vset.pattern.permute.xlu0 0
        %3137 = vperm.xlu0 %3136, %v2833
        %v3138 = vpop.permute.xlu0 %3137
        %3141 = vset.pattern.permute.xlu0 0
        %3142 = vperm.xlu0 %3141, %v2834
        %v3143 = vpop.permute.xlu0 %3142
        %3146 = vset.pattern.permute.xlu0 0
        %3147 = vperm.xlu0 %3146, %v2835
        %v3148 = vpop.permute.xlu0 %3147
        %3151 = vset.pattern.permute.xlu0 0
        %3152 = vperm.xlu0 %3151, %v2836
        %v3153 = vpop.permute.xlu0 %3152
        %3156 = vset.pattern.permute.xlu0 0
        %3157 = vperm.xlu0 %3156, %v2837
        %v3158 = vpop.permute.xlu0 %3157
        %3161 = vset.pattern.permute.xlu0 0
        %3162 = vperm.xlu0 %3161, %v2838
        %v3163 = vpop.permute.xlu0 %3162
        %3166 = vset.pattern.permute.xlu0 0
        %3167 = vperm.xlu0 %3166, %v2839
        %v3168 = vpop.permute.xlu0 %3167
        %3171 = vset.pattern.permute.xlu0 0
        %3172 = vperm.xlu0 %3171, %v2840
        %v3173 = vpop.permute.xlu0 %3172
        %3176 = vset.pattern.permute.xlu0 0
        %3177 = vperm.xlu0 %3176, %v2841
        %v3178 = vpop.permute.xlu0 %3177
        %3181 = vset.pattern.permute.xlu0 0
        %3182 = vperm.xlu0 %3181, %v2842
        %v3183 = vpop.permute.xlu0 %3182
        %3186 = vset.pattern.permute.xlu0 0
        %3187 = vperm.xlu0 %3186, %v2843
        %v3188 = vpop.permute.xlu0 %3187
        %3191 = vset.pattern.permute.xlu0 0
        %3192 = vperm.xlu0 %3191, %v2844
        %v3193 = vpop.permute.xlu0 %3192
        %3196 = vset.pattern.permute.xlu0 0
        %3197 = vperm.xlu0 %3196, %v2845
        %v3198 = vpop.permute.xlu0 %3197
        %3201 = vset.pattern.permute.xlu0 0
        %3202 = vperm.xlu0 %3201, %v2846
        %v3203 = vpop.permute.xlu0 %3202
        %3206 = vset.pattern.permute.xlu0 0
        %3207 = vperm.xlu0 %3206, %v2847
        %v3208 = vpop.permute.xlu0 %3207
        %3211 = vset.pattern.permute.xlu0 0
        %3212 = vperm.xlu0 %3211, %v2848
        %v3213 = vpop.permute.xlu0 %3212
        %3216 = vset.pattern.permute.xlu0 0
        %3217 = vperm.xlu0 %3216, %v2849
        %v3218 = vpop.permute.xlu0 %3217
        %3221 = vset.pattern.permute.xlu0 0
        %3222 = vperm.xlu0 %3221, %v2850
        %v3223 = vpop.permute.xlu0 %3222
        %3226 = vset.pattern.permute.xlu0 0
        %3227 = vperm.xlu0 %3226, %v2851
        %v3228 = vpop.permute.xlu0 %3227
        %3231 = vset.pattern.permute.xlu0 0
        %3232 = vperm.xlu0 %3231, %v2852
        %v3233 = vpop.permute.xlu0 %3232
        %3236 = vset.pattern.permute.xlu0 0
        %3237 = vperm.xlu0 %3236, %v2853
        %v3238 = vpop.permute.xlu0 %3237
        %3241 = vset.pattern.permute.xlu0 0
        %3242 = vperm.xlu0 %3241, %v2854
        %v3243 = vpop.permute.xlu0 %3242
        %v3246 = vsel %vm809, %v2726, 0
        %v3249 = vsel %vm809, %v2727, 0
        %v3252 = vsel %vm809, %v2728, 0
        %v3255 = vsel %vm809, %v2729, 0
        %v3258 = vsel %vm809, %v2730, 0
        %v3261 = vsel %vm809, %v2731, 0
        %v3264 = vsel %vm809, %v2732, 0
        %v3267 = vsel %vm809, %v2733, 0
        %v3270 = vsel %vm809, %v2734, 0
        %v3273 = vsel %vm809, %v2735, 0
        %v3276 = vsel %vm809, %v2736, 0
        %v3279 = vsel %vm809, %v2737, 0
        %v3282 = vsel %vm809, %v2738, 0
        %v3285 = vsel %vm809, %v2739, 0
        %v3288 = vsel %vm809, %v2740, 0
        %v3291 = vsel %vm809, %v2741, 0
        %v3294 = vsel %vm809, %v2742, 0
        %v3297 = vsel %vm809, %v2743, 0
        %v3300 = vsel %vm809, %v2744, 0
        %v3303 = vsel %vm809, %v2745, 0
        %v3306 = vsel %vm809, %v2746, 0
        %v3309 = vsel %vm809, %v2747, 0
        %v3312 = vsel %vm809, %v2748, 0
        %v3315 = vsel %vm809, %v2749, 0
        %v3318 = vsel %vm809, %v2750, 0
        %v3321 = vsel %vm809, %v2751, 0
        %v3324 = vsel %vm809, %v2752, 0
        %v3327 = vsel %vm809, %v2753, 0
        %v3330 = vsel %vm809, %v2754, 0
        %v3333 = vsel %vm809, %v2755, 0
        %v3336 = vsel %vm809, %v2756, 0
        %v3339 = vsel %vm809, %v2757, 0
        %v3342 = vsel %vm809, %v2758, 0
        %v3345 = vsel %vm809, %v2759, 0
        %v3348 = vsel %vm809, %v2760, 0
        %v3351 = vsel %vm809, %v2761, 0
        %v3354 = vsel %vm809, %v2762, 0
        %v3357 = vsel %vm809, %v2763, 0
        %v3360 = vsel %vm809, %v2764, 0
        %v3363 = vsel %vm809, %v2765, 0
        %v3366 = vsel %vm809, %v2766, 0
        %v3369 = vsel %vm809, %v2767, 0
        %v3372 = vsel %vm809, %v2768, 0
        %v3375 = vsel %vm809, %v2769, 0
        %v3378 = vsel %vm809, %v2770, 0
        %v3381 = vsel %vm809, %v2771, 0
        %v3384 = vsel %vm809, %v2772, 0
        %v3387 = vsel %vm809, %v2773, 0
        %v3390 = vsel %vm809, %v2774, 0
        %v3393 = vsel %vm809, %v2775, 0
        %v3396 = vsel %vm809, %v2776, 0
        %v3399 = vsel %vm809, %v2777, 0
        %v3402 = vsel %vm809, %v2778, 0
        %v3405 = vsel %vm809, %v2779, 0
        %v3408 = vsel %vm809, %v2780, 0
        %v3411 = vsel %vm809, %v2781, 0
        %v3414 = vsel %vm809, %v2782, 0
        %v3417 = vsel %vm809, %v2783, 0
        %v3420 = vsel %vm809, %v2784, 0
        %v3423 = vsel %vm809, %v2785, 0
        %v3426 = vsel %vm809, %v2786, 0
        %v3429 = vsel %vm809, %v2787, 0
        %v3432 = vsel %vm809, %v2788, 0
        %v3435 = vsel %vm809, %v2789, 0
        %v3438 = vsel %vm1002, %v2922, 0
        %3440 = vmatprep.subr.mxu0 0.0
        %3441 = vmatpush1.msra.mxu0 %v3438
        %3442 = vmatprep.subr.mxu0 0.0
        %3443 = vmatpush1.msra.mxu0 0.0
        %3444 = vmatprep.subr.mxu0 0.0
        %3445 = vmatpush1.msra.mxu0 0.0
        %3446 = vmatprep.subr.mxu0 0.0
        %3447 = vmatpush1.msra.mxu0 0.0
        %3448 = vmatprep.subr.mxu0 0.0
        %3449 = vmatpush1.msra.mxu0 0.0
        %3450 = vmatprep.subr.mxu0 0.0
        %3451 = vmatpush1.msra.mxu0 0.0
        %3452 = vmatprep.subr.mxu0 0.0
        %3453 = vmatpush1.msra.mxu0 0.0
        %3454 = vmatprep.subr.mxu0 0.0
        %3455 = vmatpush1.msra.mxu0 0.0
        %3456 = vmatprep.subr.mxu0 0.0
        %3457 = vmatpush1.msra.mxu0 0.0
        %3458 = vmatprep.subr.mxu0 0.0
        %3459 = vmatpush1.msra.mxu0 0.0
        %3460 = vmatprep.subr.mxu0 0.0
        %3461 = vmatpush1.msra.mxu0 0.0
        %3462 = vmatprep.subr.mxu0 0.0
        %3463 = vmatpush1.msra.mxu0 0.0
        %3464 = vmatprep.subr.mxu0 0.0
        %3465 = vmatpush1.msra.mxu0 0.0
        %3466 = vmatprep.subr.mxu0 0.0
        %3467 = vmatpush1.msra.mxu0 0.0
        %3468 = vmatprep.subr.mxu0 0.0
        %3469 = vmatpush1.msra.mxu0 0.0
        %3470 = vmatprep.subr.mxu0 0.0
        %3471 = vmatpush1.msra.mxu0 0.0
        %3472 = vmatprep.subr.mxu0 0.0
        %3473 = vmatpush1.msra.mxu0 0.0
        %3474 = vmatprep.subr.mxu0 0.0
        %3475 = vmatpush1.msra.mxu0 0.0
        %3476 = vmatprep.subr.mxu0 0.0
        %3477 = vmatpush1.msra.mxu0 0.0
        %3478 = vmatprep.subr.mxu0 0.0
        %3479 = vmatpush1.msra.mxu0 0.0
        %3480 = vmatprep.subr.mxu0 0.0
        %3481 = vmatpush1.msra.mxu0 0.0
        %3482 = vmatprep.subr.mxu0 0.0
        %3483 = vmatpush1.msra.mxu0 0.0
        %3484 = vmatprep.subr.mxu0 0.0
        %3485 = vmatpush1.msra.mxu0 0.0
        %3486 = vmatprep.subr.mxu0 0.0
        %3487 = vmatpush1.msra.mxu0 0.0
        %3488 = vmatprep.subr.mxu0 0.0
        %3489 = vmatpush1.msra.mxu0 0.0
        %3490 = vmatprep.subr.mxu0 0.0
        %3491 = vmatpush1.msra.mxu0 0.0
        %3492 = vmatprep.subr.mxu0 0.0
        %3493 = vmatpush1.msra.mxu0 0.0
        %3494 = vmatprep.subr.mxu0 0.0
        %3495 = vmatpush1.msra.mxu0 0.0
        %3496 = vmatprep.subr.mxu0 0.0
        %3497 = vmatpush1.msra.mxu0 0.0
        %3498 = vmatprep.subr.mxu0 0.0
        %3499 = vmatpush1.msra.mxu0 0.0
        %3500 = vmatprep.subr.mxu0 0.0
        %3501 = vmatpush1.msra.mxu0 0.0
        %3502 = vmatprep.subr.mxu0 0.0
        %3503 = vmatpush1.msra.mxu0 0.0
        %3504 = vmatprep.mubr.f32.mxu0 0.0
        %3505 = vmatmul.mubr.f32.gmra.mrb[0].mxu0 %v3246
        %v3506 = vpop.f32.mrb[0].mxu0
        %v3507 = vadd.f32 %v2928, %v3506
        %v3508 = vpop.f32.mrb[0].mxu0
        %3509 = vmatprep.mubr.f32.mxu0 0.0
        %3510 = vmatmul.mubr.f32.gmra.mrb[0].mxu0 %v3249
        %v3511 = vpop.f32.mrb[0].mxu0
        %v3512 = vadd.f32 %v2933, %v3511
        %v3513 = vpop.f32.mrb[0].mxu0
        %3514 = vmatprep.mubr.f32.mxu0 0.0
        %3515 = vmatmul.mubr.f32.gmra.mrb[0].mxu0 %v3252
        %v3516 = vpop.f32.mrb[0].mxu0
        %v3517 = vadd.f32 %v2938, %v3516
        %v3518 = vpop.f32.mrb[0].mxu0
        %3519 = vmatprep.mubr.f32.mxu0 0.0
        %3520 = vmatmul.mubr.f32.gmra.mrb[0].mxu0 %v3255
        %v3521 = vpop.f32.mrb[0].mxu0
        %v3522 = vadd.f32 %v2943, %v3521
        %v3523 = vpop.f32.mrb[0].mxu0
        %3524 = vmatprep.mubr.f32.mxu0 0.0
        %3525 = vmatmul.mubr.f32.gmra.mrb[0].mxu0 %v3258
        %v3526 = vpop.f32.mrb[0].mxu0
        %v3527 = vadd.f32 %v2948, %v3526
        %v3528 = vpop.f32.mrb[0].mxu0
        %3529 = vmatprep.mubr.f32.mxu0 0.0
        %3530 = vmatmul.mubr.f32.gmra.mrb[0].mxu0 %v3261
        %v3531 = vpop.f32.mrb[0].mxu0
        %v3532 = vadd.f32 %v2953, %v3531
        %v3533 = vpop.f32.mrb[0].mxu0
        %3534 = vmatprep.mubr.f32.mxu0 0.0
        %3535 = vmatmul.mubr.f32.gmra.mrb[0].mxu0 %v3264
        %v3536 = vpop.f32.mrb[0].mxu0
        %v3537 = vadd.f32 %v2958, %v3536
        %v3538 = vpop.f32.mrb[0].mxu0
        %3539 = vmatprep.mubr.f32.mxu0 0.0
        %3540 = vmatmul.mubr.f32.gmra.mrb[0].mxu0 %v3267
        %v3541 = vpop.f32.mrb[0].mxu0
        %v3542 = vadd.f32 %v2963, %v3541
        %v3543 = vpop.f32.mrb[0].mxu0
        %3544 = vmatprep.mubr.f32.mxu0 0.0
        %3545 = vmatmul.mubr.f32.gmra.mrb[0].mxu0 %v3270
        %v3546 = vpop.f32.mrb[0].mxu0
        %v3547 = vadd.f32 %v2968, %v3546
        %v3548 = vpop.f32.mrb[0].mxu0
        %3549 = vmatprep.mubr.f32.mxu0 0.0
        %3550 = vmatmul.mubr.f32.gmra.mrb[0].mxu0 %v3273
        %v3551 = vpop.f32.mrb[0].mxu0
        %v3552 = vadd.f32 %v2973, %v3551
        %v3553 = vpop.f32.mrb[0].mxu0
        %3554 = vmatprep.mubr.f32.mxu0 0.0
        %3555 = vmatmul.mubr.f32.gmra.mrb[0].mxu0 %v3276
        %v3556 = vpop.f32.mrb[0].mxu0
        %v3557 = vadd.f32 %v2978, %v3556
        %v3558 = vpop.f32.mrb[0].mxu0
        %3559 = vmatprep.mubr.f32.mxu0 0.0
        %3560 = vmatmul.mubr.f32.gmra.mrb[0].mxu0 %v3279
        %v3561 = vpop.f32.mrb[0].mxu0
        %v3562 = vadd.f32 %v2983, %v3561
        %v3563 = vpop.f32.mrb[0].mxu0
        %3564 = vmatprep.mubr.f32.mxu0 0.0
        %3565 = vmatmul.mubr.f32.gmra.mrb[0].mxu0 %v3282
        %v3566 = vpop.f32.mrb[0].mxu0
        %v3567 = vadd.f32 %v2988, %v3566
        %v3568 = vpop.f32.mrb[0].mxu0
        %3569 = vmatprep.mubr.f32.mxu0 0.0
        %3570 = vmatmul.mubr.f32.gmra.mrb[0].mxu0 %v3285
        %v3571 = vpop.f32.mrb[0].mxu0
        %v3572 = vadd.f32 %v2993, %v3571
        %v3573 = vpop.f32.mrb[0].mxu0
        %3574 = vmatprep.mubr.f32.mxu0 0.0
        %3575 = vmatmul.mubr.f32.gmra.mrb[0].mxu0 %v3288
        %v3576 = vpop.f32.mrb[0].mxu0
        %v3577 = vadd.f32 %v2998, %v3576
        %v3578 = vpop.f32.mrb[0].mxu0
        %3579 = vmatprep.mubr.f32.mxu0 0.0
        %3580 = vmatmul.mubr.f32.gmra.mrb[0].mxu0 %v3291
        %v3581 = vpop.f32.mrb[0].mxu0
        %v3582 = vadd.f32 %v3003, %v3581
        %v3583 = vpop.f32.mrb[0].mxu0
        %3584 = vmatprep.mubr.f32.mxu0 0.0
        %3585 = vmatmul.mubr.f32.gmra.mrb[0].mxu0 %v3294
        %v3586 = vpop.f32.mrb[0].mxu0
        %v3587 = vadd.f32 %v3008, %v3586
        %v3588 = vpop.f32.mrb[0].mxu0
        %3589 = vmatprep.mubr.f32.mxu0 0.0
        %3590 = vmatmul.mubr.f32.gmra.mrb[0].mxu0 %v3297
        %v3591 = vpop.f32.mrb[0].mxu0
        %v3592 = vadd.f32 %v3013, %v3591
        %v3593 = vpop.f32.mrb[0].mxu0
        %3594 = vmatprep.mubr.f32.mxu0 0.0
        %3595 = vmatmul.mubr.f32.gmra.mrb[0].mxu0 %v3300
        %v3596 = vpop.f32.mrb[0].mxu0
        %v3597 = vadd.f32 %v3018, %v3596
        %v3598 = vpop.f32.mrb[0].mxu0
        %3599 = vmatprep.mubr.f32.mxu0 0.0
        %3600 = vmatmul.mubr.f32.gmra.mrb[0].mxu0 %v3303
        %v3601 = vpop.f32.mrb[0].mxu0
        %v3602 = vadd.f32 %v3023, %v3601
        %v3603 = vpop.f32.mrb[0].mxu0
        %3604 = vmatprep.mubr.f32.mxu0 0.0
        %3605 = vmatmul.mubr.f32.gmra.mrb[0].mxu0 %v3306
        %v3606 = vpop.f32.mrb[0].mxu0
        %v3607 = vadd.f32 %v3028, %v3606
        %v3608 = vpop.f32.mrb[0].mxu0
        %3609 = vmatprep.mubr.f32.mxu0 0.0
        %3610 = vmatmul.mubr.f32.gmra.mrb[0].mxu0 %v3309
        %v3611 = vpop.f32.mrb[0].mxu0
        %v3612 = vadd.f32 %v3033, %v3611
        %v3613 = vpop.f32.mrb[0].mxu0
        %3614 = vmatprep.mubr.f32.mxu0 0.0
        %3615 = vmatmul.mubr.f32.gmra.mrb[0].mxu0 %v3312
        %v3616 = vpop.f32.mrb[0].mxu0
        %v3617 = vadd.f32 %v3038, %v3616
        %v3618 = vpop.f32.mrb[0].mxu0
        %3619 = vmatprep.mubr.f32.mxu0 0.0
        %3620 = vmatmul.mubr.f32.gmra.mrb[0].mxu0 %v3315
        %v3621 = vpop.f32.mrb[0].mxu0
        %v3622 = vadd.f32 %v3043, %v3621
        %v3623 = vpop.f32.mrb[0].mxu0
        %3624 = vmatprep.mubr.f32.mxu0 0.0
        %3625 = vmatmul.mubr.f32.gmra.mrb[0].mxu0 %v3318
        %v3626 = vpop.f32.mrb[0].mxu0
        %v3627 = vadd.f32 %v3048, %v3626
        %v3628 = vpop.f32.mrb[0].mxu0
        %3629 = vmatprep.mubr.f32.mxu0 0.0
        %3630 = vmatmul.mubr.f32.gmra.mrb[0].mxu0 %v3321
        %v3631 = vpop.f32.mrb[0].mxu0
        %v3632 = vadd.f32 %v3053, %v3631
        %v3633 = vpop.f32.mrb[0].mxu0
        %3634 = vmatprep.mubr.f32.mxu0 0.0
        %3635 = vmatmul.mubr.f32.gmra.mrb[0].mxu0 %v3324
        %v3636 = vpop.f32.mrb[0].mxu0
        %v3637 = vadd.f32 %v3058, %v3636
        %v3638 = vpop.f32.mrb[0].mxu0
        %3639 = vmatprep.mubr.f32.mxu0 0.0
        %3640 = vmatmul.mubr.f32.gmra.mrb[0].mxu0 %v3327
        %v3641 = vpop.f32.mrb[0].mxu0
        %v3642 = vadd.f32 %v3063, %v3641
        %v3643 = vpop.f32.mrb[0].mxu0
        %3644 = vmatprep.mubr.f32.mxu0 0.0
        %3645 = vmatmul.mubr.f32.gmra.mrb[0].mxu0 %v3330
        %v3646 = vpop.f32.mrb[0].mxu0
        %v3647 = vadd.f32 %v3068, %v3646
        %v3648 = vpop.f32.mrb[0].mxu0
        %3649 = vmatprep.mubr.f32.mxu0 0.0
        %3650 = vmatmul.mubr.f32.gmra.mrb[0].mxu0 %v3333
        %v3651 = vpop.f32.mrb[0].mxu0
        %v3652 = vadd.f32 %v3073, %v3651
        %v3653 = vpop.f32.mrb[0].mxu0
        %3654 = vmatprep.mubr.f32.mxu0 0.0
        %3655 = vmatmul.mubr.f32.gmra.mrb[0].mxu0 %v3336
        %v3656 = vpop.f32.mrb[0].mxu0
        %v3657 = vadd.f32 %v3078, %v3656
        %v3658 = vpop.f32.mrb[0].mxu0
        %3659 = vmatprep.mubr.f32.mxu0 0.0
        %3660 = vmatmul.mubr.f32.gmra.mrb[0].mxu0 %v3339
        %v3661 = vpop.f32.mrb[0].mxu0
        %v3662 = vadd.f32 %v3083, %v3661
        %v3663 = vpop.f32.mrb[0].mxu0
        %3664 = vmatprep.mubr.f32.mxu0 0.0
        %3665 = vmatmul.mubr.f32.gmra.mrb[0].mxu0 %v3342
        %v3666 = vpop.f32.mrb[0].mxu0
        %v3667 = vadd.f32 %v3088, %v3666
        %v3668 = vpop.f32.mrb[0].mxu0
        %3669 = vmatprep.mubr.f32.mxu0 0.0
        %3670 = vmatmul.mubr.f32.gmra.mrb[0].mxu0 %v3345
        %v3671 = vpop.f32.mrb[0].mxu0
        %v3672 = vadd.f32 %v3093, %v3671
        %v3673 = vpop.f32.mrb[0].mxu0
        %3674 = vmatprep.mubr.f32.mxu0 0.0
        %3675 = vmatmul.mubr.f32.gmra.mrb[0].mxu0 %v3348
        %v3676 = vpop.f32.mrb[0].mxu0
        %v3677 = vadd.f32 %v3098, %v3676
        %v3678 = vpop.f32.mrb[0].mxu0
        %3679 = vmatprep.mubr.f32.mxu0 0.0
        %3680 = vmatmul.mubr.f32.gmra.mrb[0].mxu0 %v3351
        %v3681 = vpop.f32.mrb[0].mxu0
        %v3682 = vadd.f32 %v3103, %v3681
        %v3683 = vpop.f32.mrb[0].mxu0
        %3684 = vmatprep.mubr.f32.mxu0 0.0
        %3685 = vmatmul.mubr.f32.gmra.mrb[0].mxu0 %v3354
        %v3686 = vpop.f32.mrb[0].mxu0
        %v3687 = vadd.f32 %v3108, %v3686
        %v3688 = vpop.f32.mrb[0].mxu0
        %3689 = vmatprep.mubr.f32.mxu0 0.0
        %3690 = vmatmul.mubr.f32.gmra.mrb[0].mxu0 %v3357
        %v3691 = vpop.f32.mrb[0].mxu0
        %v3692 = vadd.f32 %v3113, %v3691
        %v3693 = vpop.f32.mrb[0].mxu0
        %3694 = vmatprep.mubr.f32.mxu0 0.0
        %3695 = vmatmul.mubr.f32.gmra.mrb[0].mxu0 %v3360
        %v3696 = vpop.f32.mrb[0].mxu0
        %v3697 = vadd.f32 %v3118, %v3696
        %v3698 = vpop.f32.mrb[0].mxu0
        %3699 = vmatprep.mubr.f32.mxu0 0.0
        %3700 = vmatmul.mubr.f32.gmra.mrb[0].mxu0 %v3363
        %v3701 = vpop.f32.mrb[0].mxu0
        %v3702 = vadd.f32 %v3123, %v3701
        %v3703 = vpop.f32.mrb[0].mxu0
        %3704 = vmatprep.mubr.f32.mxu0 0.0
        %3705 = vmatmul.mubr.f32.gmra.mrb[0].mxu0 %v3366
        %v3706 = vpop.f32.mrb[0].mxu0
        %v3707 = vadd.f32 %v3128, %v3706
        %v3708 = vpop.f32.mrb[0].mxu0
        %3709 = vmatprep.mubr.f32.mxu0 0.0
        %3710 = vmatmul.mubr.f32.gmra.mrb[0].mxu0 %v3369
        %v3711 = vpop.f32.mrb[0].mxu0
        %v3712 = vadd.f32 %v3133, %v3711
        %v3713 = vpop.f32.mrb[0].mxu0
        %3714 = vmatprep.mubr.f32.mxu0 0.0
        %3715 = vmatmul.mubr.f32.gmra.mrb[0].mxu0 %v3372
        %v3716 = vpop.f32.mrb[0].mxu0
        %v3717 = vadd.f32 %v3138, %v3716
        %v3718 = vpop.f32.mrb[0].mxu0
        %3719 = vmatprep.mubr.f32.mxu0 0.0
        %3720 = vmatmul.mubr.f32.gmra.mrb[0].mxu0 %v3375
        %v3721 = vpop.f32.mrb[0].mxu0
        %v3722 = vadd.f32 %v3143, %v3721
        %v3723 = vpop.f32.mrb[0].mxu0
        %3724 = vmatprep.mubr.f32.mxu0 0.0
        %3725 = vmatmul.mubr.f32.gmra.mrb[0].mxu0 %v3378
        %v3726 = vpop.f32.mrb[0].mxu0
        %v3727 = vadd.f32 %v3148, %v3726
        %v3728 = vpop.f32.mrb[0].mxu0
        %3729 = vmatprep.mubr.f32.mxu0 0.0
        %3730 = vmatmul.mubr.f32.gmra.mrb[0].mxu0 %v3381
        %v3731 = vpop.f32.mrb[0].mxu0
        %v3732 = vadd.f32 %v3153, %v3731
        %v3733 = vpop.f32.mrb[0].mxu0
        %3734 = vmatprep.mubr.f32.mxu0 0.0
        %3735 = vmatmul.mubr.f32.gmra.mrb[0].mxu0 %v3384
        %v3736 = vpop.f32.mrb[0].mxu0
        %v3737 = vadd.f32 %v3158, %v3736
        %v3738 = vpop.f32.mrb[0].mxu0
        %3739 = vmatprep.mubr.f32.mxu0 0.0
        %3740 = vmatmul.mubr.f32.gmra.mrb[0].mxu0 %v3387
        %v3741 = vpop.f32.mrb[0].mxu0
        %v3742 = vadd.f32 %v3163, %v3741
        %v3743 = vpop.f32.mrb[0].mxu0
        %3744 = vmatprep.mubr.f32.mxu0 0.0
        %3745 = vmatmul.mubr.f32.gmra.mrb[0].mxu0 %v3390
        %v3746 = vpop.f32.mrb[0].mxu0
        %v3747 = vadd.f32 %v3168, %v3746
        %v3748 = vpop.f32.mrb[0].mxu0
        %3749 = vmatprep.mubr.f32.mxu0 0.0
        %3750 = vmatmul.mubr.f32.gmra.mrb[0].mxu0 %v3393
        %v3751 = vpop.f32.mrb[0].mxu0
        %v3752 = vadd.f32 %v3173, %v3751
        %v3753 = vpop.f32.mrb[0].mxu0
        %3754 = vmatprep.mubr.f32.mxu0 0.0
        %3755 = vmatmul.mubr.f32.gmra.mrb[0].mxu0 %v3396
        %v3756 = vpop.f32.mrb[0].mxu0
        %v3757 = vadd.f32 %v3178, %v3756
        %v3758 = vpop.f32.mrb[0].mxu0
        %3759 = vmatprep.mubr.f32.mxu0 0.0
        %3760 = vmatmul.mubr.f32.gmra.mrb[0].mxu0 %v3399
        %v3761 = vpop.f32.mrb[0].mxu0
        %v3762 = vadd.f32 %v3183, %v3761
        %v3763 = vpop.f32.mrb[0].mxu0
        %3764 = vmatprep.mubr.f32.mxu0 0.0
        %3765 = vmatmul.mubr.f32.gmra.mrb[0].mxu0 %v3402
        %v3766 = vpop.f32.mrb[0].mxu0
        %v3767 = vadd.f32 %v3188, %v3766
        %v3768 = vpop.f32.mrb[0].mxu0
        %3769 = vmatprep.mubr.f32.mxu0 0.0
        %3770 = vmatmul.mubr.f32.gmra.mrb[0].mxu0 %v3405
        %v3771 = vpop.f32.mrb[0].mxu0
        %v3772 = vadd.f32 %v3193, %v3771
        %v3773 = vpop.f32.mrb[0].mxu0
        %3774 = vmatprep.mubr.f32.mxu0 0.0
        %3775 = vmatmul.mubr.f32.gmra.mrb[0].mxu0 %v3408
        %v3776 = vpop.f32.mrb[0].mxu0
        %v3777 = vadd.f32 %v3198, %v3776
        %v3778 = vpop.f32.mrb[0].mxu0
        %3779 = vmatprep.mubr.f32.mxu0 0.0
        %3780 = vmatmul.mubr.f32.gmra.mrb[0].mxu0 %v3411
        %v3781 = vpop.f32.mrb[0].mxu0
        %v3782 = vadd.f32 %v3203, %v3781
        %v3783 = vpop.f32.mrb[0].mxu0
        %3784 = vmatprep.mubr.f32.mxu0 0.0
        %3785 = vmatmul.mubr.f32.gmra.mrb[0].mxu0 %v3414
        %v3786 = vpop.f32.mrb[0].mxu0
        %v3787 = vadd.f32 %v3208, %v3786
        %v3788 = vpop.f32.mrb[0].mxu0
        %3789 = vmatprep.mubr.f32.mxu0 0.0
        %3790 = vmatmul.mubr.f32.gmra.mrb[0].mxu0 %v3417
        %v3791 = vpop.f32.mrb[0].mxu0
        %v3792 = vadd.f32 %v3213, %v3791
        %v3793 = vpop.f32.mrb[0].mxu0
        %3794 = vmatprep.mubr.f32.mxu0 0.0
        %3795 = vmatmul.mubr.f32.gmra.mrb[0].mxu0 %v3420
        %v3796 = vpop.f32.mrb[0].mxu0
        %v3797 = vadd.f32 %v3218, %v3796
        %v3798 = vpop.f32.mrb[0].mxu0
        %3799 = vmatprep.mubr.f32.mxu0 0.0
        %3800 = vmatmul.mubr.f32.gmra.mrb[0].mxu0 %v3423
        %v3801 = vpop.f32.mrb[0].mxu0
        %v3802 = vadd.f32 %v3223, %v3801
        %v3803 = vpop.f32.mrb[0].mxu0
        %3804 = vmatprep.mubr.f32.mxu0 0.0
        %3805 = vmatmul.mubr.f32.gmra.mrb[0].mxu0 %v3426
        %v3806 = vpop.f32.mrb[0].mxu0
        %v3807 = vadd.f32 %v3228, %v3806
        %v3808 = vpop.f32.mrb[0].mxu0
        %3809 = vmatprep.mubr.f32.mxu0 0.0
        %3810 = vmatmul.mubr.f32.gmra.mrb[0].mxu0 %v3429
        %v3811 = vpop.f32.mrb[0].mxu0
        %v3812 = vadd.f32 %v3233, %v3811
        %v3813 = vpop.f32.mrb[0].mxu0
        %3814 = vmatprep.mubr.f32.mxu0 0.0
        %3815 = vmatmul.mubr.f32.gmra.mrb[0].mxu0 %v3432
        %v3816 = vpop.f32.mrb[0].mxu0
        %v3817 = vadd.f32 %v3238, %v3816
        %v3818 = vpop.f32.mrb[0].mxu0
        %3819 = vmatprep.mubr.f32.mxu0 0.0
        %3820 = vmatmul.mubr.f32.gmra.mrb[0].mxu0 %v3435
        %v3821 = vpop.f32.mrb[0].mxu0
        %v3822 = vadd.f32 %v3243, %v3821
        %v3823 = vpop.f32.mrb[0].mxu0
        %3824 = vdwg.mxu0
        %v3826 = vsel %vm1391, %v3507, 0
        %v3829 = vsel %vm1391, %v3512, 0
        %v3832 = vsel %vm1391, %v3517, 0
        %v3835 = vsel %vm1391, %v3522, 0
        %v3838 = vsel %vm1391, %v3527, 0
        %v3841 = vsel %vm1391, %v3532, 0
        %v3844 = vsel %vm1391, %v3537, 0
        %v3847 = vsel %vm1391, %v3542, 0
        %v3850 = vsel %vm1391, %v3547, 0
        %v3853 = vsel %vm1391, %v3552, 0
        %v3856 = vsel %vm1391, %v3557, 0
        %v3859 = vsel %vm1391, %v3562, 0
        %v3862 = vsel %vm1391, %v3567, 0
        %v3865 = vsel %vm1391, %v3572, 0
        %v3868 = vsel %vm1391, %v3577, 0
        %v3871 = vsel %vm1391, %v3582, 0
        %v3874 = vsel %vm1391, %v3587, 0
        %v3877 = vsel %vm1391, %v3592, 0
        %v3880 = vsel %vm1391, %v3597, 0
        %v3883 = vsel %vm1391, %v3602, 0
        %v3886 = vsel %vm1391, %v3607, 0
        %v3889 = vsel %vm1391, %v3612, 0
        %v3892 = vsel %vm1391, %v3617, 0
        %v3895 = vsel %vm1391, %v3622, 0
        %v3898 = vsel %vm1391, %v3627, 0
        %v3901 = vsel %vm1391, %v3632, 0
        %v3904 = vsel %vm1391, %v3637, 0
        %v3907 = vsel %vm1391, %v3642, 0
        %v3910 = vsel %vm1391, %v3647, 0
        %v3913 = vsel %vm1391, %v3652, 0
        %v3916 = vsel %vm1391, %v3657, 0
        %v3919 = vsel %vm1391, %v3662, 0
        %v3922 = vsel %vm1391, %v3667, 0
        %v3925 = vsel %vm1391, %v3672, 0
        %v3928 = vsel %vm1391, %v3677, 0
        %v3931 = vsel %vm1391, %v3682, 0
        %v3934 = vsel %vm1391, %v3687, 0
        %v3937 = vsel %vm1391, %v3692, 0
        %v3940 = vsel %vm1391, %v3697, 0
        %v3943 = vsel %vm1391, %v3702, 0
        %v3946 = vsel %vm1391, %v3707, 0
        %v3949 = vsel %vm1391, %v3712, 0
        %v3952 = vsel %vm1391, %v3717, 0
        %v3955 = vsel %vm1391, %v3722, 0
        %v3958 = vsel %vm1391, %v3727, 0
        %v3961 = vsel %vm1391, %v3732, 0
        %v3964 = vsel %vm1391, %v3737, 0
        %v3967 = vsel %vm1391, %v3742, 0
        %v3970 = vsel %vm1391, %v3747, 0
        %v3973 = vsel %vm1391, %v3752, 0
        %v3976 = vsel %vm1391, %v3757, 0
        %v3979 = vsel %vm1391, %v3762, 0
        %v3982 = vsel %vm1391, %v3767, 0
        %v3985 = vsel %vm1391, %v3772, 0
        %v3988 = vsel %vm1391, %v3777, 0
        %v3991 = vsel %vm1391, %v3782, 0
        %v3994 = vsel %vm1391, %v3787, 0
        %v3997 = vsel %vm1391, %v3792, 0
        %v4000 = vsel %vm1391, %v3797, 0
        %v4003 = vsel %vm1391, %v3802, 0
        %v4006 = vsel %vm1391, %v3807, 0
        %v4009 = vsel %vm1391, %v3812, 0
        %v4012 = vsel %vm1391, %v3817, 0
        %v4015 = vsel %vm1391, %v3822, 0
        %v4018 = vsel %vm1002, %v2723, 0
        %v4021 = vsel %vm1002, %v2724, 0
        %4023 = vmatprep.subr.mxu0 %v2716
        %4024 = vmatpush1.msra.mxu0 %v2715
        %4025 = vmatprep.subr.mxu0 %v2718
        %4026 = vmatpush1.msra.mxu0 %v2717
        %4027 = vmatprep.subr.mxu0 %v2720
        %4028 = vmatpush1.msra.mxu0 %v2719
        %4029 = vmatprep.subr.mxu0 %v2722
        %4030 = vmatpush1.msra.mxu0 %v2721
        %4031 = vmatprep.subr.mxu0 %v4021
        %4032 = vmatpush1.msra.mxu0 %v4018
        %4033 = vmatprep.subr.mxu0 0.0
        %4034 = vmatpush1.msra.mxu0 0.0
        %4035 = vmatprep.subr.mxu0 0.0
        %4036 = vmatpush1.msra.mxu0 0.0
        %4037 = vmatprep.subr.mxu0 0.0
        %4038 = vmatpush1.msra.mxu0 0.0
        %4039 = vmatprep.subr.mxu0 0.0
        %4040 = vmatpush1.msra.mxu0 0.0
        %4041 = vmatprep.subr.mxu0 0.0
        %4042 = vmatpush1.msra.mxu0 0.0
        %4043 = vmatprep.subr.mxu0 0.0
        %4044 = vmatpush1.msra.mxu0 0.0
        %4045 = vmatprep.subr.mxu0 0.0
        %4046 = vmatpush1.msra.mxu0 0.0
        %4047 = vmatprep.subr.mxu0 0.0
        %4048 = vmatpush1.msra.mxu0 0.0
        %4049 = vmatprep.subr.mxu0 0.0
        %4050 = vmatpush1.msra.mxu0 0.0
        %4051 = vmatprep.subr.mxu0 0.0
        %4052 = vmatpush1.msra.mxu0 0.0
        %4053 = vmatprep.subr.mxu0 0.0
        %4054 = vmatpush1.msra.mxu0 0.0
        %4055 = vmatprep.subr.mxu0 0.0
        %4056 = vmatpush1.msra.mxu0 0.0
        %4057 = vmatprep.subr.mxu0 0.0
        %4058 = vmatpush1.msra.mxu0 0.0
        %4059 = vmatprep.subr.mxu0 0.0
        %4060 = vmatpush1.msra.mxu0 0.0
        %4061 = vmatprep.subr.mxu0 0.0
        %4062 = vmatpush1.msra.mxu0 0.0
        %4063 = vmatprep.subr.mxu0 0.0
        %4064 = vmatpush1.msra.mxu0 0.0
        %4065 = vmatprep.subr.mxu0 0.0
        %4066 = vmatpush1.msra.mxu0 0.0
        %4067 = vmatprep.subr.mxu0 0.0
        %4068 = vmatpush1.msra.mxu0 0.0
        %4069 = vmatprep.subr.mxu0 0.0
        %4070 = vmatpush1.msra.mxu0 0.0
        %4071 = vmatprep.subr.mxu0 0.0
        %4072 = vmatpush1.msra.mxu0 0.0
        %4073 = vmatprep.subr.mxu0 0.0
        %4074 = vmatpush1.msra.mxu0 0.0
        %4075 = vmatprep.subr.mxu0 0.0
        %4076 = vmatpush1.msra.mxu0 0.0
        %4077 = vmatprep.subr.mxu0 0.0
        %4078 = vmatpush1.msra.mxu0 0.0
        %4079 = vmatprep.subr.mxu0 0.0
        %4080 = vmatpush1.msra.mxu0 0.0
        %4081 = vmatprep.subr.mxu0 0.0
        %4082 = vmatpush1.msra.mxu0 0.0
        %4083 = vmatprep.subr.mxu0 0.0
        %4084 = vmatpush1.msra.mxu0 0.0
        %4085 = vmatprep.subr.mxu0 0.0
        %4086 = vmatpush1.msra.mxu0 0.0
        %4087 = vmatprep.mubr.f32.mxu0 0.0
        %4088 = vmatmul.mubr.f32.gmra.mrb[0].mxu0 %v3826
        %v4089 = vpop.f32.mrb[0].mxu0
        %v4090 = vadd.f32 0.0, %v4089
        %v4091 = vpop.f32.mrb[0].mxu0
        %v4092 = vadd.f32 0.0, %v4091
        %4093 = vmatprep.mubr.f32.mxu0 0.0
        %4094 = vmatmul.mubr.f32.gmra.mrb[0].mxu0 %v3829
        %v4095 = vpop.f32.mrb[0].mxu0
        %v4096 = vadd.f32 0.0, %v4095
        %v4097 = vpop.f32.mrb[0].mxu0
        %v4098 = vadd.f32 0.0, %v4097
        %4099 = vmatprep.mubr.f32.mxu0 0.0
        %4100 = vmatmul.mubr.f32.gmra.mrb[0].mxu0 %v3832
        %v4101 = vpop.f32.mrb[0].mxu0
        %v4102 = vadd.f32 0.0, %v4101
        %v4103 = vpop.f32.mrb[0].mxu0
        %v4104 = vadd.f32 0.0, %v4103
        %4105 = vmatprep.mubr.f32.mxu0 0.0
        %4106 = vmatmul.mubr.f32.gmra.mrb[0].mxu0 %v3835
        %v4107 = vpop.f32.mrb[0].mxu0
        %v4108 = vadd.f32 0.0, %v4107
        %v4109 = vpop.f32.mrb[0].mxu0
        %v4110 = vadd.f32 0.0, %v4109
        %4111 = vmatprep.mubr.f32.mxu0 0.0
        %4112 = vmatmul.mubr.f32.gmra.mrb[0].mxu0 %v3838
        %v4113 = vpop.f32.mrb[0].mxu0
        %v4114 = vadd.f32 0.0, %v4113
        %v4115 = vpop.f32.mrb[0].mxu0
        %v4116 = vadd.f32 0.0, %v4115
        %4117 = vmatprep.mubr.f32.mxu0 0.0
        %4118 = vmatmul.mubr.f32.gmra.mrb[0].mxu0 %v3841
        %v4119 = vpop.f32.mrb[0].mxu0
        %v4120 = vadd.f32 0.0, %v4119
        %v4121 = vpop.f32.mrb[0].mxu0
        %v4122 = vadd.f32 0.0, %v4121
        %4123 = vmatprep.mubr.f32.mxu0 0.0
        %4124 = vmatmul.mubr.f32.gmra.mrb[0].mxu0 %v3844
        %v4125 = vpop.f32.mrb[0].mxu0
        %v4126 = vadd.f32 0.0, %v4125
        %v4127 = vpop.f32.mrb[0].mxu0
        %v4128 = vadd.f32 0.0, %v4127
        %4129 = vmatprep.mubr.f32.mxu0 0.0
        %4130 = vmatmul.mubr.f32.gmra.mrb[0].mxu0 %v3847
        %v4131 = vpop.f32.mrb[0].mxu0
        %v4132 = vadd.f32 0.0, %v4131
        %v4133 = vpop.f32.mrb[0].mxu0
        %v4134 = vadd.f32 0.0, %v4133
        %4135 = vmatprep.mubr.f32.mxu0 0.0
        %4136 = vmatmul.mubr.f32.gmra.mrb[0].mxu0 %v3850
        %v4137 = vpop.f32.mrb[0].mxu0
        %v4138 = vadd.f32 0.0, %v4137
        %v4139 = vpop.f32.mrb[0].mxu0
        %v4140 = vadd.f32 0.0, %v4139
        %4141 = vmatprep.mubr.f32.mxu0 0.0
        %4142 = vmatmul.mubr.f32.gmra.mrb[0].mxu0 %v3853
        %v4143 = vpop.f32.mrb[0].mxu0
        %v4144 = vadd.f32 0.0, %v4143
        %v4145 = vpop.f32.mrb[0].mxu0
        %v4146 = vadd.f32 0.0, %v4145
        %4147 = vmatprep.mubr.f32.mxu0 0.0
        %4148 = vmatmul.mubr.f32.gmra.mrb[0].mxu0 %v3856
        %v4149 = vpop.f32.mrb[0].mxu0
        %v4150 = vadd.f32 0.0, %v4149
        %v4151 = vpop.f32.mrb[0].mxu0
        %v4152 = vadd.f32 0.0, %v4151
        %4153 = vmatprep.mubr.f32.mxu0 0.0
        %4154 = vmatmul.mubr.f32.gmra.mrb[0].mxu0 %v3859
        %v4155 = vpop.f32.mrb[0].mxu0
        %v4156 = vadd.f32 0.0, %v4155
        %v4157 = vpop.f32.mrb[0].mxu0
        %v4158 = vadd.f32 0.0, %v4157
        %4159 = vmatprep.mubr.f32.mxu0 0.0
        %4160 = vmatmul.mubr.f32.gmra.mrb[0].mxu0 %v3862
        %v4161 = vpop.f32.mrb[0].mxu0
        %v4162 = vadd.f32 0.0, %v4161
        %v4163 = vpop.f32.mrb[0].mxu0
        %v4164 = vadd.f32 0.0, %v4163
        %4165 = vmatprep.mubr.f32.mxu0 0.0
        %4166 = vmatmul.mubr.f32.gmra.mrb[0].mxu0 %v3865
        %v4167 = vpop.f32.mrb[0].mxu0
        %v4168 = vadd.f32 0.0, %v4167
        %v4169 = vpop.f32.mrb[0].mxu0
        %v4170 = vadd.f32 0.0, %v4169
        %4171 = vmatprep.mubr.f32.mxu0 0.0
        %4172 = vmatmul.mubr.f32.gmra.mrb[0].mxu0 %v3868
        %v4173 = vpop.f32.mrb[0].mxu0
        %v4174 = vadd.f32 0.0, %v4173
        %v4175 = vpop.f32.mrb[0].mxu0
        %v4176 = vadd.f32 0.0, %v4175
        %4177 = vmatprep.mubr.f32.mxu0 0.0
        %4178 = vmatmul.mubr.f32.gmra.mrb[0].mxu0 %v3871
        %v4179 = vpop.f32.mrb[0].mxu0
        %v4180 = vadd.f32 0.0, %v4179
        %v4181 = vpop.f32.mrb[0].mxu0
        %v4182 = vadd.f32 0.0, %v4181
        %4183 = vmatprep.mubr.f32.mxu0 0.0
        %4184 = vmatmul.mubr.f32.gmra.mrb[0].mxu0 %v3874
        %v4185 = vpop.f32.mrb[0].mxu0
        %v4186 = vadd.f32 0.0, %v4185
        %v4187 = vpop.f32.mrb[0].mxu0
        %v4188 = vadd.f32 0.0, %v4187
        %4189 = vmatprep.mubr.f32.mxu0 0.0
        %4190 = vmatmul.mubr.f32.gmra.mrb[0].mxu0 %v3877
        %v4191 = vpop.f32.mrb[0].mxu0
        %v4192 = vadd.f32 0.0, %v4191
        %v4193 = vpop.f32.mrb[0].mxu0
        %v4194 = vadd.f32 0.0, %v4193
        %4195 = vmatprep.mubr.f32.mxu0 0.0
        %4196 = vmatmul.mubr.f32.gmra.mrb[0].mxu0 %v3880
        %v4197 = vpop.f32.mrb[0].mxu0
        %v4198 = vadd.f32 0.0, %v4197
        %v4199 = vpop.f32.mrb[0].mxu0
        %v4200 = vadd.f32 0.0, %v4199
        %4201 = vmatprep.mubr.f32.mxu0 0.0
        %4202 = vmatmul.mubr.f32.gmra.mrb[0].mxu0 %v3883
        %v4203 = vpop.f32.mrb[0].mxu0
        %v4204 = vadd.f32 0.0, %v4203
        %v4205 = vpop.f32.mrb[0].mxu0
        %v4206 = vadd.f32 0.0, %v4205
        %4207 = vmatprep.mubr.f32.mxu0 0.0
        %4208 = vmatmul.mubr.f32.gmra.mrb[0].mxu0 %v3886
        %v4209 = vpop.f32.mrb[0].mxu0
        %v4210 = vadd.f32 0.0, %v4209
        %v4211 = vpop.f32.mrb[0].mxu0
        %v4212 = vadd.f32 0.0, %v4211
        %4213 = vmatprep.mubr.f32.mxu0 0.0
        %4214 = vmatmul.mubr.f32.gmra.mrb[0].mxu0 %v3889
        %v4215 = vpop.f32.mrb[0].mxu0
        %v4216 = vadd.f32 0.0, %v4215
        %v4217 = vpop.f32.mrb[0].mxu0
        %v4218 = vadd.f32 0.0, %v4217
        %4219 = vmatprep.mubr.f32.mxu0 0.0
        %4220 = vmatmul.mubr.f32.gmra.mrb[0].mxu0 %v3892
        %v4221 = vpop.f32.mrb[0].mxu0
        %v4222 = vadd.f32 0.0, %v4221
        %v4223 = vpop.f32.mrb[0].mxu0
        %v4224 = vadd.f32 0.0, %v4223
        %4225 = vmatprep.mubr.f32.mxu0 0.0
        %4226 = vmatmul.mubr.f32.gmra.mrb[0].mxu0 %v3895
        %v4227 = vpop.f32.mrb[0].mxu0
        %v4228 = vadd.f32 0.0, %v4227
        %v4229 = vpop.f32.mrb[0].mxu0
        %v4230 = vadd.f32 0.0, %v4229
        %4231 = vmatprep.mubr.f32.mxu0 0.0
        %4232 = vmatmul.mubr.f32.gmra.mrb[0].mxu0 %v3898
        %v4233 = vpop.f32.mrb[0].mxu0
        %v4234 = vadd.f32 0.0, %v4233
        %v4235 = vpop.f32.mrb[0].mxu0
        %v4236 = vadd.f32 0.0, %v4235
        %4237 = vmatprep.mubr.f32.mxu0 0.0
        %4238 = vmatmul.mubr.f32.gmra.mrb[0].mxu0 %v3901
        %v4239 = vpop.f32.mrb[0].mxu0
        %v4240 = vadd.f32 0.0, %v4239
        %v4241 = vpop.f32.mrb[0].mxu0
        %v4242 = vadd.f32 0.0, %v4241
        %4243 = vmatprep.mubr.f32.mxu0 0.0
        %4244 = vmatmul.mubr.f32.gmra.mrb[0].mxu0 %v3904
        %v4245 = vpop.f32.mrb[0].mxu0
        %v4246 = vadd.f32 0.0, %v4245
        %v4247 = vpop.f32.mrb[0].mxu0
        %v4248 = vadd.f32 0.0, %v4247
        %4249 = vmatprep.mubr.f32.mxu0 0.0
        %4250 = vmatmul.mubr.f32.gmra.mrb[0].mxu0 %v3907
        %v4251 = vpop.f32.mrb[0].mxu0
        %v4252 = vadd.f32 0.0, %v4251
        %v4253 = vpop.f32.mrb[0].mxu0
        %v4254 = vadd.f32 0.0, %v4253
        %4255 = vmatprep.mubr.f32.mxu0 0.0
        %4256 = vmatmul.mubr.f32.gmra.mrb[0].mxu0 %v3910
        %v4257 = vpop.f32.mrb[0].mxu0
        %v4258 = vadd.f32 0.0, %v4257
        %v4259 = vpop.f32.mrb[0].mxu0
        %v4260 = vadd.f32 0.0, %v4259
        %4261 = vmatprep.mubr.f32.mxu0 0.0
        %4262 = vmatmul.mubr.f32.gmra.mrb[0].mxu0 %v3913
        %v4263 = vpop.f32.mrb[0].mxu0
        %v4264 = vadd.f32 0.0, %v4263
        %v4265 = vpop.f32.mrb[0].mxu0
        %v4266 = vadd.f32 0.0, %v4265
        %4267 = vmatprep.mubr.f32.mxu0 0.0
        %4268 = vmatmul.mubr.f32.gmra.mrb[0].mxu0 %v3916
        %v4269 = vpop.f32.mrb[0].mxu0
        %v4270 = vadd.f32 0.0, %v4269
        %v4271 = vpop.f32.mrb[0].mxu0
        %v4272 = vadd.f32 0.0, %v4271
        %4273 = vmatprep.mubr.f32.mxu0 0.0
        %4274 = vmatmul.mubr.f32.gmra.mrb[0].mxu0 %v3919
        %v4275 = vpop.f32.mrb[0].mxu0
        %v4276 = vadd.f32 0.0, %v4275
        %v4277 = vpop.f32.mrb[0].mxu0
        %v4278 = vadd.f32 0.0, %v4277
        %4279 = vmatprep.mubr.f32.mxu0 0.0
        %4280 = vmatmul.mubr.f32.gmra.mrb[0].mxu0 %v3922
        %v4281 = vpop.f32.mrb[0].mxu0
        %v4282 = vadd.f32 0.0, %v4281
        %v4283 = vpop.f32.mrb[0].mxu0
        %v4284 = vadd.f32 0.0, %v4283
        %4285 = vmatprep.mubr.f32.mxu0 0.0
        %4286 = vmatmul.mubr.f32.gmra.mrb[0].mxu0 %v3925
        %v4287 = vpop.f32.mrb[0].mxu0
        %v4288 = vadd.f32 0.0, %v4287
        %v4289 = vpop.f32.mrb[0].mxu0
        %v4290 = vadd.f32 0.0, %v4289
        %4291 = vmatprep.mubr.f32.mxu0 0.0
        %4292 = vmatmul.mubr.f32.gmra.mrb[0].mxu0 %v3928
        %v4293 = vpop.f32.mrb[0].mxu0
        %v4294 = vadd.f32 0.0, %v4293
        %v4295 = vpop.f32.mrb[0].mxu0
        %v4296 = vadd.f32 0.0, %v4295
        %4297 = vmatprep.mubr.f32.mxu0 0.0
        %4298 = vmatmul.mubr.f32.gmra.mrb[0].mxu0 %v3931
        %v4299 = vpop.f32.mrb[0].mxu0
        %v4300 = vadd.f32 0.0, %v4299
        %v4301 = vpop.f32.mrb[0].mxu0
        %v4302 = vadd.f32 0.0, %v4301
        %4303 = vmatprep.mubr.f32.mxu0 0.0
        %4304 = vmatmul.mubr.f32.gmra.mrb[0].mxu0 %v3934
        %v4305 = vpop.f32.mrb[0].mxu0
        %v4306 = vadd.f32 0.0, %v4305
        %v4307 = vpop.f32.mrb[0].mxu0
        %v4308 = vadd.f32 0.0, %v4307
        %4309 = vmatprep.mubr.f32.mxu0 0.0
        %4310 = vmatmul.mubr.f32.gmra.mrb[0].mxu0 %v3937
        %v4311 = vpop.f32.mrb[0].mxu0
        %v4312 = vadd.f32 0.0, %v4311
        %v4313 = vpop.f32.mrb[0].mxu0
        %v4314 = vadd.f32 0.0, %v4313
        %4315 = vmatprep.mubr.f32.mxu0 0.0
        %4316 = vmatmul.mubr.f32.gmra.mrb[0].mxu0 %v3940
        %v4317 = vpop.f32.mrb[0].mxu0
        %v4318 = vadd.f32 0.0, %v4317
        %v4319 = vpop.f32.mrb[0].mxu0
        %v4320 = vadd.f32 0.0, %v4319
        %4321 = vmatprep.mubr.f32.mxu0 0.0
        %4322 = vmatmul.mubr.f32.gmra.mrb[0].mxu0 %v3943
        %v4323 = vpop.f32.mrb[0].mxu0
        %v4324 = vadd.f32 0.0, %v4323
        %v4325 = vpop.f32.mrb[0].mxu0
        %v4326 = vadd.f32 0.0, %v4325
        %4327 = vmatprep.mubr.f32.mxu0 0.0
        %4328 = vmatmul.mubr.f32.gmra.mrb[0].mxu0 %v3946
        %v4329 = vpop.f32.mrb[0].mxu0
        %v4330 = vadd.f32 0.0, %v4329
        %v4331 = vpop.f32.mrb[0].mxu0
        %v4332 = vadd.f32 0.0, %v4331
        %4333 = vmatprep.mubr.f32.mxu0 0.0
        %4334 = vmatmul.mubr.f32.gmra.mrb[0].mxu0 %v3949
        %v4335 = vpop.f32.mrb[0].mxu0
        %v4336 = vadd.f32 0.0, %v4335
        %v4337 = vpop.f32.mrb[0].mxu0
        %v4338 = vadd.f32 0.0, %v4337
        %4339 = vmatprep.mubr.f32.mxu0 0.0
        %4340 = vmatmul.mubr.f32.gmra.mrb[0].mxu0 %v3952
        %v4341 = vpop.f32.mrb[0].mxu0
        %v4342 = vadd.f32 0.0, %v4341
        %v4343 = vpop.f32.mrb[0].mxu0
        %v4344 = vadd.f32 0.0, %v4343
        %4345 = vmatprep.mubr.f32.mxu0 0.0
        %4346 = vmatmul.mubr.f32.gmra.mrb[0].mxu0 %v3955
        %v4347 = vpop.f32.mrb[0].mxu0
        %v4348 = vadd.f32 0.0, %v4347
        %v4349 = vpop.f32.mrb[0].mxu0
        %v4350 = vadd.f32 0.0, %v4349
        %4351 = vmatprep.mubr.f32.mxu0 0.0
        %4352 = vmatmul.mubr.f32.gmra.mrb[0].mxu0 %v3958
        %v4353 = vpop.f32.mrb[0].mxu0
        %v4354 = vadd.f32 0.0, %v4353
        %v4355 = vpop.f32.mrb[0].mxu0
        %v4356 = vadd.f32 0.0, %v4355
        %4357 = vmatprep.mubr.f32.mxu0 0.0
        %4358 = vmatmul.mubr.f32.gmra.mrb[0].mxu0 %v3961
        %v4359 = vpop.f32.mrb[0].mxu0
        %v4360 = vadd.f32 0.0, %v4359
        %v4361 = vpop.f32.mrb[0].mxu0
        %v4362 = vadd.f32 0.0, %v4361
        %4363 = vmatprep.mubr.f32.mxu0 0.0
        %4364 = vmatmul.mubr.f32.gmra.mrb[0].mxu0 %v3964
        %v4365 = vpop.f32.mrb[0].mxu0
        %v4366 = vadd.f32 0.0, %v4365
        %v4367 = vpop.f32.mrb[0].mxu0
        %v4368 = vadd.f32 0.0, %v4367
        %4369 = vmatprep.mubr.f32.mxu0 0.0
        %4370 = vmatmul.mubr.f32.gmra.mrb[0].mxu0 %v3967
        %v4371 = vpop.f32.mrb[0].mxu0
        %v4372 = vadd.f32 0.0, %v4371
        %v4373 = vpop.f32.mrb[0].mxu0
        %v4374 = vadd.f32 0.0, %v4373
        %4375 = vmatprep.mubr.f32.mxu0 0.0
        %4376 = vmatmul.mubr.f32.gmra.mrb[0].mxu0 %v3970
        %v4377 = vpop.f32.mrb[0].mxu0
        %v4378 = vadd.f32 0.0, %v4377
        %v4379 = vpop.f32.mrb[0].mxu0
        %v4380 = vadd.f32 0.0, %v4379
        %4381 = vmatprep.mubr.f32.mxu0 0.0
        %4382 = vmatmul.mubr.f32.gmra.mrb[0].mxu0 %v3973
        %v4383 = vpop.f32.mrb[0].mxu0
        %v4384 = vadd.f32 0.0, %v4383
        %v4385 = vpop.f32.mrb[0].mxu0
        %v4386 = vadd.f32 0.0, %v4385
        %4387 = vmatprep.mubr.f32.mxu0 0.0
        %4388 = vmatmul.mubr.f32.gmra.mrb[0].mxu0 %v3976
        %v4389 = vpop.f32.mrb[0].mxu0
        %v4390 = vadd.f32 0.0, %v4389
        %v4391 = vpop.f32.mrb[0].mxu0
        %v4392 = vadd.f32 0.0, %v4391
        %4393 = vmatprep.mubr.f32.mxu0 0.0
        %4394 = vmatmul.mubr.f32.gmra.mrb[0].mxu0 %v3979
        %v4395 = vpop.f32.mrb[0].mxu0
        %v4396 = vadd.f32 0.0, %v4395
        %v4397 = vpop.f32.mrb[0].mxu0
        %v4398 = vadd.f32 0.0, %v4397
        %4399 = vmatprep.mubr.f32.mxu0 0.0
        %4400 = vmatmul.mubr.f32.gmra.mrb[0].mxu0 %v3982
        %v4401 = vpop.f32.mrb[0].mxu0
        %v4402 = vadd.f32 0.0, %v4401
        %v4403 = vpop.f32.mrb[0].mxu0
        %v4404 = vadd.f32 0.0, %v4403
        %4405 = vmatprep.mubr.f32.mxu0 0.0
        %4406 = vmatmul.mubr.f32.gmra.mrb[0].mxu0 %v3985
        %v4407 = vpop.f32.mrb[0].mxu0
        %v4408 = vadd.f32 0.0, %v4407
        %v4409 = vpop.f32.mrb[0].mxu0
        %v4410 = vadd.f32 0.0, %v4409
        %4411 = vmatprep.mubr.f32.mxu0 0.0
        %4412 = vmatmul.mubr.f32.gmra.mrb[0].mxu0 %v3988
        %v4413 = vpop.f32.mrb[0].mxu0
        %v4414 = vadd.f32 0.0, %v4413
        %v4415 = vpop.f32.mrb[0].mxu0
        %v4416 = vadd.f32 0.0, %v4415
        %4417 = vmatprep.mubr.f32.mxu0 0.0
        %4418 = vmatmul.mubr.f32.gmra.mrb[0].mxu0 %v3991
        %v4419 = vpop.f32.mrb[0].mxu0
        %v4420 = vadd.f32 0.0, %v4419
        %v4421 = vpop.f32.mrb[0].mxu0
        %v4422 = vadd.f32 0.0, %v4421
        %4423 = vmatprep.mubr.f32.mxu0 0.0
        %4424 = vmatmul.mubr.f32.gmra.mrb[0].mxu0 %v3994
        %v4425 = vpop.f32.mrb[0].mxu0
        %v4426 = vadd.f32 0.0, %v4425
        %v4427 = vpop.f32.mrb[0].mxu0
        %v4428 = vadd.f32 0.0, %v4427
        %4429 = vmatprep.mubr.f32.mxu0 0.0
        %4430 = vmatmul.mubr.f32.gmra.mrb[0].mxu0 %v3997
        %v4431 = vpop.f32.mrb[0].mxu0
        %v4432 = vadd.f32 0.0, %v4431
        %v4433 = vpop.f32.mrb[0].mxu0
        %v4434 = vadd.f32 0.0, %v4433
        %4435 = vmatprep.mubr.f32.mxu0 0.0
        %4436 = vmatmul.mubr.f32.gmra.mrb[0].mxu0 %v4000
        %v4437 = vpop.f32.mrb[0].mxu0
        %v4438 = vadd.f32 0.0, %v4437
        %v4439 = vpop.f32.mrb[0].mxu0
        %v4440 = vadd.f32 0.0, %v4439
        %4441 = vmatprep.mubr.f32.mxu0 0.0
        %4442 = vmatmul.mubr.f32.gmra.mrb[0].mxu0 %v4003
        %v4443 = vpop.f32.mrb[0].mxu0
        %v4444 = vadd.f32 0.0, %v4443
        %v4445 = vpop.f32.mrb[0].mxu0
        %v4446 = vadd.f32 0.0, %v4445
        %4447 = vmatprep.mubr.f32.mxu0 0.0
        %4448 = vmatmul.mubr.f32.gmra.mrb[0].mxu0 %v4006
        %v4449 = vpop.f32.mrb[0].mxu0
        %v4450 = vadd.f32 0.0, %v4449
        %v4451 = vpop.f32.mrb[0].mxu0
        %v4452 = vadd.f32 0.0, %v4451
        %4453 = vmatprep.mubr.f32.mxu0 0.0
        %4454 = vmatmul.mubr.f32.gmra.mrb[0].mxu0 %v4009
        %v4455 = vpop.f32.mrb[0].mxu0
        %v4456 = vadd.f32 0.0, %v4455
        %v4457 = vpop.f32.mrb[0].mxu0
        %v4458 = vadd.f32 0.0, %v4457
        %4459 = vmatprep.mubr.f32.mxu0 0.0
        %4460 = vmatmul.mubr.f32.gmra.mrb[0].mxu0 %v4012
        %v4461 = vpop.f32.mrb[0].mxu0
        %v4462 = vadd.f32 0.0, %v4461
        %v4463 = vpop.f32.mrb[0].mxu0
        %v4464 = vadd.f32 0.0, %v4463
        %4465 = vmatprep.mubr.f32.mxu0 0.0
        %4466 = vmatmul.mubr.f32.gmra.mrb[0].mxu0 %v4015
        %v4467 = vpop.f32.mrb[0].mxu0
        %v4468 = vadd.f32 0.0, %v4467
        %v4469 = vpop.f32.mrb[0].mxu0
        %v4470 = vadd.f32 0.0, %v4469
        %4471 = vdwg.mxu0
        %v4600 = vrot.slane %v4090, 4
        %v4601 = vrot.slane %v4092, 4
        %v4602 = vrot.slane %v4096, 4
        %v4603 = vsel %vm1002, %v4600, %v4602
        %v4604 = vrot.slane %v4098, 4
        %v4605 = vsel %vm1002, %v4601, %v4604
        %v4606 = vrot.slane %v4102, 4
        %v4607 = vsel %vm1002, %v4602, %v4606
        %v4608 = vrot.slane %v4104, 4
        %v4609 = vsel %vm1002, %v4604, %v4608
        %v4610 = vrot.slane %v4108, 4
        %v4611 = vsel %vm1002, %v4606, %v4610
        %v4612 = vrot.slane %v4110, 4
        %v4613 = vsel %vm1002, %v4608, %v4612
        %v4614 = vrot.slane %v4114, 4
        %v4615 = vsel %vm1002, %v4610, %v4614
        %v4616 = vrot.slane %v4116, 4
        %v4617 = vsel %vm1002, %v4612, %v4616
        %v4618 = vrot.slane %v4120, 4
        %v4619 = vsel %vm1002, %v4614, %v4618
        %v4620 = vrot.slane %v4122, 4
        %v4621 = vsel %vm1002, %v4616, %v4620
        %v4622 = vrot.slane %v4126, 4
        %v4623 = vsel %vm1002, %v4618, %v4622
        %v4624 = vrot.slane %v4128, 4
        %v4625 = vsel %vm1002, %v4620, %v4624
        %v4626 = vrot.slane %v4132, 4
        %v4627 = vsel %vm1002, %v4622, %v4626
        %v4628 = vrot.slane %v4134, 4
        %v4629 = vsel %vm1002, %v4624, %v4628
        %v4630 = vrot.slane %v4138, 4
        %v4631 = vsel %vm1002, %v4626, %v4630
        %v4632 = vrot.slane %v4140, 4
        %v4633 = vsel %vm1002, %v4628, %v4632
        %v4634 = vrot.slane %v4144, 4
        %v4635 = vsel %vm1002, %v4630, %v4634
        %v4636 = vrot.slane %v4146, 4
        %v4637 = vsel %vm1002, %v4632, %v4636
        %v4638 = vrot.slane %v4150, 4
        %v4639 = vsel %vm1002, %v4634, %v4638
        %v4640 = vrot.slane %v4152, 4
        %v4641 = vsel %vm1002, %v4636, %v4640
        %v4642 = vrot.slane %v4156, 4
        %v4643 = vsel %vm1002, %v4638, %v4642
        %v4644 = vrot.slane %v4158, 4
        %v4645 = vsel %vm1002, %v4640, %v4644
        %v4646 = vrot.slane %v4162, 4
        %v4647 = vsel %vm1002, %v4642, %v4646
        %v4648 = vrot.slane %v4164, 4
        %v4649 = vsel %vm1002, %v4644, %v4648
        %v4650 = vrot.slane %v4168, 4
        %v4651 = vsel %vm1002, %v4646, %v4650
        %v4652 = vrot.slane %v4170, 4
        %v4653 = vsel %vm1002, %v4648, %v4652
        %v4654 = vrot.slane %v4174, 4
        %v4655 = vsel %vm1002, %v4650, %v4654
        %v4656 = vrot.slane %v4176, 4
        %v4657 = vsel %vm1002, %v4652, %v4656
        %v4658 = vrot.slane %v4180, 4
        %v4659 = vsel %vm1002, %v4654, %v4658
        %v4660 = vrot.slane %v4182, 4
        %v4661 = vsel %vm1002, %v4656, %v4660
        %v4662 = vrot.slane %v4186, 4
        %v4663 = vsel %vm1002, %v4658, %v4662
        %v4664 = vrot.slane %v4188, 4
        %v4665 = vsel %vm1002, %v4660, %v4664
        %v4666 = vrot.slane %v4192, 4
        %v4667 = vsel %vm1002, %v4662, %v4666
        %v4668 = vrot.slane %v4194, 4
        %v4669 = vsel %vm1002, %v4664, %v4668
        %v4670 = vrot.slane %v4198, 4
        %v4671 = vsel %vm1002, %v4666, %v4670
        %v4672 = vrot.slane %v4200, 4
        %v4673 = vsel %vm1002, %v4668, %v4672
        %v4674 = vrot.slane %v4204, 4
        %v4675 = vsel %vm1002, %v4670, %v4674
        %v4676 = vrot.slane %v4206, 4
        %v4677 = vsel %vm1002, %v4672, %v4676
        %v4678 = vrot.slane %v4210, 4
        %v4679 = vsel %vm1002, %v4674, %v4678
        %v4680 = vrot.slane %v4212, 4
        %v4681 = vsel %vm1002, %v4676, %v4680
        %v4682 = vrot.slane %v4216, 4
        %v4683 = vsel %vm1002, %v4678, %v4682
        %v4684 = vrot.slane %v4218, 4
        %v4685 = vsel %vm1002, %v4680, %v4684
        %v4686 = vrot.slane %v4222, 4
        %v4687 = vsel %vm1002, %v4682, %v4686
        %v4688 = vrot.slane %v4224, 4
        %v4689 = vsel %vm1002, %v4684, %v4688
        %v4690 = vrot.slane %v4228, 4
        %v4691 = vsel %vm1002, %v4686, %v4690
        %v4692 = vrot.slane %v4230, 4
        %v4693 = vsel %vm1002, %v4688, %v4692
        %v4694 = vrot.slane %v4234, 4
        %v4695 = vsel %vm1002, %v4690, %v4694
        %v4696 = vrot.slane %v4236, 4
        %v4697 = vsel %vm1002, %v4692, %v4696
        %v4698 = vrot.slane %v4240, 4
        %v4699 = vsel %vm1002, %v4694, %v4698
        %v4700 = vrot.slane %v4242, 4
        %v4701 = vsel %vm1002, %v4696, %v4700
        %v4702 = vrot.slane %v4246, 4
        %v4703 = vsel %vm1002, %v4698, %v4702
        %v4704 = vrot.slane %v4248, 4
        %v4705 = vsel %vm1002, %v4700, %v4704
        %v4706 = vrot.slane %v4252, 4
        %v4707 = vsel %vm1002, %v4702, %v4706
        %v4708 = vrot.slane %v4254, 4
        %v4709 = vsel %vm1002, %v4704, %v4708
        %v4710 = vrot.slane %v4258, 4
        %v4711 = vsel %vm1002, %v4706, %v4710
        %v4712 = vrot.slane %v4260, 4
        %v4713 = vsel %vm1002, %v4708, %v4712
        %v4714 = vrot.slane %v4264, 4
        %v4715 = vsel %vm1002, %v4710, %v4714
        %v4716 = vrot.slane %v4266, 4
        %v4717 = vsel %vm1002, %v4712, %v4716
        %v4718 = vrot.slane %v4270, 4
        %v4719 = vsel %vm1002, %v4714, %v4718
        %v4720 = vrot.slane %v4272, 4
        %v4721 = vsel %vm1002, %v4716, %v4720
        %v4722 = vrot.slane %v4276, 4
        %v4723 = vsel %vm1002, %v4718, %v4722
        %v4724 = vrot.slane %v4278, 4
        %v4725 = vsel %vm1002, %v4720, %v4724
        %v4726 = vrot.slane %v4282, 4
        %v4727 = vsel %vm1002, %v4722, %v4726
        %v4728 = vrot.slane %v4284, 4
        %v4729 = vsel %vm1002, %v4724, %v4728
        %v4730 = vrot.slane %v4288, 4
        %v4731 = vsel %vm1002, %v4726, %v4730
        %v4732 = vrot.slane %v4290, 4
        %v4733 = vsel %vm1002, %v4728, %v4732
        %v4734 = vrot.slane %v4294, 4
        %v4735 = vsel %vm1002, %v4730, %v4734
        %v4736 = vrot.slane %v4296, 4
        %v4737 = vsel %vm1002, %v4732, %v4736
        %v4738 = vrot.slane %v4300, 4
        %v4739 = vsel %vm1002, %v4734, %v4738
        %v4740 = vrot.slane %v4302, 4
        %v4741 = vsel %vm1002, %v4736, %v4740
        %v4742 = vrot.slane %v4306, 4
        %v4743 = vsel %vm1002, %v4738, %v4742
        %v4744 = vrot.slane %v4308, 4
        %v4745 = vsel %vm1002, %v4740, %v4744
        %v4746 = vrot.slane %v4312, 4
        %v4747 = vsel %vm1002, %v4742, %v4746
        %v4748 = vrot.slane %v4314, 4
        %v4749 = vsel %vm1002, %v4744, %v4748
        %v4750 = vrot.slane %v4318, 4
        %v4751 = vsel %vm1002, %v4746, %v4750
        %v4752 = vrot.slane %v4320, 4
        %v4753 = vsel %vm1002, %v4748, %v4752
        %v4754 = vrot.slane %v4324, 4
        %v4755 = vsel %vm1002, %v4750, %v4754
        %v4756 = vrot.slane %v4326, 4
        %v4757 = vsel %vm1002, %v4752, %v4756
        %v4758 = vrot.slane %v4330, 4
        %v4759 = vsel %vm1002, %v4754, %v4758
        %v4760 = vrot.slane %v4332, 4
        %v4761 = vsel %vm1002, %v4756, %v4760
        %v4762 = vrot.slane %v4336, 4
        %v4763 = vsel %vm1002, %v4758, %v4762
        %v4764 = vrot.slane %v4338, 4
        %v4765 = vsel %vm1002, %v4760, %v4764
        %v4766 = vrot.slane %v4342, 4
        %v4767 = vsel %vm1002, %v4762, %v4766
        %v4768 = vrot.slane %v4344, 4
        %v4769 = vsel %vm1002, %v4764, %v4768
        %v4770 = vrot.slane %v4348, 4
        %v4771 = vsel %vm1002, %v4766, %v4770
        %v4772 = vrot.slane %v4350, 4
        %v4773 = vsel %vm1002, %v4768, %v4772
        %v4774 = vrot.slane %v4354, 4
        %v4775 = vsel %vm1002, %v4770, %v4774
        %v4776 = vrot.slane %v4356, 4
        %v4777 = vsel %vm1002, %v4772, %v4776
        %v4778 = vrot.slane %v4360, 4
        %v4779 = vsel %vm1002, %v4774, %v4778
        %v4780 = vrot.slane %v4362, 4
        %v4781 = vsel %vm1002, %v4776, %v4780
        %v4782 = vrot.slane %v4366, 4
        %v4783 = vsel %vm1002, %v4778, %v4782
        %v4784 = vrot.slane %v4368, 4
        %v4785 = vsel %vm1002, %v4780, %v4784
        %v4786 = vrot.slane %v4372, 4
        %v4787 = vsel %vm1002, %v4782, %v4786
        %v4788 = vrot.slane %v4374, 4
        %v4789 = vsel %vm1002, %v4784, %v4788
        %v4790 = vrot.slane %v4378, 4
        %v4791 = vsel %vm1002, %v4786, %v4790
        %v4792 = vrot.slane %v4380, 4
        %v4793 = vsel %vm1002, %v4788, %v4792
        %v4794 = vrot.slane %v4384, 4
        %v4795 = vsel %vm1002, %v4790, %v4794
        %v4796 = vrot.slane %v4386, 4
        %v4797 = vsel %vm1002, %v4792, %v4796
        %v4798 = vrot.slane %v4390, 4
        %v4799 = vsel %vm1002, %v4794, %v4798
        %v4800 = vrot.slane %v4392, 4
        %v4801 = vsel %vm1002, %v4796, %v4800
        %v4802 = vrot.slane %v4396, 4
        %v4803 = vsel %vm1002, %v4798, %v4802
        %v4804 = vrot.slane %v4398, 4
        %v4805 = vsel %vm1002, %v4800, %v4804
        %v4806 = vrot.slane %v4402, 4
        %v4807 = vsel %vm1002, %v4802, %v4806
        %v4808 = vrot.slane %v4404, 4
        %v4809 = vsel %vm1002, %v4804, %v4808
        %v4810 = vrot.slane %v4408, 4
        %v4811 = vsel %vm1002, %v4806, %v4810
        %v4812 = vrot.slane %v4410, 4
        %v4813 = vsel %vm1002, %v4808, %v4812
        %v4814 = vrot.slane %v4414, 4
        %v4815 = vsel %vm1002, %v4810, %v4814
        %v4816 = vrot.slane %v4416, 4
        %v4817 = vsel %vm1002, %v4812, %v4816
        %v4818 = vrot.slane %v4420, 4
        %v4819 = vsel %vm1002, %v4814, %v4818
        %v4820 = vrot.slane %v4422, 4
        %v4821 = vsel %vm1002, %v4816, %v4820
        %v4822 = vrot.slane %v4426, 4
        %v4823 = vsel %vm1002, %v4818, %v4822
        %v4824 = vrot.slane %v4428, 4
        %v4825 = vsel %vm1002, %v4820, %v4824
        %v4826 = vrot.slane %v4432, 4
        %v4827 = vsel %vm1002, %v4822, %v4826
        %v4828 = vrot.slane %v4434, 4
        %v4829 = vsel %vm1002, %v4824, %v4828
        %v4830 = vrot.slane %v4438, 4
        %v4831 = vsel %vm1002, %v4826, %v4830
        %v4832 = vrot.slane %v4440, 4
        %v4833 = vsel %vm1002, %v4828, %v4832
        %v4834 = vrot.slane %v4444, 4
        %v4835 = vsel %vm1002, %v4830, %v4834
        %v4836 = vrot.slane %v4446, 4
        %v4837 = vsel %vm1002, %v4832, %v4836
        %v4838 = vrot.slane %v4450, 4
        %v4839 = vsel %vm1002, %v4834, %v4838
        %v4840 = vrot.slane %v4452, 4
        %v4841 = vsel %vm1002, %v4836, %v4840
        %v4842 = vrot.slane %v4456, 4
        %v4843 = vsel %vm1002, %v4838, %v4842
        %v4844 = vrot.slane %v4458, 4
        %v4845 = vsel %vm1002, %v4840, %v4844
        %v4846 = vrot.slane %v4462, 4
        %v4847 = vsel %vm1002, %v4842, %v4846
        %v4848 = vrot.slane %v4464, 4
        %v4849 = vsel %vm1002, %v4844, %v4848
        %v4850 = vrot.slane %v4468, 4
        %v4851 = vsel %vm1002, %v4846, %v4850
        %v4852 = vrot.slane %v4470, 4
        %v4853 = vsel %vm1002, %v4848, %v4852
        %4984 = vst [vmem:[%s242 + $0x400] sm:$0xf0] %v4600
        %4985 = vst [vmem:[%s242 + $0x408] sm:$0xf0] %v4601
        %4986 = vst [vmem:[%s242 + $0x410] sm:$0xff] %v4603
        %4987 = vst [vmem:[%s242 + $0x418] sm:$0xff] %v4605
        %4988 = vst [vmem:[%s242 + $0x420] sm:$0xff] %v4607
        %4989 = vst [vmem:[%s242 + $0x428] sm:$0xff] %v4609
        %4990 = vst [vmem:[%s242 + $0x430] sm:$0xff] %v4611
        %4991 = vst [vmem:[%s242 + $0x438] sm:$0xff] %v4613
        %4992 = vst [vmem:[%s242 + $0x440] sm:$0xff] %v4615
        %4993 = vst [vmem:[%s242 + $0x448] sm:$0xff] %v4617
        %4994 = vst [vmem:[%s242 + $0x450] sm:$0xff] %v4619
        %4995 = vst [vmem:[%s242 + $0x458] sm:$0xff] %v4621
        %4996 = vst [vmem:[%s242 + $0x460] sm:$0xff] %v4623
        %4997 = vst [vmem:[%s242 + $0x468] sm:$0xff] %v4625
        %4998 = vst [vmem:[%s242 + $0x470] sm:$0xff] %v4627
        %4999 = vst [vmem:[%s242 + $0x478] sm:$0xff] %v4629
        %5000 = vst [vmem:[%s242 + $0x480] sm:$0xff] %v4631
        %5001 = vst [vmem:[%s242 + $0x488] sm:$0xff] %v4633
        %5002 = vst [vmem:[%s242 + $0x490] sm:$0xff] %v4635
        %5003 = vst [vmem:[%s242 + $0x498] sm:$0xff] %v4637
        %5004 = vst [vmem:[%s242 + $0x4a0] sm:$0xff] %v4639
        %5005 = vst [vmem:[%s242 + $0x4a8] sm:$0xff] %v4641
        %5006 = vst [vmem:[%s242 + $0x4b0] sm:$0xff] %v4643
        %5007 = vst [vmem:[%s242 + $0x4b8] sm:$0xff] %v4645
        %5008 = vst [vmem:[%s242 + $0x4c0] sm:$0xff] %v4647
        %5009 = vst [vmem:[%s242 + $0x4c8] sm:$0xff] %v4649
        %5010 = vst [vmem:[%s242 + $0x4d0] sm:$0xff] %v4651
        %5011 = vst [vmem:[%s242 + $0x4d8] sm:$0xff] %v4653
        %5012 = vst [vmem:[%s242 + $0x4e0] sm:$0xff] %v4655
        %5013 = vst [vmem:[%s242 + $0x4e8] sm:$0xff] %v4657
        %5014 = vst [vmem:[%s242 + $0x4f0] sm:$0xff] %v4659
        %5015 = vst [vmem:[%s242 + $0x4f8] sm:$0xff] %v4661
        %5016 = vst [vmem:[%s242 + $0x500] sm:$0xff] %v4663
        %5017 = vst [vmem:[%s242 + $0x508] sm:$0xff] %v4665
        %5018 = vst [vmem:[%s242 + $0x510] sm:$0xff] %v4667
        %5019 = vst [vmem:[%s242 + $0x518] sm:$0xff] %v4669
        %5020 = vst [vmem:[%s242 + $0x520] sm:$0xff] %v4671
        %5021 = vst [vmem:[%s242 + $0x528] sm:$0xff] %v4673
        %5022 = vst [vmem:[%s242 + $0x530] sm:$0xff] %v4675
        %5023 = vst [vmem:[%s242 + $0x538] sm:$0xff] %v4677
        %5024 = vst [vmem:[%s242 + $0x540] sm:$0xff] %v4679
        %5025 = vst [vmem:[%s242 + $0x548] sm:$0xff] %v4681
        %5026 = vst [vmem:[%s242 + $0x550] sm:$0xff] %v4683
        %5027 = vst [vmem:[%s242 + $0x558] sm:$0xff] %v4685
        %5028 = vst [vmem:[%s242 + $0x560] sm:$0xff] %v4687
        %5029 = vst [vmem:[%s242 + $0x568] sm:$0xff] %v4689
        %5030 = vst [vmem:[%s242 + $0x570] sm:$0xff] %v4691
        %5031 = vst [vmem:[%s242 + $0x578] sm:$0xff] %v4693
        %5032 = vst [vmem:[%s242 + $0x580] sm:$0xff] %v4695
        %5033 = vst [vmem:[%s242 + $0x588] sm:$0xff] %v4697
        %5034 = vst [vmem:[%s242 + $0x590] sm:$0xff] %v4699
        %5035 = vst [vmem:[%s242 + $0x598] sm:$0xff] %v4701
        %5036 = vst [vmem:[%s242 + $0x5a0] sm:$0xff] %v4703
        %5037 = vst [vmem:[%s242 + $0x5a8] sm:$0xff] %v4705
        %5038 = vst [vmem:[%s242 + $0x5b0] sm:$0xff] %v4707
        %5039 = vst [vmem:[%s242 + $0x5b8] sm:$0xff] %v4709
        %5040 = vst [vmem:[%s242 + $0x5c0] sm:$0xff] %v4711
        %5041 = vst [vmem:[%s242 + $0x5c8] sm:$0xff] %v4713
        %5042 = vst [vmem:[%s242 + $0x5d0] sm:$0xff] %v4715
        %5043 = vst [vmem:[%s242 + $0x5d8] sm:$0xff] %v4717
        %5044 = vst [vmem:[%s242 + $0x5e0] sm:$0xff] %v4719
        %5045 = vst [vmem:[%s242 + $0x5e8] sm:$0xff] %v4721
        %5046 = vst [vmem:[%s242 + $0x5f0] sm:$0xff] %v4723
        %5047 = vst [vmem:[%s242 + $0x5f8] sm:$0xff] %v4725
        %5048 = vst [vmem:[%s242 + $0x600] sm:$0xff] %v4727
        %5049 = vst [vmem:[%s242 + $0x608] sm:$0xff] %v4729
        %5050 = vst [vmem:[%s242 + $0x610] sm:$0xff] %v4731
        %5051 = vst [vmem:[%s242 + $0x618] sm:$0xff] %v4733
        %5052 = vst [vmem:[%s242 + $0x620] sm:$0xff] %v4735
        %5053 = vst [vmem:[%s242 + $0x628] sm:$0xff] %v4737
        %5054 = vst [vmem:[%s242 + $0x630] sm:$0xff] %v4739
        %5055 = vst [vmem:[%s242 + $0x638] sm:$0xff] %v4741
        %5056 = vst [vmem:[%s242 + $0x640] sm:$0xff] %v4743
        %5057 = vst [vmem:[%s242 + $0x648] sm:$0xff] %v4745
        %5058 = vst [vmem:[%s242 + $0x650] sm:$0xff] %v4747
        %5059 = vst [vmem:[%s242 + $0x658] sm:$0xff] %v4749
        %5060 = vst [vmem:[%s242 + $0x660] sm:$0xff] %v4751
        %5061 = vst [vmem:[%s242 + $0x668] sm:$0xff] %v4753
        %5062 = vst [vmem:[%s242 + $0x670] sm:$0xff] %v4755
        %5063 = vst [vmem:[%s242 + $0x678] sm:$0xff] %v4757
        %5064 = vst [vmem:[%s242 + $0x680] sm:$0xff] %v4759
        %5065 = vst [vmem:[%s242 + $0x688] sm:$0xff] %v4761
        %5066 = vst [vmem:[%s242 + $0x690] sm:$0xff] %v4763
        %5067 = vst [vmem:[%s242 + $0x698] sm:$0xff] %v4765
        %5068 = vst [vmem:[%s242 + $0x6a0] sm:$0xff] %v4767
        %5069 = vst [vmem:[%s242 + $0x6a8] sm:$0xff] %v4769
        %5070 = vst [vmem:[%s242 + $0x6b0] sm:$0xff] %v4771
        %5071 = vst [vmem:[%s242 + $0x6b8] sm:$0xff] %v4773
        %5072 = vst [vmem:[%s242 + $0x6c0] sm:$0xff] %v4775
        %5073 = vst [vmem:[%s242 + $0x6c8] sm:$0xff] %v4777
        %5074 = vst [vmem:[%s242 + $0x6d0] sm:$0xff] %v4779
        %5075 = vst [vmem:[%s242 + $0x6d8] sm:$0xff] %v4781
        %5076 = vst [vmem:[%s242 + $0x6e0] sm:$0xff] %v4783
        %5077 = vst [vmem:[%s242 + $0x6e8] sm:$0xff] %v4785
        %5078 = vst [vmem:[%s242 + $0x6f0] sm:$0xff] %v4787
        %5079 = vst [vmem:[%s242 + $0x6f8] sm:$0xff] %v4789
        %5080 = vst [vmem:[%s242 + $0x700] sm:$0xff] %v4791
        %5081 = vst [vmem:[%s242 + $0x708] sm:$0xff] %v4793
        %5082 = vst [vmem:[%s242 + $0x710] sm:$0xff] %v4795
        %5083 = vst [vmem:[%s242 + $0x718] sm:$0xff] %v4797
        %5084 = vst [vmem:[%s242 + $0x720] sm:$0xff] %v4799
        %5085 = vst [vmem:[%s242 + $0x728] sm:$0xff] %v4801
        %5086 = vst [vmem:[%s242 + $0x730] sm:$0xff] %v4803
        %5087 = vst [vmem:[%s242 + $0x738] sm:$0xff] %v4805
        %5088 = vst [vmem:[%s242 + $0x740] sm:$0xff] %v4807
        %5089 = vst [vmem:[%s242 + $0x748] sm:$0xff] %v4809
        %5090 = vst [vmem:[%s242 + $0x750] sm:$0xff] %v4811
        %5091 = vst [vmem:[%s242 + $0x758] sm:$0xff] %v4813
        %5092 = vst [vmem:[%s242 + $0x760] sm:$0xff] %v4815
        %5093 = vst [vmem:[%s242 + $0x768] sm:$0xff] %v4817
        %5094 = vst [vmem:[%s242 + $0x770] sm:$0xff] %v4819
        %5095 = vst [vmem:[%s242 + $0x778] sm:$0xff] %v4821
        %5096 = vst [vmem:[%s242 + $0x780] sm:$0xff] %v4823
        %5097 = vst [vmem:[%s242 + $0x788] sm:$0xff] %v4825
        %5098 = vst [vmem:[%s242 + $0x790] sm:$0xff] %v4827
        %5099 = vst [vmem:[%s242 + $0x798] sm:$0xff] %v4829
        %5100 = vst [vmem:[%s242 + $0x7a0] sm:$0xff] %v4831
        %5101 = vst [vmem:[%s242 + $0x7a8] sm:$0xff] %v4833
        %5102 = vst [vmem:[%s242 + $0x7b0] sm:$0xff] %v4835
        %5103 = vst [vmem:[%s242 + $0x7b8] sm:$0xff] %v4837
        %5104 = vst [vmem:[%s242 + $0x7c0] sm:$0xff] %v4839
        %5105 = vst [vmem:[%s242 + $0x7c8] sm:$0xff] %v4841
        %5106 = vst [vmem:[%s242 + $0x7d0] sm:$0xff] %v4843
        %5107 = vst [vmem:[%s242 + $0x7d8] sm:$0xff] %v4845
        %5108 = vst [vmem:[%s242 + $0x7e0] sm:$0xff] %v4847
        %5109 = vst [vmem:[%s242 + $0x7e8] sm:$0xff] %v4849
        %5110 = vst [vmem:[%s242 + $0x7f0] sm:$0xff] %v4851
        %5111 = vst [vmem:[%s242 + $0x7f8] sm:$0xff] %v4853
        %5112 = vst [vmem:[%s242 + $0x800] sm:$0xf] %v4850
        %5113 = vst [vmem:[%s242 + $0x808] sm:$0xf] %v4852
        %s5114 = scalar_lea.vmem %s1, 512
        %v5115 = vld [vmem:[%s5114] sm:$0xff]
        %v5116 = vld [vmem:[%s5114 + $0x8] sm:$0xff]
        %v5117 = vld [vmem:[%s5114 + $0x10] sm:$0xff]
        %v5118 = vld [vmem:[%s5114 + $0x18] sm:$0xff]
        %v5119 = vld [vmem:[%s5114 + $0x20] sm:$0xff]
        %v5120 = vld [vmem:[%s5114 + $0x28] sm:$0xff]
        %v5121 = vld [vmem:[%s5114 + $0x30] sm:$0xff]
        %v5122 = vld [vmem:[%s5114 + $0x38] sm:$0xff]
        %v5123 = vld [vmem:[%s5114 + $0x40] sm:$0xff]
        %v5124 = vld [vmem:[%s5114 + $0x48] sm:$0xff]
        %v5125 = vld [vmem:[%s5114 + $0x50] sm:$0xff]
        %v5126 = vld [vmem:[%s5114 + $0x58] sm:$0xff]
        %v5127 = vld [vmem:[%s5114 + $0x60] sm:$0xff]
        %v5128 = vld [vmem:[%s5114 + $0x68] sm:$0xff]
        %v5129 = vld [vmem:[%s5114 + $0x70] sm:$0xff]
        %v5130 = vld [vmem:[%s5114 + $0x78] sm:$0xff]
        %v5131 = vld [vmem:[%s5114 + $0x80] sm:$0xff]
        %v5132 = vld [vmem:[%s5114 + $0x88] sm:$0xff]
        %v5133 = vld [vmem:[%s5114 + $0x90] sm:$0xff]
        %v5134 = vld [vmem:[%s5114 + $0x98] sm:$0xff]
        %v5135 = vld [vmem:[%s5114 + $0xa0] sm:$0xff]
        %v5136 = vld [vmem:[%s5114 + $0xa8] sm:$0xff]
        %v5137 = vld [vmem:[%s5114 + $0xb0] sm:$0xff]
        %v5138 = vld [vmem:[%s5114 + $0xb8] sm:$0xff]
        %v5139 = vld [vmem:[%s5114 + $0xc0] sm:$0xff]
        %v5140 = vld [vmem:[%s5114 + $0xc8] sm:$0xff]
        %v5141 = vld [vmem:[%s5114 + $0xd0] sm:$0xff]
        %v5142 = vld [vmem:[%s5114 + $0xd8] sm:$0xff]
        %v5143 = vld [vmem:[%s5114 + $0xe0] sm:$0xff]
        %v5144 = vld [vmem:[%s5114 + $0xe8] sm:$0xff]
        %v5145 = vld [vmem:[%s5114 + $0xf0] sm:$0xff]
        %v5146 = vld [vmem:[%s5114 + $0xf8] sm:$0xff]
        %s5147 = scalar_lea.vmem %s2, 160
        %v5148 = vld [vmem:[%s5147] sm:$0xff]
        %v5149 = vld [vmem:[%s5147 + $0x8] sm:$0xff]
        %v5150 = vld [vmem:[%s5147 + $0x10] sm:$0xff]
        %v5151 = vld [vmem:[%s5147 + $0x18] sm:$0xff]
        %v5152 = vld [vmem:[%s5147 + $0x20] sm:$0xff]
        %v5153 = vld [vmem:[%s5147 + $0x28] sm:$0xff]
        %v5154 = vld [vmem:[%s5147 + $0x30] sm:$0xff]
        %v5155 = vld [vmem:[%s5147 + $0x38] sm:$0xff]
        %v5156 = vld [vmem:[%s5147 + $0x40] sm:$0xf]
        %v5157 = vld [vmem:[%s5147 + $0x48] sm:$0xf]
        %s5158 = scalar_lea.vmem %s3, 1024
        %v5159 = vld [vmem:[%s5158] sm:$0xff]
        %v5160 = vld [vmem:[%s5158 + $0x8] sm:$0xff]
        %v5161 = vld [vmem:[%s5158 + $0x10] sm:$0xff]
        %v5162 = vld [vmem:[%s5158 + $0x18] sm:$0xff]
        %v5163 = vld [vmem:[%s5158 + $0x20] sm:$0xff]
        %v5164 = vld [vmem:[%s5158 + $0x28] sm:$0xff]
        %v5165 = vld [vmem:[%s5158 + $0x30] sm:$0xff]
        %v5166 = vld [vmem:[%s5158 + $0x38] sm:$0xff]
        %v5167 = vld [vmem:[%s5158 + $0x40] sm:$0xff]
        %v5168 = vld [vmem:[%s5158 + $0x48] sm:$0xff]
        %v5169 = vld [vmem:[%s5158 + $0x50] sm:$0xff]
        %v5170 = vld [vmem:[%s5158 + $0x58] sm:$0xff]
        %v5171 = vld [vmem:[%s5158 + $0x60] sm:$0xff]
        %v5172 = vld [vmem:[%s5158 + $0x68] sm:$0xff]
        %v5173 = vld [vmem:[%s5158 + $0x70] sm:$0xff]
        %v5174 = vld [vmem:[%s5158 + $0x78] sm:$0xff]
        %v5175 = vld [vmem:[%s5158 + $0x80] sm:$0xff]
        %v5176 = vld [vmem:[%s5158 + $0x88] sm:$0xff]
        %v5177 = vld [vmem:[%s5158 + $0x90] sm:$0xff]
        %v5178 = vld [vmem:[%s5158 + $0x98] sm:$0xff]
        %v5179 = vld [vmem:[%s5158 + $0xa0] sm:$0xff]
        %v5180 = vld [vmem:[%s5158 + $0xa8] sm:$0xff]
        %v5181 = vld [vmem:[%s5158 + $0xb0] sm:$0xff]
        %v5182 = vld [vmem:[%s5158 + $0xb8] sm:$0xff]
        %v5183 = vld [vmem:[%s5158 + $0xc0] sm:$0xff]
        %v5184 = vld [vmem:[%s5158 + $0xc8] sm:$0xff]
        %v5185 = vld [vmem:[%s5158 + $0xd0] sm:$0xff]
        %v5186 = vld [vmem:[%s5158 + $0xd8] sm:$0xff]
        %v5187 = vld [vmem:[%s5158 + $0xe0] sm:$0xff]
        %v5188 = vld [vmem:[%s5158 + $0xe8] sm:$0xff]
        %v5189 = vld [vmem:[%s5158 + $0xf0] sm:$0xff]
        %v5190 = vld [vmem:[%s5158 + $0xf8] sm:$0xff]
        %v5191 = vld [vmem:[%s5158 + $0x100] sm:$0xff]
        %v5192 = vld [vmem:[%s5158 + $0x108] sm:$0xff]
        %v5193 = vld [vmem:[%s5158 + $0x110] sm:$0xff]
        %v5194 = vld [vmem:[%s5158 + $0x118] sm:$0xff]
        %v5195 = vld [vmem:[%s5158 + $0x120] sm:$0xff]
        %v5196 = vld [vmem:[%s5158 + $0x128] sm:$0xff]
        %v5197 = vld [vmem:[%s5158 + $0x130] sm:$0xff]
        %v5198 = vld [vmem:[%s5158 + $0x138] sm:$0xff]
        %v5199 = vld [vmem:[%s5158 + $0x140] sm:$0xff]
        %v5200 = vld [vmem:[%s5158 + $0x148] sm:$0xff]
        %v5201 = vld [vmem:[%s5158 + $0x150] sm:$0xff]
        %v5202 = vld [vmem:[%s5158 + $0x158] sm:$0xff]
        %v5203 = vld [vmem:[%s5158 + $0x160] sm:$0xff]
        %v5204 = vld [vmem:[%s5158 + $0x168] sm:$0xff]
        %v5205 = vld [vmem:[%s5158 + $0x170] sm:$0xff]
        %v5206 = vld [vmem:[%s5158 + $0x178] sm:$0xff]
        %v5207 = vld [vmem:[%s5158 + $0x180] sm:$0xff]
        %v5208 = vld [vmem:[%s5158 + $0x188] sm:$0xff]
        %v5209 = vld [vmem:[%s5158 + $0x190] sm:$0xff]
        %v5210 = vld [vmem:[%s5158 + $0x198] sm:$0xff]
        %v5211 = vld [vmem:[%s5158 + $0x1a0] sm:$0xff]
        %v5212 = vld [vmem:[%s5158 + $0x1a8] sm:$0xff]
        %v5213 = vld [vmem:[%s5158 + $0x1b0] sm:$0xff]
        %v5214 = vld [vmem:[%s5158 + $0x1b8] sm:$0xff]
        %v5215 = vld [vmem:[%s5158 + $0x1c0] sm:$0xff]
        %v5216 = vld [vmem:[%s5158 + $0x1c8] sm:$0xff]
        %v5217 = vld [vmem:[%s5158 + $0x1d0] sm:$0xff]
        %v5218 = vld [vmem:[%s5158 + $0x1d8] sm:$0xff]
        %v5219 = vld [vmem:[%s5158 + $0x1e0] sm:$0xff]
        %v5220 = vld [vmem:[%s5158 + $0x1e8] sm:$0xff]
        %v5221 = vld [vmem:[%s5158 + $0x1f0] sm:$0xff]
        %v5222 = vld [vmem:[%s5158 + $0x1f8] sm:$0xff]
        %s5223 = scalar_lea.vmem %s4, 1024
        %v5224 = vld [vmem:[%s5223] sm:$0xff]
        %v5225 = vld [vmem:[%s5223 + $0x8] sm:$0xff]
        %v5226 = vld [vmem:[%s5223 + $0x10] sm:$0xff]
        %v5227 = vld [vmem:[%s5223 + $0x18] sm:$0xff]
        %v5228 = vld [vmem:[%s5223 + $0x20] sm:$0xff]
        %v5229 = vld [vmem:[%s5223 + $0x28] sm:$0xff]
        %v5230 = vld [vmem:[%s5223 + $0x30] sm:$0xff]
        %v5231 = vld [vmem:[%s5223 + $0x38] sm:$0xff]
        %v5232 = vld [vmem:[%s5223 + $0x40] sm:$0xff]
        %v5233 = vld [vmem:[%s5223 + $0x48] sm:$0xff]
        %v5234 = vld [vmem:[%s5223 + $0x50] sm:$0xff]
        %v5235 = vld [vmem:[%s5223 + $0x58] sm:$0xff]
        %v5236 = vld [vmem:[%s5223 + $0x60] sm:$0xff]
        %v5237 = vld [vmem:[%s5223 + $0x68] sm:$0xff]
        %v5238 = vld [vmem:[%s5223 + $0x70] sm:$0xff]
        %v5239 = vld [vmem:[%s5223 + $0x78] sm:$0xff]
        %v5240 = vld [vmem:[%s5223 + $0x80] sm:$0xff]
        %v5241 = vld [vmem:[%s5223 + $0x88] sm:$0xff]
        %v5242 = vld [vmem:[%s5223 + $0x90] sm:$0xff]
        %v5243 = vld [vmem:[%s5223 + $0x98] sm:$0xff]
        %v5244 = vld [vmem:[%s5223 + $0xa0] sm:$0xff]
        %v5245 = vld [vmem:[%s5223 + $0xa8] sm:$0xff]
        %v5246 = vld [vmem:[%s5223 + $0xb0] sm:$0xff]
        %v5247 = vld [vmem:[%s5223 + $0xb8] sm:$0xff]
        %v5248 = vld [vmem:[%s5223 + $0xc0] sm:$0xff]
        %v5249 = vld [vmem:[%s5223 + $0xc8] sm:$0xff]
        %v5250 = vld [vmem:[%s5223 + $0xd0] sm:$0xff]
        %v5251 = vld [vmem:[%s5223 + $0xd8] sm:$0xff]
        %v5252 = vld [vmem:[%s5223 + $0xe0] sm:$0xff]
        %v5253 = vld [vmem:[%s5223 + $0xe8] sm:$0xff]
        %v5254 = vld [vmem:[%s5223 + $0xf0] sm:$0xff]
        %v5255 = vld [vmem:[%s5223 + $0xf8] sm:$0xff]
        %v5256 = vld [vmem:[%s5223 + $0x100] sm:$0xff]
        %v5257 = vld [vmem:[%s5223 + $0x108] sm:$0xff]
        %v5258 = vld [vmem:[%s5223 + $0x110] sm:$0xff]
        %v5259 = vld [vmem:[%s5223 + $0x118] sm:$0xff]
        %v5260 = vld [vmem:[%s5223 + $0x120] sm:$0xff]
        %v5261 = vld [vmem:[%s5223 + $0x128] sm:$0xff]
        %v5262 = vld [vmem:[%s5223 + $0x130] sm:$0xff]
        %v5263 = vld [vmem:[%s5223 + $0x138] sm:$0xff]
        %v5264 = vld [vmem:[%s5223 + $0x140] sm:$0xff]
        %v5265 = vld [vmem:[%s5223 + $0x148] sm:$0xff]
        %v5266 = vld [vmem:[%s5223 + $0x150] sm:$0xff]
        %v5267 = vld [vmem:[%s5223 + $0x158] sm:$0xff]
        %v5268 = vld [vmem:[%s5223 + $0x160] sm:$0xff]
        %v5269 = vld [vmem:[%s5223 + $0x168] sm:$0xff]
        %v5270 = vld [vmem:[%s5223 + $0x170] sm:$0xff]
        %v5271 = vld [vmem:[%s5223 + $0x178] sm:$0xff]
        %v5272 = vld [vmem:[%s5223 + $0x180] sm:$0xff]
        %v5273 = vld [vmem:[%s5223 + $0x188] sm:$0xff]
        %v5274 = vld [vmem:[%s5223 + $0x190] sm:$0xff]
        %v5275 = vld [vmem:[%s5223 + $0x198] sm:$0xff]
        %v5276 = vld [vmem:[%s5223 + $0x1a0] sm:$0xff]
        %v5277 = vld [vmem:[%s5223 + $0x1a8] sm:$0xff]
        %v5278 = vld [vmem:[%s5223 + $0x1b0] sm:$0xff]
        %v5279 = vld [vmem:[%s5223 + $0x1b8] sm:$0xff]
        %v5280 = vld [vmem:[%s5223 + $0x1c0] sm:$0xff]
        %v5281 = vld [vmem:[%s5223 + $0x1c8] sm:$0xff]
        %v5282 = vld [vmem:[%s5223 + $0x1d0] sm:$0xff]
        %v5283 = vld [vmem:[%s5223 + $0x1d8] sm:$0xff]
        %v5284 = vld [vmem:[%s5223 + $0x1e0] sm:$0xff]
        %v5285 = vld [vmem:[%s5223 + $0x1e8] sm:$0xff]
        %v5286 = vld [vmem:[%s5223 + $0x1f0] sm:$0xff]
        %v5287 = vld [vmem:[%s5223 + $0x1f8] sm:$0xff]
        %5288 = vmatprep.subr.mxu0 0.0
        %5289 = vmatpush1.msra.mxu0 %v5115
        %5290 = vmatprep.subr.mxu0 0.0
        %5291 = vmatpush1.msra.mxu0 %v5116
        %5292 = vmatprep.subr.mxu0 0.0
        %5293 = vmatpush1.msra.mxu0 %v5117
        %5294 = vmatprep.subr.mxu0 0.0
        %5295 = vmatpush1.msra.mxu0 %v5118
        %5296 = vmatprep.subr.mxu0 0.0
        %5297 = vmatpush1.msra.mxu0 %v5119
        %5298 = vmatprep.subr.mxu0 0.0
        %5299 = vmatpush1.msra.mxu0 %v5120
        %5300 = vmatprep.subr.mxu0 0.0
        %5301 = vmatpush1.msra.mxu0 %v5121
        %5302 = vmatprep.subr.mxu0 0.0
        %5303 = vmatpush1.msra.mxu0 %v5122
        %5304 = vmatprep.subr.mxu0 0.0
        %5305 = vmatpush1.msra.mxu0 %v5123
        %5306 = vmatprep.subr.mxu0 0.0
        %5307 = vmatpush1.msra.mxu0 %v5124
        %5308 = vmatprep.subr.mxu0 0.0
        %5309 = vmatpush1.msra.mxu0 %v5125
        %5310 = vmatprep.subr.mxu0 0.0
        %5311 = vmatpush1.msra.mxu0 %v5126
        %5312 = vmatprep.subr.mxu0 0.0
        %5313 = vmatpush1.msra.mxu0 %v5127
        %5314 = vmatprep.subr.mxu0 0.0
        %5315 = vmatpush1.msra.mxu0 %v5128
        %5316 = vmatprep.subr.mxu0 0.0
        %5317 = vmatpush1.msra.mxu0 %v5129
        %5318 = vmatprep.subr.mxu0 0.0
        %5319 = vmatpush1.msra.mxu0 %v5130
        %5320 = vmatprep.subr.mxu0 0.0
        %5321 = vmatpush1.msra.mxu0 %v5131
        %5322 = vmatprep.subr.mxu0 0.0
        %5323 = vmatpush1.msra.mxu0 %v5132
        %5324 = vmatprep.subr.mxu0 0.0
        %5325 = vmatpush1.msra.mxu0 %v5133
        %5326 = vmatprep.subr.mxu0 0.0
        %5327 = vmatpush1.msra.mxu0 %v5134
        %5328 = vmatprep.subr.mxu0 0.0
        %5329 = vmatpush1.msra.mxu0 %v5135
        %5330 = vmatprep.subr.mxu0 0.0
        %5331 = vmatpush1.msra.mxu0 %v5136
        %5332 = vmatprep.subr.mxu0 0.0
        %5333 = vmatpush1.msra.mxu0 %v5137
        %5334 = vmatprep.subr.mxu0 0.0
        %5335 = vmatpush1.msra.mxu0 %v5138
        %5336 = vmatprep.subr.mxu0 0.0
        %5337 = vmatpush1.msra.mxu0 %v5139
        %5338 = vmatprep.subr.mxu0 0.0
        %5339 = vmatpush1.msra.mxu0 %v5140
        %5340 = vmatprep.subr.mxu0 0.0
        %5341 = vmatpush1.msra.mxu0 %v5141
        %5342 = vmatprep.subr.mxu0 0.0
        %5343 = vmatpush1.msra.mxu0 %v5142
        %5344 = vmatprep.subr.mxu0 0.0
        %5345 = vmatpush1.msra.mxu0 %v5143
        %5346 = vmatprep.subr.mxu0 0.0
        %5347 = vmatpush1.msra.mxu0 %v5144
        %5348 = vmatprep.subr.mxu0 0.0
        %5349 = vmatpush1.msra.mxu0 %v5145
        %5350 = vmatprep.subr.mxu0 0.0
        %5351 = vmatpush1.msra.mxu0 %v5146
        %5352 = vmatprep.mubr.f32.mxu0 %v245
        %5353 = vmatmul.mubr.f32.gmra.mrb[0].mxu0 %v243
        %v5354 = vpop.f32.mrb[0].mxu0
        %v5355 = vadd.f32 0.0, %v5354
        %v5356 = vpop.f32.mrb[0].mxu0
        %5357 = vdwg.mxu0
        %5359 = vset.pattern.permute.xlu0 0
        %5360 = vperm.xlu0 %5359, %v5224
        %v5361 = vpop.permute.xlu0 %5360
        %5364 = vset.pattern.permute.xlu0 0
        %5365 = vperm.xlu0 %5364, %v5225
        %v5366 = vpop.permute.xlu0 %5365
        %5369 = vset.pattern.permute.xlu0 0
        %5370 = vperm.xlu0 %5369, %v5226
        %v5371 = vpop.permute.xlu0 %5370
        %5374 = vset.pattern.permute.xlu0 0
        %5375 = vperm.xlu0 %5374, %v5227
        %v5376 = vpop.permute.xlu0 %5375
        %5379 = vset.pattern.permute.xlu0 0
        %5380 = vperm.xlu0 %5379, %v5228
        %v5381 = vpop.permute.xlu0 %5380
        %5384 = vset.pattern.permute.xlu0 0
        %5385 = vperm.xlu0 %5384, %v5229
        %v5386 = vpop.permute.xlu0 %5385
        %5389 = vset.pattern.permute.xlu0 0
        %5390 = vperm.xlu0 %5389, %v5230
        %v5391 = vpop.permute.xlu0 %5390
        %5394 = vset.pattern.permute.xlu0 0
        %5395 = vperm.xlu0 %5394, %v5231
        %v5396 = vpop.permute.xlu0 %5395
        %5399 = vset.pattern.permute.xlu0 0
        %5400 = vperm.xlu0 %5399, %v5232
        %v5401 = vpop.permute.xlu0 %5400
        %5404 = vset.pattern.permute.xlu0 0
        %5405 = vperm.xlu0 %5404, %v5233
        %v5406 = vpop.permute.xlu0 %5405
        %5409 = vset.pattern.permute.xlu0 0
        %5410 = vperm.xlu0 %5409, %v5234
        %v5411 = vpop.permute.xlu0 %5410
        %5414 = vset.pattern.permute.xlu0 0
        %5415 = vperm.xlu0 %5414, %v5235
        %v5416 = vpop.permute.xlu0 %5415
        %5419 = vset.pattern.permute.xlu0 0
        %5420 = vperm.xlu0 %5419, %v5236
        %v5421 = vpop.permute.xlu0 %5420
        %5424 = vset.pattern.permute.xlu0 0
        %5425 = vperm.xlu0 %5424, %v5237
        %v5426 = vpop.permute.xlu0 %5425
        %5429 = vset.pattern.permute.xlu0 0
        %5430 = vperm.xlu0 %5429, %v5238
        %v5431 = vpop.permute.xlu0 %5430
        %5434 = vset.pattern.permute.xlu0 0
        %5435 = vperm.xlu0 %5434, %v5239
        %v5436 = vpop.permute.xlu0 %5435
        %5439 = vset.pattern.permute.xlu0 0
        %5440 = vperm.xlu0 %5439, %v5240
        %v5441 = vpop.permute.xlu0 %5440
        %5444 = vset.pattern.permute.xlu0 0
        %5445 = vperm.xlu0 %5444, %v5241
        %v5446 = vpop.permute.xlu0 %5445
        %5449 = vset.pattern.permute.xlu0 0
        %5450 = vperm.xlu0 %5449, %v5242
        %v5451 = vpop.permute.xlu0 %5450
        %5454 = vset.pattern.permute.xlu0 0
        %5455 = vperm.xlu0 %5454, %v5243
        %v5456 = vpop.permute.xlu0 %5455
        %5459 = vset.pattern.permute.xlu0 0
        %5460 = vperm.xlu0 %5459, %v5244
        %v5461 = vpop.permute.xlu0 %5460
        %5464 = vset.pattern.permute.xlu0 0
        %5465 = vperm.xlu0 %5464, %v5245
        %v5466 = vpop.permute.xlu0 %5465
        %5469 = vset.pattern.permute.xlu0 0
        %5470 = vperm.xlu0 %5469, %v5246
        %v5471 = vpop.permute.xlu0 %5470
        %5474 = vset.pattern.permute.xlu0 0
        %5475 = vperm.xlu0 %5474, %v5247
        %v5476 = vpop.permute.xlu0 %5475
        %5479 = vset.pattern.permute.xlu0 0
        %5480 = vperm.xlu0 %5479, %v5248
        %v5481 = vpop.permute.xlu0 %5480
        %5484 = vset.pattern.permute.xlu0 0
        %5485 = vperm.xlu0 %5484, %v5249
        %v5486 = vpop.permute.xlu0 %5485
        %5489 = vset.pattern.permute.xlu0 0
        %5490 = vperm.xlu0 %5489, %v5250
        %v5491 = vpop.permute.xlu0 %5490
        %5494 = vset.pattern.permute.xlu0 0
        %5495 = vperm.xlu0 %5494, %v5251
        %v5496 = vpop.permute.xlu0 %5495
        %5499 = vset.pattern.permute.xlu0 0
        %5500 = vperm.xlu0 %5499, %v5252
        %v5501 = vpop.permute.xlu0 %5500
        %5504 = vset.pattern.permute.xlu0 0
        %5505 = vperm.xlu0 %5504, %v5253
        %v5506 = vpop.permute.xlu0 %5505
        %5509 = vset.pattern.permute.xlu0 0
        %5510 = vperm.xlu0 %5509, %v5254
        %v5511 = vpop.permute.xlu0 %5510
        %5514 = vset.pattern.permute.xlu0 0
        %5515 = vperm.xlu0 %5514, %v5255
        %v5516 = vpop.permute.xlu0 %5515
        %5519 = vset.pattern.permute.xlu0 0
        %5520 = vperm.xlu0 %5519, %v5256
        %v5521 = vpop.permute.xlu0 %5520
        %5524 = vset.pattern.permute.xlu0 0
        %5525 = vperm.xlu0 %5524, %v5257
        %v5526 = vpop.permute.xlu0 %5525
        %5529 = vset.pattern.permute.xlu0 0
        %5530 = vperm.xlu0 %5529, %v5258
        %v5531 = vpop.permute.xlu0 %5530
        %5534 = vset.pattern.permute.xlu0 0
        %5535 = vperm.xlu0 %5534, %v5259
        %v5536 = vpop.permute.xlu0 %5535
        %5539 = vset.pattern.permute.xlu0 0
        %5540 = vperm.xlu0 %5539, %v5260
        %v5541 = vpop.permute.xlu0 %5540
        %5544 = vset.pattern.permute.xlu0 0
        %5545 = vperm.xlu0 %5544, %v5261
        %v5546 = vpop.permute.xlu0 %5545
        %5549 = vset.pattern.permute.xlu0 0
        %5550 = vperm.xlu0 %5549, %v5262
        %v5551 = vpop.permute.xlu0 %5550
        %5554 = vset.pattern.permute.xlu0 0
        %5555 = vperm.xlu0 %5554, %v5263
        %v5556 = vpop.permute.xlu0 %5555
        %5559 = vset.pattern.permute.xlu0 0
        %5560 = vperm.xlu0 %5559, %v5264
        %v5561 = vpop.permute.xlu0 %5560
        %5564 = vset.pattern.permute.xlu0 0
        %5565 = vperm.xlu0 %5564, %v5265
        %v5566 = vpop.permute.xlu0 %5565
        %5569 = vset.pattern.permute.xlu0 0
        %5570 = vperm.xlu0 %5569, %v5266
        %v5571 = vpop.permute.xlu0 %5570
        %5574 = vset.pattern.permute.xlu0 0
        %5575 = vperm.xlu0 %5574, %v5267
        %v5576 = vpop.permute.xlu0 %5575
        %5579 = vset.pattern.permute.xlu0 0
        %5580 = vperm.xlu0 %5579, %v5268
        %v5581 = vpop.permute.xlu0 %5580
        %5584 = vset.pattern.permute.xlu0 0
        %5585 = vperm.xlu0 %5584, %v5269
        %v5586 = vpop.permute.xlu0 %5585
        %5589 = vset.pattern.permute.xlu0 0
        %5590 = vperm.xlu0 %5589, %v5270
        %v5591 = vpop.permute.xlu0 %5590
        %5594 = vset.pattern.permute.xlu0 0
        %5595 = vperm.xlu0 %5594, %v5271
        %v5596 = vpop.permute.xlu0 %5595
        %5599 = vset.pattern.permute.xlu0 0
        %5600 = vperm.xlu0 %5599, %v5272
        %v5601 = vpop.permute.xlu0 %5600
        %5604 = vset.pattern.permute.xlu0 0
        %5605 = vperm.xlu0 %5604, %v5273
        %v5606 = vpop.permute.xlu0 %5605
        %5609 = vset.pattern.permute.xlu0 0
        %5610 = vperm.xlu0 %5609, %v5274
        %v5611 = vpop.permute.xlu0 %5610
        %5614 = vset.pattern.permute.xlu0 0
        %5615 = vperm.xlu0 %5614, %v5275
        %v5616 = vpop.permute.xlu0 %5615
        %5619 = vset.pattern.permute.xlu0 0
        %5620 = vperm.xlu0 %5619, %v5276
        %v5621 = vpop.permute.xlu0 %5620
        %5624 = vset.pattern.permute.xlu0 0
        %5625 = vperm.xlu0 %5624, %v5277
        %v5626 = vpop.permute.xlu0 %5625
        %5629 = vset.pattern.permute.xlu0 0
        %5630 = vperm.xlu0 %5629, %v5278
        %v5631 = vpop.permute.xlu0 %5630
        %5634 = vset.pattern.permute.xlu0 0
        %5635 = vperm.xlu0 %5634, %v5279
        %v5636 = vpop.permute.xlu0 %5635
        %5639 = vset.pattern.permute.xlu0 0
        %5640 = vperm.xlu0 %5639, %v5280
        %v5641 = vpop.permute.xlu0 %5640
        %5644 = vset.pattern.permute.xlu0 0
        %5645 = vperm.xlu0 %5644, %v5281
        %v5646 = vpop.permute.xlu0 %5645
        %5649 = vset.pattern.permute.xlu0 0
        %5650 = vperm.xlu0 %5649, %v5282
        %v5651 = vpop.permute.xlu0 %5650
        %5654 = vset.pattern.permute.xlu0 0
        %5655 = vperm.xlu0 %5654, %v5283
        %v5656 = vpop.permute.xlu0 %5655
        %5659 = vset.pattern.permute.xlu0 0
        %5660 = vperm.xlu0 %5659, %v5284
        %v5661 = vpop.permute.xlu0 %5660
        %5664 = vset.pattern.permute.xlu0 0
        %5665 = vperm.xlu0 %5664, %v5285
        %v5666 = vpop.permute.xlu0 %5665
        %5669 = vset.pattern.permute.xlu0 0
        %5670 = vperm.xlu0 %5669, %v5286
        %v5671 = vpop.permute.xlu0 %5670
        %5674 = vset.pattern.permute.xlu0 0
        %5675 = vperm.xlu0 %5674, %v5287
        %v5676 = vpop.permute.xlu0 %5675
        %v5679 = vsel %vm809, %v5159, 0
        %v5682 = vsel %vm809, %v5160, 0
        %v5685 = vsel %vm809, %v5161, 0
        %v5688 = vsel %vm809, %v5162, 0
        %v5691 = vsel %vm809, %v5163, 0
        %v5694 = vsel %vm809, %v5164, 0
        %v5697 = vsel %vm809, %v5165, 0
        %v5700 = vsel %vm809, %v5166, 0
        %v5703 = vsel %vm809, %v5167, 0
        %v5706 = vsel %vm809, %v5168, 0
        %v5709 = vsel %vm809, %v5169, 0
        %v5712 = vsel %vm809, %v5170, 0
        %v5715 = vsel %vm809, %v5171, 0
        %v5718 = vsel %vm809, %v5172, 0
        %v5721 = vsel %vm809, %v5173, 0
        %v5724 = vsel %vm809, %v5174, 0
        %v5727 = vsel %vm809, %v5175, 0
        %v5730 = vsel %vm809, %v5176, 0
        %v5733 = vsel %vm809, %v5177, 0
        %v5736 = vsel %vm809, %v5178, 0
        %v5739 = vsel %vm809, %v5179, 0
        %v5742 = vsel %vm809, %v5180, 0
        %v5745 = vsel %vm809, %v5181, 0
        %v5748 = vsel %vm809, %v5182, 0
        %v5751 = vsel %vm809, %v5183, 0
        %v5754 = vsel %vm809, %v5184, 0
        %v5757 = vsel %vm809, %v5185, 0
        %v5760 = vsel %vm809, %v5186, 0
        %v5763 = vsel %vm809, %v5187, 0
        %v5766 = vsel %vm809, %v5188, 0
        %v5769 = vsel %vm809, %v5189, 0
        %v5772 = vsel %vm809, %v5190, 0
        %v5775 = vsel %vm809, %v5191, 0
        %v5778 = vsel %vm809, %v5192, 0
        %v5781 = vsel %vm809, %v5193, 0
        %v5784 = vsel %vm809, %v5194, 0
        %v5787 = vsel %vm809, %v5195, 0
        %v5790 = vsel %vm809, %v5196, 0
        %v5793 = vsel %vm809, %v5197, 0
        %v5796 = vsel %vm809, %v5198, 0
        %v5799 = vsel %vm809, %v5199, 0
        %v5802 = vsel %vm809, %v5200, 0
        %v5805 = vsel %vm809, %v5201, 0
        %v5808 = vsel %vm809, %v5202, 0
        %v5811 = vsel %vm809, %v5203, 0
        %v5814 = vsel %vm809, %v5204, 0
        %v5817 = vsel %vm809, %v5205, 0
        %v5820 = vsel %vm809, %v5206, 0
        %v5823 = vsel %vm809, %v5207, 0
        %v5826 = vsel %vm809, %v5208, 0
        %v5829 = vsel %vm809, %v5209, 0
        %v5832 = vsel %vm809, %v5210, 0
        %v5835 = vsel %vm809, %v5211, 0
        %v5838 = vsel %vm809, %v5212, 0
        %v5841 = vsel %vm809, %v5213, 0
        %v5844 = vsel %vm809, %v5214, 0
        %v5847 = vsel %vm809, %v5215, 0
        %v5850 = vsel %vm809, %v5216, 0
        %v5853 = vsel %vm809, %v5217, 0
        %v5856 = vsel %vm809, %v5218, 0
        %v5859 = vsel %vm809, %v5219, 0
        %v5862 = vsel %vm809, %v5220, 0
        %v5865 = vsel %vm809, %v5221, 0
        %v5868 = vsel %vm809, %v5222, 0
        %v5871 = vsel %vm1002, %v5355, 0
        %5873 = vmatprep.subr.mxu0 0.0
        %5874 = vmatpush1.msra.mxu0 %v5871
        %5875 = vmatprep.subr.mxu0 0.0
        %5876 = vmatpush1.msra.mxu0 0.0
        %5877 = vmatprep.subr.mxu0 0.0
        %5878 = vmatpush1.msra.mxu0 0.0
        %5879 = vmatprep.subr.mxu0 0.0
        %5880 = vmatpush1.msra.mxu0 0.0
        %5881 = vmatprep.subr.mxu0 0.0
        %5882 = vmatpush1.msra.mxu0 0.0
        %5883 = vmatprep.subr.mxu0 0.0
        %5884 = vmatpush1.msra.mxu0 0.0
        %5885 = vmatprep.subr.mxu0 0.0
        %5886 = vmatpush1.msra.mxu0 0.0
        %5887 = vmatprep.subr.mxu0 0.0
        %5888 = vmatpush1.msra.mxu0 0.0
        %5889 = vmatprep.subr.mxu0 0.0
        %5890 = vmatpush1.msra.mxu0 0.0
        %5891 = vmatprep.subr.mxu0 0.0
        %5892 = vmatpush1.msra.mxu0 0.0
        %5893 = vmatprep.subr.mxu0 0.0
        %5894 = vmatpush1.msra.mxu0 0.0
        %5895 = vmatprep.subr.mxu0 0.0
        %5896 = vmatpush1.msra.mxu0 0.0
        %5897 = vmatprep.subr.mxu0 0.0
        %5898 = vmatpush1.msra.mxu0 0.0
        %5899 = vmatprep.subr.mxu0 0.0
        %5900 = vmatpush1.msra.mxu0 0.0
        %5901 = vmatprep.subr.mxu0 0.0
        %5902 = vmatpush1.msra.mxu0 0.0
        %5903 = vmatprep.subr.mxu0 0.0
        %5904 = vmatpush1.msra.mxu0 0.0
        %5905 = vmatprep.subr.mxu0 0.0
        %5906 = vmatpush1.msra.mxu0 0.0
        %5907 = vmatprep.subr.mxu0 0.0
        %5908 = vmatpush1.msra.mxu0 0.0
        %5909 = vmatprep.subr.mxu0 0.0
        %5910 = vmatpush1.msra.mxu0 0.0
        %5911 = vmatprep.subr.mxu0 0.0
        %5912 = vmatpush1.msra.mxu0 0.0
        %5913 = vmatprep.subr.mxu0 0.0
        %5914 = vmatpush1.msra.mxu0 0.0
        %5915 = vmatprep.subr.mxu0 0.0
        %5916 = vmatpush1.msra.mxu0 0.0
        %5917 = vmatprep.subr.mxu0 0.0
        %5918 = vmatpush1.msra.mxu0 0.0
        %5919 = vmatprep.subr.mxu0 0.0
        %5920 = vmatpush1.msra.mxu0 0.0
        %5921 = vmatprep.subr.mxu0 0.0
        %5922 = vmatpush1.msra.mxu0 0.0
        %5923 = vmatprep.subr.mxu0 0.0
        %5924 = vmatpush1.msra.mxu0 0.0
        %5925 = vmatprep.subr.mxu0 0.0
        %5926 = vmatpush1.msra.mxu0 0.0
        %5927 = vmatprep.subr.mxu0 0.0
        %5928 = vmatpush1.msra.mxu0 0.0
        %5929 = vmatprep.subr.mxu0 0.0
        %5930 = vmatpush1.msra.mxu0 0.0
        %5931 = vmatprep.subr.mxu0 0.0
        %5932 = vmatpush1.msra.mxu0 0.0
        %5933 = vmatprep.subr.mxu0 0.0
        %5934 = vmatpush1.msra.mxu0 0.0
        %5935 = vmatprep.subr.mxu0 0.0
        %5936 = vmatpush1.msra.mxu0 0.0
        %5937 = vmatprep.mubr.f32.mxu0 0.0
        %5938 = vmatmul.mubr.f32.gmra.mrb[0].mxu0 %v5679
        %v5939 = vpop.f32.mrb[0].mxu0
        %v5940 = vadd.f32 %v5361, %v5939
        %v5941 = vpop.f32.mrb[0].mxu0
        %5942 = vmatprep.mubr.f32.mxu0 0.0
        %5943 = vmatmul.mubr.f32.gmra.mrb[0].mxu0 %v5682
        %v5944 = vpop.f32.mrb[0].mxu0
        %v5945 = vadd.f32 %v5366, %v5944
        %v5946 = vpop.f32.mrb[0].mxu0
        %5947 = vmatprep.mubr.f32.mxu0 0.0
        %5948 = vmatmul.mubr.f32.gmra.mrb[0].mxu0 %v5685
        %v5949 = vpop.f32.mrb[0].mxu0
        %v5950 = vadd.f32 %v5371, %v5949
        %v5951 = vpop.f32.mrb[0].mxu0
        %5952 = vmatprep.mubr.f32.mxu0 0.0
        %5953 = vmatmul.mubr.f32.gmra.mrb[0].mxu0 %v5688
        %v5954 = vpop.f32.mrb[0].mxu0
        %v5955 = vadd.f32 %v5376, %v5954
        %v5956 = vpop.f32.mrb[0].mxu0
        %5957 = vmatprep.mubr.f32.mxu0 0.0
        %5958 = vmatmul.mubr.f32.gmra.mrb[0].mxu0 %v5691
        %v5959 = vpop.f32.mrb[0].mxu0
        %v5960 = vadd.f32 %v5381, %v5959
        %v5961 = vpop.f32.mrb[0].mxu0
        %5962 = vmatprep.mubr.f32.mxu0 0.0
        %5963 = vmatmul.mubr.f32.gmra.mrb[0].mxu0 %v5694
        %v5964 = vpop.f32.mrb[0].mxu0
        %v5965 = vadd.f32 %v5386, %v5964
        %v5966 = vpop.f32.mrb[0].mxu0
        %5967 = vmatprep.mubr.f32.mxu0 0.0
        %5968 = vmatmul.mubr.f32.gmra.mrb[0].mxu0 %v5697
        %v5969 = vpop.f32.mrb[0].mxu0
        %v5970 = vadd.f32 %v5391, %v5969
        %v5971 = vpop.f32.mrb[0].mxu0
        %5972 = vmatprep.mubr.f32.mxu0 0.0
        %5973 = vmatmul.mubr.f32.gmra.mrb[0].mxu0 %v5700
        %v5974 = vpop.f32.mrb[0].mxu0
        %v5975 = vadd.f32 %v5396, %v5974
        %v5976 = vpop.f32.mrb[0].mxu0
        %5977 = vmatprep.mubr.f32.mxu0 0.0
        %5978 = vmatmul.mubr.f32.gmra.mrb[0].mxu0 %v5703
        %v5979 = vpop.f32.mrb[0].mxu0
        %v5980 = vadd.f32 %v5401, %v5979
        %v5981 = vpop.f32.mrb[0].mxu0
        %5982 = vmatprep.mubr.f32.mxu0 0.0
        %5983 = vmatmul.mubr.f32.gmra.mrb[0].mxu0 %v5706
        %v5984 = vpop.f32.mrb[0].mxu0
        %v5985 = vadd.f32 %v5406, %v5984
        %v5986 = vpop.f32.mrb[0].mxu0
        %5987 = vmatprep.mubr.f32.mxu0 0.0
        %5988 = vmatmul.mubr.f32.gmra.mrb[0].mxu0 %v5709
        %v5989 = vpop.f32.mrb[0].mxu0
        %v5990 = vadd.f32 %v5411, %v5989
        %v5991 = vpop.f32.mrb[0].mxu0
        %5992 = vmatprep.mubr.f32.mxu0 0.0
        %5993 = vmatmul.mubr.f32.gmra.mrb[0].mxu0 %v5712
        %v5994 = vpop.f32.mrb[0].mxu0
        %v5995 = vadd.f32 %v5416, %v5994
        %v5996 = vpop.f32.mrb[0].mxu0
        %5997 = vmatprep.mubr.f32.mxu0 0.0
        %5998 = vmatmul.mubr.f32.gmra.mrb[0].mxu0 %v5715
        %v5999 = vpop.f32.mrb[0].mxu0
        %v6000 = vadd.f32 %v5421, %v5999
        %v6001 = vpop.f32.mrb[0].mxu0
        %6002 = vmatprep.mubr.f32.mxu0 0.0
        %6003 = vmatmul.mubr.f32.gmra.mrb[0].mxu0 %v5718
        %v6004 = vpop.f32.mrb[0].mxu0
        %v6005 = vadd.f32 %v5426, %v6004
        %v6006 = vpop.f32.mrb[0].mxu0
        %6007 = vmatprep.mubr.f32.mxu0 0.0
        %6008 = vmatmul.mubr.f32.gmra.mrb[0].mxu0 %v5721
        %v6009 = vpop.f32.mrb[0].mxu0
        %v6010 = vadd.f32 %v5431, %v6009
        %v6011 = vpop.f32.mrb[0].mxu0
        %6012 = vmatprep.mubr.f32.mxu0 0.0
        %6013 = vmatmul.mubr.f32.gmra.mrb[0].mxu0 %v5724
        %v6014 = vpop.f32.mrb[0].mxu0
        %v6015 = vadd.f32 %v5436, %v6014
        %v6016 = vpop.f32.mrb[0].mxu0
        %6017 = vmatprep.mubr.f32.mxu0 0.0
        %6018 = vmatmul.mubr.f32.gmra.mrb[0].mxu0 %v5727
        %v6019 = vpop.f32.mrb[0].mxu0
        %v6020 = vadd.f32 %v5441, %v6019
        %v6021 = vpop.f32.mrb[0].mxu0
        %6022 = vmatprep.mubr.f32.mxu0 0.0
        %6023 = vmatmul.mubr.f32.gmra.mrb[0].mxu0 %v5730
        %v6024 = vpop.f32.mrb[0].mxu0
        %v6025 = vadd.f32 %v5446, %v6024
        %v6026 = vpop.f32.mrb[0].mxu0
        %6027 = vmatprep.mubr.f32.mxu0 0.0
        %6028 = vmatmul.mubr.f32.gmra.mrb[0].mxu0 %v5733
        %v6029 = vpop.f32.mrb[0].mxu0
        %v6030 = vadd.f32 %v5451, %v6029
        %v6031 = vpop.f32.mrb[0].mxu0
        %6032 = vmatprep.mubr.f32.mxu0 0.0
        %6033 = vmatmul.mubr.f32.gmra.mrb[0].mxu0 %v5736
        %v6034 = vpop.f32.mrb[0].mxu0
        %v6035 = vadd.f32 %v5456, %v6034
        %v6036 = vpop.f32.mrb[0].mxu0
        %6037 = vmatprep.mubr.f32.mxu0 0.0
        %6038 = vmatmul.mubr.f32.gmra.mrb[0].mxu0 %v5739
        %v6039 = vpop.f32.mrb[0].mxu0
        %v6040 = vadd.f32 %v5461, %v6039
        %v6041 = vpop.f32.mrb[0].mxu0
        %6042 = vmatprep.mubr.f32.mxu0 0.0
        %6043 = vmatmul.mubr.f32.gmra.mrb[0].mxu0 %v5742
        %v6044 = vpop.f32.mrb[0].mxu0
        %v6045 = vadd.f32 %v5466, %v6044
        %v6046 = vpop.f32.mrb[0].mxu0
        %6047 = vmatprep.mubr.f32.mxu0 0.0
        %6048 = vmatmul.mubr.f32.gmra.mrb[0].mxu0 %v5745
        %v6049 = vpop.f32.mrb[0].mxu0
        %v6050 = vadd.f32 %v5471, %v6049
        %v6051 = vpop.f32.mrb[0].mxu0
        %6052 = vmatprep.mubr.f32.mxu0 0.0
        %6053 = vmatmul.mubr.f32.gmra.mrb[0].mxu0 %v5748
        %v6054 = vpop.f32.mrb[0].mxu0
        %v6055 = vadd.f32 %v5476, %v6054
        %v6056 = vpop.f32.mrb[0].mxu0
        %6057 = vmatprep.mubr.f32.mxu0 0.0
        %6058 = vmatmul.mubr.f32.gmra.mrb[0].mxu0 %v5751
        %v6059 = vpop.f32.mrb[0].mxu0
        %v6060 = vadd.f32 %v5481, %v6059
        %v6061 = vpop.f32.mrb[0].mxu0
        %6062 = vmatprep.mubr.f32.mxu0 0.0
        %6063 = vmatmul.mubr.f32.gmra.mrb[0].mxu0 %v5754
        %v6064 = vpop.f32.mrb[0].mxu0
        %v6065 = vadd.f32 %v5486, %v6064
        %v6066 = vpop.f32.mrb[0].mxu0
        %6067 = vmatprep.mubr.f32.mxu0 0.0
        %6068 = vmatmul.mubr.f32.gmra.mrb[0].mxu0 %v5757
        %v6069 = vpop.f32.mrb[0].mxu0
        %v6070 = vadd.f32 %v5491, %v6069
        %v6071 = vpop.f32.mrb[0].mxu0
        %6072 = vmatprep.mubr.f32.mxu0 0.0
        %6073 = vmatmul.mubr.f32.gmra.mrb[0].mxu0 %v5760
        %v6074 = vpop.f32.mrb[0].mxu0
        %v6075 = vadd.f32 %v5496, %v6074
        %v6076 = vpop.f32.mrb[0].mxu0
        %6077 = vmatprep.mubr.f32.mxu0 0.0
        %6078 = vmatmul.mubr.f32.gmra.mrb[0].mxu0 %v5763
        %v6079 = vpop.f32.mrb[0].mxu0
        %v6080 = vadd.f32 %v5501, %v6079
        %v6081 = vpop.f32.mrb[0].mxu0
        %6082 = vmatprep.mubr.f32.mxu0 0.0
        %6083 = vmatmul.mubr.f32.gmra.mrb[0].mxu0 %v5766
        %v6084 = vpop.f32.mrb[0].mxu0
        %v6085 = vadd.f32 %v5506, %v6084
        %v6086 = vpop.f32.mrb[0].mxu0
        %6087 = vmatprep.mubr.f32.mxu0 0.0
        %6088 = vmatmul.mubr.f32.gmra.mrb[0].mxu0 %v5769
        %v6089 = vpop.f32.mrb[0].mxu0
        %v6090 = vadd.f32 %v5511, %v6089
        %v6091 = vpop.f32.mrb[0].mxu0
        %6092 = vmatprep.mubr.f32.mxu0 0.0
        %6093 = vmatmul.mubr.f32.gmra.mrb[0].mxu0 %v5772
        %v6094 = vpop.f32.mrb[0].mxu0
        %v6095 = vadd.f32 %v5516, %v6094
        %v6096 = vpop.f32.mrb[0].mxu0
        %6097 = vmatprep.mubr.f32.mxu0 0.0
        %6098 = vmatmul.mubr.f32.gmra.mrb[0].mxu0 %v5775
        %v6099 = vpop.f32.mrb[0].mxu0
        %v6100 = vadd.f32 %v5521, %v6099
        %v6101 = vpop.f32.mrb[0].mxu0
        %6102 = vmatprep.mubr.f32.mxu0 0.0
        %6103 = vmatmul.mubr.f32.gmra.mrb[0].mxu0 %v5778
        %v6104 = vpop.f32.mrb[0].mxu0
        %v6105 = vadd.f32 %v5526, %v6104
        %v6106 = vpop.f32.mrb[0].mxu0
        %6107 = vmatprep.mubr.f32.mxu0 0.0
        %6108 = vmatmul.mubr.f32.gmra.mrb[0].mxu0 %v5781
        %v6109 = vpop.f32.mrb[0].mxu0
        %v6110 = vadd.f32 %v5531, %v6109
        %v6111 = vpop.f32.mrb[0].mxu0
        %6112 = vmatprep.mubr.f32.mxu0 0.0
        %6113 = vmatmul.mubr.f32.gmra.mrb[0].mxu0 %v5784
        %v6114 = vpop.f32.mrb[0].mxu0
        %v6115 = vadd.f32 %v5536, %v6114
        %v6116 = vpop.f32.mrb[0].mxu0
        %6117 = vmatprep.mubr.f32.mxu0 0.0
        %6118 = vmatmul.mubr.f32.gmra.mrb[0].mxu0 %v5787
        %v6119 = vpop.f32.mrb[0].mxu0
        %v6120 = vadd.f32 %v5541, %v6119
        %v6121 = vpop.f32.mrb[0].mxu0
        %6122 = vmatprep.mubr.f32.mxu0 0.0
        %6123 = vmatmul.mubr.f32.gmra.mrb[0].mxu0 %v5790
        %v6124 = vpop.f32.mrb[0].mxu0
        %v6125 = vadd.f32 %v5546, %v6124
        %v6126 = vpop.f32.mrb[0].mxu0
        %6127 = vmatprep.mubr.f32.mxu0 0.0
        %6128 = vmatmul.mubr.f32.gmra.mrb[0].mxu0 %v5793
        %v6129 = vpop.f32.mrb[0].mxu0
        %v6130 = vadd.f32 %v5551, %v6129
        %v6131 = vpop.f32.mrb[0].mxu0
        %6132 = vmatprep.mubr.f32.mxu0 0.0
        %6133 = vmatmul.mubr.f32.gmra.mrb[0].mxu0 %v5796
        %v6134 = vpop.f32.mrb[0].mxu0
        %v6135 = vadd.f32 %v5556, %v6134
        %v6136 = vpop.f32.mrb[0].mxu0
        %6137 = vmatprep.mubr.f32.mxu0 0.0
        %6138 = vmatmul.mubr.f32.gmra.mrb[0].mxu0 %v5799
        %v6139 = vpop.f32.mrb[0].mxu0
        %v6140 = vadd.f32 %v5561, %v6139
        %v6141 = vpop.f32.mrb[0].mxu0
        %6142 = vmatprep.mubr.f32.mxu0 0.0
        %6143 = vmatmul.mubr.f32.gmra.mrb[0].mxu0 %v5802
        %v6144 = vpop.f32.mrb[0].mxu0
        %v6145 = vadd.f32 %v5566, %v6144
        %v6146 = vpop.f32.mrb[0].mxu0
        %6147 = vmatprep.mubr.f32.mxu0 0.0
        %6148 = vmatmul.mubr.f32.gmra.mrb[0].mxu0 %v5805
        %v6149 = vpop.f32.mrb[0].mxu0
        %v6150 = vadd.f32 %v5571, %v6149
        %v6151 = vpop.f32.mrb[0].mxu0
        %6152 = vmatprep.mubr.f32.mxu0 0.0
        %6153 = vmatmul.mubr.f32.gmra.mrb[0].mxu0 %v5808
        %v6154 = vpop.f32.mrb[0].mxu0
        %v6155 = vadd.f32 %v5576, %v6154
        %v6156 = vpop.f32.mrb[0].mxu0
        %6157 = vmatprep.mubr.f32.mxu0 0.0
        %6158 = vmatmul.mubr.f32.gmra.mrb[0].mxu0 %v5811
        %v6159 = vpop.f32.mrb[0].mxu0
        %v6160 = vadd.f32 %v5581, %v6159
        %v6161 = vpop.f32.mrb[0].mxu0
        %6162 = vmatprep.mubr.f32.mxu0 0.0
        %6163 = vmatmul.mubr.f32.gmra.mrb[0].mxu0 %v5814
        %v6164 = vpop.f32.mrb[0].mxu0
        %v6165 = vadd.f32 %v5586, %v6164
        %v6166 = vpop.f32.mrb[0].mxu0
        %6167 = vmatprep.mubr.f32.mxu0 0.0
        %6168 = vmatmul.mubr.f32.gmra.mrb[0].mxu0 %v5817
        %v6169 = vpop.f32.mrb[0].mxu0
        %v6170 = vadd.f32 %v5591, %v6169
        %v6171 = vpop.f32.mrb[0].mxu0
        %6172 = vmatprep.mubr.f32.mxu0 0.0
        %6173 = vmatmul.mubr.f32.gmra.mrb[0].mxu0 %v5820
        %v6174 = vpop.f32.mrb[0].mxu0
        %v6175 = vadd.f32 %v5596, %v6174
        %v6176 = vpop.f32.mrb[0].mxu0
        %6177 = vmatprep.mubr.f32.mxu0 0.0
        %6178 = vmatmul.mubr.f32.gmra.mrb[0].mxu0 %v5823
        %v6179 = vpop.f32.mrb[0].mxu0
        %v6180 = vadd.f32 %v5601, %v6179
        %v6181 = vpop.f32.mrb[0].mxu0
        %6182 = vmatprep.mubr.f32.mxu0 0.0
        %6183 = vmatmul.mubr.f32.gmra.mrb[0].mxu0 %v5826
        %v6184 = vpop.f32.mrb[0].mxu0
        %v6185 = vadd.f32 %v5606, %v6184
        %v6186 = vpop.f32.mrb[0].mxu0
        %6187 = vmatprep.mubr.f32.mxu0 0.0
        %6188 = vmatmul.mubr.f32.gmra.mrb[0].mxu0 %v5829
        %v6189 = vpop.f32.mrb[0].mxu0
        %v6190 = vadd.f32 %v5611, %v6189
        %v6191 = vpop.f32.mrb[0].mxu0
        %6192 = vmatprep.mubr.f32.mxu0 0.0
        %6193 = vmatmul.mubr.f32.gmra.mrb[0].mxu0 %v5832
        %v6194 = vpop.f32.mrb[0].mxu0
        %v6195 = vadd.f32 %v5616, %v6194
        %v6196 = vpop.f32.mrb[0].mxu0
        %6197 = vmatprep.mubr.f32.mxu0 0.0
        %6198 = vmatmul.mubr.f32.gmra.mrb[0].mxu0 %v5835
        %v6199 = vpop.f32.mrb[0].mxu0
        %v6200 = vadd.f32 %v5621, %v6199
        %v6201 = vpop.f32.mrb[0].mxu0
        %6202 = vmatprep.mubr.f32.mxu0 0.0
        %6203 = vmatmul.mubr.f32.gmra.mrb[0].mxu0 %v5838
        %v6204 = vpop.f32.mrb[0].mxu0
        %v6205 = vadd.f32 %v5626, %v6204
        %v6206 = vpop.f32.mrb[0].mxu0
        %6207 = vmatprep.mubr.f32.mxu0 0.0
        %6208 = vmatmul.mubr.f32.gmra.mrb[0].mxu0 %v5841
        %v6209 = vpop.f32.mrb[0].mxu0
        %v6210 = vadd.f32 %v5631, %v6209
        %v6211 = vpop.f32.mrb[0].mxu0
        %6212 = vmatprep.mubr.f32.mxu0 0.0
        %6213 = vmatmul.mubr.f32.gmra.mrb[0].mxu0 %v5844
        %v6214 = vpop.f32.mrb[0].mxu0
        %v6215 = vadd.f32 %v5636, %v6214
        %v6216 = vpop.f32.mrb[0].mxu0
        %6217 = vmatprep.mubr.f32.mxu0 0.0
        %6218 = vmatmul.mubr.f32.gmra.mrb[0].mxu0 %v5847
        %v6219 = vpop.f32.mrb[0].mxu0
        %v6220 = vadd.f32 %v5641, %v6219
        %v6221 = vpop.f32.mrb[0].mxu0
        %6222 = vmatprep.mubr.f32.mxu0 0.0
        %6223 = vmatmul.mubr.f32.gmra.mrb[0].mxu0 %v5850
        %v6224 = vpop.f32.mrb[0].mxu0
        %v6225 = vadd.f32 %v5646, %v6224
        %v6226 = vpop.f32.mrb[0].mxu0
        %6227 = vmatprep.mubr.f32.mxu0 0.0
        %6228 = vmatmul.mubr.f32.gmra.mrb[0].mxu0 %v5853
        %v6229 = vpop.f32.mrb[0].mxu0
        %v6230 = vadd.f32 %v5651, %v6229
        %v6231 = vpop.f32.mrb[0].mxu0
        %6232 = vmatprep.mubr.f32.mxu0 0.0
        %6233 = vmatmul.mubr.f32.gmra.mrb[0].mxu0 %v5856
        %v6234 = vpop.f32.mrb[0].mxu0
        %v6235 = vadd.f32 %v5656, %v6234
        %v6236 = vpop.f32.mrb[0].mxu0
        %6237 = vmatprep.mubr.f32.mxu0 0.0
        %6238 = vmatmul.mubr.f32.gmra.mrb[0].mxu0 %v5859
        %v6239 = vpop.f32.mrb[0].mxu0
        %v6240 = vadd.f32 %v5661, %v6239
        %v6241 = vpop.f32.mrb[0].mxu0
        %6242 = vmatprep.mubr.f32.mxu0 0.0
        %6243 = vmatmul.mubr.f32.gmra.mrb[0].mxu0 %v5862
        %v6244 = vpop.f32.mrb[0].mxu0
        %v6245 = vadd.f32 %v5666, %v6244
        %v6246 = vpop.f32.mrb[0].mxu0
        %6247 = vmatprep.mubr.f32.mxu0 0.0
        %6248 = vmatmul.mubr.f32.gmra.mrb[0].mxu0 %v5865
        %v6249 = vpop.f32.mrb[0].mxu0
        %v6250 = vadd.f32 %v5671, %v6249
        %v6251 = vpop.f32.mrb[0].mxu0
        %6252 = vmatprep.mubr.f32.mxu0 0.0
        %6253 = vmatmul.mubr.f32.gmra.mrb[0].mxu0 %v5868
        %v6254 = vpop.f32.mrb[0].mxu0
        %v6255 = vadd.f32 %v5676, %v6254
        %v6256 = vpop.f32.mrb[0].mxu0
        %6257 = vdwg.mxu0
        %v6259 = vsel %vm1391, %v5940, 0
        %v6262 = vsel %vm1391, %v5945, 0
        %v6265 = vsel %vm1391, %v5950, 0
        %v6268 = vsel %vm1391, %v5955, 0
        %v6271 = vsel %vm1391, %v5960, 0
        %v6274 = vsel %vm1391, %v5965, 0
        %v6277 = vsel %vm1391, %v5970, 0
        %v6280 = vsel %vm1391, %v5975, 0
        %v6283 = vsel %vm1391, %v5980, 0
        %v6286 = vsel %vm1391, %v5985, 0
        %v6289 = vsel %vm1391, %v5990, 0
        %v6292 = vsel %vm1391, %v5995, 0
        %v6295 = vsel %vm1391, %v6000, 0
        %v6298 = vsel %vm1391, %v6005, 0
        %v6301 = vsel %vm1391, %v6010, 0
        %v6304 = vsel %vm1391, %v6015, 0
        %v6307 = vsel %vm1391, %v6020, 0
        %v6310 = vsel %vm1391, %v6025, 0
        %v6313 = vsel %vm1391, %v6030, 0
        %v6316 = vsel %vm1391, %v6035, 0
        %v6319 = vsel %vm1391, %v6040, 0
        %v6322 = vsel %vm1391, %v6045, 0
        %v6325 = vsel %vm1391, %v6050, 0
        %v6328 = vsel %vm1391, %v6055, 0
        %v6331 = vsel %vm1391, %v6060, 0
        %v6334 = vsel %vm1391, %v6065, 0
        %v6337 = vsel %vm1391, %v6070, 0
        %v6340 = vsel %vm1391, %v6075, 0
        %v6343 = vsel %vm1391, %v6080, 0
        %v6346 = vsel %vm1391, %v6085, 0
        %v6349 = vsel %vm1391, %v6090, 0
        %v6352 = vsel %vm1391, %v6095, 0
        %v6355 = vsel %vm1391, %v6100, 0
        %v6358 = vsel %vm1391, %v6105, 0
        %v6361 = vsel %vm1391, %v6110, 0
        %v6364 = vsel %vm1391, %v6115, 0
        %v6367 = vsel %vm1391, %v6120, 0
        %v6370 = vsel %vm1391, %v6125, 0
        %v6373 = vsel %vm1391, %v6130, 0
        %v6376 = vsel %vm1391, %v6135, 0
        %v6379 = vsel %vm1391, %v6140, 0
        %v6382 = vsel %vm1391, %v6145, 0
        %v6385 = vsel %vm1391, %v6150, 0
        %v6388 = vsel %vm1391, %v6155, 0
        %v6391 = vsel %vm1391, %v6160, 0
        %v6394 = vsel %vm1391, %v6165, 0
        %v6397 = vsel %vm1391, %v6170, 0
        %v6400 = vsel %vm1391, %v6175, 0
        %v6403 = vsel %vm1391, %v6180, 0
        %v6406 = vsel %vm1391, %v6185, 0
        %v6409 = vsel %vm1391, %v6190, 0
        %v6412 = vsel %vm1391, %v6195, 0
        %v6415 = vsel %vm1391, %v6200, 0
        %v6418 = vsel %vm1391, %v6205, 0
        %v6421 = vsel %vm1391, %v6210, 0
        %v6424 = vsel %vm1391, %v6215, 0
        %v6427 = vsel %vm1391, %v6220, 0
        %v6430 = vsel %vm1391, %v6225, 0
        %v6433 = vsel %vm1391, %v6230, 0
        %v6436 = vsel %vm1391, %v6235, 0
        %v6439 = vsel %vm1391, %v6240, 0
        %v6442 = vsel %vm1391, %v6245, 0
        %v6445 = vsel %vm1391, %v6250, 0
        %v6448 = vsel %vm1391, %v6255, 0
        %v6451 = vsel %vm1002, %v5156, 0
        %v6454 = vsel %vm1002, %v5157, 0
        %6456 = vmatprep.subr.mxu0 %v5149
        %6457 = vmatpush1.msra.mxu0 %v5148
        %6458 = vmatprep.subr.mxu0 %v5151
        %6459 = vmatpush1.msra.mxu0 %v5150
        %6460 = vmatprep.subr.mxu0 %v5153
        %6461 = vmatpush1.msra.mxu0 %v5152
        %6462 = vmatprep.subr.mxu0 %v5155
        %6463 = vmatpush1.msra.mxu0 %v5154
        %6464 = vmatprep.subr.mxu0 %v6454
        %6465 = vmatpush1.msra.mxu0 %v6451
        %6466 = vmatprep.subr.mxu0 0.0
        %6467 = vmatpush1.msra.mxu0 0.0
        %6468 = vmatprep.subr.mxu0 0.0
        %6469 = vmatpush1.msra.mxu0 0.0
        %6470 = vmatprep.subr.mxu0 0.0
        %6471 = vmatpush1.msra.mxu0 0.0
        %6472 = vmatprep.subr.mxu0 0.0
        %6473 = vmatpush1.msra.mxu0 0.0
        %6474 = vmatprep.subr.mxu0 0.0
        %6475 = vmatpush1.msra.mxu0 0.0
        %6476 = vmatprep.subr.mxu0 0.0
        %6477 = vmatpush1.msra.mxu0 0.0
        %6478 = vmatprep.subr.mxu0 0.0
        %6479 = vmatpush1.msra.mxu0 0.0
        %6480 = vmatprep.subr.mxu0 0.0
        %6481 = vmatpush1.msra.mxu0 0.0
        %6482 = vmatprep.subr.mxu0 0.0
        %6483 = vmatpush1.msra.mxu0 0.0
        %6484 = vmatprep.subr.mxu0 0.0
        %6485 = vmatpush1.msra.mxu0 0.0
        %6486 = vmatprep.subr.mxu0 0.0
        %6487 = vmatpush1.msra.mxu0 0.0
        %6488 = vmatprep.subr.mxu0 0.0
        %6489 = vmatpush1.msra.mxu0 0.0
        %6490 = vmatprep.subr.mxu0 0.0
        %6491 = vmatpush1.msra.mxu0 0.0
        %6492 = vmatprep.subr.mxu0 0.0
        %6493 = vmatpush1.msra.mxu0 0.0
        %6494 = vmatprep.subr.mxu0 0.0
        %6495 = vmatpush1.msra.mxu0 0.0
        %6496 = vmatprep.subr.mxu0 0.0
        %6497 = vmatpush1.msra.mxu0 0.0
        %6498 = vmatprep.subr.mxu0 0.0
        %6499 = vmatpush1.msra.mxu0 0.0
        %6500 = vmatprep.subr.mxu0 0.0
        %6501 = vmatpush1.msra.mxu0 0.0
        %6502 = vmatprep.subr.mxu0 0.0
        %6503 = vmatpush1.msra.mxu0 0.0
        %6504 = vmatprep.subr.mxu0 0.0
        %6505 = vmatpush1.msra.mxu0 0.0
        %6506 = vmatprep.subr.mxu0 0.0
        %6507 = vmatpush1.msra.mxu0 0.0
        %6508 = vmatprep.subr.mxu0 0.0
        %6509 = vmatpush1.msra.mxu0 0.0
        %6510 = vmatprep.subr.mxu0 0.0
        %6511 = vmatpush1.msra.mxu0 0.0
        %6512 = vmatprep.subr.mxu0 0.0
        %6513 = vmatpush1.msra.mxu0 0.0
        %6514 = vmatprep.subr.mxu0 0.0
        %6515 = vmatpush1.msra.mxu0 0.0
        %6516 = vmatprep.subr.mxu0 0.0
        %6517 = vmatpush1.msra.mxu0 0.0
        %6518 = vmatprep.subr.mxu0 0.0
        %6519 = vmatpush1.msra.mxu0 0.0
        %6520 = vmatprep.mubr.f32.mxu0 0.0
        %6521 = vmatmul.mubr.f32.gmra.mrb[0].mxu0 %v6259
        %v6522 = vpop.f32.mrb[0].mxu0
        %v6523 = vadd.f32 0.0, %v6522
        %v6524 = vpop.f32.mrb[0].mxu0
        %v6525 = vadd.f32 0.0, %v6524
        %6526 = vmatprep.mubr.f32.mxu0 0.0
        %6527 = vmatmul.mubr.f32.gmra.mrb[0].mxu0 %v6262
        %v6528 = vpop.f32.mrb[0].mxu0
        %v6529 = vadd.f32 0.0, %v6528
        %v6530 = vpop.f32.mrb[0].mxu0
        %v6531 = vadd.f32 0.0, %v6530
        %6532 = vmatprep.mubr.f32.mxu0 0.0
        %6533 = vmatmul.mubr.f32.gmra.mrb[0].mxu0 %v6265
        %v6534 = vpop.f32.mrb[0].mxu0
        %v6535 = vadd.f32 0.0, %v6534
        %v6536 = vpop.f32.mrb[0].mxu0
        %v6537 = vadd.f32 0.0, %v6536
        %6538 = vmatprep.mubr.f32.mxu0 0.0
        %6539 = vmatmul.mubr.f32.gmra.mrb[0].mxu0 %v6268
        %v6540 = vpop.f32.mrb[0].mxu0
        %v6541 = vadd.f32 0.0, %v6540
        %v6542 = vpop.f32.mrb[0].mxu0
        %v6543 = vadd.f32 0.0, %v6542
        %6544 = vmatprep.mubr.f32.mxu0 0.0
        %6545 = vmatmul.mubr.f32.gmra.mrb[0].mxu0 %v6271
        %v6546 = vpop.f32.mrb[0].mxu0
        %v6547 = vadd.f32 0.0, %v6546
        %v6548 = vpop.f32.mrb[0].mxu0
        %v6549 = vadd.f32 0.0, %v6548
        %6550 = vmatprep.mubr.f32.mxu0 0.0
        %6551 = vmatmul.mubr.f32.gmra.mrb[0].mxu0 %v6274
        %v6552 = vpop.f32.mrb[0].mxu0
        %v6553 = vadd.f32 0.0, %v6552
        %v6554 = vpop.f32.mrb[0].mxu0
        %v6555 = vadd.f32 0.0, %v6554
        %6556 = vmatprep.mubr.f32.mxu0 0.0
        %6557 = vmatmul.mubr.f32.gmra.mrb[0].mxu0 %v6277
        %v6558 = vpop.f32.mrb[0].mxu0
        %v6559 = vadd.f32 0.0, %v6558
        %v6560 = vpop.f32.mrb[0].mxu0
        %v6561 = vadd.f32 0.0, %v6560
        %6562 = vmatprep.mubr.f32.mxu0 0.0
        %6563 = vmatmul.mubr.f32.gmra.mrb[0].mxu0 %v6280
        %v6564 = vpop.f32.mrb[0].mxu0
        %v6565 = vadd.f32 0.0, %v6564
        %v6566 = vpop.f32.mrb[0].mxu0
        %v6567 = vadd.f32 0.0, %v6566
        %6568 = vmatprep.mubr.f32.mxu0 0.0
        %6569 = vmatmul.mubr.f32.gmra.mrb[0].mxu0 %v6283
        %v6570 = vpop.f32.mrb[0].mxu0
        %v6571 = vadd.f32 0.0, %v6570
        %v6572 = vpop.f32.mrb[0].mxu0
        %v6573 = vadd.f32 0.0, %v6572
        %6574 = vmatprep.mubr.f32.mxu0 0.0
        %6575 = vmatmul.mubr.f32.gmra.mrb[0].mxu0 %v6286
        %v6576 = vpop.f32.mrb[0].mxu0
        %v6577 = vadd.f32 0.0, %v6576
        %v6578 = vpop.f32.mrb[0].mxu0
        %v6579 = vadd.f32 0.0, %v6578
        %6580 = vmatprep.mubr.f32.mxu0 0.0
        %6581 = vmatmul.mubr.f32.gmra.mrb[0].mxu0 %v6289
        %v6582 = vpop.f32.mrb[0].mxu0
        %v6583 = vadd.f32 0.0, %v6582
        %v6584 = vpop.f32.mrb[0].mxu0
        %v6585 = vadd.f32 0.0, %v6584
        %6586 = vmatprep.mubr.f32.mxu0 0.0
        %6587 = vmatmul.mubr.f32.gmra.mrb[0].mxu0 %v6292
        %v6588 = vpop.f32.mrb[0].mxu0
        %v6589 = vadd.f32 0.0, %v6588
        %v6590 = vpop.f32.mrb[0].mxu0
        %v6591 = vadd.f32 0.0, %v6590
        %6592 = vmatprep.mubr.f32.mxu0 0.0
        %6593 = vmatmul.mubr.f32.gmra.mrb[0].mxu0 %v6295
        %v6594 = vpop.f32.mrb[0].mxu0
        %v6595 = vadd.f32 0.0, %v6594
        %v6596 = vpop.f32.mrb[0].mxu0
        %v6597 = vadd.f32 0.0, %v6596
        %6598 = vmatprep.mubr.f32.mxu0 0.0
        %6599 = vmatmul.mubr.f32.gmra.mrb[0].mxu0 %v6298
        %v6600 = vpop.f32.mrb[0].mxu0
        %v6601 = vadd.f32 0.0, %v6600
        %v6602 = vpop.f32.mrb[0].mxu0
        %v6603 = vadd.f32 0.0, %v6602
        %6604 = vmatprep.mubr.f32.mxu0 0.0
        %6605 = vmatmul.mubr.f32.gmra.mrb[0].mxu0 %v6301
        %v6606 = vpop.f32.mrb[0].mxu0
        %v6607 = vadd.f32 0.0, %v6606
        %v6608 = vpop.f32.mrb[0].mxu0
        %v6609 = vadd.f32 0.0, %v6608
        %6610 = vmatprep.mubr.f32.mxu0 0.0
        %6611 = vmatmul.mubr.f32.gmra.mrb[0].mxu0 %v6304
        %v6612 = vpop.f32.mrb[0].mxu0
        %v6613 = vadd.f32 0.0, %v6612
        %v6614 = vpop.f32.mrb[0].mxu0
        %v6615 = vadd.f32 0.0, %v6614
        %6616 = vmatprep.mubr.f32.mxu0 0.0
        %6617 = vmatmul.mubr.f32.gmra.mrb[0].mxu0 %v6307
        %v6618 = vpop.f32.mrb[0].mxu0
        %v6619 = vadd.f32 0.0, %v6618
        %v6620 = vpop.f32.mrb[0].mxu0
        %v6621 = vadd.f32 0.0, %v6620
        %6622 = vmatprep.mubr.f32.mxu0 0.0
        %6623 = vmatmul.mubr.f32.gmra.mrb[0].mxu0 %v6310
        %v6624 = vpop.f32.mrb[0].mxu0
        %v6625 = vadd.f32 0.0, %v6624
        %v6626 = vpop.f32.mrb[0].mxu0
        %v6627 = vadd.f32 0.0, %v6626
        %6628 = vmatprep.mubr.f32.mxu0 0.0
        %6629 = vmatmul.mubr.f32.gmra.mrb[0].mxu0 %v6313
        %v6630 = vpop.f32.mrb[0].mxu0
        %v6631 = vadd.f32 0.0, %v6630
        %v6632 = vpop.f32.mrb[0].mxu0
        %v6633 = vadd.f32 0.0, %v6632
        %6634 = vmatprep.mubr.f32.mxu0 0.0
        %6635 = vmatmul.mubr.f32.gmra.mrb[0].mxu0 %v6316
        %v6636 = vpop.f32.mrb[0].mxu0
        %v6637 = vadd.f32 0.0, %v6636
        %v6638 = vpop.f32.mrb[0].mxu0
        %v6639 = vadd.f32 0.0, %v6638
        %6640 = vmatprep.mubr.f32.mxu0 0.0
        %6641 = vmatmul.mubr.f32.gmra.mrb[0].mxu0 %v6319
        %v6642 = vpop.f32.mrb[0].mxu0
        %v6643 = vadd.f32 0.0, %v6642
        %v6644 = vpop.f32.mrb[0].mxu0
        %v6645 = vadd.f32 0.0, %v6644
        %6646 = vmatprep.mubr.f32.mxu0 0.0
        %6647 = vmatmul.mubr.f32.gmra.mrb[0].mxu0 %v6322
        %v6648 = vpop.f32.mrb[0].mxu0
        %v6649 = vadd.f32 0.0, %v6648
        %v6650 = vpop.f32.mrb[0].mxu0
        %v6651 = vadd.f32 0.0, %v6650
        %6652 = vmatprep.mubr.f32.mxu0 0.0
        %6653 = vmatmul.mubr.f32.gmra.mrb[0].mxu0 %v6325
        %v6654 = vpop.f32.mrb[0].mxu0
        %v6655 = vadd.f32 0.0, %v6654
        %v6656 = vpop.f32.mrb[0].mxu0
        %v6657 = vadd.f32 0.0, %v6656
        %6658 = vmatprep.mubr.f32.mxu0 0.0
        %6659 = vmatmul.mubr.f32.gmra.mrb[0].mxu0 %v6328
        %v6660 = vpop.f32.mrb[0].mxu0
        %v6661 = vadd.f32 0.0, %v6660
        %v6662 = vpop.f32.mrb[0].mxu0
        %v6663 = vadd.f32 0.0, %v6662
        %6664 = vmatprep.mubr.f32.mxu0 0.0
        %6665 = vmatmul.mubr.f32.gmra.mrb[0].mxu0 %v6331
        %v6666 = vpop.f32.mrb[0].mxu0
        %v6667 = vadd.f32 0.0, %v6666
        %v6668 = vpop.f32.mrb[0].mxu0
        %v6669 = vadd.f32 0.0, %v6668
        %6670 = vmatprep.mubr.f32.mxu0 0.0
        %6671 = vmatmul.mubr.f32.gmra.mrb[0].mxu0 %v6334
        %v6672 = vpop.f32.mrb[0].mxu0
        %v6673 = vadd.f32 0.0, %v6672
        %v6674 = vpop.f32.mrb[0].mxu0
        %v6675 = vadd.f32 0.0, %v6674
        %6676 = vmatprep.mubr.f32.mxu0 0.0
        %6677 = vmatmul.mubr.f32.gmra.mrb[0].mxu0 %v6337
        %v6678 = vpop.f32.mrb[0].mxu0
        %v6679 = vadd.f32 0.0, %v6678
        %v6680 = vpop.f32.mrb[0].mxu0
        %v6681 = vadd.f32 0.0, %v6680
        %6682 = vmatprep.mubr.f32.mxu0 0.0
        %6683 = vmatmul.mubr.f32.gmra.mrb[0].mxu0 %v6340
        %v6684 = vpop.f32.mrb[0].mxu0
        %v6685 = vadd.f32 0.0, %v6684
        %v6686 = vpop.f32.mrb[0].mxu0
        %v6687 = vadd.f32 0.0, %v6686
        %6688 = vmatprep.mubr.f32.mxu0 0.0
        %6689 = vmatmul.mubr.f32.gmra.mrb[0].mxu0 %v6343
        %v6690 = vpop.f32.mrb[0].mxu0
        %v6691 = vadd.f32 0.0, %v6690
        %v6692 = vpop.f32.mrb[0].mxu0
        %v6693 = vadd.f32 0.0, %v6692
        %6694 = vmatprep.mubr.f32.mxu0 0.0
        %6695 = vmatmul.mubr.f32.gmra.mrb[0].mxu0 %v6346
        %v6696 = vpop.f32.mrb[0].mxu0
        %v6697 = vadd.f32 0.0, %v6696
        %v6698 = vpop.f32.mrb[0].mxu0
        %v6699 = vadd.f32 0.0, %v6698
        %6700 = vmatprep.mubr.f32.mxu0 0.0
        %6701 = vmatmul.mubr.f32.gmra.mrb[0].mxu0 %v6349
        %v6702 = vpop.f32.mrb[0].mxu0
        %v6703 = vadd.f32 0.0, %v6702
        %v6704 = vpop.f32.mrb[0].mxu0
        %v6705 = vadd.f32 0.0, %v6704
        %6706 = vmatprep.mubr.f32.mxu0 0.0
        %6707 = vmatmul.mubr.f32.gmra.mrb[0].mxu0 %v6352
        %v6708 = vpop.f32.mrb[0].mxu0
        %v6709 = vadd.f32 0.0, %v6708
        %v6710 = vpop.f32.mrb[0].mxu0
        %v6711 = vadd.f32 0.0, %v6710
        %6712 = vmatprep.mubr.f32.mxu0 0.0
        %6713 = vmatmul.mubr.f32.gmra.mrb[0].mxu0 %v6355
        %v6714 = vpop.f32.mrb[0].mxu0
        %v6715 = vadd.f32 0.0, %v6714
        %v6716 = vpop.f32.mrb[0].mxu0
        %v6717 = vadd.f32 0.0, %v6716
        %6718 = vmatprep.mubr.f32.mxu0 0.0
        %6719 = vmatmul.mubr.f32.gmra.mrb[0].mxu0 %v6358
        %v6720 = vpop.f32.mrb[0].mxu0
        %v6721 = vadd.f32 0.0, %v6720
        %v6722 = vpop.f32.mrb[0].mxu0
        %v6723 = vadd.f32 0.0, %v6722
        %6724 = vmatprep.mubr.f32.mxu0 0.0
        %6725 = vmatmul.mubr.f32.gmra.mrb[0].mxu0 %v6361
        %v6726 = vpop.f32.mrb[0].mxu0
        %v6727 = vadd.f32 0.0, %v6726
        %v6728 = vpop.f32.mrb[0].mxu0
        %v6729 = vadd.f32 0.0, %v6728
        %6730 = vmatprep.mubr.f32.mxu0 0.0
        %6731 = vmatmul.mubr.f32.gmra.mrb[0].mxu0 %v6364
        %v6732 = vpop.f32.mrb[0].mxu0
        %v6733 = vadd.f32 0.0, %v6732
        %v6734 = vpop.f32.mrb[0].mxu0
        %v6735 = vadd.f32 0.0, %v6734
        %6736 = vmatprep.mubr.f32.mxu0 0.0
        %6737 = vmatmul.mubr.f32.gmra.mrb[0].mxu0 %v6367
        %v6738 = vpop.f32.mrb[0].mxu0
        %v6739 = vadd.f32 0.0, %v6738
        %v6740 = vpop.f32.mrb[0].mxu0
        %v6741 = vadd.f32 0.0, %v6740
        %6742 = vmatprep.mubr.f32.mxu0 0.0
        %6743 = vmatmul.mubr.f32.gmra.mrb[0].mxu0 %v6370
        %v6744 = vpop.f32.mrb[0].mxu0
        %v6745 = vadd.f32 0.0, %v6744
        %v6746 = vpop.f32.mrb[0].mxu0
        %v6747 = vadd.f32 0.0, %v6746
        %6748 = vmatprep.mubr.f32.mxu0 0.0
        %6749 = vmatmul.mubr.f32.gmra.mrb[0].mxu0 %v6373
        %v6750 = vpop.f32.mrb[0].mxu0
        %v6751 = vadd.f32 0.0, %v6750
        %v6752 = vpop.f32.mrb[0].mxu0
        %v6753 = vadd.f32 0.0, %v6752
        %6754 = vmatprep.mubr.f32.mxu0 0.0
        %6755 = vmatmul.mubr.f32.gmra.mrb[0].mxu0 %v6376
        %v6756 = vpop.f32.mrb[0].mxu0
        %v6757 = vadd.f32 0.0, %v6756
        %v6758 = vpop.f32.mrb[0].mxu0
        %v6759 = vadd.f32 0.0, %v6758
        %6760 = vmatprep.mubr.f32.mxu0 0.0
        %6761 = vmatmul.mubr.f32.gmra.mrb[0].mxu0 %v6379
        %v6762 = vpop.f32.mrb[0].mxu0
        %v6763 = vadd.f32 0.0, %v6762
        %v6764 = vpop.f32.mrb[0].mxu0
        %v6765 = vadd.f32 0.0, %v6764
        %6766 = vmatprep.mubr.f32.mxu0 0.0
        %6767 = vmatmul.mubr.f32.gmra.mrb[0].mxu0 %v6382
        %v6768 = vpop.f32.mrb[0].mxu0
        %v6769 = vadd.f32 0.0, %v6768
        %v6770 = vpop.f32.mrb[0].mxu0
        %v6771 = vadd.f32 0.0, %v6770
        %6772 = vmatprep.mubr.f32.mxu0 0.0
        %6773 = vmatmul.mubr.f32.gmra.mrb[0].mxu0 %v6385
        %v6774 = vpop.f32.mrb[0].mxu0
        %v6775 = vadd.f32 0.0, %v6774
        %v6776 = vpop.f32.mrb[0].mxu0
        %v6777 = vadd.f32 0.0, %v6776
        %6778 = vmatprep.mubr.f32.mxu0 0.0
        %6779 = vmatmul.mubr.f32.gmra.mrb[0].mxu0 %v6388
        %v6780 = vpop.f32.mrb[0].mxu0
        %v6781 = vadd.f32 0.0, %v6780
        %v6782 = vpop.f32.mrb[0].mxu0
        %v6783 = vadd.f32 0.0, %v6782
        %6784 = vmatprep.mubr.f32.mxu0 0.0
        %6785 = vmatmul.mubr.f32.gmra.mrb[0].mxu0 %v6391
        %v6786 = vpop.f32.mrb[0].mxu0
        %v6787 = vadd.f32 0.0, %v6786
        %v6788 = vpop.f32.mrb[0].mxu0
        %v6789 = vadd.f32 0.0, %v6788
        %6790 = vmatprep.mubr.f32.mxu0 0.0
        %6791 = vmatmul.mubr.f32.gmra.mrb[0].mxu0 %v6394
        %v6792 = vpop.f32.mrb[0].mxu0
        %v6793 = vadd.f32 0.0, %v6792
        %v6794 = vpop.f32.mrb[0].mxu0
        %v6795 = vadd.f32 0.0, %v6794
        %6796 = vmatprep.mubr.f32.mxu0 0.0
        %6797 = vmatmul.mubr.f32.gmra.mrb[0].mxu0 %v6397
        %v6798 = vpop.f32.mrb[0].mxu0
        %v6799 = vadd.f32 0.0, %v6798
        %v6800 = vpop.f32.mrb[0].mxu0
        %v6801 = vadd.f32 0.0, %v6800
        %6802 = vmatprep.mubr.f32.mxu0 0.0
        %6803 = vmatmul.mubr.f32.gmra.mrb[0].mxu0 %v6400
        %v6804 = vpop.f32.mrb[0].mxu0
        %v6805 = vadd.f32 0.0, %v6804
        %v6806 = vpop.f32.mrb[0].mxu0
        %v6807 = vadd.f32 0.0, %v6806
        %6808 = vmatprep.mubr.f32.mxu0 0.0
        %6809 = vmatmul.mubr.f32.gmra.mrb[0].mxu0 %v6403
        %v6810 = vpop.f32.mrb[0].mxu0
        %v6811 = vadd.f32 0.0, %v6810
        %v6812 = vpop.f32.mrb[0].mxu0
        %v6813 = vadd.f32 0.0, %v6812
        %6814 = vmatprep.mubr.f32.mxu0 0.0
        %6815 = vmatmul.mubr.f32.gmra.mrb[0].mxu0 %v6406
        %v6816 = vpop.f32.mrb[0].mxu0
        %v6817 = vadd.f32 0.0, %v6816
        %v6818 = vpop.f32.mrb[0].mxu0
        %v6819 = vadd.f32 0.0, %v6818
        %6820 = vmatprep.mubr.f32.mxu0 0.0
        %6821 = vmatmul.mubr.f32.gmra.mrb[0].mxu0 %v6409
        %v6822 = vpop.f32.mrb[0].mxu0
        %v6823 = vadd.f32 0.0, %v6822
        %v6824 = vpop.f32.mrb[0].mxu0
        %v6825 = vadd.f32 0.0, %v6824
        %6826 = vmatprep.mubr.f32.mxu0 0.0
        %6827 = vmatmul.mubr.f32.gmra.mrb[0].mxu0 %v6412
        %v6828 = vpop.f32.mrb[0].mxu0
        %v6829 = vadd.f32 0.0, %v6828
        %v6830 = vpop.f32.mrb[0].mxu0
        %v6831 = vadd.f32 0.0, %v6830
        %6832 = vmatprep.mubr.f32.mxu0 0.0
        %6833 = vmatmul.mubr.f32.gmra.mrb[0].mxu0 %v6415
        %v6834 = vpop.f32.mrb[0].mxu0
        %v6835 = vadd.f32 0.0, %v6834
        %v6836 = vpop.f32.mrb[0].mxu0
        %v6837 = vadd.f32 0.0, %v6836
        %6838 = vmatprep.mubr.f32.mxu0 0.0
        %6839 = vmatmul.mubr.f32.gmra.mrb[0].mxu0 %v6418
        %v6840 = vpop.f32.mrb[0].mxu0
        %v6841 = vadd.f32 0.0, %v6840
        %v6842 = vpop.f32.mrb[0].mxu0
        %v6843 = vadd.f32 0.0, %v6842
        %6844 = vmatprep.mubr.f32.mxu0 0.0
        %6845 = vmatmul.mubr.f32.gmra.mrb[0].mxu0 %v6421
        %v6846 = vpop.f32.mrb[0].mxu0
        %v6847 = vadd.f32 0.0, %v6846
        %v6848 = vpop.f32.mrb[0].mxu0
        %v6849 = vadd.f32 0.0, %v6848
        %6850 = vmatprep.mubr.f32.mxu0 0.0
        %6851 = vmatmul.mubr.f32.gmra.mrb[0].mxu0 %v6424
        %v6852 = vpop.f32.mrb[0].mxu0
        %v6853 = vadd.f32 0.0, %v6852
        %v6854 = vpop.f32.mrb[0].mxu0
        %v6855 = vadd.f32 0.0, %v6854
        %6856 = vmatprep.mubr.f32.mxu0 0.0
        %6857 = vmatmul.mubr.f32.gmra.mrb[0].mxu0 %v6427
        %v6858 = vpop.f32.mrb[0].mxu0
        %v6859 = vadd.f32 0.0, %v6858
        %v6860 = vpop.f32.mrb[0].mxu0
        %v6861 = vadd.f32 0.0, %v6860
        %6862 = vmatprep.mubr.f32.mxu0 0.0
        %6863 = vmatmul.mubr.f32.gmra.mrb[0].mxu0 %v6430
        %v6864 = vpop.f32.mrb[0].mxu0
        %v6865 = vadd.f32 0.0, %v6864
        %v6866 = vpop.f32.mrb[0].mxu0
        %v6867 = vadd.f32 0.0, %v6866
        %6868 = vmatprep.mubr.f32.mxu0 0.0
        %6869 = vmatmul.mubr.f32.gmra.mrb[0].mxu0 %v6433
        %v6870 = vpop.f32.mrb[0].mxu0
        %v6871 = vadd.f32 0.0, %v6870
        %v6872 = vpop.f32.mrb[0].mxu0
        %v6873 = vadd.f32 0.0, %v6872
        %6874 = vmatprep.mubr.f32.mxu0 0.0
        %6875 = vmatmul.mubr.f32.gmra.mrb[0].mxu0 %v6436
        %v6876 = vpop.f32.mrb[0].mxu0
        %v6877 = vadd.f32 0.0, %v6876
        %v6878 = vpop.f32.mrb[0].mxu0
        %v6879 = vadd.f32 0.0, %v6878
        %6880 = vmatprep.mubr.f32.mxu0 0.0
        %6881 = vmatmul.mubr.f32.gmra.mrb[0].mxu0 %v6439
        %v6882 = vpop.f32.mrb[0].mxu0
        %v6883 = vadd.f32 0.0, %v6882
        %v6884 = vpop.f32.mrb[0].mxu0
        %v6885 = vadd.f32 0.0, %v6884
        %6886 = vmatprep.mubr.f32.mxu0 0.0
        %6887 = vmatmul.mubr.f32.gmra.mrb[0].mxu0 %v6442
        %v6888 = vpop.f32.mrb[0].mxu0
        %v6889 = vadd.f32 0.0, %v6888
        %v6890 = vpop.f32.mrb[0].mxu0
        %v6891 = vadd.f32 0.0, %v6890
        %6892 = vmatprep.mubr.f32.mxu0 0.0
        %6893 = vmatmul.mubr.f32.gmra.mrb[0].mxu0 %v6445
        %v6894 = vpop.f32.mrb[0].mxu0
        %v6895 = vadd.f32 0.0, %v6894
        %v6896 = vpop.f32.mrb[0].mxu0
        %v6897 = vadd.f32 0.0, %v6896
        %6898 = vmatprep.mubr.f32.mxu0 0.0
        %6899 = vmatmul.mubr.f32.gmra.mrb[0].mxu0 %v6448
        %v6900 = vpop.f32.mrb[0].mxu0
        %v6901 = vadd.f32 0.0, %v6900
        %v6902 = vpop.f32.mrb[0].mxu0
        %v6903 = vadd.f32 0.0, %v6902
        %6904 = vdwg.mxu0
        %v7033 = vrot.slane %v6523, 4
        %v7034 = vrot.slane %v6525, 4
        %v7035 = vrot.slane %v6529, 4
        %v7036 = vsel %vm1002, %v7033, %v7035
        %v7037 = vrot.slane %v6531, 4
        %v7038 = vsel %vm1002, %v7034, %v7037
        %v7039 = vrot.slane %v6535, 4
        %v7040 = vsel %vm1002, %v7035, %v7039
        %v7041 = vrot.slane %v6537, 4
        %v7042 = vsel %vm1002, %v7037, %v7041
        %v7043 = vrot.slane %v6541, 4
        %v7044 = vsel %vm1002, %v7039, %v7043
        %v7045 = vrot.slane %v6543, 4
        %v7046 = vsel %vm1002, %v7041, %v7045
        %v7047 = vrot.slane %v6547, 4
        %v7048 = vsel %vm1002, %v7043, %v7047
        %v7049 = vrot.slane %v6549, 4
        %v7050 = vsel %vm1002, %v7045, %v7049
        %v7051 = vrot.slane %v6553, 4
        %v7052 = vsel %vm1002, %v7047, %v7051
        %v7053 = vrot.slane %v6555, 4
        %v7054 = vsel %vm1002, %v7049, %v7053
        %v7055 = vrot.slane %v6559, 4
        %v7056 = vsel %vm1002, %v7051, %v7055
        %v7057 = vrot.slane %v6561, 4
        %v7058 = vsel %vm1002, %v7053, %v7057
        %v7059 = vrot.slane %v6565, 4
        %v7060 = vsel %vm1002, %v7055, %v7059
        %v7061 = vrot.slane %v6567, 4
        %v7062 = vsel %vm1002, %v7057, %v7061
        %v7063 = vrot.slane %v6571, 4
        %v7064 = vsel %vm1002, %v7059, %v7063
        %v7065 = vrot.slane %v6573, 4
        %v7066 = vsel %vm1002, %v7061, %v7065
        %v7067 = vrot.slane %v6577, 4
        %v7068 = vsel %vm1002, %v7063, %v7067
        %v7069 = vrot.slane %v6579, 4
        %v7070 = vsel %vm1002, %v7065, %v7069
        %v7071 = vrot.slane %v6583, 4
        %v7072 = vsel %vm1002, %v7067, %v7071
        %v7073 = vrot.slane %v6585, 4
        %v7074 = vsel %vm1002, %v7069, %v7073
        %v7075 = vrot.slane %v6589, 4
        %v7076 = vsel %vm1002, %v7071, %v7075
        %v7077 = vrot.slane %v6591, 4
        %v7078 = vsel %vm1002, %v7073, %v7077
        %v7079 = vrot.slane %v6595, 4
        %v7080 = vsel %vm1002, %v7075, %v7079
        %v7081 = vrot.slane %v6597, 4
        %v7082 = vsel %vm1002, %v7077, %v7081
        %v7083 = vrot.slane %v6601, 4
        %v7084 = vsel %vm1002, %v7079, %v7083
        %v7085 = vrot.slane %v6603, 4
        %v7086 = vsel %vm1002, %v7081, %v7085
        %v7087 = vrot.slane %v6607, 4
        %v7088 = vsel %vm1002, %v7083, %v7087
        %v7089 = vrot.slane %v6609, 4
        %v7090 = vsel %vm1002, %v7085, %v7089
        %v7091 = vrot.slane %v6613, 4
        %v7092 = vsel %vm1002, %v7087, %v7091
        %v7093 = vrot.slane %v6615, 4
        %v7094 = vsel %vm1002, %v7089, %v7093
        %v7095 = vrot.slane %v6619, 4
        %v7096 = vsel %vm1002, %v7091, %v7095
        %v7097 = vrot.slane %v6621, 4
        %v7098 = vsel %vm1002, %v7093, %v7097
        %v7099 = vrot.slane %v6625, 4
        %v7100 = vsel %vm1002, %v7095, %v7099
        %v7101 = vrot.slane %v6627, 4
        %v7102 = vsel %vm1002, %v7097, %v7101
        %v7103 = vrot.slane %v6631, 4
        %v7104 = vsel %vm1002, %v7099, %v7103
        %v7105 = vrot.slane %v6633, 4
        %v7106 = vsel %vm1002, %v7101, %v7105
        %v7107 = vrot.slane %v6637, 4
        %v7108 = vsel %vm1002, %v7103, %v7107
        %v7109 = vrot.slane %v6639, 4
        %v7110 = vsel %vm1002, %v7105, %v7109
        %v7111 = vrot.slane %v6643, 4
        %v7112 = vsel %vm1002, %v7107, %v7111
        %v7113 = vrot.slane %v6645, 4
        %v7114 = vsel %vm1002, %v7109, %v7113
        %v7115 = vrot.slane %v6649, 4
        %v7116 = vsel %vm1002, %v7111, %v7115
        %v7117 = vrot.slane %v6651, 4
        %v7118 = vsel %vm1002, %v7113, %v7117
        %v7119 = vrot.slane %v6655, 4
        %v7120 = vsel %vm1002, %v7115, %v7119
        %v7121 = vrot.slane %v6657, 4
        %v7122 = vsel %vm1002, %v7117, %v7121
        %v7123 = vrot.slane %v6661, 4
        %v7124 = vsel %vm1002, %v7119, %v7123
        %v7125 = vrot.slane %v6663, 4
        %v7126 = vsel %vm1002, %v7121, %v7125
        %v7127 = vrot.slane %v6667, 4
        %v7128 = vsel %vm1002, %v7123, %v7127
        %v7129 = vrot.slane %v6669, 4
        %v7130 = vsel %vm1002, %v7125, %v7129
        %v7131 = vrot.slane %v6673, 4
        %v7132 = vsel %vm1002, %v7127, %v7131
        %v7133 = vrot.slane %v6675, 4
        %v7134 = vsel %vm1002, %v7129, %v7133
        %v7135 = vrot.slane %v6679, 4
        %v7136 = vsel %vm1002, %v7131, %v7135
        %v7137 = vrot.slane %v6681, 4
        %v7138 = vsel %vm1002, %v7133, %v7137
        %v7139 = vrot.slane %v6685, 4
        %v7140 = vsel %vm1002, %v7135, %v7139
        %v7141 = vrot.slane %v6687, 4
        %v7142 = vsel %vm1002, %v7137, %v7141
        %v7143 = vrot.slane %v6691, 4
        %v7144 = vsel %vm1002, %v7139, %v7143
        %v7145 = vrot.slane %v6693, 4
        %v7146 = vsel %vm1002, %v7141, %v7145
        %v7147 = vrot.slane %v6697, 4
        %v7148 = vsel %vm1002, %v7143, %v7147
        %v7149 = vrot.slane %v6699, 4
        %v7150 = vsel %vm1002, %v7145, %v7149
        %v7151 = vrot.slane %v6703, 4
        %v7152 = vsel %vm1002, %v7147, %v7151
        %v7153 = vrot.slane %v6705, 4
        %v7154 = vsel %vm1002, %v7149, %v7153
        %v7155 = vrot.slane %v6709, 4
        %v7156 = vsel %vm1002, %v7151, %v7155
        %v7157 = vrot.slane %v6711, 4
        %v7158 = vsel %vm1002, %v7153, %v7157
        %v7159 = vrot.slane %v6715, 4
        %v7160 = vsel %vm1002, %v7155, %v7159
        %v7161 = vrot.slane %v6717, 4
        %v7162 = vsel %vm1002, %v7157, %v7161
        %v7163 = vrot.slane %v6721, 4
        %v7164 = vsel %vm1002, %v7159, %v7163
        %v7165 = vrot.slane %v6723, 4
        %v7166 = vsel %vm1002, %v7161, %v7165
        %v7167 = vrot.slane %v6727, 4
        %v7168 = vsel %vm1002, %v7163, %v7167
        %v7169 = vrot.slane %v6729, 4
        %v7170 = vsel %vm1002, %v7165, %v7169
        %v7171 = vrot.slane %v6733, 4
        %v7172 = vsel %vm1002, %v7167, %v7171
        %v7173 = vrot.slane %v6735, 4
        %v7174 = vsel %vm1002, %v7169, %v7173
        %v7175 = vrot.slane %v6739, 4
        %v7176 = vsel %vm1002, %v7171, %v7175
        %v7177 = vrot.slane %v6741, 4
        %v7178 = vsel %vm1002, %v7173, %v7177
        %v7179 = vrot.slane %v6745, 4
        %v7180 = vsel %vm1002, %v7175, %v7179
        %v7181 = vrot.slane %v6747, 4
        %v7182 = vsel %vm1002, %v7177, %v7181
        %v7183 = vrot.slane %v6751, 4
        %v7184 = vsel %vm1002, %v7179, %v7183
        %v7185 = vrot.slane %v6753, 4
        %v7186 = vsel %vm1002, %v7181, %v7185
        %v7187 = vrot.slane %v6757, 4
        %v7188 = vsel %vm1002, %v7183, %v7187
        %v7189 = vrot.slane %v6759, 4
        %v7190 = vsel %vm1002, %v7185, %v7189
        %v7191 = vrot.slane %v6763, 4
        %v7192 = vsel %vm1002, %v7187, %v7191
        %v7193 = vrot.slane %v6765, 4
        %v7194 = vsel %vm1002, %v7189, %v7193
        %v7195 = vrot.slane %v6769, 4
        %v7196 = vsel %vm1002, %v7191, %v7195
        %v7197 = vrot.slane %v6771, 4
        %v7198 = vsel %vm1002, %v7193, %v7197
        %v7199 = vrot.slane %v6775, 4
        %v7200 = vsel %vm1002, %v7195, %v7199
        %v7201 = vrot.slane %v6777, 4
        %v7202 = vsel %vm1002, %v7197, %v7201
        %v7203 = vrot.slane %v6781, 4
        %v7204 = vsel %vm1002, %v7199, %v7203
        %v7205 = vrot.slane %v6783, 4
        %v7206 = vsel %vm1002, %v7201, %v7205
        %v7207 = vrot.slane %v6787, 4
        %v7208 = vsel %vm1002, %v7203, %v7207
        %v7209 = vrot.slane %v6789, 4
        %v7210 = vsel %vm1002, %v7205, %v7209
        %v7211 = vrot.slane %v6793, 4
        %v7212 = vsel %vm1002, %v7207, %v7211
        %v7213 = vrot.slane %v6795, 4
        %v7214 = vsel %vm1002, %v7209, %v7213
        %v7215 = vrot.slane %v6799, 4
        %v7216 = vsel %vm1002, %v7211, %v7215
        %v7217 = vrot.slane %v6801, 4
        %v7218 = vsel %vm1002, %v7213, %v7217
        %v7219 = vrot.slane %v6805, 4
        %v7220 = vsel %vm1002, %v7215, %v7219
        %v7221 = vrot.slane %v6807, 4
        %v7222 = vsel %vm1002, %v7217, %v7221
        %v7223 = vrot.slane %v6811, 4
        %v7224 = vsel %vm1002, %v7219, %v7223
        %v7225 = vrot.slane %v6813, 4
        %v7226 = vsel %vm1002, %v7221, %v7225
        %v7227 = vrot.slane %v6817, 4
        %v7228 = vsel %vm1002, %v7223, %v7227
        %v7229 = vrot.slane %v6819, 4
        %v7230 = vsel %vm1002, %v7225, %v7229
        %v7231 = vrot.slane %v6823, 4
        %v7232 = vsel %vm1002, %v7227, %v7231
        %v7233 = vrot.slane %v6825, 4
        %v7234 = vsel %vm1002, %v7229, %v7233
        %v7235 = vrot.slane %v6829, 4
        %v7236 = vsel %vm1002, %v7231, %v7235
        %v7237 = vrot.slane %v6831, 4
        %v7238 = vsel %vm1002, %v7233, %v7237
        %v7239 = vrot.slane %v6835, 4
        %v7240 = vsel %vm1002, %v7235, %v7239
        %v7241 = vrot.slane %v6837, 4
        %v7242 = vsel %vm1002, %v7237, %v7241
        %v7243 = vrot.slane %v6841, 4
        %v7244 = vsel %vm1002, %v7239, %v7243
        %v7245 = vrot.slane %v6843, 4
        %v7246 = vsel %vm1002, %v7241, %v7245
        %v7247 = vrot.slane %v6847, 4
        %v7248 = vsel %vm1002, %v7243, %v7247
        %v7249 = vrot.slane %v6849, 4
        %v7250 = vsel %vm1002, %v7245, %v7249
        %v7251 = vrot.slane %v6853, 4
        %v7252 = vsel %vm1002, %v7247, %v7251
        %v7253 = vrot.slane %v6855, 4
        %v7254 = vsel %vm1002, %v7249, %v7253
        %v7255 = vrot.slane %v6859, 4
        %v7256 = vsel %vm1002, %v7251, %v7255
        %v7257 = vrot.slane %v6861, 4
        %v7258 = vsel %vm1002, %v7253, %v7257
        %v7259 = vrot.slane %v6865, 4
        %v7260 = vsel %vm1002, %v7255, %v7259
        %v7261 = vrot.slane %v6867, 4
        %v7262 = vsel %vm1002, %v7257, %v7261
        %v7263 = vrot.slane %v6871, 4
        %v7264 = vsel %vm1002, %v7259, %v7263
        %v7265 = vrot.slane %v6873, 4
        %v7266 = vsel %vm1002, %v7261, %v7265
        %v7267 = vrot.slane %v6877, 4
        %v7268 = vsel %vm1002, %v7263, %v7267
        %v7269 = vrot.slane %v6879, 4
        %v7270 = vsel %vm1002, %v7265, %v7269
        %v7271 = vrot.slane %v6883, 4
        %v7272 = vsel %vm1002, %v7267, %v7271
        %v7273 = vrot.slane %v6885, 4
        %v7274 = vsel %vm1002, %v7269, %v7273
        %v7275 = vrot.slane %v6889, 4
        %v7276 = vsel %vm1002, %v7271, %v7275
        %v7277 = vrot.slane %v6891, 4
        %v7278 = vsel %vm1002, %v7273, %v7277
        %v7279 = vrot.slane %v6895, 4
        %v7280 = vsel %vm1002, %v7275, %v7279
        %v7281 = vrot.slane %v6897, 4
        %v7282 = vsel %vm1002, %v7277, %v7281
        %v7283 = vrot.slane %v6901, 4
        %v7284 = vsel %vm1002, %v7279, %v7283
        %v7285 = vrot.slane %v6903, 4
        %v7286 = vsel %vm1002, %v7281, %v7285
        %7417 = vst [vmem:[%s242 + $0x800] sm:$0xf0] %v7033
        %7418 = vst [vmem:[%s242 + $0x808] sm:$0xf0] %v7034
        %7419 = vst [vmem:[%s242 + $0x810] sm:$0xff] %v7036
        %7420 = vst [vmem:[%s242 + $0x818] sm:$0xff] %v7038
        %7421 = vst [vmem:[%s242 + $0x820] sm:$0xff] %v7040
        %7422 = vst [vmem:[%s242 + $0x828] sm:$0xff] %v7042
        %7423 = vst [vmem:[%s242 + $0x830] sm:$0xff] %v7044
        %7424 = vst [vmem:[%s242 + $0x838] sm:$0xff] %v7046
        %7425 = vst [vmem:[%s242 + $0x840] sm:$0xff] %v7048
        %7426 = vst [vmem:[%s242 + $0x848] sm:$0xff] %v7050
        %7427 = vst [vmem:[%s242 + $0x850] sm:$0xff] %v7052
        %7428 = vst [vmem:[%s242 + $0x858] sm:$0xff] %v7054
        %7429 = vst [vmem:[%s242 + $0x860] sm:$0xff] %v7056
        %7430 = vst [vmem:[%s242 + $0x868] sm:$0xff] %v7058
        %7431 = vst [vmem:[%s242 + $0x870] sm:$0xff] %v7060
        %7432 = vst [vmem:[%s242 + $0x878] sm:$0xff] %v7062
        %7433 = vst [vmem:[%s242 + $0x880] sm:$0xff] %v7064
        %7434 = vst [vmem:[%s242 + $0x888] sm:$0xff] %v7066
        %7435 = vst [vmem:[%s242 + $0x890] sm:$0xff] %v7068
        %7436 = vst [vmem:[%s242 + $0x898] sm:$0xff] %v7070
        %7437 = vst [vmem:[%s242 + $0x8a0] sm:$0xff] %v7072
        %7438 = vst [vmem:[%s242 + $0x8a8] sm:$0xff] %v7074
        %7439 = vst [vmem:[%s242 + $0x8b0] sm:$0xff] %v7076
        %7440 = vst [vmem:[%s242 + $0x8b8] sm:$0xff] %v7078
        %7441 = vst [vmem:[%s242 + $0x8c0] sm:$0xff] %v7080
        %7442 = vst [vmem:[%s242 + $0x8c8] sm:$0xff] %v7082
        %7443 = vst [vmem:[%s242 + $0x8d0] sm:$0xff] %v7084
        %7444 = vst [vmem:[%s242 + $0x8d8] sm:$0xff] %v7086
        %7445 = vst [vmem:[%s242 + $0x8e0] sm:$0xff] %v7088
        %7446 = vst [vmem:[%s242 + $0x8e8] sm:$0xff] %v7090
        %7447 = vst [vmem:[%s242 + $0x8f0] sm:$0xff] %v7092
        %7448 = vst [vmem:[%s242 + $0x8f8] sm:$0xff] %v7094
        %7449 = vst [vmem:[%s242 + $0x900] sm:$0xff] %v7096
        %7450 = vst [vmem:[%s242 + $0x908] sm:$0xff] %v7098
        %7451 = vst [vmem:[%s242 + $0x910] sm:$0xff] %v7100
        %7452 = vst [vmem:[%s242 + $0x918] sm:$0xff] %v7102
        %7453 = vst [vmem:[%s242 + $0x920] sm:$0xff] %v7104
        %7454 = vst [vmem:[%s242 + $0x928] sm:$0xff] %v7106
        %7455 = vst [vmem:[%s242 + $0x930] sm:$0xff] %v7108
        %7456 = vst [vmem:[%s242 + $0x938] sm:$0xff] %v7110
        %7457 = vst [vmem:[%s242 + $0x940] sm:$0xff] %v7112
        %7458 = vst [vmem:[%s242 + $0x948] sm:$0xff] %v7114
        %7459 = vst [vmem:[%s242 + $0x950] sm:$0xff] %v7116
        %7460 = vst [vmem:[%s242 + $0x958] sm:$0xff] %v7118
        %7461 = vst [vmem:[%s242 + $0x960] sm:$0xff] %v7120
        %7462 = vst [vmem:[%s242 + $0x968] sm:$0xff] %v7122
        %7463 = vst [vmem:[%s242 + $0x970] sm:$0xff] %v7124
        %7464 = vst [vmem:[%s242 + $0x978] sm:$0xff] %v7126
        %7465 = vst [vmem:[%s242 + $0x980] sm:$0xff] %v7128
        %7466 = vst [vmem:[%s242 + $0x988] sm:$0xff] %v7130
        %7467 = vst [vmem:[%s242 + $0x990] sm:$0xff] %v7132
        %7468 = vst [vmem:[%s242 + $0x998] sm:$0xff] %v7134
        %7469 = vst [vmem:[%s242 + $0x9a0] sm:$0xff] %v7136
        %7470 = vst [vmem:[%s242 + $0x9a8] sm:$0xff] %v7138
        %7471 = vst [vmem:[%s242 + $0x9b0] sm:$0xff] %v7140
        %7472 = vst [vmem:[%s242 + $0x9b8] sm:$0xff] %v7142
        %7473 = vst [vmem:[%s242 + $0x9c0] sm:$0xff] %v7144
        %7474 = vst [vmem:[%s242 + $0x9c8] sm:$0xff] %v7146
        %7475 = vst [vmem:[%s242 + $0x9d0] sm:$0xff] %v7148
        %7476 = vst [vmem:[%s242 + $0x9d8] sm:$0xff] %v7150
        %7477 = vst [vmem:[%s242 + $0x9e0] sm:$0xff] %v7152
        %7478 = vst [vmem:[%s242 + $0x9e8] sm:$0xff] %v7154
        %7479 = vst [vmem:[%s242 + $0x9f0] sm:$0xff] %v7156
        %7480 = vst [vmem:[%s242 + $0x9f8] sm:$0xff] %v7158
        %7481 = vst [vmem:[%s242 + $0xa00] sm:$0xff] %v7160
        %7482 = vst [vmem:[%s242 + $0xa08] sm:$0xff] %v7162
        %7483 = vst [vmem:[%s242 + $0xa10] sm:$0xff] %v7164
        %7484 = vst [vmem:[%s242 + $0xa18] sm:$0xff] %v7166
        %7485 = vst [vmem:[%s242 + $0xa20] sm:$0xff] %v7168
        %7486 = vst [vmem:[%s242 + $0xa28] sm:$0xff] %v7170
        %7487 = vst [vmem:[%s242 + $0xa30] sm:$0xff] %v7172
        %7488 = vst [vmem:[%s242 + $0xa38] sm:$0xff] %v7174
        %7489 = vst [vmem:[%s242 + $0xa40] sm:$0xff] %v7176
        %7490 = vst [vmem:[%s242 + $0xa48] sm:$0xff] %v7178
        %7491 = vst [vmem:[%s242 + $0xa50] sm:$0xff] %v7180
        %7492 = vst [vmem:[%s242 + $0xa58] sm:$0xff] %v7182
        %7493 = vst [vmem:[%s242 + $0xa60] sm:$0xff] %v7184
        %7494 = vst [vmem:[%s242 + $0xa68] sm:$0xff] %v7186
        %7495 = vst [vmem:[%s242 + $0xa70] sm:$0xff] %v7188
        %7496 = vst [vmem:[%s242 + $0xa78] sm:$0xff] %v7190
        %7497 = vst [vmem:[%s242 + $0xa80] sm:$0xff] %v7192
        %7498 = vst [vmem:[%s242 + $0xa88] sm:$0xff] %v7194
        %7499 = vst [vmem:[%s242 + $0xa90] sm:$0xff] %v7196
        %7500 = vst [vmem:[%s242 + $0xa98] sm:$0xff] %v7198
        %7501 = vst [vmem:[%s242 + $0xaa0] sm:$0xff] %v7200
        %7502 = vst [vmem:[%s242 + $0xaa8] sm:$0xff] %v7202
        %7503 = vst [vmem:[%s242 + $0xab0] sm:$0xff] %v7204
        %7504 = vst [vmem:[%s242 + $0xab8] sm:$0xff] %v7206
        %7505 = vst [vmem:[%s242 + $0xac0] sm:$0xff] %v7208
        %7506 = vst [vmem:[%s242 + $0xac8] sm:$0xff] %v7210
        %7507 = vst [vmem:[%s242 + $0xad0] sm:$0xff] %v7212
        %7508 = vst [vmem:[%s242 + $0xad8] sm:$0xff] %v7214
        %7509 = vst [vmem:[%s242 + $0xae0] sm:$0xff] %v7216
        %7510 = vst [vmem:[%s242 + $0xae8] sm:$0xff] %v7218
        %7511 = vst [vmem:[%s242 + $0xaf0] sm:$0xff] %v7220
        %7512 = vst [vmem:[%s242 + $0xaf8] sm:$0xff] %v7222
        %7513 = vst [vmem:[%s242 + $0xb00] sm:$0xff] %v7224
        %7514 = vst [vmem:[%s242 + $0xb08] sm:$0xff] %v7226
        %7515 = vst [vmem:[%s242 + $0xb10] sm:$0xff] %v7228
        %7516 = vst [vmem:[%s242 + $0xb18] sm:$0xff] %v7230
        %7517 = vst [vmem:[%s242 + $0xb20] sm:$0xff] %v7232
        %7518 = vst [vmem:[%s242 + $0xb28] sm:$0xff] %v7234
        %7519 = vst [vmem:[%s242 + $0xb30] sm:$0xff] %v7236
        %7520 = vst [vmem:[%s242 + $0xb38] sm:$0xff] %v7238
        %7521 = vst [vmem:[%s242 + $0xb40] sm:$0xff] %v7240
        %7522 = vst [vmem:[%s242 + $0xb48] sm:$0xff] %v7242
        %7523 = vst [vmem:[%s242 + $0xb50] sm:$0xff] %v7244
        %7524 = vst [vmem:[%s242 + $0xb58] sm:$0xff] %v7246
        %7525 = vst [vmem:[%s242 + $0xb60] sm:$0xff] %v7248
        %7526 = vst [vmem:[%s242 + $0xb68] sm:$0xff] %v7250
        %7527 = vst [vmem:[%s242 + $0xb70] sm:$0xff] %v7252
        %7528 = vst [vmem:[%s242 + $0xb78] sm:$0xff] %v7254
        %7529 = vst [vmem:[%s242 + $0xb80] sm:$0xff] %v7256
        %7530 = vst [vmem:[%s242 + $0xb88] sm:$0xff] %v7258
        %7531 = vst [vmem:[%s242 + $0xb90] sm:$0xff] %v7260
        %7532 = vst [vmem:[%s242 + $0xb98] sm:$0xff] %v7262
        %7533 = vst [vmem:[%s242 + $0xba0] sm:$0xff] %v7264
        %7534 = vst [vmem:[%s242 + $0xba8] sm:$0xff] %v7266
        %7535 = vst [vmem:[%s242 + $0xbb0] sm:$0xff] %v7268
        %7536 = vst [vmem:[%s242 + $0xbb8] sm:$0xff] %v7270
        %7537 = vst [vmem:[%s242 + $0xbc0] sm:$0xff] %v7272
        %7538 = vst [vmem:[%s242 + $0xbc8] sm:$0xff] %v7274
        %7539 = vst [vmem:[%s242 + $0xbd0] sm:$0xff] %v7276
        %7540 = vst [vmem:[%s242 + $0xbd8] sm:$0xff] %v7278
        %7541 = vst [vmem:[%s242 + $0xbe0] sm:$0xff] %v7280
        %7542 = vst [vmem:[%s242 + $0xbe8] sm:$0xff] %v7282
        %7543 = vst [vmem:[%s242 + $0xbf0] sm:$0xff] %v7284
        %7544 = vst [vmem:[%s242 + $0xbf8] sm:$0xff] %v7286
        %7545 = vst [vmem:[%s242 + $0xc00] sm:$0xf] %v7283
        %7546 = vst [vmem:[%s242 + $0xc08] sm:$0xf] %v7285
        %s7547 = scalar_lea.vmem %s1, 768
        %v7548 = vld [vmem:[%s7547] sm:$0xff]
        %v7549 = vld [vmem:[%s7547 + $0x8] sm:$0xff]
        %v7550 = vld [vmem:[%s7547 + $0x10] sm:$0xff]
        %v7551 = vld [vmem:[%s7547 + $0x18] sm:$0xff]
        %v7552 = vld [vmem:[%s7547 + $0x20] sm:$0xff]
        %v7553 = vld [vmem:[%s7547 + $0x28] sm:$0xff]
        %v7554 = vld [vmem:[%s7547 + $0x30] sm:$0xff]
        %v7555 = vld [vmem:[%s7547 + $0x38] sm:$0xff]
        %v7556 = vld [vmem:[%s7547 + $0x40] sm:$0xff]
        %v7557 = vld [vmem:[%s7547 + $0x48] sm:$0xff]
        %v7558 = vld [vmem:[%s7547 + $0x50] sm:$0xff]
        %v7559 = vld [vmem:[%s7547 + $0x58] sm:$0xff]
        %v7560 = vld [vmem:[%s7547 + $0x60] sm:$0xff]
        %v7561 = vld [vmem:[%s7547 + $0x68] sm:$0xff]
        %v7562 = vld [vmem:[%s7547 + $0x70] sm:$0xff]
        %v7563 = vld [vmem:[%s7547 + $0x78] sm:$0xff]
        %v7564 = vld [vmem:[%s7547 + $0x80] sm:$0xff]
        %v7565 = vld [vmem:[%s7547 + $0x88] sm:$0xff]
        %v7566 = vld [vmem:[%s7547 + $0x90] sm:$0xff]
        %v7567 = vld [vmem:[%s7547 + $0x98] sm:$0xff]
        %v7568 = vld [vmem:[%s7547 + $0xa0] sm:$0xff]
        %v7569 = vld [vmem:[%s7547 + $0xa8] sm:$0xff]
        %v7570 = vld [vmem:[%s7547 + $0xb0] sm:$0xff]
        %v7571 = vld [vmem:[%s7547 + $0xb8] sm:$0xff]
        %v7572 = vld [vmem:[%s7547 + $0xc0] sm:$0xff]
        %v7573 = vld [vmem:[%s7547 + $0xc8] sm:$0xff]
        %v7574 = vld [vmem:[%s7547 + $0xd0] sm:$0xff]
        %v7575 = vld [vmem:[%s7547 + $0xd8] sm:$0xff]
        %v7576 = vld [vmem:[%s7547 + $0xe0] sm:$0xff]
        %v7577 = vld [vmem:[%s7547 + $0xe8] sm:$0xff]
        %v7578 = vld [vmem:[%s7547 + $0xf0] sm:$0xff]
        %v7579 = vld [vmem:[%s7547 + $0xf8] sm:$0xff]
        %s7580 = scalar_lea.vmem %s2, 240
        %v7581 = vld [vmem:[%s7580] sm:$0xff]
        %v7582 = vld [vmem:[%s7580 + $0x8] sm:$0xff]
        %v7583 = vld [vmem:[%s7580 + $0x10] sm:$0xff]
        %v7584 = vld [vmem:[%s7580 + $0x18] sm:$0xff]
        %v7585 = vld [vmem:[%s7580 + $0x20] sm:$0xff]
        %v7586 = vld [vmem:[%s7580 + $0x28] sm:$0xff]
        %v7587 = vld [vmem:[%s7580 + $0x30] sm:$0xff]
        %v7588 = vld [vmem:[%s7580 + $0x38] sm:$0xff]
        %v7589 = vld [vmem:[%s7580 + $0x40] sm:$0xf]
        %v7590 = vld [vmem:[%s7580 + $0x48] sm:$0xf]
        %s7591 = scalar_lea.vmem %s3, 1536
        %v7592 = vld [vmem:[%s7591] sm:$0xff]
        %v7593 = vld [vmem:[%s7591 + $0x8] sm:$0xff]
        %v7594 = vld [vmem:[%s7591 + $0x10] sm:$0xff]
        %v7595 = vld [vmem:[%s7591 + $0x18] sm:$0xff]
        %v7596 = vld [vmem:[%s7591 + $0x20] sm:$0xff]
        %v7597 = vld [vmem:[%s7591 + $0x28] sm:$0xff]
        %v7598 = vld [vmem:[%s7591 + $0x30] sm:$0xff]
        %v7599 = vld [vmem:[%s7591 + $0x38] sm:$0xff]
        %v7600 = vld [vmem:[%s7591 + $0x40] sm:$0xff]
        %v7601 = vld [vmem:[%s7591 + $0x48] sm:$0xff]
        %v7602 = vld [vmem:[%s7591 + $0x50] sm:$0xff]
        %v7603 = vld [vmem:[%s7591 + $0x58] sm:$0xff]
        %v7604 = vld [vmem:[%s7591 + $0x60] sm:$0xff]
        %v7605 = vld [vmem:[%s7591 + $0x68] sm:$0xff]
        %v7606 = vld [vmem:[%s7591 + $0x70] sm:$0xff]
        %v7607 = vld [vmem:[%s7591 + $0x78] sm:$0xff]
        %v7608 = vld [vmem:[%s7591 + $0x80] sm:$0xff]
        %v7609 = vld [vmem:[%s7591 + $0x88] sm:$0xff]
        %v7610 = vld [vmem:[%s7591 + $0x90] sm:$0xff]
        %v7611 = vld [vmem:[%s7591 + $0x98] sm:$0xff]
        %v7612 = vld [vmem:[%s7591 + $0xa0] sm:$0xff]
        %v7613 = vld [vmem:[%s7591 + $0xa8] sm:$0xff]
        %v7614 = vld [vmem:[%s7591 + $0xb0] sm:$0xff]
        %v7615 = vld [vmem:[%s7591 + $0xb8] sm:$0xff]
        %v7616 = vld [vmem:[%s7591 + $0xc0] sm:$0xff]
        %v7617 = vld [vmem:[%s7591 + $0xc8] sm:$0xff]
        %v7618 = vld [vmem:[%s7591 + $0xd0] sm:$0xff]
        %v7619 = vld [vmem:[%s7591 + $0xd8] sm:$0xff]
        %v7620 = vld [vmem:[%s7591 + $0xe0] sm:$0xff]
        %v7621 = vld [vmem:[%s7591 + $0xe8] sm:$0xff]
        %v7622 = vld [vmem:[%s7591 + $0xf0] sm:$0xff]
        %v7623 = vld [vmem:[%s7591 + $0xf8] sm:$0xff]
        %v7624 = vld [vmem:[%s7591 + $0x100] sm:$0xff]
        %v7625 = vld [vmem:[%s7591 + $0x108] sm:$0xff]
        %v7626 = vld [vmem:[%s7591 + $0x110] sm:$0xff]
        %v7627 = vld [vmem:[%s7591 + $0x118] sm:$0xff]
        %v7628 = vld [vmem:[%s7591 + $0x120] sm:$0xff]
        %v7629 = vld [vmem:[%s7591 + $0x128] sm:$0xff]
        %v7630 = vld [vmem:[%s7591 + $0x130] sm:$0xff]
        %v7631 = vld [vmem:[%s7591 + $0x138] sm:$0xff]
        %v7632 = vld [vmem:[%s7591 + $0x140] sm:$0xff]
        %v7633 = vld [vmem:[%s7591 + $0x148] sm:$0xff]
        %v7634 = vld [vmem:[%s7591 + $0x150] sm:$0xff]
        %v7635 = vld [vmem:[%s7591 + $0x158] sm:$0xff]
        %v7636 = vld [vmem:[%s7591 + $0x160] sm:$0xff]
        %v7637 = vld [vmem:[%s7591 + $0x168] sm:$0xff]
        %v7638 = vld [vmem:[%s7591 + $0x170] sm:$0xff]
        %v7639 = vld [vmem:[%s7591 + $0x178] sm:$0xff]
        %v7640 = vld [vmem:[%s7591 + $0x180] sm:$0xff]
        %v7641 = vld [vmem:[%s7591 + $0x188] sm:$0xff]
        %v7642 = vld [vmem:[%s7591 + $0x190] sm:$0xff]
        %v7643 = vld [vmem:[%s7591 + $0x198] sm:$0xff]
        %v7644 = vld [vmem:[%s7591 + $0x1a0] sm:$0xff]
        %v7645 = vld [vmem:[%s7591 + $0x1a8] sm:$0xff]
        %v7646 = vld [vmem:[%s7591 + $0x1b0] sm:$0xff]
        %v7647 = vld [vmem:[%s7591 + $0x1b8] sm:$0xff]
        %v7648 = vld [vmem:[%s7591 + $0x1c0] sm:$0xff]
        %v7649 = vld [vmem:[%s7591 + $0x1c8] sm:$0xff]
        %v7650 = vld [vmem:[%s7591 + $0x1d0] sm:$0xff]
        %v7651 = vld [vmem:[%s7591 + $0x1d8] sm:$0xff]
        %v7652 = vld [vmem:[%s7591 + $0x1e0] sm:$0xff]
        %v7653 = vld [vmem:[%s7591 + $0x1e8] sm:$0xff]
        %v7654 = vld [vmem:[%s7591 + $0x1f0] sm:$0xff]
        %v7655 = vld [vmem:[%s7591 + $0x1f8] sm:$0xff]
        %s7656 = scalar_lea.vmem %s4, 1536
        %v7657 = vld [vmem:[%s7656] sm:$0xff]
        %v7658 = vld [vmem:[%s7656 + $0x8] sm:$0xff]
        %v7659 = vld [vmem:[%s7656 + $0x10] sm:$0xff]
        %v7660 = vld [vmem:[%s7656 + $0x18] sm:$0xff]
        %v7661 = vld [vmem:[%s7656 + $0x20] sm:$0xff]
        %v7662 = vld [vmem:[%s7656 + $0x28] sm:$0xff]
        %v7663 = vld [vmem:[%s7656 + $0x30] sm:$0xff]
        %v7664 = vld [vmem:[%s7656 + $0x38] sm:$0xff]
        %v7665 = vld [vmem:[%s7656 + $0x40] sm:$0xff]
        %v7666 = vld [vmem:[%s7656 + $0x48] sm:$0xff]
        %v7667 = vld [vmem:[%s7656 + $0x50] sm:$0xff]
        %v7668 = vld [vmem:[%s7656 + $0x58] sm:$0xff]
        %v7669 = vld [vmem:[%s7656 + $0x60] sm:$0xff]
        %v7670 = vld [vmem:[%s7656 + $0x68] sm:$0xff]
        %v7671 = vld [vmem:[%s7656 + $0x70] sm:$0xff]
        %v7672 = vld [vmem:[%s7656 + $0x78] sm:$0xff]
        %v7673 = vld [vmem:[%s7656 + $0x80] sm:$0xff]
        %v7674 = vld [vmem:[%s7656 + $0x88] sm:$0xff]
        %v7675 = vld [vmem:[%s7656 + $0x90] sm:$0xff]
        %v7676 = vld [vmem:[%s7656 + $0x98] sm:$0xff]
        %v7677 = vld [vmem:[%s7656 + $0xa0] sm:$0xff]
        %v7678 = vld [vmem:[%s7656 + $0xa8] sm:$0xff]
        %v7679 = vld [vmem:[%s7656 + $0xb0] sm:$0xff]
        %v7680 = vld [vmem:[%s7656 + $0xb8] sm:$0xff]
        %v7681 = vld [vmem:[%s7656 + $0xc0] sm:$0xff]
        %v7682 = vld [vmem:[%s7656 + $0xc8] sm:$0xff]
        %v7683 = vld [vmem:[%s7656 + $0xd0] sm:$0xff]
        %v7684 = vld [vmem:[%s7656 + $0xd8] sm:$0xff]
        %v7685 = vld [vmem:[%s7656 + $0xe0] sm:$0xff]
        %v7686 = vld [vmem:[%s7656 + $0xe8] sm:$0xff]
        %v7687 = vld [vmem:[%s7656 + $0xf0] sm:$0xff]
        %v7688 = vld [vmem:[%s7656 + $0xf8] sm:$0xff]
        %v7689 = vld [vmem:[%s7656 + $0x100] sm:$0xff]
        %v7690 = vld [vmem:[%s7656 + $0x108] sm:$0xff]
        %v7691 = vld [vmem:[%s7656 + $0x110] sm:$0xff]
        %v7692 = vld [vmem:[%s7656 + $0x118] sm:$0xff]
        %v7693 = vld [vmem:[%s7656 + $0x120] sm:$0xff]
        %v7694 = vld [vmem:[%s7656 + $0x128] sm:$0xff]
        %v7695 = vld [vmem:[%s7656 + $0x130] sm:$0xff]
        %v7696 = vld [vmem:[%s7656 + $0x138] sm:$0xff]
        %v7697 = vld [vmem:[%s7656 + $0x140] sm:$0xff]
        %v7698 = vld [vmem:[%s7656 + $0x148] sm:$0xff]
        %v7699 = vld [vmem:[%s7656 + $0x150] sm:$0xff]
        %v7700 = vld [vmem:[%s7656 + $0x158] sm:$0xff]
        %v7701 = vld [vmem:[%s7656 + $0x160] sm:$0xff]
        %v7702 = vld [vmem:[%s7656 + $0x168] sm:$0xff]
        %v7703 = vld [vmem:[%s7656 + $0x170] sm:$0xff]
        %v7704 = vld [vmem:[%s7656 + $0x178] sm:$0xff]
        %v7705 = vld [vmem:[%s7656 + $0x180] sm:$0xff]
        %v7706 = vld [vmem:[%s7656 + $0x188] sm:$0xff]
        %v7707 = vld [vmem:[%s7656 + $0x190] sm:$0xff]
        %v7708 = vld [vmem:[%s7656 + $0x198] sm:$0xff]
        %v7709 = vld [vmem:[%s7656 + $0x1a0] sm:$0xff]
        %v7710 = vld [vmem:[%s7656 + $0x1a8] sm:$0xff]
        %v7711 = vld [vmem:[%s7656 + $0x1b0] sm:$0xff]
        %v7712 = vld [vmem:[%s7656 + $0x1b8] sm:$0xff]
        %v7713 = vld [vmem:[%s7656 + $0x1c0] sm:$0xff]
        %v7714 = vld [vmem:[%s7656 + $0x1c8] sm:$0xff]
        %v7715 = vld [vmem:[%s7656 + $0x1d0] sm:$0xff]
        %v7716 = vld [vmem:[%s7656 + $0x1d8] sm:$0xff]
        %v7717 = vld [vmem:[%s7656 + $0x1e0] sm:$0xff]
        %v7718 = vld [vmem:[%s7656 + $0x1e8] sm:$0xff]
        %v7719 = vld [vmem:[%s7656 + $0x1f0] sm:$0xff]
        %v7720 = vld [vmem:[%s7656 + $0x1f8] sm:$0xff]
        %7721 = vmatprep.subr.mxu0 0.0
        %7722 = vmatpush1.msra.mxu0 %v7548
        %7723 = vmatprep.subr.mxu0 0.0
        %7724 = vmatpush1.msra.mxu0 %v7549
        %7725 = vmatprep.subr.mxu0 0.0
        %7726 = vmatpush1.msra.mxu0 %v7550
        %7727 = vmatprep.subr.mxu0 0.0
        %7728 = vmatpush1.msra.mxu0 %v7551
        %7729 = vmatprep.subr.mxu0 0.0
        %7730 = vmatpush1.msra.mxu0 %v7552
        %7731 = vmatprep.subr.mxu0 0.0
        %7732 = vmatpush1.msra.mxu0 %v7553
        %7733 = vmatprep.subr.mxu0 0.0
        %7734 = vmatpush1.msra.mxu0 %v7554
        %7735 = vmatprep.subr.mxu0 0.0
        %7736 = vmatpush1.msra.mxu0 %v7555
        %7737 = vmatprep.subr.mxu0 0.0
        %7738 = vmatpush1.msra.mxu0 %v7556
        %7739 = vmatprep.subr.mxu0 0.0
        %7740 = vmatpush1.msra.mxu0 %v7557
        %7741 = vmatprep.subr.mxu0 0.0
        %7742 = vmatpush1.msra.mxu0 %v7558
        %7743 = vmatprep.subr.mxu0 0.0
        %7744 = vmatpush1.msra.mxu0 %v7559
        %7745 = vmatprep.subr.mxu0 0.0
        %7746 = vmatpush1.msra.mxu0 %v7560
        %7747 = vmatprep.subr.mxu0 0.0
        %7748 = vmatpush1.msra.mxu0 %v7561
        %7749 = vmatprep.subr.mxu0 0.0
        %7750 = vmatpush1.msra.mxu0 %v7562
        %7751 = vmatprep.subr.mxu0 0.0
        %7752 = vmatpush1.msra.mxu0 %v7563
        %7753 = vmatprep.subr.mxu0 0.0
        %7754 = vmatpush1.msra.mxu0 %v7564
        %7755 = vmatprep.subr.mxu0 0.0
        %7756 = vmatpush1.msra.mxu0 %v7565
        %7757 = vmatprep.subr.mxu0 0.0
        %7758 = vmatpush1.msra.mxu0 %v7566
        %7759 = vmatprep.subr.mxu0 0.0
        %7760 = vmatpush1.msra.mxu0 %v7567
        %7761 = vmatprep.subr.mxu0 0.0
        %7762 = vmatpush1.msra.mxu0 %v7568
        %7763 = vmatprep.subr.mxu0 0.0
        %7764 = vmatpush1.msra.mxu0 %v7569
        %7765 = vmatprep.subr.mxu0 0.0
        %7766 = vmatpush1.msra.mxu0 %v7570
        %7767 = vmatprep.subr.mxu0 0.0
        %7768 = vmatpush1.msra.mxu0 %v7571
        %7769 = vmatprep.subr.mxu0 0.0
        %7770 = vmatpush1.msra.mxu0 %v7572
        %7771 = vmatprep.subr.mxu0 0.0
        %7772 = vmatpush1.msra.mxu0 %v7573
        %7773 = vmatprep.subr.mxu0 0.0
        %7774 = vmatpush1.msra.mxu0 %v7574
        %7775 = vmatprep.subr.mxu0 0.0
        %7776 = vmatpush1.msra.mxu0 %v7575
        %7777 = vmatprep.subr.mxu0 0.0
        %7778 = vmatpush1.msra.mxu0 %v7576
        %7779 = vmatprep.subr.mxu0 0.0
        %7780 = vmatpush1.msra.mxu0 %v7577
        %7781 = vmatprep.subr.mxu0 0.0
        %7782 = vmatpush1.msra.mxu0 %v7578
        %7783 = vmatprep.subr.mxu0 0.0
        %7784 = vmatpush1.msra.mxu0 %v7579
        %7785 = vmatprep.mubr.f32.mxu0 %v245
        %7786 = vmatmul.mubr.f32.gmra.mrb[0].mxu0 %v243
        %v7787 = vpop.f32.mrb[0].mxu0
        %v7788 = vadd.f32 0.0, %v7787
        %v7789 = vpop.f32.mrb[0].mxu0
        %7790 = vdwg.mxu0
        %7792 = vset.pattern.permute.xlu0 0
        %7793 = vperm.xlu0 %7792, %v7657
        %v7794 = vpop.permute.xlu0 %7793
        %7797 = vset.pattern.permute.xlu0 0
        %7798 = vperm.xlu0 %7797, %v7658
        %v7799 = vpop.permute.xlu0 %7798
        %7802 = vset.pattern.permute.xlu0 0
        %7803 = vperm.xlu0 %7802, %v7659
        %v7804 = vpop.permute.xlu0 %7803
        %7807 = vset.pattern.permute.xlu0 0
        %7808 = vperm.xlu0 %7807, %v7660
        %v7809 = vpop.permute.xlu0 %7808
        %7812 = vset.pattern.permute.xlu0 0
        %7813 = vperm.xlu0 %7812, %v7661
        %v7814 = vpop.permute.xlu0 %7813
        %7817 = vset.pattern.permute.xlu0 0
        %7818 = vperm.xlu0 %7817, %v7662
        %v7819 = vpop.permute.xlu0 %7818
        %7822 = vset.pattern.permute.xlu0 0
        %7823 = vperm.xlu0 %7822, %v7663
        %v7824 = vpop.permute.xlu0 %7823
        %7827 = vset.pattern.permute.xlu0 0
        %7828 = vperm.xlu0 %7827, %v7664
        %v7829 = vpop.permute.xlu0 %7828
        %7832 = vset.pattern.permute.xlu0 0
        %7833 = vperm.xlu0 %7832, %v7665
        %v7834 = vpop.permute.xlu0 %7833
        %7837 = vset.pattern.permute.xlu0 0
        %7838 = vperm.xlu0 %7837, %v7666
        %v7839 = vpop.permute.xlu0 %7838
        %7842 = vset.pattern.permute.xlu0 0
        %7843 = vperm.xlu0 %7842, %v7667
        %v7844 = vpop.permute.xlu0 %7843
        %7847 = vset.pattern.permute.xlu0 0
        %7848 = vperm.xlu0 %7847, %v7668
        %v7849 = vpop.permute.xlu0 %7848
        %7852 = vset.pattern.permute.xlu0 0
        %7853 = vperm.xlu0 %7852, %v7669
        %v7854 = vpop.permute.xlu0 %7853
        %7857 = vset.pattern.permute.xlu0 0
        %7858 = vperm.xlu0 %7857, %v7670
        %v7859 = vpop.permute.xlu0 %7858
        %7862 = vset.pattern.permute.xlu0 0
        %7863 = vperm.xlu0 %7862, %v7671
        %v7864 = vpop.permute.xlu0 %7863
        %7867 = vset.pattern.permute.xlu0 0
        %7868 = vperm.xlu0 %7867, %v7672
        %v7869 = vpop.permute.xlu0 %7868
        %7872 = vset.pattern.permute.xlu0 0
        %7873 = vperm.xlu0 %7872, %v7673
        %v7874 = vpop.permute.xlu0 %7873
        %7877 = vset.pattern.permute.xlu0 0
        %7878 = vperm.xlu0 %7877, %v7674
        %v7879 = vpop.permute.xlu0 %7878
        %7882 = vset.pattern.permute.xlu0 0
        %7883 = vperm.xlu0 %7882, %v7675
        %v7884 = vpop.permute.xlu0 %7883
        %7887 = vset.pattern.permute.xlu0 0
        %7888 = vperm.xlu0 %7887, %v7676
        %v7889 = vpop.permute.xlu0 %7888
        %7892 = vset.pattern.permute.xlu0 0
        %7893 = vperm.xlu0 %7892, %v7677
        %v7894 = vpop.permute.xlu0 %7893
        %7897 = vset.pattern.permute.xlu0 0
        %7898 = vperm.xlu0 %7897, %v7678
        %v7899 = vpop.permute.xlu0 %7898
        %7902 = vset.pattern.permute.xlu0 0
        %7903 = vperm.xlu0 %7902, %v7679
        %v7904 = vpop.permute.xlu0 %7903
        %7907 = vset.pattern.permute.xlu0 0
        %7908 = vperm.xlu0 %7907, %v7680
        %v7909 = vpop.permute.xlu0 %7908
        %7912 = vset.pattern.permute.xlu0 0
        %7913 = vperm.xlu0 %7912, %v7681
        %v7914 = vpop.permute.xlu0 %7913
        %7917 = vset.pattern.permute.xlu0 0
        %7918 = vperm.xlu0 %7917, %v7682
        %v7919 = vpop.permute.xlu0 %7918
        %7922 = vset.pattern.permute.xlu0 0
        %7923 = vperm.xlu0 %7922, %v7683
        %v7924 = vpop.permute.xlu0 %7923
        %7927 = vset.pattern.permute.xlu0 0
        %7928 = vperm.xlu0 %7927, %v7684
        %v7929 = vpop.permute.xlu0 %7928
        %7932 = vset.pattern.permute.xlu0 0
        %7933 = vperm.xlu0 %7932, %v7685
        %v7934 = vpop.permute.xlu0 %7933
        %7937 = vset.pattern.permute.xlu0 0
        %7938 = vperm.xlu0 %7937, %v7686
        %v7939 = vpop.permute.xlu0 %7938
        %7942 = vset.pattern.permute.xlu0 0
        %7943 = vperm.xlu0 %7942, %v7687
        %v7944 = vpop.permute.xlu0 %7943
        %7947 = vset.pattern.permute.xlu0 0
        %7948 = vperm.xlu0 %7947, %v7688
        %v7949 = vpop.permute.xlu0 %7948
        %7952 = vset.pattern.permute.xlu0 0
        %7953 = vperm.xlu0 %7952, %v7689
        %v7954 = vpop.permute.xlu0 %7953
        %7957 = vset.pattern.permute.xlu0 0
        %7958 = vperm.xlu0 %7957, %v7690
        %v7959 = vpop.permute.xlu0 %7958
        %7962 = vset.pattern.permute.xlu0 0
        %7963 = vperm.xlu0 %7962, %v7691
        %v7964 = vpop.permute.xlu0 %7963
        %7967 = vset.pattern.permute.xlu0 0
        %7968 = vperm.xlu0 %7967, %v7692
        %v7969 = vpop.permute.xlu0 %7968
        %7972 = vset.pattern.permute.xlu0 0
        %7973 = vperm.xlu0 %7972, %v7693
        %v7974 = vpop.permute.xlu0 %7973
        %7977 = vset.pattern.permute.xlu0 0
        %7978 = vperm.xlu0 %7977, %v7694
        %v7979 = vpop.permute.xlu0 %7978
        %7982 = vset.pattern.permute.xlu0 0
        %7983 = vperm.xlu0 %7982, %v7695
        %v7984 = vpop.permute.xlu0 %7983
        %7987 = vset.pattern.permute.xlu0 0
        %7988 = vperm.xlu0 %7987, %v7696
        %v7989 = vpop.permute.xlu0 %7988
        %7992 = vset.pattern.permute.xlu0 0
        %7993 = vperm.xlu0 %7992, %v7697
        %v7994 = vpop.permute.xlu0 %7993
        %7997 = vset.pattern.permute.xlu0 0
        %7998 = vperm.xlu0 %7997, %v7698
        %v7999 = vpop.permute.xlu0 %7998
        %8002 = vset.pattern.permute.xlu0 0
        %8003 = vperm.xlu0 %8002, %v7699
        %v8004 = vpop.permute.xlu0 %8003
        %8007 = vset.pattern.permute.xlu0 0
        %8008 = vperm.xlu0 %8007, %v7700
        %v8009 = vpop.permute.xlu0 %8008
        %8012 = vset.pattern.permute.xlu0 0
        %8013 = vperm.xlu0 %8012, %v7701
        %v8014 = vpop.permute.xlu0 %8013
        %8017 = vset.pattern.permute.xlu0 0
        %8018 = vperm.xlu0 %8017, %v7702
        %v8019 = vpop.permute.xlu0 %8018
        %8022 = vset.pattern.permute.xlu0 0
        %8023 = vperm.xlu0 %8022, %v7703
        %v8024 = vpop.permute.xlu0 %8023
        %8027 = vset.pattern.permute.xlu0 0
        %8028 = vperm.xlu0 %8027, %v7704
        %v8029 = vpop.permute.xlu0 %8028
        %8032 = vset.pattern.permute.xlu0 0
        %8033 = vperm.xlu0 %8032, %v7705
        %v8034 = vpop.permute.xlu0 %8033
        %8037 = vset.pattern.permute.xlu0 0
        %8038 = vperm.xlu0 %8037, %v7706
        %v8039 = vpop.permute.xlu0 %8038
        %8042 = vset.pattern.permute.xlu0 0
        %8043 = vperm.xlu0 %8042, %v7707
        %v8044 = vpop.permute.xlu0 %8043
        %8047 = vset.pattern.permute.xlu0 0
        %8048 = vperm.xlu0 %8047, %v7708
        %v8049 = vpop.permute.xlu0 %8048
        %8052 = vset.pattern.permute.xlu0 0
        %8053 = vperm.xlu0 %8052, %v7709
        %v8054 = vpop.permute.xlu0 %8053
        %8057 = vset.pattern.permute.xlu0 0
        %8058 = vperm.xlu0 %8057, %v7710
        %v8059 = vpop.permute.xlu0 %8058
        %8062 = vset.pattern.permute.xlu0 0
        %8063 = vperm.xlu0 %8062, %v7711
        %v8064 = vpop.permute.xlu0 %8063
        %8067 = vset.pattern.permute.xlu0 0
        %8068 = vperm.xlu0 %8067, %v7712
        %v8069 = vpop.permute.xlu0 %8068
        %8072 = vset.pattern.permute.xlu0 0
        %8073 = vperm.xlu0 %8072, %v7713
        %v8074 = vpop.permute.xlu0 %8073
        %8077 = vset.pattern.permute.xlu0 0
        %8078 = vperm.xlu0 %8077, %v7714
        %v8079 = vpop.permute.xlu0 %8078
        %8082 = vset.pattern.permute.xlu0 0
        %8083 = vperm.xlu0 %8082, %v7715
        %v8084 = vpop.permute.xlu0 %8083
        %8087 = vset.pattern.permute.xlu0 0
        %8088 = vperm.xlu0 %8087, %v7716
        %v8089 = vpop.permute.xlu0 %8088
        %8092 = vset.pattern.permute.xlu0 0
        %8093 = vperm.xlu0 %8092, %v7717
        %v8094 = vpop.permute.xlu0 %8093
        %8097 = vset.pattern.permute.xlu0 0
        %8098 = vperm.xlu0 %8097, %v7718
        %v8099 = vpop.permute.xlu0 %8098
        %8102 = vset.pattern.permute.xlu0 0
        %8103 = vperm.xlu0 %8102, %v7719
        %v8104 = vpop.permute.xlu0 %8103
        %8107 = vset.pattern.permute.xlu0 0
        %8108 = vperm.xlu0 %8107, %v7720
        %v8109 = vpop.permute.xlu0 %8108
        %v8112 = vsel %vm809, %v7592, 0
        %v8115 = vsel %vm809, %v7593, 0
        %v8118 = vsel %vm809, %v7594, 0
        %v8121 = vsel %vm809, %v7595, 0
        %v8124 = vsel %vm809, %v7596, 0
        %v8127 = vsel %vm809, %v7597, 0
        %v8130 = vsel %vm809, %v7598, 0
        %v8133 = vsel %vm809, %v7599, 0
        %v8136 = vsel %vm809, %v7600, 0
        %v8139 = vsel %vm809, %v7601, 0
        %v8142 = vsel %vm809, %v7602, 0
        %v8145 = vsel %vm809, %v7603, 0
        %v8148 = vsel %vm809, %v7604, 0
        %v8151 = vsel %vm809, %v7605, 0
        %v8154 = vsel %vm809, %v7606, 0
        %v8157 = vsel %vm809, %v7607, 0
        %v8160 = vsel %vm809, %v7608, 0
        %v8163 = vsel %vm809, %v7609, 0
        %v8166 = vsel %vm809, %v7610, 0
        %v8169 = vsel %vm809, %v7611, 0
        %v8172 = vsel %vm809, %v7612, 0
        %v8175 = vsel %vm809, %v7613, 0
        %v8178 = vsel %vm809, %v7614, 0
        %v8181 = vsel %vm809, %v7615, 0
        %v8184 = vsel %vm809, %v7616, 0
        %v8187 = vsel %vm809, %v7617, 0
        %v8190 = vsel %vm809, %v7618, 0
        %v8193 = vsel %vm809, %v7619, 0
        %v8196 = vsel %vm809, %v7620, 0
        %v8199 = vsel %vm809, %v7621, 0
        %v8202 = vsel %vm809, %v7622, 0
        %v8205 = vsel %vm809, %v7623, 0
        %v8208 = vsel %vm809, %v7624, 0
        %v8211 = vsel %vm809, %v7625, 0
        %v8214 = vsel %vm809, %v7626, 0
        %v8217 = vsel %vm809, %v7627, 0
        %v8220 = vsel %vm809, %v7628, 0
        %v8223 = vsel %vm809, %v7629, 0
        %v8226 = vsel %vm809, %v7630, 0
        %v8229 = vsel %vm809, %v7631, 0
        %v8232 = vsel %vm809, %v7632, 0
        %v8235 = vsel %vm809, %v7633, 0
        %v8238 = vsel %vm809, %v7634, 0
        %v8241 = vsel %vm809, %v7635, 0
        %v8244 = vsel %vm809, %v7636, 0
        %v8247 = vsel %vm809, %v7637, 0
        %v8250 = vsel %vm809, %v7638, 0
        %v8253 = vsel %vm809, %v7639, 0
        %v8256 = vsel %vm809, %v7640, 0
        %v8259 = vsel %vm809, %v7641, 0
        %v8262 = vsel %vm809, %v7642, 0
        %v8265 = vsel %vm809, %v7643, 0
        %v8268 = vsel %vm809, %v7644, 0
        %v8271 = vsel %vm809, %v7645, 0
        %v8274 = vsel %vm809, %v7646, 0
        %v8277 = vsel %vm809, %v7647, 0
        %v8280 = vsel %vm809, %v7648, 0
        %v8283 = vsel %vm809, %v7649, 0
        %v8286 = vsel %vm809, %v7650, 0
        %v8289 = vsel %vm809, %v7651, 0
        %v8292 = vsel %vm809, %v7652, 0
        %v8295 = vsel %vm809, %v7653, 0
        %v8298 = vsel %vm809, %v7654, 0
        %v8301 = vsel %vm809, %v7655, 0
        %v8304 = vsel %vm1002, %v7788, 0
        %8306 = vmatprep.subr.mxu0 0.0
        %8307 = vmatpush1.msra.mxu0 %v8304
        %8308 = vmatprep.subr.mxu0 0.0
        %8309 = vmatpush1.msra.mxu0 0.0
        %8310 = vmatprep.subr.mxu0 0.0
        %8311 = vmatpush1.msra.mxu0 0.0
        %8312 = vmatprep.subr.mxu0 0.0
        %8313 = vmatpush1.msra.mxu0 0.0
        %8314 = vmatprep.subr.mxu0 0.0
        %8315 = vmatpush1.msra.mxu0 0.0
        %8316 = vmatprep.subr.mxu0 0.0
        %8317 = vmatpush1.msra.mxu0 0.0
        %8318 = vmatprep.subr.mxu0 0.0
        %8319 = vmatpush1.msra.mxu0 0.0
        %8320 = vmatprep.subr.mxu0 0.0
        %8321 = vmatpush1.msra.mxu0 0.0
        %8322 = vmatprep.subr.mxu0 0.0
        %8323 = vmatpush1.msra.mxu0 0.0
        %8324 = vmatprep.subr.mxu0 0.0
        %8325 = vmatpush1.msra.mxu0 0.0
        %8326 = vmatprep.subr.mxu0 0.0
        %8327 = vmatpush1.msra.mxu0 0.0
        %8328 = vmatprep.subr.mxu0 0.0
        %8329 = vmatpush1.msra.mxu0 0.0
        %8330 = vmatprep.subr.mxu0 0.0
        %8331 = vmatpush1.msra.mxu0 0.0
        %8332 = vmatprep.subr.mxu0 0.0
        %8333 = vmatpush1.msra.mxu0 0.0
        %8334 = vmatprep.subr.mxu0 0.0
        %8335 = vmatpush1.msra.mxu0 0.0
        %8336 = vmatprep.subr.mxu0 0.0
        %8337 = vmatpush1.msra.mxu0 0.0
        %8338 = vmatprep.subr.mxu0 0.0
        %8339 = vmatpush1.msra.mxu0 0.0
        %8340 = vmatprep.subr.mxu0 0.0
        %8341 = vmatpush1.msra.mxu0 0.0
        %8342 = vmatprep.subr.mxu0 0.0
        %8343 = vmatpush1.msra.mxu0 0.0
        %8344 = vmatprep.subr.mxu0 0.0
        %8345 = vmatpush1.msra.mxu0 0.0
        %8346 = vmatprep.subr.mxu0 0.0
        %8347 = vmatpush1.msra.mxu0 0.0
        %8348 = vmatprep.subr.mxu0 0.0
        %8349 = vmatpush1.msra.mxu0 0.0
        %8350 = vmatprep.subr.mxu0 0.0
        %8351 = vmatpush1.msra.mxu0 0.0
        %8352 = vmatprep.subr.mxu0 0.0
        %8353 = vmatpush1.msra.mxu0 0.0
        %8354 = vmatprep.subr.mxu0 0.0
        %8355 = vmatpush1.msra.mxu0 0.0
        %8356 = vmatprep.subr.mxu0 0.0
        %8357 = vmatpush1.msra.mxu0 0.0
        %8358 = vmatprep.subr.mxu0 0.0
        %8359 = vmatpush1.msra.mxu0 0.0
        %8360 = vmatprep.subr.mxu0 0.0
        %8361 = vmatpush1.msra.mxu0 0.0
        %8362 = vmatprep.subr.mxu0 0.0
        %8363 = vmatpush1.msra.mxu0 0.0
        %8364 = vmatprep.subr.mxu0 0.0
        %8365 = vmatpush1.msra.mxu0 0.0
        %8366 = vmatprep.subr.mxu0 0.0
        %8367 = vmatpush1.msra.mxu0 0.0
        %8368 = vmatprep.subr.mxu0 0.0
        %8369 = vmatpush1.msra.mxu0 0.0
        %8370 = vmatprep.mubr.f32.mxu0 0.0
        %8371 = vmatmul.mubr.f32.gmra.mrb[0].mxu0 %v8112
        %v8372 = vpop.f32.mrb[0].mxu0
        %v8373 = vadd.f32 %v7794, %v8372
        %v8374 = vpop.f32.mrb[0].mxu0
        %8375 = vmatprep.mubr.f32.mxu0 0.0
        %8376 = vmatmul.mubr.f32.gmra.mrb[0].mxu0 %v8115
        %v8377 = vpop.f32.mrb[0].mxu0
        %v8378 = vadd.f32 %v7799, %v8377
        %v8379 = vpop.f32.mrb[0].mxu0
        %8380 = vmatprep.mubr.f32.mxu0 0.0
        %8381 = vmatmul.mubr.f32.gmra.mrb[0].mxu0 %v8118
        %v8382 = vpop.f32.mrb[0].mxu0
        %v8383 = vadd.f32 %v7804, %v8382
        %v8384 = vpop.f32.mrb[0].mxu0
        %8385 = vmatprep.mubr.f32.mxu0 0.0
        %8386 = vmatmul.mubr.f32.gmra.mrb[0].mxu0 %v8121
        %v8387 = vpop.f32.mrb[0].mxu0
        %v8388 = vadd.f32 %v7809, %v8387
        %v8389 = vpop.f32.mrb[0].mxu0
        %8390 = vmatprep.mubr.f32.mxu0 0.0
        %8391 = vmatmul.mubr.f32.gmra.mrb[0].mxu0 %v8124
        %v8392 = vpop.f32.mrb[0].mxu0
        %v8393 = vadd.f32 %v7814, %v8392
        %v8394 = vpop.f32.mrb[0].mxu0
        %8395 = vmatprep.mubr.f32.mxu0 0.0
        %8396 = vmatmul.mubr.f32.gmra.mrb[0].mxu0 %v8127
        %v8397 = vpop.f32.mrb[0].mxu0
        %v8398 = vadd.f32 %v7819, %v8397
        %v8399 = vpop.f32.mrb[0].mxu0
        %8400 = vmatprep.mubr.f32.mxu0 0.0
        %8401 = vmatmul.mubr.f32.gmra.mrb[0].mxu0 %v8130
        %v8402 = vpop.f32.mrb[0].mxu0
        %v8403 = vadd.f32 %v7824, %v8402
        %v8404 = vpop.f32.mrb[0].mxu0
        %8405 = vmatprep.mubr.f32.mxu0 0.0
        %8406 = vmatmul.mubr.f32.gmra.mrb[0].mxu0 %v8133
        %v8407 = vpop.f32.mrb[0].mxu0
        %v8408 = vadd.f32 %v7829, %v8407
        %v8409 = vpop.f32.mrb[0].mxu0
        %8410 = vmatprep.mubr.f32.mxu0 0.0
        %8411 = vmatmul.mubr.f32.gmra.mrb[0].mxu0 %v8136
        %v8412 = vpop.f32.mrb[0].mxu0
        %v8413 = vadd.f32 %v7834, %v8412
        %v8414 = vpop.f32.mrb[0].mxu0
        %8415 = vmatprep.mubr.f32.mxu0 0.0
        %8416 = vmatmul.mubr.f32.gmra.mrb[0].mxu0 %v8139
        %v8417 = vpop.f32.mrb[0].mxu0
        %v8418 = vadd.f32 %v7839, %v8417
        %v8419 = vpop.f32.mrb[0].mxu0
        %8420 = vmatprep.mubr.f32.mxu0 0.0
        %8421 = vmatmul.mubr.f32.gmra.mrb[0].mxu0 %v8142
        %v8422 = vpop.f32.mrb[0].mxu0
        %v8423 = vadd.f32 %v7844, %v8422
        %v8424 = vpop.f32.mrb[0].mxu0
        %8425 = vmatprep.mubr.f32.mxu0 0.0
        %8426 = vmatmul.mubr.f32.gmra.mrb[0].mxu0 %v8145
        %v8427 = vpop.f32.mrb[0].mxu0
        %v8428 = vadd.f32 %v7849, %v8427
        %v8429 = vpop.f32.mrb[0].mxu0
        %8430 = vmatprep.mubr.f32.mxu0 0.0
        %8431 = vmatmul.mubr.f32.gmra.mrb[0].mxu0 %v8148
        %v8432 = vpop.f32.mrb[0].mxu0
        %v8433 = vadd.f32 %v7854, %v8432
        %v8434 = vpop.f32.mrb[0].mxu0
        %8435 = vmatprep.mubr.f32.mxu0 0.0
        %8436 = vmatmul.mubr.f32.gmra.mrb[0].mxu0 %v8151
        %v8437 = vpop.f32.mrb[0].mxu0
        %v8438 = vadd.f32 %v7859, %v8437
        %v8439 = vpop.f32.mrb[0].mxu0
        %8440 = vmatprep.mubr.f32.mxu0 0.0
        %8441 = vmatmul.mubr.f32.gmra.mrb[0].mxu0 %v8154
        %v8442 = vpop.f32.mrb[0].mxu0
        %v8443 = vadd.f32 %v7864, %v8442
        %v8444 = vpop.f32.mrb[0].mxu0
        %8445 = vmatprep.mubr.f32.mxu0 0.0
        %8446 = vmatmul.mubr.f32.gmra.mrb[0].mxu0 %v8157
        %v8447 = vpop.f32.mrb[0].mxu0
        %v8448 = vadd.f32 %v7869, %v8447
        %v8449 = vpop.f32.mrb[0].mxu0
        %8450 = vmatprep.mubr.f32.mxu0 0.0
        %8451 = vmatmul.mubr.f32.gmra.mrb[0].mxu0 %v8160
        %v8452 = vpop.f32.mrb[0].mxu0
        %v8453 = vadd.f32 %v7874, %v8452
        %v8454 = vpop.f32.mrb[0].mxu0
        %8455 = vmatprep.mubr.f32.mxu0 0.0
        %8456 = vmatmul.mubr.f32.gmra.mrb[0].mxu0 %v8163
        %v8457 = vpop.f32.mrb[0].mxu0
        %v8458 = vadd.f32 %v7879, %v8457
        %v8459 = vpop.f32.mrb[0].mxu0
        %8460 = vmatprep.mubr.f32.mxu0 0.0
        %8461 = vmatmul.mubr.f32.gmra.mrb[0].mxu0 %v8166
        %v8462 = vpop.f32.mrb[0].mxu0
        %v8463 = vadd.f32 %v7884, %v8462
        %v8464 = vpop.f32.mrb[0].mxu0
        %8465 = vmatprep.mubr.f32.mxu0 0.0
        %8466 = vmatmul.mubr.f32.gmra.mrb[0].mxu0 %v8169
        %v8467 = vpop.f32.mrb[0].mxu0
        %v8468 = vadd.f32 %v7889, %v8467
        %v8469 = vpop.f32.mrb[0].mxu0
        %8470 = vmatprep.mubr.f32.mxu0 0.0
        %8471 = vmatmul.mubr.f32.gmra.mrb[0].mxu0 %v8172
        %v8472 = vpop.f32.mrb[0].mxu0
        %v8473 = vadd.f32 %v7894, %v8472
        %v8474 = vpop.f32.mrb[0].mxu0
        %8475 = vmatprep.mubr.f32.mxu0 0.0
        %8476 = vmatmul.mubr.f32.gmra.mrb[0].mxu0 %v8175
        %v8477 = vpop.f32.mrb[0].mxu0
        %v8478 = vadd.f32 %v7899, %v8477
        %v8479 = vpop.f32.mrb[0].mxu0
        %8480 = vmatprep.mubr.f32.mxu0 0.0
        %8481 = vmatmul.mubr.f32.gmra.mrb[0].mxu0 %v8178
        %v8482 = vpop.f32.mrb[0].mxu0
        %v8483 = vadd.f32 %v7904, %v8482
        %v8484 = vpop.f32.mrb[0].mxu0
        %8485 = vmatprep.mubr.f32.mxu0 0.0
        %8486 = vmatmul.mubr.f32.gmra.mrb[0].mxu0 %v8181
        %v8487 = vpop.f32.mrb[0].mxu0
        %v8488 = vadd.f32 %v7909, %v8487
        %v8489 = vpop.f32.mrb[0].mxu0
        %8490 = vmatprep.mubr.f32.mxu0 0.0
        %8491 = vmatmul.mubr.f32.gmra.mrb[0].mxu0 %v8184
        %v8492 = vpop.f32.mrb[0].mxu0
        %v8493 = vadd.f32 %v7914, %v8492
        %v8494 = vpop.f32.mrb[0].mxu0
        %8495 = vmatprep.mubr.f32.mxu0 0.0
        %8496 = vmatmul.mubr.f32.gmra.mrb[0].mxu0 %v8187
        %v8497 = vpop.f32.mrb[0].mxu0
        %v8498 = vadd.f32 %v7919, %v8497
        %v8499 = vpop.f32.mrb[0].mxu0
        %8500 = vmatprep.mubr.f32.mxu0 0.0
        %8501 = vmatmul.mubr.f32.gmra.mrb[0].mxu0 %v8190
        %v8502 = vpop.f32.mrb[0].mxu0
        %v8503 = vadd.f32 %v7924, %v8502
        %v8504 = vpop.f32.mrb[0].mxu0
        %8505 = vmatprep.mubr.f32.mxu0 0.0
        %8506 = vmatmul.mubr.f32.gmra.mrb[0].mxu0 %v8193
        %v8507 = vpop.f32.mrb[0].mxu0
        %v8508 = vadd.f32 %v7929, %v8507
        %v8509 = vpop.f32.mrb[0].mxu0
        %8510 = vmatprep.mubr.f32.mxu0 0.0
        %8511 = vmatmul.mubr.f32.gmra.mrb[0].mxu0 %v8196
        %v8512 = vpop.f32.mrb[0].mxu0
        %v8513 = vadd.f32 %v7934, %v8512
        %v8514 = vpop.f32.mrb[0].mxu0
        %8515 = vmatprep.mubr.f32.mxu0 0.0
        %8516 = vmatmul.mubr.f32.gmra.mrb[0].mxu0 %v8199
        %v8517 = vpop.f32.mrb[0].mxu0
        %v8518 = vadd.f32 %v7939, %v8517
        %v8519 = vpop.f32.mrb[0].mxu0
        %8520 = vmatprep.mubr.f32.mxu0 0.0
        %8521 = vmatmul.mubr.f32.gmra.mrb[0].mxu0 %v8202
        %v8522 = vpop.f32.mrb[0].mxu0
        %v8523 = vadd.f32 %v7944, %v8522
        %v8524 = vpop.f32.mrb[0].mxu0
        %8525 = vmatprep.mubr.f32.mxu0 0.0
        %8526 = vmatmul.mubr.f32.gmra.mrb[0].mxu0 %v8205
        %v8527 = vpop.f32.mrb[0].mxu0
        %v8528 = vadd.f32 %v7949, %v8527
        %v8529 = vpop.f32.mrb[0].mxu0
        %8530 = vmatprep.mubr.f32.mxu0 0.0
        %8531 = vmatmul.mubr.f32.gmra.mrb[0].mxu0 %v8208
        %v8532 = vpop.f32.mrb[0].mxu0
        %v8533 = vadd.f32 %v7954, %v8532
        %v8534 = vpop.f32.mrb[0].mxu0
        %8535 = vmatprep.mubr.f32.mxu0 0.0
        %8536 = vmatmul.mubr.f32.gmra.mrb[0].mxu0 %v8211
        %v8537 = vpop.f32.mrb[0].mxu0
        %v8538 = vadd.f32 %v7959, %v8537
        %v8539 = vpop.f32.mrb[0].mxu0
        %8540 = vmatprep.mubr.f32.mxu0 0.0
        %8541 = vmatmul.mubr.f32.gmra.mrb[0].mxu0 %v8214
        %v8542 = vpop.f32.mrb[0].mxu0
        %v8543 = vadd.f32 %v7964, %v8542
        %v8544 = vpop.f32.mrb[0].mxu0
        %8545 = vmatprep.mubr.f32.mxu0 0.0
        %8546 = vmatmul.mubr.f32.gmra.mrb[0].mxu0 %v8217
        %v8547 = vpop.f32.mrb[0].mxu0
        %v8548 = vadd.f32 %v7969, %v8547
        %v8549 = vpop.f32.mrb[0].mxu0
        %8550 = vmatprep.mubr.f32.mxu0 0.0
        %8551 = vmatmul.mubr.f32.gmra.mrb[0].mxu0 %v8220
        %v8552 = vpop.f32.mrb[0].mxu0
        %v8553 = vadd.f32 %v7974, %v8552
        %v8554 = vpop.f32.mrb[0].mxu0
        %8555 = vmatprep.mubr.f32.mxu0 0.0
        %8556 = vmatmul.mubr.f32.gmra.mrb[0].mxu0 %v8223
        %v8557 = vpop.f32.mrb[0].mxu0
        %v8558 = vadd.f32 %v7979, %v8557
        %v8559 = vpop.f32.mrb[0].mxu0
        %8560 = vmatprep.mubr.f32.mxu0 0.0
        %8561 = vmatmul.mubr.f32.gmra.mrb[0].mxu0 %v8226
        %v8562 = vpop.f32.mrb[0].mxu0
        %v8563 = vadd.f32 %v7984, %v8562
        %v8564 = vpop.f32.mrb[0].mxu0
        %8565 = vmatprep.mubr.f32.mxu0 0.0
        %8566 = vmatmul.mubr.f32.gmra.mrb[0].mxu0 %v8229
        %v8567 = vpop.f32.mrb[0].mxu0
        %v8568 = vadd.f32 %v7989, %v8567
        %v8569 = vpop.f32.mrb[0].mxu0
        %8570 = vmatprep.mubr.f32.mxu0 0.0
        %8571 = vmatmul.mubr.f32.gmra.mrb[0].mxu0 %v8232
        %v8572 = vpop.f32.mrb[0].mxu0
        %v8573 = vadd.f32 %v7994, %v8572
        %v8574 = vpop.f32.mrb[0].mxu0
        %8575 = vmatprep.mubr.f32.mxu0 0.0
        %8576 = vmatmul.mubr.f32.gmra.mrb[0].mxu0 %v8235
        %v8577 = vpop.f32.mrb[0].mxu0
        %v8578 = vadd.f32 %v7999, %v8577
        %v8579 = vpop.f32.mrb[0].mxu0
        %8580 = vmatprep.mubr.f32.mxu0 0.0
        %8581 = vmatmul.mubr.f32.gmra.mrb[0].mxu0 %v8238
        %v8582 = vpop.f32.mrb[0].mxu0
        %v8583 = vadd.f32 %v8004, %v8582
        %v8584 = vpop.f32.mrb[0].mxu0
        %8585 = vmatprep.mubr.f32.mxu0 0.0
        %8586 = vmatmul.mubr.f32.gmra.mrb[0].mxu0 %v8241
        %v8587 = vpop.f32.mrb[0].mxu0
        %v8588 = vadd.f32 %v8009, %v8587
        %v8589 = vpop.f32.mrb[0].mxu0
        %8590 = vmatprep.mubr.f32.mxu0 0.0
        %8591 = vmatmul.mubr.f32.gmra.mrb[0].mxu0 %v8244
        %v8592 = vpop.f32.mrb[0].mxu0
        %v8593 = vadd.f32 %v8014, %v8592
        %v8594 = vpop.f32.mrb[0].mxu0
        %8595 = vmatprep.mubr.f32.mxu0 0.0
        %8596 = vmatmul.mubr.f32.gmra.mrb[0].mxu0 %v8247
        %v8597 = vpop.f32.mrb[0].mxu0
        %v8598 = vadd.f32 %v8019, %v8597
        %v8599 = vpop.f32.mrb[0].mxu0
        %8600 = vmatprep.mubr.f32.mxu0 0.0
        %8601 = vmatmul.mubr.f32.gmra.mrb[0].mxu0 %v8250
        %v8602 = vpop.f32.mrb[0].mxu0
        %v8603 = vadd.f32 %v8024, %v8602
        %v8604 = vpop.f32.mrb[0].mxu0
        %8605 = vmatprep.mubr.f32.mxu0 0.0
        %8606 = vmatmul.mubr.f32.gmra.mrb[0].mxu0 %v8253
        %v8607 = vpop.f32.mrb[0].mxu0
        %v8608 = vadd.f32 %v8029, %v8607
        %v8609 = vpop.f32.mrb[0].mxu0
        %8610 = vmatprep.mubr.f32.mxu0 0.0
        %8611 = vmatmul.mubr.f32.gmra.mrb[0].mxu0 %v8256
        %v8612 = vpop.f32.mrb[0].mxu0
        %v8613 = vadd.f32 %v8034, %v8612
        %v8614 = vpop.f32.mrb[0].mxu0
        %8615 = vmatprep.mubr.f32.mxu0 0.0
        %8616 = vmatmul.mubr.f32.gmra.mrb[0].mxu0 %v8259
        %v8617 = vpop.f32.mrb[0].mxu0
        %v8618 = vadd.f32 %v8039, %v8617
        %v8619 = vpop.f32.mrb[0].mxu0
        %8620 = vmatprep.mubr.f32.mxu0 0.0
        %8621 = vmatmul.mubr.f32.gmra.mrb[0].mxu0 %v8262
        %v8622 = vpop.f32.mrb[0].mxu0
        %v8623 = vadd.f32 %v8044, %v8622
        %v8624 = vpop.f32.mrb[0].mxu0
        %8625 = vmatprep.mubr.f32.mxu0 0.0
        %8626 = vmatmul.mubr.f32.gmra.mrb[0].mxu0 %v8265
        %v8627 = vpop.f32.mrb[0].mxu0
        %v8628 = vadd.f32 %v8049, %v8627
        %v8629 = vpop.f32.mrb[0].mxu0
        %8630 = vmatprep.mubr.f32.mxu0 0.0
        %8631 = vmatmul.mubr.f32.gmra.mrb[0].mxu0 %v8268
        %v8632 = vpop.f32.mrb[0].mxu0
        %v8633 = vadd.f32 %v8054, %v8632
        %v8634 = vpop.f32.mrb[0].mxu0
        %8635 = vmatprep.mubr.f32.mxu0 0.0
        %8636 = vmatmul.mubr.f32.gmra.mrb[0].mxu0 %v8271
        %v8637 = vpop.f32.mrb[0].mxu0
        %v8638 = vadd.f32 %v8059, %v8637
        %v8639 = vpop.f32.mrb[0].mxu0
        %8640 = vmatprep.mubr.f32.mxu0 0.0
        %8641 = vmatmul.mubr.f32.gmra.mrb[0].mxu0 %v8274
        %v8642 = vpop.f32.mrb[0].mxu0
        %v8643 = vadd.f32 %v8064, %v8642
        %v8644 = vpop.f32.mrb[0].mxu0
        %8645 = vmatprep.mubr.f32.mxu0 0.0
        %8646 = vmatmul.mubr.f32.gmra.mrb[0].mxu0 %v8277
        %v8647 = vpop.f32.mrb[0].mxu0
        %v8648 = vadd.f32 %v8069, %v8647
        %v8649 = vpop.f32.mrb[0].mxu0
        %8650 = vmatprep.mubr.f32.mxu0 0.0
        %8651 = vmatmul.mubr.f32.gmra.mrb[0].mxu0 %v8280
        %v8652 = vpop.f32.mrb[0].mxu0
        %v8653 = vadd.f32 %v8074, %v8652
        %v8654 = vpop.f32.mrb[0].mxu0
        %8655 = vmatprep.mubr.f32.mxu0 0.0
        %8656 = vmatmul.mubr.f32.gmra.mrb[0].mxu0 %v8283
        %v8657 = vpop.f32.mrb[0].mxu0
        %v8658 = vadd.f32 %v8079, %v8657
        %v8659 = vpop.f32.mrb[0].mxu0
        %8660 = vmatprep.mubr.f32.mxu0 0.0
        %8661 = vmatmul.mubr.f32.gmra.mrb[0].mxu0 %v8286
        %v8662 = vpop.f32.mrb[0].mxu0
        %v8663 = vadd.f32 %v8084, %v8662
        %v8664 = vpop.f32.mrb[0].mxu0
        %8665 = vmatprep.mubr.f32.mxu0 0.0
        %8666 = vmatmul.mubr.f32.gmra.mrb[0].mxu0 %v8289
        %v8667 = vpop.f32.mrb[0].mxu0
        %v8668 = vadd.f32 %v8089, %v8667
        %v8669 = vpop.f32.mrb[0].mxu0
        %8670 = vmatprep.mubr.f32.mxu0 0.0
        %8671 = vmatmul.mubr.f32.gmra.mrb[0].mxu0 %v8292
        %v8672 = vpop.f32.mrb[0].mxu0
        %v8673 = vadd.f32 %v8094, %v8672
        %v8674 = vpop.f32.mrb[0].mxu0
        %8675 = vmatprep.mubr.f32.mxu0 0.0
        %8676 = vmatmul.mubr.f32.gmra.mrb[0].mxu0 %v8295
        %v8677 = vpop.f32.mrb[0].mxu0
        %v8678 = vadd.f32 %v8099, %v8677
        %v8679 = vpop.f32.mrb[0].mxu0
        %8680 = vmatprep.mubr.f32.mxu0 0.0
        %8681 = vmatmul.mubr.f32.gmra.mrb[0].mxu0 %v8298
        %v8682 = vpop.f32.mrb[0].mxu0
        %v8683 = vadd.f32 %v8104, %v8682
        %v8684 = vpop.f32.mrb[0].mxu0
        %8685 = vmatprep.mubr.f32.mxu0 0.0
        %8686 = vmatmul.mubr.f32.gmra.mrb[0].mxu0 %v8301
        %v8687 = vpop.f32.mrb[0].mxu0
        %v8688 = vadd.f32 %v8109, %v8687
        %v8689 = vpop.f32.mrb[0].mxu0
        %8690 = vdwg.mxu0
        %v8692 = vsel %vm1391, %v8373, 0
        %v8695 = vsel %vm1391, %v8378, 0
        %v8698 = vsel %vm1391, %v8383, 0
        %v8701 = vsel %vm1391, %v8388, 0
        %v8704 = vsel %vm1391, %v8393, 0
        %v8707 = vsel %vm1391, %v8398, 0
        %v8710 = vsel %vm1391, %v8403, 0
        %v8713 = vsel %vm1391, %v8408, 0
        %v8716 = vsel %vm1391, %v8413, 0
        %v8719 = vsel %vm1391, %v8418, 0
        %v8722 = vsel %vm1391, %v8423, 0
        %v8725 = vsel %vm1391, %v8428, 0
        %v8728 = vsel %vm1391, %v8433, 0
        %v8731 = vsel %vm1391, %v8438, 0
        %v8734 = vsel %vm1391, %v8443, 0
        %v8737 = vsel %vm1391, %v8448, 0
        %v8740 = vsel %vm1391, %v8453, 0
        %v8743 = vsel %vm1391, %v8458, 0
        %v8746 = vsel %vm1391, %v8463, 0
        %v8749 = vsel %vm1391, %v8468, 0
        %v8752 = vsel %vm1391, %v8473, 0
        %v8755 = vsel %vm1391, %v8478, 0
        %v8758 = vsel %vm1391, %v8483, 0
        %v8761 = vsel %vm1391, %v8488, 0
        %v8764 = vsel %vm1391, %v8493, 0
        %v8767 = vsel %vm1391, %v8498, 0
        %v8770 = vsel %vm1391, %v8503, 0
        %v8773 = vsel %vm1391, %v8508, 0
        %v8776 = vsel %vm1391, %v8513, 0
        %v8779 = vsel %vm1391, %v8518, 0
        %v8782 = vsel %vm1391, %v8523, 0
        %v8785 = vsel %vm1391, %v8528, 0
        %v8788 = vsel %vm1391, %v8533, 0
        %v8791 = vsel %vm1391, %v8538, 0
        %v8794 = vsel %vm1391, %v8543, 0
        %v8797 = vsel %vm1391, %v8548, 0
        %v8800 = vsel %vm1391, %v8553, 0
        %v8803 = vsel %vm1391, %v8558, 0
        %v8806 = vsel %vm1391, %v8563, 0
        %v8809 = vsel %vm1391, %v8568, 0
        %v8812 = vsel %vm1391, %v8573, 0
        %v8815 = vsel %vm1391, %v8578, 0
        %v8818 = vsel %vm1391, %v8583, 0
        %v8821 = vsel %vm1391, %v8588, 0
        %v8824 = vsel %vm1391, %v8593, 0
        %v8827 = vsel %vm1391, %v8598, 0
        %v8830 = vsel %vm1391, %v8603, 0
        %v8833 = vsel %vm1391, %v8608, 0
        %v8836 = vsel %vm1391, %v8613, 0
        %v8839 = vsel %vm1391, %v8618, 0
        %v8842 = vsel %vm1391, %v8623, 0
        %v8845 = vsel %vm1391, %v8628, 0
        %v8848 = vsel %vm1391, %v8633, 0
        %v8851 = vsel %vm1391, %v8638, 0
        %v8854 = vsel %vm1391, %v8643, 0
        %v8857 = vsel %vm1391, %v8648, 0
        %v8860 = vsel %vm1391, %v8653, 0
        %v8863 = vsel %vm1391, %v8658, 0
        %v8866 = vsel %vm1391, %v8663, 0
        %v8869 = vsel %vm1391, %v8668, 0
        %v8872 = vsel %vm1391, %v8673, 0
        %v8875 = vsel %vm1391, %v8678, 0
        %v8878 = vsel %vm1391, %v8683, 0
        %v8881 = vsel %vm1391, %v8688, 0
        %v8884 = vsel %vm1002, %v7589, 0
        %v8887 = vsel %vm1002, %v7590, 0
        %8889 = vmatprep.subr.mxu0 %v7582
        %8890 = vmatpush1.msra.mxu0 %v7581
        %8891 = vmatprep.subr.mxu0 %v7584
        %8892 = vmatpush1.msra.mxu0 %v7583
        %8893 = vmatprep.subr.mxu0 %v7586
        %8894 = vmatpush1.msra.mxu0 %v7585
        %8895 = vmatprep.subr.mxu0 %v7588
        %8896 = vmatpush1.msra.mxu0 %v7587
        %8897 = vmatprep.subr.mxu0 %v8887
        %8898 = vmatpush1.msra.mxu0 %v8884
        %8899 = vmatprep.subr.mxu0 0.0
        %8900 = vmatpush1.msra.mxu0 0.0
        %8901 = vmatprep.subr.mxu0 0.0
        %8902 = vmatpush1.msra.mxu0 0.0
        %8903 = vmatprep.subr.mxu0 0.0
        %8904 = vmatpush1.msra.mxu0 0.0
        %8905 = vmatprep.subr.mxu0 0.0
        %8906 = vmatpush1.msra.mxu0 0.0
        %8907 = vmatprep.subr.mxu0 0.0
        %8908 = vmatpush1.msra.mxu0 0.0
        %8909 = vmatprep.subr.mxu0 0.0
        %8910 = vmatpush1.msra.mxu0 0.0
        %8911 = vmatprep.subr.mxu0 0.0
        %8912 = vmatpush1.msra.mxu0 0.0
        %8913 = vmatprep.subr.mxu0 0.0
        %8914 = vmatpush1.msra.mxu0 0.0
        %8915 = vmatprep.subr.mxu0 0.0
        %8916 = vmatpush1.msra.mxu0 0.0
        %8917 = vmatprep.subr.mxu0 0.0
        %8918 = vmatpush1.msra.mxu0 0.0
        %8919 = vmatprep.subr.mxu0 0.0
        %8920 = vmatpush1.msra.mxu0 0.0
        %8921 = vmatprep.subr.mxu0 0.0
        %8922 = vmatpush1.msra.mxu0 0.0
        %8923 = vmatprep.subr.mxu0 0.0
        %8924 = vmatpush1.msra.mxu0 0.0
        %8925 = vmatprep.subr.mxu0 0.0
        %8926 = vmatpush1.msra.mxu0 0.0
        %8927 = vmatprep.subr.mxu0 0.0
        %8928 = vmatpush1.msra.mxu0 0.0
        %8929 = vmatprep.subr.mxu0 0.0
        %8930 = vmatpush1.msra.mxu0 0.0
        %8931 = vmatprep.subr.mxu0 0.0
        %8932 = vmatpush1.msra.mxu0 0.0
        %8933 = vmatprep.subr.mxu0 0.0
        %8934 = vmatpush1.msra.mxu0 0.0
        %8935 = vmatprep.subr.mxu0 0.0
        %8936 = vmatpush1.msra.mxu0 0.0
        %8937 = vmatprep.subr.mxu0 0.0
        %8938 = vmatpush1.msra.mxu0 0.0
        %8939 = vmatprep.subr.mxu0 0.0
        %8940 = vmatpush1.msra.mxu0 0.0
        %8941 = vmatprep.subr.mxu0 0.0
        %8942 = vmatpush1.msra.mxu0 0.0
        %8943 = vmatprep.subr.mxu0 0.0
        %8944 = vmatpush1.msra.mxu0 0.0
        %8945 = vmatprep.subr.mxu0 0.0
        %8946 = vmatpush1.msra.mxu0 0.0
        %8947 = vmatprep.subr.mxu0 0.0
        %8948 = vmatpush1.msra.mxu0 0.0
        %8949 = vmatprep.subr.mxu0 0.0
        %8950 = vmatpush1.msra.mxu0 0.0
        %8951 = vmatprep.subr.mxu0 0.0
        %8952 = vmatpush1.msra.mxu0 0.0
        %8953 = vmatprep.mubr.f32.mxu0 0.0
        %8954 = vmatmul.mubr.f32.gmra.mrb[0].mxu0 %v8692
        %v8955 = vpop.f32.mrb[0].mxu0
        %v8956 = vadd.f32 0.0, %v8955
        %v8957 = vpop.f32.mrb[0].mxu0
        %v8958 = vadd.f32 0.0, %v8957
        %8959 = vmatprep.mubr.f32.mxu0 0.0
        %8960 = vmatmul.mubr.f32.gmra.mrb[0].mxu0 %v8695
        %v8961 = vpop.f32.mrb[0].mxu0
        %v8962 = vadd.f32 0.0, %v8961
        %v8963 = vpop.f32.mrb[0].mxu0
        %v8964 = vadd.f32 0.0, %v8963
        %8965 = vmatprep.mubr.f32.mxu0 0.0
        %8966 = vmatmul.mubr.f32.gmra.mrb[0].mxu0 %v8698
        %v8967 = vpop.f32.mrb[0].mxu0
        %v8968 = vadd.f32 0.0, %v8967
        %v8969 = vpop.f32.mrb[0].mxu0
        %v8970 = vadd.f32 0.0, %v8969
        %8971 = vmatprep.mubr.f32.mxu0 0.0
        %8972 = vmatmul.mubr.f32.gmra.mrb[0].mxu0 %v8701
        %v8973 = vpop.f32.mrb[0].mxu0
        %v8974 = vadd.f32 0.0, %v8973
        %v8975 = vpop.f32.mrb[0].mxu0
        %v8976 = vadd.f32 0.0, %v8975
        %8977 = vmatprep.mubr.f32.mxu0 0.0
        %8978 = vmatmul.mubr.f32.gmra.mrb[0].mxu0 %v8704
        %v8979 = vpop.f32.mrb[0].mxu0
        %v8980 = vadd.f32 0.0, %v8979
        %v8981 = vpop.f32.mrb[0].mxu0
        %v8982 = vadd.f32 0.0, %v8981
        %8983 = vmatprep.mubr.f32.mxu0 0.0
        %8984 = vmatmul.mubr.f32.gmra.mrb[0].mxu0 %v8707
        %v8985 = vpop.f32.mrb[0].mxu0
        %v8986 = vadd.f32 0.0, %v8985
        %v8987 = vpop.f32.mrb[0].mxu0
        %v8988 = vadd.f32 0.0, %v8987
        %8989 = vmatprep.mubr.f32.mxu0 0.0
        %8990 = vmatmul.mubr.f32.gmra.mrb[0].mxu0 %v8710
        %v8991 = vpop.f32.mrb[0].mxu0
        %v8992 = vadd.f32 0.0, %v8991
        %v8993 = vpop.f32.mrb[0].mxu0
        %v8994 = vadd.f32 0.0, %v8993
        %8995 = vmatprep.mubr.f32.mxu0 0.0
        %8996 = vmatmul.mubr.f32.gmra.mrb[0].mxu0 %v8713
        %v8997 = vpop.f32.mrb[0].mxu0
        %v8998 = vadd.f32 0.0, %v8997
        %v8999 = vpop.f32.mrb[0].mxu0
        %v9000 = vadd.f32 0.0, %v8999
        %9001 = vmatprep.mubr.f32.mxu0 0.0
        %9002 = vmatmul.mubr.f32.gmra.mrb[0].mxu0 %v8716
        %v9003 = vpop.f32.mrb[0].mxu0
        %v9004 = vadd.f32 0.0, %v9003
        %v9005 = vpop.f32.mrb[0].mxu0
        %v9006 = vadd.f32 0.0, %v9005
        %9007 = vmatprep.mubr.f32.mxu0 0.0
        %9008 = vmatmul.mubr.f32.gmra.mrb[0].mxu0 %v8719
        %v9009 = vpop.f32.mrb[0].mxu0
        %v9010 = vadd.f32 0.0, %v9009
        %v9011 = vpop.f32.mrb[0].mxu0
        %v9012 = vadd.f32 0.0, %v9011
        %9013 = vmatprep.mubr.f32.mxu0 0.0
        %9014 = vmatmul.mubr.f32.gmra.mrb[0].mxu0 %v8722
        %v9015 = vpop.f32.mrb[0].mxu0
        %v9016 = vadd.f32 0.0, %v9015
        %v9017 = vpop.f32.mrb[0].mxu0
        %v9018 = vadd.f32 0.0, %v9017
        %9019 = vmatprep.mubr.f32.mxu0 0.0
        %9020 = vmatmul.mubr.f32.gmra.mrb[0].mxu0 %v8725
        %v9021 = vpop.f32.mrb[0].mxu0
        %v9022 = vadd.f32 0.0, %v9021
        %v9023 = vpop.f32.mrb[0].mxu0
        %v9024 = vadd.f32 0.0, %v9023
        %9025 = vmatprep.mubr.f32.mxu0 0.0
        %9026 = vmatmul.mubr.f32.gmra.mrb[0].mxu0 %v8728
        %v9027 = vpop.f32.mrb[0].mxu0
        %v9028 = vadd.f32 0.0, %v9027
        %v9029 = vpop.f32.mrb[0].mxu0
        %v9030 = vadd.f32 0.0, %v9029
        %9031 = vmatprep.mubr.f32.mxu0 0.0
        %9032 = vmatmul.mubr.f32.gmra.mrb[0].mxu0 %v8731
        %v9033 = vpop.f32.mrb[0].mxu0
        %v9034 = vadd.f32 0.0, %v9033
        %v9035 = vpop.f32.mrb[0].mxu0
        %v9036 = vadd.f32 0.0, %v9035
        %9037 = vmatprep.mubr.f32.mxu0 0.0
        %9038 = vmatmul.mubr.f32.gmra.mrb[0].mxu0 %v8734
        %v9039 = vpop.f32.mrb[0].mxu0
        %v9040 = vadd.f32 0.0, %v9039
        %v9041 = vpop.f32.mrb[0].mxu0
        %v9042 = vadd.f32 0.0, %v9041
        %9043 = vmatprep.mubr.f32.mxu0 0.0
        %9044 = vmatmul.mubr.f32.gmra.mrb[0].mxu0 %v8737
        %v9045 = vpop.f32.mrb[0].mxu0
        %v9046 = vadd.f32 0.0, %v9045
        %v9047 = vpop.f32.mrb[0].mxu0
        %v9048 = vadd.f32 0.0, %v9047
        %9049 = vmatprep.mubr.f32.mxu0 0.0
        %9050 = vmatmul.mubr.f32.gmra.mrb[0].mxu0 %v8740
        %v9051 = vpop.f32.mrb[0].mxu0
        %v9052 = vadd.f32 0.0, %v9051
        %v9053 = vpop.f32.mrb[0].mxu0
        %v9054 = vadd.f32 0.0, %v9053
        %9055 = vmatprep.mubr.f32.mxu0 0.0
        %9056 = vmatmul.mubr.f32.gmra.mrb[0].mxu0 %v8743
        %v9057 = vpop.f32.mrb[0].mxu0
        %v9058 = vadd.f32 0.0, %v9057
        %v9059 = vpop.f32.mrb[0].mxu0
        %v9060 = vadd.f32 0.0, %v9059
        %9061 = vmatprep.mubr.f32.mxu0 0.0
        %9062 = vmatmul.mubr.f32.gmra.mrb[0].mxu0 %v8746
        %v9063 = vpop.f32.mrb[0].mxu0
        %v9064 = vadd.f32 0.0, %v9063
        %v9065 = vpop.f32.mrb[0].mxu0
        %v9066 = vadd.f32 0.0, %v9065
        %9067 = vmatprep.mubr.f32.mxu0 0.0
        %9068 = vmatmul.mubr.f32.gmra.mrb[0].mxu0 %v8749
        %v9069 = vpop.f32.mrb[0].mxu0
        %v9070 = vadd.f32 0.0, %v9069
        %v9071 = vpop.f32.mrb[0].mxu0
        %v9072 = vadd.f32 0.0, %v9071
        %9073 = vmatprep.mubr.f32.mxu0 0.0
        %9074 = vmatmul.mubr.f32.gmra.mrb[0].mxu0 %v8752
        %v9075 = vpop.f32.mrb[0].mxu0
        %v9076 = vadd.f32 0.0, %v9075
        %v9077 = vpop.f32.mrb[0].mxu0
        %v9078 = vadd.f32 0.0, %v9077
        %9079 = vmatprep.mubr.f32.mxu0 0.0
        %9080 = vmatmul.mubr.f32.gmra.mrb[0].mxu0 %v8755
        %v9081 = vpop.f32.mrb[0].mxu0
        %v9082 = vadd.f32 0.0, %v9081
        %v9083 = vpop.f32.mrb[0].mxu0
        %v9084 = vadd.f32 0.0, %v9083
        %9085 = vmatprep.mubr.f32.mxu0 0.0
        %9086 = vmatmul.mubr.f32.gmra.mrb[0].mxu0 %v8758
        %v9087 = vpop.f32.mrb[0].mxu0
        %v9088 = vadd.f32 0.0, %v9087
        %v9089 = vpop.f32.mrb[0].mxu0
        %v9090 = vadd.f32 0.0, %v9089
        %9091 = vmatprep.mubr.f32.mxu0 0.0
        %9092 = vmatmul.mubr.f32.gmra.mrb[0].mxu0 %v8761
        %v9093 = vpop.f32.mrb[0].mxu0
        %v9094 = vadd.f32 0.0, %v9093
        %v9095 = vpop.f32.mrb[0].mxu0
        %v9096 = vadd.f32 0.0, %v9095
        %9097 = vmatprep.mubr.f32.mxu0 0.0
        %9098 = vmatmul.mubr.f32.gmra.mrb[0].mxu0 %v8764
        %v9099 = vpop.f32.mrb[0].mxu0
        %v9100 = vadd.f32 0.0, %v9099
        %v9101 = vpop.f32.mrb[0].mxu0
        %v9102 = vadd.f32 0.0, %v9101
        %9103 = vmatprep.mubr.f32.mxu0 0.0
        %9104 = vmatmul.mubr.f32.gmra.mrb[0].mxu0 %v8767
        %v9105 = vpop.f32.mrb[0].mxu0
        %v9106 = vadd.f32 0.0, %v9105
        %v9107 = vpop.f32.mrb[0].mxu0
        %v9108 = vadd.f32 0.0, %v9107
        %9109 = vmatprep.mubr.f32.mxu0 0.0
        %9110 = vmatmul.mubr.f32.gmra.mrb[0].mxu0 %v8770
        %v9111 = vpop.f32.mrb[0].mxu0
        %v9112 = vadd.f32 0.0, %v9111
        %v9113 = vpop.f32.mrb[0].mxu0
        %v9114 = vadd.f32 0.0, %v9113
        %9115 = vmatprep.mubr.f32.mxu0 0.0
        %9116 = vmatmul.mubr.f32.gmra.mrb[0].mxu0 %v8773
        %v9117 = vpop.f32.mrb[0].mxu0
        %v9118 = vadd.f32 0.0, %v9117
        %v9119 = vpop.f32.mrb[0].mxu0
        %v9120 = vadd.f32 0.0, %v9119
        %9121 = vmatprep.mubr.f32.mxu0 0.0
        %9122 = vmatmul.mubr.f32.gmra.mrb[0].mxu0 %v8776
        %v9123 = vpop.f32.mrb[0].mxu0
        %v9124 = vadd.f32 0.0, %v9123
        %v9125 = vpop.f32.mrb[0].mxu0
        %v9126 = vadd.f32 0.0, %v9125
        %9127 = vmatprep.mubr.f32.mxu0 0.0
        %9128 = vmatmul.mubr.f32.gmra.mrb[0].mxu0 %v8779
        %v9129 = vpop.f32.mrb[0].mxu0
        %v9130 = vadd.f32 0.0, %v9129
        %v9131 = vpop.f32.mrb[0].mxu0
        %v9132 = vadd.f32 0.0, %v9131
        %9133 = vmatprep.mubr.f32.mxu0 0.0
        %9134 = vmatmul.mubr.f32.gmra.mrb[0].mxu0 %v8782
        %v9135 = vpop.f32.mrb[0].mxu0
        %v9136 = vadd.f32 0.0, %v9135
        %v9137 = vpop.f32.mrb[0].mxu0
        %v9138 = vadd.f32 0.0, %v9137
        %9139 = vmatprep.mubr.f32.mxu0 0.0
        %9140 = vmatmul.mubr.f32.gmra.mrb[0].mxu0 %v8785
        %v9141 = vpop.f32.mrb[0].mxu0
        %v9142 = vadd.f32 0.0, %v9141
        %v9143 = vpop.f32.mrb[0].mxu0
        %v9144 = vadd.f32 0.0, %v9143
        %9145 = vmatprep.mubr.f32.mxu0 0.0
        %9146 = vmatmul.mubr.f32.gmra.mrb[0].mxu0 %v8788
        %v9147 = vpop.f32.mrb[0].mxu0
        %v9148 = vadd.f32 0.0, %v9147
        %v9149 = vpop.f32.mrb[0].mxu0
        %v9150 = vadd.f32 0.0, %v9149
        %9151 = vmatprep.mubr.f32.mxu0 0.0
        %9152 = vmatmul.mubr.f32.gmra.mrb[0].mxu0 %v8791
        %v9153 = vpop.f32.mrb[0].mxu0
        %v9154 = vadd.f32 0.0, %v9153
        %v9155 = vpop.f32.mrb[0].mxu0
        %v9156 = vadd.f32 0.0, %v9155
        %9157 = vmatprep.mubr.f32.mxu0 0.0
        %9158 = vmatmul.mubr.f32.gmra.mrb[0].mxu0 %v8794
        %v9159 = vpop.f32.mrb[0].mxu0
        %v9160 = vadd.f32 0.0, %v9159
        %v9161 = vpop.f32.mrb[0].mxu0
        %v9162 = vadd.f32 0.0, %v9161
        %9163 = vmatprep.mubr.f32.mxu0 0.0
        %9164 = vmatmul.mubr.f32.gmra.mrb[0].mxu0 %v8797
        %v9165 = vpop.f32.mrb[0].mxu0
        %v9166 = vadd.f32 0.0, %v9165
        %v9167 = vpop.f32.mrb[0].mxu0
        %v9168 = vadd.f32 0.0, %v9167
        %9169 = vmatprep.mubr.f32.mxu0 0.0
        %9170 = vmatmul.mubr.f32.gmra.mrb[0].mxu0 %v8800
        %v9171 = vpop.f32.mrb[0].mxu0
        %v9172 = vadd.f32 0.0, %v9171
        %v9173 = vpop.f32.mrb[0].mxu0
        %v9174 = vadd.f32 0.0, %v9173
        %9175 = vmatprep.mubr.f32.mxu0 0.0
        %9176 = vmatmul.mubr.f32.gmra.mrb[0].mxu0 %v8803
        %v9177 = vpop.f32.mrb[0].mxu0
        %v9178 = vadd.f32 0.0, %v9177
        %v9179 = vpop.f32.mrb[0].mxu0
        %v9180 = vadd.f32 0.0, %v9179
        %9181 = vmatprep.mubr.f32.mxu0 0.0
        %9182 = vmatmul.mubr.f32.gmra.mrb[0].mxu0 %v8806
        %v9183 = vpop.f32.mrb[0].mxu0
        %v9184 = vadd.f32 0.0, %v9183
        %v9185 = vpop.f32.mrb[0].mxu0
        %v9186 = vadd.f32 0.0, %v9185
        %9187 = vmatprep.mubr.f32.mxu0 0.0
        %9188 = vmatmul.mubr.f32.gmra.mrb[0].mxu0 %v8809
        %v9189 = vpop.f32.mrb[0].mxu0
        %v9190 = vadd.f32 0.0, %v9189
        %v9191 = vpop.f32.mrb[0].mxu0
        %v9192 = vadd.f32 0.0, %v9191
        %9193 = vmatprep.mubr.f32.mxu0 0.0
        %9194 = vmatmul.mubr.f32.gmra.mrb[0].mxu0 %v8812
        %v9195 = vpop.f32.mrb[0].mxu0
        %v9196 = vadd.f32 0.0, %v9195
        %v9197 = vpop.f32.mrb[0].mxu0
        %v9198 = vadd.f32 0.0, %v9197
        %9199 = vmatprep.mubr.f32.mxu0 0.0
        %9200 = vmatmul.mubr.f32.gmra.mrb[0].mxu0 %v8815
        %v9201 = vpop.f32.mrb[0].mxu0
        %v9202 = vadd.f32 0.0, %v9201
        %v9203 = vpop.f32.mrb[0].mxu0
        %v9204 = vadd.f32 0.0, %v9203
        %9205 = vmatprep.mubr.f32.mxu0 0.0
        %9206 = vmatmul.mubr.f32.gmra.mrb[0].mxu0 %v8818
        %v9207 = vpop.f32.mrb[0].mxu0
        %v9208 = vadd.f32 0.0, %v9207
        %v9209 = vpop.f32.mrb[0].mxu0
        %v9210 = vadd.f32 0.0, %v9209
        %9211 = vmatprep.mubr.f32.mxu0 0.0
        %9212 = vmatmul.mubr.f32.gmra.mrb[0].mxu0 %v8821
        %v9213 = vpop.f32.mrb[0].mxu0
        %v9214 = vadd.f32 0.0, %v9213
        %v9215 = vpop.f32.mrb[0].mxu0
        %v9216 = vadd.f32 0.0, %v9215
        %9217 = vmatprep.mubr.f32.mxu0 0.0
        %9218 = vmatmul.mubr.f32.gmra.mrb[0].mxu0 %v8824
        %v9219 = vpop.f32.mrb[0].mxu0
        %v9220 = vadd.f32 0.0, %v9219
        %v9221 = vpop.f32.mrb[0].mxu0
        %v9222 = vadd.f32 0.0, %v9221
        %9223 = vmatprep.mubr.f32.mxu0 0.0
        %9224 = vmatmul.mubr.f32.gmra.mrb[0].mxu0 %v8827
        %v9225 = vpop.f32.mrb[0].mxu0
        %v9226 = vadd.f32 0.0, %v9225
        %v9227 = vpop.f32.mrb[0].mxu0
        %v9228 = vadd.f32 0.0, %v9227
        %9229 = vmatprep.mubr.f32.mxu0 0.0
        %9230 = vmatmul.mubr.f32.gmra.mrb[0].mxu0 %v8830
        %v9231 = vpop.f32.mrb[0].mxu0
        %v9232 = vadd.f32 0.0, %v9231
        %v9233 = vpop.f32.mrb[0].mxu0
        %v9234 = vadd.f32 0.0, %v9233
        %9235 = vmatprep.mubr.f32.mxu0 0.0
        %9236 = vmatmul.mubr.f32.gmra.mrb[0].mxu0 %v8833
        %v9237 = vpop.f32.mrb[0].mxu0
        %v9238 = vadd.f32 0.0, %v9237
        %v9239 = vpop.f32.mrb[0].mxu0
        %v9240 = vadd.f32 0.0, %v9239
        %9241 = vmatprep.mubr.f32.mxu0 0.0
        %9242 = vmatmul.mubr.f32.gmra.mrb[0].mxu0 %v8836
        %v9243 = vpop.f32.mrb[0].mxu0
        %v9244 = vadd.f32 0.0, %v9243
        %v9245 = vpop.f32.mrb[0].mxu0
        %v9246 = vadd.f32 0.0, %v9245
        %9247 = vmatprep.mubr.f32.mxu0 0.0
        %9248 = vmatmul.mubr.f32.gmra.mrb[0].mxu0 %v8839
        %v9249 = vpop.f32.mrb[0].mxu0
        %v9250 = vadd.f32 0.0, %v9249
        %v9251 = vpop.f32.mrb[0].mxu0
        %v9252 = vadd.f32 0.0, %v9251
        %9253 = vmatprep.mubr.f32.mxu0 0.0
        %9254 = vmatmul.mubr.f32.gmra.mrb[0].mxu0 %v8842
        %v9255 = vpop.f32.mrb[0].mxu0
        %v9256 = vadd.f32 0.0, %v9255
        %v9257 = vpop.f32.mrb[0].mxu0
        %v9258 = vadd.f32 0.0, %v9257
        %9259 = vmatprep.mubr.f32.mxu0 0.0
        %9260 = vmatmul.mubr.f32.gmra.mrb[0].mxu0 %v8845
        %v9261 = vpop.f32.mrb[0].mxu0
        %v9262 = vadd.f32 0.0, %v9261
        %v9263 = vpop.f32.mrb[0].mxu0
        %v9264 = vadd.f32 0.0, %v9263
        %9265 = vmatprep.mubr.f32.mxu0 0.0
        %9266 = vmatmul.mubr.f32.gmra.mrb[0].mxu0 %v8848
        %v9267 = vpop.f32.mrb[0].mxu0
        %v9268 = vadd.f32 0.0, %v9267
        %v9269 = vpop.f32.mrb[0].mxu0
        %v9270 = vadd.f32 0.0, %v9269
        %9271 = vmatprep.mubr.f32.mxu0 0.0
        %9272 = vmatmul.mubr.f32.gmra.mrb[0].mxu0 %v8851
        %v9273 = vpop.f32.mrb[0].mxu0
        %v9274 = vadd.f32 0.0, %v9273
        %v9275 = vpop.f32.mrb[0].mxu0
        %v9276 = vadd.f32 0.0, %v9275
        %9277 = vmatprep.mubr.f32.mxu0 0.0
        %9278 = vmatmul.mubr.f32.gmra.mrb[0].mxu0 %v8854
        %v9279 = vpop.f32.mrb[0].mxu0
        %v9280 = vadd.f32 0.0, %v9279
        %v9281 = vpop.f32.mrb[0].mxu0
        %v9282 = vadd.f32 0.0, %v9281
        %9283 = vmatprep.mubr.f32.mxu0 0.0
        %9284 = vmatmul.mubr.f32.gmra.mrb[0].mxu0 %v8857
        %v9285 = vpop.f32.mrb[0].mxu0
        %v9286 = vadd.f32 0.0, %v9285
        %v9287 = vpop.f32.mrb[0].mxu0
        %v9288 = vadd.f32 0.0, %v9287
        %9289 = vmatprep.mubr.f32.mxu0 0.0
        %9290 = vmatmul.mubr.f32.gmra.mrb[0].mxu0 %v8860
        %v9291 = vpop.f32.mrb[0].mxu0
        %v9292 = vadd.f32 0.0, %v9291
        %v9293 = vpop.f32.mrb[0].mxu0
        %v9294 = vadd.f32 0.0, %v9293
        %9295 = vmatprep.mubr.f32.mxu0 0.0
        %9296 = vmatmul.mubr.f32.gmra.mrb[0].mxu0 %v8863
        %v9297 = vpop.f32.mrb[0].mxu0
        %v9298 = vadd.f32 0.0, %v9297
        %v9299 = vpop.f32.mrb[0].mxu0
        %v9300 = vadd.f32 0.0, %v9299
        %9301 = vmatprep.mubr.f32.mxu0 0.0
        %9302 = vmatmul.mubr.f32.gmra.mrb[0].mxu0 %v8866
        %v9303 = vpop.f32.mrb[0].mxu0
        %v9304 = vadd.f32 0.0, %v9303
        %v9305 = vpop.f32.mrb[0].mxu0
        %v9306 = vadd.f32 0.0, %v9305
        %9307 = vmatprep.mubr.f32.mxu0 0.0
        %9308 = vmatmul.mubr.f32.gmra.mrb[0].mxu0 %v8869
        %v9309 = vpop.f32.mrb[0].mxu0
        %v9310 = vadd.f32 0.0, %v9309
        %v9311 = vpop.f32.mrb[0].mxu0
        %v9312 = vadd.f32 0.0, %v9311
        %9313 = vmatprep.mubr.f32.mxu0 0.0
        %9314 = vmatmul.mubr.f32.gmra.mrb[0].mxu0 %v8872
        %v9315 = vpop.f32.mrb[0].mxu0
        %v9316 = vadd.f32 0.0, %v9315
        %v9317 = vpop.f32.mrb[0].mxu0
        %v9318 = vadd.f32 0.0, %v9317
        %9319 = vmatprep.mubr.f32.mxu0 0.0
        %9320 = vmatmul.mubr.f32.gmra.mrb[0].mxu0 %v8875
        %v9321 = vpop.f32.mrb[0].mxu0
        %v9322 = vadd.f32 0.0, %v9321
        %v9323 = vpop.f32.mrb[0].mxu0
        %v9324 = vadd.f32 0.0, %v9323
        %9325 = vmatprep.mubr.f32.mxu0 0.0
        %9326 = vmatmul.mubr.f32.gmra.mrb[0].mxu0 %v8878
        %v9327 = vpop.f32.mrb[0].mxu0
        %v9328 = vadd.f32 0.0, %v9327
        %v9329 = vpop.f32.mrb[0].mxu0
        %v9330 = vadd.f32 0.0, %v9329
        %9331 = vmatprep.mubr.f32.mxu0 0.0
        %9332 = vmatmul.mubr.f32.gmra.mrb[0].mxu0 %v8881
        %v9333 = vpop.f32.mrb[0].mxu0
        %v9334 = vadd.f32 0.0, %v9333
        %v9335 = vpop.f32.mrb[0].mxu0
        %v9336 = vadd.f32 0.0, %v9335
        %9337 = vdwg.mxu0
        %v9466 = vrot.slane %v8956, 4
        %v9467 = vrot.slane %v8958, 4
        %v9468 = vrot.slane %v8962, 4
        %v9469 = vsel %vm1002, %v9466, %v9468
        %v9470 = vrot.slane %v8964, 4
        %v9471 = vsel %vm1002, %v9467, %v9470
        %v9472 = vrot.slane %v8968, 4
        %v9473 = vsel %vm1002, %v9468, %v9472
        %v9474 = vrot.slane %v8970, 4
        %v9475 = vsel %vm1002, %v9470, %v9474
        %v9476 = vrot.slane %v8974, 4
        %v9477 = vsel %vm1002, %v9472, %v9476
        %v9478 = vrot.slane %v8976, 4
        %v9479 = vsel %vm1002, %v9474, %v9478
        %v9480 = vrot.slane %v8980, 4
        %v9481 = vsel %vm1002, %v9476, %v9480
        %v9482 = vrot.slane %v8982, 4
        %v9483 = vsel %vm1002, %v9478, %v9482
        %v9484 = vrot.slane %v8986, 4
        %v9485 = vsel %vm1002, %v9480, %v9484
        %v9486 = vrot.slane %v8988, 4
        %v9487 = vsel %vm1002, %v9482, %v9486
        %v9488 = vrot.slane %v8992, 4
        %v9489 = vsel %vm1002, %v9484, %v9488
        %v9490 = vrot.slane %v8994, 4
        %v9491 = vsel %vm1002, %v9486, %v9490
        %v9492 = vrot.slane %v8998, 4
        %v9493 = vsel %vm1002, %v9488, %v9492
        %v9494 = vrot.slane %v9000, 4
        %v9495 = vsel %vm1002, %v9490, %v9494
        %v9496 = vrot.slane %v9004, 4
        %v9497 = vsel %vm1002, %v9492, %v9496
        %v9498 = vrot.slane %v9006, 4
        %v9499 = vsel %vm1002, %v9494, %v9498
        %v9500 = vrot.slane %v9010, 4
        %v9501 = vsel %vm1002, %v9496, %v9500
        %v9502 = vrot.slane %v9012, 4
        %v9503 = vsel %vm1002, %v9498, %v9502
        %v9504 = vrot.slane %v9016, 4
        %v9505 = vsel %vm1002, %v9500, %v9504
        %v9506 = vrot.slane %v9018, 4
        %v9507 = vsel %vm1002, %v9502, %v9506
        %v9508 = vrot.slane %v9022, 4
        %v9509 = vsel %vm1002, %v9504, %v9508
        %v9510 = vrot.slane %v9024, 4
        %v9511 = vsel %vm1002, %v9506, %v9510
        %v9512 = vrot.slane %v9028, 4
        %v9513 = vsel %vm1002, %v9508, %v9512
        %v9514 = vrot.slane %v9030, 4
        %v9515 = vsel %vm1002, %v9510, %v9514
        %v9516 = vrot.slane %v9034, 4
        %v9517 = vsel %vm1002, %v9512, %v9516
        %v9518 = vrot.slane %v9036, 4
        %v9519 = vsel %vm1002, %v9514, %v9518
        %v9520 = vrot.slane %v9040, 4
        %v9521 = vsel %vm1002, %v9516, %v9520
        %v9522 = vrot.slane %v9042, 4
        %v9523 = vsel %vm1002, %v9518, %v9522
        %v9524 = vrot.slane %v9046, 4
        %v9525 = vsel %vm1002, %v9520, %v9524
        %v9526 = vrot.slane %v9048, 4
        %v9527 = vsel %vm1002, %v9522, %v9526
        %v9528 = vrot.slane %v9052, 4
        %v9529 = vsel %vm1002, %v9524, %v9528
        %v9530 = vrot.slane %v9054, 4
        %v9531 = vsel %vm1002, %v9526, %v9530
        %v9532 = vrot.slane %v9058, 4
        %v9533 = vsel %vm1002, %v9528, %v9532
        %v9534 = vrot.slane %v9060, 4
        %v9535 = vsel %vm1002, %v9530, %v9534
        %v9536 = vrot.slane %v9064, 4
        %v9537 = vsel %vm1002, %v9532, %v9536
        %v9538 = vrot.slane %v9066, 4
        %v9539 = vsel %vm1002, %v9534, %v9538
        %v9540 = vrot.slane %v9070, 4
        %v9541 = vsel %vm1002, %v9536, %v9540
        %v9542 = vrot.slane %v9072, 4
        %v9543 = vsel %vm1002, %v9538, %v9542
        %v9544 = vrot.slane %v9076, 4
        %v9545 = vsel %vm1002, %v9540, %v9544
        %v9546 = vrot.slane %v9078, 4
        %v9547 = vsel %vm1002, %v9542, %v9546
        %v9548 = vrot.slane %v9082, 4
        %v9549 = vsel %vm1002, %v9544, %v9548
        %v9550 = vrot.slane %v9084, 4
        %v9551 = vsel %vm1002, %v9546, %v9550
        %v9552 = vrot.slane %v9088, 4
        %v9553 = vsel %vm1002, %v9548, %v9552
        %v9554 = vrot.slane %v9090, 4
        %v9555 = vsel %vm1002, %v9550, %v9554
        %v9556 = vrot.slane %v9094, 4
        %v9557 = vsel %vm1002, %v9552, %v9556
        %v9558 = vrot.slane %v9096, 4
        %v9559 = vsel %vm1002, %v9554, %v9558
        %v9560 = vrot.slane %v9100, 4
        %v9561 = vsel %vm1002, %v9556, %v9560
        %v9562 = vrot.slane %v9102, 4
        %v9563 = vsel %vm1002, %v9558, %v9562
        %v9564 = vrot.slane %v9106, 4
        %v9565 = vsel %vm1002, %v9560, %v9564
        %v9566 = vrot.slane %v9108, 4
        %v9567 = vsel %vm1002, %v9562, %v9566
        %v9568 = vrot.slane %v9112, 4
        %v9569 = vsel %vm1002, %v9564, %v9568
        %v9570 = vrot.slane %v9114, 4
        %v9571 = vsel %vm1002, %v9566, %v9570
        %v9572 = vrot.slane %v9118, 4
        %v9573 = vsel %vm1002, %v9568, %v9572
        %v9574 = vrot.slane %v9120, 4
        %v9575 = vsel %vm1002, %v9570, %v9574
        %v9576 = vrot.slane %v9124, 4
        %v9577 = vsel %vm1002, %v9572, %v9576
        %v9578 = vrot.slane %v9126, 4
        %v9579 = vsel %vm1002, %v9574, %v9578
        %v9580 = vrot.slane %v9130, 4
        %v9581 = vsel %vm1002, %v9576, %v9580
        %v9582 = vrot.slane %v9132, 4
        %v9583 = vsel %vm1002, %v9578, %v9582
        %v9584 = vrot.slane %v9136, 4
        %v9585 = vsel %vm1002, %v9580, %v9584
        %v9586 = vrot.slane %v9138, 4
        %v9587 = vsel %vm1002, %v9582, %v9586
        %v9588 = vrot.slane %v9142, 4
        %v9589 = vsel %vm1002, %v9584, %v9588
        %v9590 = vrot.slane %v9144, 4
        %v9591 = vsel %vm1002, %v9586, %v9590
        %v9592 = vrot.slane %v9148, 4
        %v9593 = vsel %vm1002, %v9588, %v9592
        %v9594 = vrot.slane %v9150, 4
        %v9595 = vsel %vm1002, %v9590, %v9594
        %v9596 = vrot.slane %v9154, 4
        %v9597 = vsel %vm1002, %v9592, %v9596
        %v9598 = vrot.slane %v9156, 4
        %v9599 = vsel %vm1002, %v9594, %v9598
        %v9600 = vrot.slane %v9160, 4
        %v9601 = vsel %vm1002, %v9596, %v9600
        %v9602 = vrot.slane %v9162, 4
        %v9603 = vsel %vm1002, %v9598, %v9602
        %v9604 = vrot.slane %v9166, 4
        %v9605 = vsel %vm1002, %v9600, %v9604
        %v9606 = vrot.slane %v9168, 4
        %v9607 = vsel %vm1002, %v9602, %v9606
        %v9608 = vrot.slane %v9172, 4
        %v9609 = vsel %vm1002, %v9604, %v9608
        %v9610 = vrot.slane %v9174, 4
        %v9611 = vsel %vm1002, %v9606, %v9610
        %v9612 = vrot.slane %v9178, 4
        %v9613 = vsel %vm1002, %v9608, %v9612
        %v9614 = vrot.slane %v9180, 4
        %v9615 = vsel %vm1002, %v9610, %v9614
        %v9616 = vrot.slane %v9184, 4
        %v9617 = vsel %vm1002, %v9612, %v9616
        %v9618 = vrot.slane %v9186, 4
        %v9619 = vsel %vm1002, %v9614, %v9618
        %v9620 = vrot.slane %v9190, 4
        %v9621 = vsel %vm1002, %v9616, %v9620
        %v9622 = vrot.slane %v9192, 4
        %v9623 = vsel %vm1002, %v9618, %v9622
        %v9624 = vrot.slane %v9196, 4
        %v9625 = vsel %vm1002, %v9620, %v9624
        %v9626 = vrot.slane %v9198, 4
        %v9627 = vsel %vm1002, %v9622, %v9626
        %v9628 = vrot.slane %v9202, 4
        %v9629 = vsel %vm1002, %v9624, %v9628
        %v9630 = vrot.slane %v9204, 4
        %v9631 = vsel %vm1002, %v9626, %v9630
        %v9632 = vrot.slane %v9208, 4
        %v9633 = vsel %vm1002, %v9628, %v9632
        %v9634 = vrot.slane %v9210, 4
        %v9635 = vsel %vm1002, %v9630, %v9634
        %v9636 = vrot.slane %v9214, 4
        %v9637 = vsel %vm1002, %v9632, %v9636
        %v9638 = vrot.slane %v9216, 4
        %v9639 = vsel %vm1002, %v9634, %v9638
        %v9640 = vrot.slane %v9220, 4
        %v9641 = vsel %vm1002, %v9636, %v9640
        %v9642 = vrot.slane %v9222, 4
        %v9643 = vsel %vm1002, %v9638, %v9642
        %v9644 = vrot.slane %v9226, 4
        %v9645 = vsel %vm1002, %v9640, %v9644
        %v9646 = vrot.slane %v9228, 4
        %v9647 = vsel %vm1002, %v9642, %v9646
        %v9648 = vrot.slane %v9232, 4
        %v9649 = vsel %vm1002, %v9644, %v9648
        %v9650 = vrot.slane %v9234, 4
        %v9651 = vsel %vm1002, %v9646, %v9650
        %v9652 = vrot.slane %v9238, 4
        %v9653 = vsel %vm1002, %v9648, %v9652
        %v9654 = vrot.slane %v9240, 4
        %v9655 = vsel %vm1002, %v9650, %v9654
        %v9656 = vrot.slane %v9244, 4
        %v9657 = vsel %vm1002, %v9652, %v9656
        %v9658 = vrot.slane %v9246, 4
        %v9659 = vsel %vm1002, %v9654, %v9658
        %v9660 = vrot.slane %v9250, 4
        %v9661 = vsel %vm1002, %v9656, %v9660
        %v9662 = vrot.slane %v9252, 4
        %v9663 = vsel %vm1002, %v9658, %v9662
        %v9664 = vrot.slane %v9256, 4
        %v9665 = vsel %vm1002, %v9660, %v9664
        %v9666 = vrot.slane %v9258, 4
        %v9667 = vsel %vm1002, %v9662, %v9666
        %v9668 = vrot.slane %v9262, 4
        %v9669 = vsel %vm1002, %v9664, %v9668
        %v9670 = vrot.slane %v9264, 4
        %v9671 = vsel %vm1002, %v9666, %v9670
        %v9672 = vrot.slane %v9268, 4
        %v9673 = vsel %vm1002, %v9668, %v9672
        %v9674 = vrot.slane %v9270, 4
        %v9675 = vsel %vm1002, %v9670, %v9674
        %v9676 = vrot.slane %v9274, 4
        %v9677 = vsel %vm1002, %v9672, %v9676
        %v9678 = vrot.slane %v9276, 4
        %v9679 = vsel %vm1002, %v9674, %v9678
        %v9680 = vrot.slane %v9280, 4
        %v9681 = vsel %vm1002, %v9676, %v9680
        %v9682 = vrot.slane %v9282, 4
        %v9683 = vsel %vm1002, %v9678, %v9682
        %v9684 = vrot.slane %v9286, 4
        %v9685 = vsel %vm1002, %v9680, %v9684
        %v9686 = vrot.slane %v9288, 4
        %v9687 = vsel %vm1002, %v9682, %v9686
        %v9688 = vrot.slane %v9292, 4
        %v9689 = vsel %vm1002, %v9684, %v9688
        %v9690 = vrot.slane %v9294, 4
        %v9691 = vsel %vm1002, %v9686, %v9690
        %v9692 = vrot.slane %v9298, 4
        %v9693 = vsel %vm1002, %v9688, %v9692
        %v9694 = vrot.slane %v9300, 4
        %v9695 = vsel %vm1002, %v9690, %v9694
        %v9696 = vrot.slane %v9304, 4
        %v9697 = vsel %vm1002, %v9692, %v9696
        %v9698 = vrot.slane %v9306, 4
        %v9699 = vsel %vm1002, %v9694, %v9698
        %v9700 = vrot.slane %v9310, 4
        %v9701 = vsel %vm1002, %v9696, %v9700
        %v9702 = vrot.slane %v9312, 4
        %v9703 = vsel %vm1002, %v9698, %v9702
        %v9704 = vrot.slane %v9316, 4
        %v9705 = vsel %vm1002, %v9700, %v9704
        %v9706 = vrot.slane %v9318, 4
        %v9707 = vsel %vm1002, %v9702, %v9706
        %v9708 = vrot.slane %v9322, 4
        %v9709 = vsel %vm1002, %v9704, %v9708
        %v9710 = vrot.slane %v9324, 4
        %v9711 = vsel %vm1002, %v9706, %v9710
        %v9712 = vrot.slane %v9328, 4
        %v9713 = vsel %vm1002, %v9708, %v9712
        %v9714 = vrot.slane %v9330, 4
        %v9715 = vsel %vm1002, %v9710, %v9714
        %v9716 = vrot.slane %v9334, 4
        %v9717 = vsel %vm1002, %v9712, %v9716
        %v9718 = vrot.slane %v9336, 4
        %v9719 = vsel %vm1002, %v9714, %v9718
        %9850 = vst [vmem:[%s242 + $0xc00] sm:$0xf0] %v9466
        %9851 = vst [vmem:[%s242 + $0xc08] sm:$0xf0] %v9467
        %9852 = vst [vmem:[%s242 + $0xc10] sm:$0xff] %v9469
        %9853 = vst [vmem:[%s242 + $0xc18] sm:$0xff] %v9471
        %9854 = vst [vmem:[%s242 + $0xc20] sm:$0xff] %v9473
        %9855 = vst [vmem:[%s242 + $0xc28] sm:$0xff] %v9475
        %9856 = vst [vmem:[%s242 + $0xc30] sm:$0xff] %v9477
        %9857 = vst [vmem:[%s242 + $0xc38] sm:$0xff] %v9479
        %9858 = vst [vmem:[%s242 + $0xc40] sm:$0xff] %v9481
        %9859 = vst [vmem:[%s242 + $0xc48] sm:$0xff] %v9483
        %9860 = vst [vmem:[%s242 + $0xc50] sm:$0xff] %v9485
        %9861 = vst [vmem:[%s242 + $0xc58] sm:$0xff] %v9487
        %9862 = vst [vmem:[%s242 + $0xc60] sm:$0xff] %v9489
        %9863 = vst [vmem:[%s242 + $0xc68] sm:$0xff] %v9491
        %9864 = vst [vmem:[%s242 + $0xc70] sm:$0xff] %v9493
        %9865 = vst [vmem:[%s242 + $0xc78] sm:$0xff] %v9495
        %9866 = vst [vmem:[%s242 + $0xc80] sm:$0xff] %v9497
        %9867 = vst [vmem:[%s242 + $0xc88] sm:$0xff] %v9499
        %9868 = vst [vmem:[%s242 + $0xc90] sm:$0xff] %v9501
        %9869 = vst [vmem:[%s242 + $0xc98] sm:$0xff] %v9503
        %9870 = vst [vmem:[%s242 + $0xca0] sm:$0xff] %v9505
        %9871 = vst [vmem:[%s242 + $0xca8] sm:$0xff] %v9507
        %9872 = vst [vmem:[%s242 + $0xcb0] sm:$0xff] %v9509
        %9873 = vst [vmem:[%s242 + $0xcb8] sm:$0xff] %v9511
        %9874 = vst [vmem:[%s242 + $0xcc0] sm:$0xff] %v9513
        %9875 = vst [vmem:[%s242 + $0xcc8] sm:$0xff] %v9515
        %9876 = vst [vmem:[%s242 + $0xcd0] sm:$0xff] %v9517
        %9877 = vst [vmem:[%s242 + $0xcd8] sm:$0xff] %v9519
        %9878 = vst [vmem:[%s242 + $0xce0] sm:$0xff] %v9521
        %9879 = vst [vmem:[%s242 + $0xce8] sm:$0xff] %v9523
        %9880 = vst [vmem:[%s242 + $0xcf0] sm:$0xff] %v9525
        %9881 = vst [vmem:[%s242 + $0xcf8] sm:$0xff] %v9527
        %9882 = vst [vmem:[%s242 + $0xd00] sm:$0xff] %v9529
        %9883 = vst [vmem:[%s242 + $0xd08] sm:$0xff] %v9531
        %9884 = vst [vmem:[%s242 + $0xd10] sm:$0xff] %v9533
        %9885 = vst [vmem:[%s242 + $0xd18] sm:$0xff] %v9535
        %9886 = vst [vmem:[%s242 + $0xd20] sm:$0xff] %v9537
        %9887 = vst [vmem:[%s242 + $0xd28] sm:$0xff] %v9539
        %9888 = vst [vmem:[%s242 + $0xd30] sm:$0xff] %v9541
        %9889 = vst [vmem:[%s242 + $0xd38] sm:$0xff] %v9543
        %9890 = vst [vmem:[%s242 + $0xd40] sm:$0xff] %v9545
        %9891 = vst [vmem:[%s242 + $0xd48] sm:$0xff] %v9547
        %9892 = vst [vmem:[%s242 + $0xd50] sm:$0xff] %v9549
        %9893 = vst [vmem:[%s242 + $0xd58] sm:$0xff] %v9551
        %9894 = vst [vmem:[%s242 + $0xd60] sm:$0xff] %v9553
        %9895 = vst [vmem:[%s242 + $0xd68] sm:$0xff] %v9555
        %9896 = vst [vmem:[%s242 + $0xd70] sm:$0xff] %v9557
        %9897 = vst [vmem:[%s242 + $0xd78] sm:$0xff] %v9559
        %9898 = vst [vmem:[%s242 + $0xd80] sm:$0xff] %v9561
        %9899 = vst [vmem:[%s242 + $0xd88] sm:$0xff] %v9563
        %9900 = vst [vmem:[%s242 + $0xd90] sm:$0xff] %v9565
        %9901 = vst [vmem:[%s242 + $0xd98] sm:$0xff] %v9567
        %9902 = vst [vmem:[%s242 + $0xda0] sm:$0xff] %v9569
        %9903 = vst [vmem:[%s242 + $0xda8] sm:$0xff] %v9571
        %9904 = vst [vmem:[%s242 + $0xdb0] sm:$0xff] %v9573
        %9905 = vst [vmem:[%s242 + $0xdb8] sm:$0xff] %v9575
        %9906 = vst [vmem:[%s242 + $0xdc0] sm:$0xff] %v9577
        %9907 = vst [vmem:[%s242 + $0xdc8] sm:$0xff] %v9579
        %9908 = vst [vmem:[%s242 + $0xdd0] sm:$0xff] %v9581
        %9909 = vst [vmem:[%s242 + $0xdd8] sm:$0xff] %v9583
        %9910 = vst [vmem:[%s242 + $0xde0] sm:$0xff] %v9585
        %9911 = vst [vmem:[%s242 + $0xde8] sm:$0xff] %v9587
        %9912 = vst [vmem:[%s242 + $0xdf0] sm:$0xff] %v9589
        %9913 = vst [vmem:[%s242 + $0xdf8] sm:$0xff] %v9591
        %9914 = vst [vmem:[%s242 + $0xe00] sm:$0xff] %v9593
        %9915 = vst [vmem:[%s242 + $0xe08] sm:$0xff] %v9595
        %9916 = vst [vmem:[%s242 + $0xe10] sm:$0xff] %v9597
        %9917 = vst [vmem:[%s242 + $0xe18] sm:$0xff] %v9599
        %9918 = vst [vmem:[%s242 + $0xe20] sm:$0xff] %v9601
        %9919 = vst [vmem:[%s242 + $0xe28] sm:$0xff] %v9603
        %9920 = vst [vmem:[%s242 + $0xe30] sm:$0xff] %v9605
        %9921 = vst [vmem:[%s242 + $0xe38] sm:$0xff] %v9607
        %9922 = vst [vmem:[%s242 + $0xe40] sm:$0xff] %v9609
        %9923 = vst [vmem:[%s242 + $0xe48] sm:$0xff] %v9611
        %9924 = vst [vmem:[%s242 + $0xe50] sm:$0xff] %v9613
        %9925 = vst [vmem:[%s242 + $0xe58] sm:$0xff] %v9615
        %9926 = vst [vmem:[%s242 + $0xe60] sm:$0xff] %v9617
        %9927 = vst [vmem:[%s242 + $0xe68] sm:$0xff] %v9619
        %9928 = vst [vmem:[%s242 + $0xe70] sm:$0xff] %v9621
        %9929 = vst [vmem:[%s242 + $0xe78] sm:$0xff] %v9623
        %9930 = vst [vmem:[%s242 + $0xe80] sm:$0xff] %v9625
        %9931 = vst [vmem:[%s242 + $0xe88] sm:$0xff] %v9627
        %9932 = vst [vmem:[%s242 + $0xe90] sm:$0xff] %v9629
        %9933 = vst [vmem:[%s242 + $0xe98] sm:$0xff] %v9631
        %9934 = vst [vmem:[%s242 + $0xea0] sm:$0xff] %v9633
        %9935 = vst [vmem:[%s242 + $0xea8] sm:$0xff] %v9635
        %9936 = vst [vmem:[%s242 + $0xeb0] sm:$0xff] %v9637
        %9937 = vst [vmem:[%s242 + $0xeb8] sm:$0xff] %v9639
        %9938 = vst [vmem:[%s242 + $0xec0] sm:$0xff] %v9641
        %9939 = vst [vmem:[%s242 + $0xec8] sm:$0xff] %v9643
        %9940 = vst [vmem:[%s242 + $0xed0] sm:$0xff] %v9645
        %9941 = vst [vmem:[%s242 + $0xed8] sm:$0xff] %v9647
        %9942 = vst [vmem:[%s242 + $0xee0] sm:$0xff] %v9649
        %9943 = vst [vmem:[%s242 + $0xee8] sm:$0xff] %v9651
        %9944 = vst [vmem:[%s242 + $0xef0] sm:$0xff] %v9653
        %9945 = vst [vmem:[%s242 + $0xef8] sm:$0xff] %v9655
        %9946 = vst [vmem:[%s242 + $0xf00] sm:$0xff] %v9657
        %9947 = vst [vmem:[%s242 + $0xf08] sm:$0xff] %v9659
        %9948 = vst [vmem:[%s242 + $0xf10] sm:$0xff] %v9661
        %9949 = vst [vmem:[%s242 + $0xf18] sm:$0xff] %v9663
        %9950 = vst [vmem:[%s242 + $0xf20] sm:$0xff] %v9665
        %9951 = vst [vmem:[%s242 + $0xf28] sm:$0xff] %v9667
        %9952 = vst [vmem:[%s242 + $0xf30] sm:$0xff] %v9669
        %9953 = vst [vmem:[%s242 + $0xf38] sm:$0xff] %v9671
        %9954 = vst [vmem:[%s242 + $0xf40] sm:$0xff] %v9673
        %9955 = vst [vmem:[%s242 + $0xf48] sm:$0xff] %v9675
        %9956 = vst [vmem:[%s242 + $0xf50] sm:$0xff] %v9677
        %9957 = vst [vmem:[%s242 + $0xf58] sm:$0xff] %v9679
        %9958 = vst [vmem:[%s242 + $0xf60] sm:$0xff] %v9681
        %9959 = vst [vmem:[%s242 + $0xf68] sm:$0xff] %v9683
        %9960 = vst [vmem:[%s242 + $0xf70] sm:$0xff] %v9685
        %9961 = vst [vmem:[%s242 + $0xf78] sm:$0xff] %v9687
        %9962 = vst [vmem:[%s242 + $0xf80] sm:$0xff] %v9689
        %9963 = vst [vmem:[%s242 + $0xf88] sm:$0xff] %v9691
        %9964 = vst [vmem:[%s242 + $0xf90] sm:$0xff] %v9693
        %9965 = vst [vmem:[%s242 + $0xf98] sm:$0xff] %v9695
        %9966 = vst [vmem:[%s242 + $0xfa0] sm:$0xff] %v9697
        %9967 = vst [vmem:[%s242 + $0xfa8] sm:$0xff] %v9699
        %9968 = vst [vmem:[%s242 + $0xfb0] sm:$0xff] %v9701
        %9969 = vst [vmem:[%s242 + $0xfb8] sm:$0xff] %v9703
        %9970 = vst [vmem:[%s242 + $0xfc0] sm:$0xff] %v9705
        %9971 = vst [vmem:[%s242 + $0xfc8] sm:$0xff] %v9707
        %9972 = vst [vmem:[%s242 + $0xfd0] sm:$0xff] %v9709
        %9973 = vst [vmem:[%s242 + $0xfd8] sm:$0xff] %v9711
        %9974 = vst [vmem:[%s242 + $0xfe0] sm:$0xff] %v9713
        %9975 = vst [vmem:[%s242 + $0xfe8] sm:$0xff] %v9715
        %9976 = vst [vmem:[%s242 + $0xff0] sm:$0xff] %v9717
        %9977 = vst [vmem:[%s242 + $0xff8] sm:$0xff] %v9719
        %9978 = vst [vmem:[%s242 + $0x1000] sm:$0xf] %v9716
        %9979 = vst [vmem:[%s242 + $0x1008] sm:$0xf] %v9718
        %p9980 = scmp.lt.s32.totalorder %s19, 1
        %s9981 = scalar_select %p9980, %s19, 1
        %s9982 = smul.addr %s9981, 514
        %s9983 = smul.addr %s9982, 8
        %s9984 = scalar_lea.vmem %s5, %s9983
        // Predicated region
        $region45: #{tpu_custom_call.1} parent=39 // pred_check
          %p9985 = pneg %p147
        $region46: #{tpu_custom_call.1} parent=39 // pred_check_branch
          %9987 = sbr.rel (%p9985) target = $region48
        $region47: #{tpu_custom_call.1} parent=39 // pred_region
          _
        $region48: #{tpu_custom_call.1} parent=39 // pred_fallthru
          _
      $region40: #{tpu_custom_call.1} parent=5 // pred_fallthru
        _
      %p9988 = scmp.le.s32.totalorder 2, %s14
      // Predicated region
      $region49: #{tpu_custom_call.1} parent=5 // pred_check
        %p9989 = pneg %p9988
      $region50: #{tpu_custom_call.1} parent=5 // pred_check_branch
        %9991 = sbr.rel (%p9989) target = $region52
      $region51: #{tpu_custom_call.1} parent=5 // pred_region
        %s9992 = ssub.s32 %s14, 2
        // Predicated region
        $region53: #{tpu_custom_call.1} parent=51 // pred_check
          %p9993 = pneg %p153
        $region54: #{tpu_custom_call.1} parent=51 // pred_check_branch
          %9995 = sbr.rel (%p9993) target = $region56
        $region55: #{tpu_custom_call.1} parent=51 // pred_region
          %p9996 = scmp.lt.s32.totalorder %s20, 1
          %s9997 = scalar_select %p9996, %s20, 1
          %s9998 = smul.addr %s9997, 514
          %s9999 = smul.addr %s9998, 8
          %s10000 = scalar_lea.vmem %s5, %s9999
        $region56: #{tpu_custom_call.1} parent=51 // pred_fallthru
          _
      $region52: #{tpu_custom_call.1} parent=5 // pred_fallthru
        _
    $region6: #{tpu_custom_call.1} parent=1 // loop_footer
      %s18 = sadd.s32 1, %s14
    $region7: #{tpu_custom_call.1} parent=1 // loop_footer_branch
      %13 = sbr.rel target = $region3
    $region8: #{tpu_custom_call.1} parent=1 // loop_exit
      _
    %10001 = vsyncpa [#allocation3], 1
    %s10002 = scalar_lea.sflag [#allocation3], 1
    %10003 = vsyncpa %s10002, 1

</llo_original>
